<compile_context>
chip_gen: v6e
topology: v6e:2x2x1
jax: 0.10.0
libtpu: 0.0.40
codegen_flags: <defaults>
</compile_context>

<pallas_src>
import math

import jax
import jax.numpy as jnp
from jax.experimental import pallas as pl
from jax.experimental.pallas import tpu as pltpu


# ----------------------------------------------------------------------------
# VMEM budget (per-generation): 3/4 of physical, capped at 96 MiB
# ----------------------------------------------------------------------------
try:
    _VMEM_PHYS = int(getattr(pltpu.get_tpu_info(), "vmem_capacity_bytes",
                             64 * 1024 * 1024))
except Exception:  # pragma: no cover - conservative fallback
    _VMEM_PHYS = 64 * 1024 * 1024
_VMEM_LIMIT = max(32 * 1024 * 1024, min(_VMEM_PHYS * 3 // 4, 96 * 1024 * 1024))


# ----------------------------------------------------------------------------
# numerically-stable elementwise helpers (VPU / EUP, f32)
# ----------------------------------------------------------------------------
def _sigmoid(y):
    z = jnp.exp(-jnp.abs(y))
    return jnp.where(y >= 0.0, 1.0 / (1.0 + z), z / (1.0 + z))


def _silu(y):
    return y * _sigmoid(y)


def _elu1(y):
    # ELU(alpha=1) + 1:  y + 1 for y > 0, exp(y) for y <= 0
    return jnp.where(y > 0.0, y + 1.0, jnp.exp(jnp.minimum(y, 0.0)))


def _gelu_tanh(y):
    # TODO(synk): PyTorch nn.GELU() is exact-erf; erf lowering in Mosaic is not
    # guaranteed, so the tanh approximation is used (max abs err ~1e-3).
    c = math.sqrt(2.0 / math.pi)
    return 0.5 * y * (1.0 + jnp.tanh(c * (y + 0.044715 * y * y * y)))


def _layernorm(x, g, b):
    mu = jnp.mean(x, axis=-1, keepdims=True)
    var = jnp.mean(jnp.square(x - mu), axis=-1, keepdims=True)
    return (x - mu) * jax.lax.rsqrt(var + 1e-5) * g + b


# ----------------------------------------------------------------------------
# spec / tiling helpers
# ----------------------------------------------------------------------------
def _row_tile(M, row_bytes, budget=None):
    """Largest row tile (<=1024, multiple of 8) dividing M that fits the budget."""
    if budget is None:
        budget = max(8 * 1024 * 1024, _VMEM_LIMIT // 4)
    for t in (1024, 512, 256, 128, 64, 32, 16, 8):
        if M % t == 0 and 2 * t * row_bytes <= budget:
            return t
    return M   # fallback: whole extent (demo shapes always divide)


def _full_spec(shape):
    nd = len(shape)
    return pl.BlockSpec(shape, lambda *_: (0,) * nd)


def _compiler_params(parallel=True):
    sem = "parallel" if parallel else "arbitrary"
    return pltpu.CompilerParams(dimension_semantics=(sem,),
                                vmem_limit_bytes=_VMEM_LIMIT)


# ----------------------------------------------------------------------------
# depthwise 3x3 conv on the flattened (L, C) layout
#   three (L + 2W, C) f32 scratches hold x at row offsets W, W+1, W-1 so every
#   tap is an aligned slice at offset kh*W; column wrap handled by (L,1) masks.
# ----------------------------------------------------------------------------
def _fill_pads(x, pad_c, pad_r, pad_l, L, W):
    pad_c[W:W + L] = x          # pad_c[p] = x[p - W]      (column j   tap)
    pad_r[W + 1:W + L + 1] = x  # pad_r[p] = x[p - W - 1]  (column j-1 tap)
    pad_l[W - 1:W + L - 1] = x  # pad_l[p] = x[p - W + 1]  (column j+1 tap)


def _dw3x3_flat(pad_c, pad_r, pad_l, w9, b, m0, mW, L, W):
    # w9 is (9, C): w9[3*kh + kw] is the (kh, kw) tap.  m0 / mW zero the
    # wrapped j-1 / j+1 taps at j == 0 / j == W-1.
    t0 = t1 = t2 = None
    for kh in range(3):
        r = kh * W
        a0 = pad_r[r:r + L] * w9[3 * kh + 0:3 * kh + 1, :]
        a1 = pad_c[r:r + L] * w9[3 * kh + 1:3 * kh + 2, :]
        a2 = pad_l[r:r + L] * w9[3 * kh + 2:3 * kh + 3, :]
        t0 = a0 if t0 is None else t0 + a0
        t1 = a1 if t1 is None else t1 + a1
        t2 = a2 if t2 is None else t2 + a2
    return t0 * m0 + t1 + t2 * mW + b


# ----------------------------------------------------------------------------
# kernel 1: cpe1 depthwise conv + residual
# ----------------------------------------------------------------------------
def _make_cpe_kernel(L, W, C):
    def kernel(x_ref, m0_ref, mW_ref, w_ref, b_ref, o_ref, pad_c, pad_r, pad_l):
        @pl.when(pl.program_id(0) == 0)
        def _init():           # borders stay zero; interiors overwritten each step
            pad_c[...] = jnp.zeros_like(pad_c)
            pad_r[...] = jnp.zeros_like(pad_r)
            pad_l[...] = jnp.zeros_like(pad_l)

        x = x_ref[0].astype(jnp.float32)
        _fill_pads(x, pad_c, pad_r, pad_l, L, W)
        conv = _dw3x3_flat(pad_c, pad_r, pad_l, w_ref[...], b_ref[...],
                           m0_ref[...], mW_ref[...], L, W)
        o_ref[0] = (x + conv).astype(o_ref.dtype)
    return kernel


def cpe_conv_residual(x, m0, mW, w9, b, W):
    B, L, C = x.shape
    tok = pl.BlockSpec((1, L, C), lambda i: (i, 0, 0))
    return pl.pallas_call(
        _make_cpe_kernel(L, W, C),
        out_shape=jax.ShapeDtypeStruct((B, L, C), jnp.bfloat16),
        grid=(B,),
        in_specs=[tok, _full_spec(m0.shape), _full_spec(mW.shape),
                  _full_spec(w9.shape), _full_spec(b.shape)],
        out_specs=tok,
        scratch_shapes=[pltpu.VMEM((L + 2 * W, C), jnp.float32),
                        pltpu.VMEM((L + 2 * W, C), jnp.float32),
                        pltpu.VMEM((L + 2 * W, C), jnp.float32)],
        compiler_params=_compiler_params(parallel=False),
    )(x, m0, mW, w9, b)


# ----------------------------------------------------------------------------
# kernel 2: norm1 -> (act_proj + SiLU, in_proj)
# ----------------------------------------------------------------------------
def _norm_dual_proj_kernel(x_ref, g_ref, b_ref, aw_ref, ab_ref, iw_ref, ib_ref,
                           act_ref, xi_ref):
    x = x_ref[...].astype(jnp.float32)
    xn = _layernorm(x, g_ref[...], b_ref[...])
    xnb = xn.astype(jnp.bfloat16)
    a = jnp.dot(xnb, aw_ref[...], preferred_element_type=jnp.float32) + ab_ref[...]
    act_ref[...] = _silu(a).astype(act_ref.dtype)
    xi = jnp.dot(xnb, iw_ref[...], preferred_element_type=jnp.float32) + ib_ref[...]
    xi_ref[...] = xi.astype(xi_ref.dtype)


def norm1_dual_proj(x, g, b, aw, ab, iw, ib):
    M, C = x.shape
    TM = _row_tile(M, row_bytes=16 * C)
    row = pl.BlockSpec((TM, C), lambda i: (i, 0))
    return pl.pallas_call(
        _norm_dual_proj_kernel,
        out_shape=(jax.ShapeDtypeStruct((M, C), jnp.bfloat16),
                   jax.ShapeDtypeStruct((M, C), jnp.bfloat16)),
        grid=(M // TM,),
        in_specs=[row, _full_spec(g.shape), _full_spec(b.shape),
                  _full_spec(aw.shape), _full_spec(ab.shape),
                  _full_spec(iw.shape), _full_spec(ib.shape)],
        out_specs=(row, row),
        compiler_params=_compiler_params(parallel=True),
    )(x, g, b, aw, ab, iw, ib)


# ----------------------------------------------------------------------------
# kernel 3: fused attention block
#   dwc+SiLU -> v; LePE(v); q/k proj + ELU+1; RoPE; block-diagonal-KV linear
#   attention; + LePE; * act_res; out_proj; + shortcut; cpe2 conv + residual
# ----------------------------------------------------------------------------
def _make_attn_kernel(L, W, C, num_heads):
    d = C // num_heads
    inv_n = 1.0 / float(L)

    def kernel(xi_ref, act_ref, short_ref, m0_ref, mW_ref,
               dwc_w_ref, dwc_b_ref, lepe_w_ref, lepe_b_ref,
               qw_ref, qb_ref, kw_ref, kb_ref, cos_ref, sin_ref, ones_ref,
               ow_ref, ob_ref, cpe2_w_ref, cpe2_b_ref,
               o_ref, pad_c, pad_r, pad_l, kv_ref):
        @pl.when(pl.program_id(0) == 0)
        def _init():
            pad_c[...] = jnp.zeros_like(pad_c)
            pad_r[...] = jnp.zeros_like(pad_r)
            pad_l[...] = jnp.zeros_like(pad_l)
            kv_ref[...] = jnp.zeros_like(kv_ref)     # off-diagonal stays zero

        m0 = m0_ref[...]
        mW = mW_ref[...]

        # --- dwc depthwise conv + SiLU  ->  v (the attention input) ---------
        xi = xi_ref[0].astype(jnp.float32)
        _fill_pads(xi, pad_c, pad_r, pad_l, L, W)
        v = _silu(_dw3x3_flat(pad_c, pad_r, pad_l, dwc_w_ref[...], dwc_b_ref[...],
                              m0, mW, L, W))

        # --- LePE(v) depthwise conv (scratches reused) -----------------------
        _fill_pads(v, pad_c, pad_r, pad_l, L, W)
        lepe = _dw3x3_flat(pad_c, pad_r, pad_l, lepe_w_ref[...], lepe_b_ref[...],
                           m0, mW, L, W)

        # --- q / k projections + ELU + 1 -------------------------------------
        vb = v.astype(jnp.bfloat16)
        q = _elu1(jnp.dot(vb, qw_ref[...], preferred_element_type=jnp.float32)
                  + qb_ref[...])
        k = _elu1(jnp.dot(vb, kw_ref[...], preferred_element_type=jnp.float32)
                  + kb_ref[...])

        # --- RoPE (interleaved pairs; sign folded into sin table) ------------
        cos_f = cos_ref[...]
        sin_f = sin_ref[...]
        lane = jax.lax.broadcasted_iota(jnp.int32, (L, C), 1)
        even = (lane % 2) == 0                       # hoisted, reused for q and k

        def rope(t):
            nxt = pltpu.roll(t, shift=C - 1, axis=1)   # fetch t[:, c+1]
            prv = pltpu.roll(t, shift=1, axis=1)       # fetch t[:, c-1]
            return t * cos_f + jnp.where(even, nxt, prv) * sin_f

        q_rope = rope(q)
        k_rope = rope(k)

        # --- z = 1 / (q . mean_L(k) per head + eps), broadcast per head ------
        kmean = jnp.mean(k, axis=0, keepdims=True)                       # (1, C)
        denom = jnp.dot(q * kmean, ones_ref[...],
                        preferred_element_type=jnp.float32) + 1e-6       # (L, C)
        z = pl.reciprocal(denom, approx=True)

        # --- block-diagonal kv: per-head (d, d) blocks of (k_rope^T v) / n ---
        krb = k_rope.astype(jnp.bfloat16)
        for h in range(num_heads):                    # static unroll over heads
            sl = slice(h * d, (h + 1) * d)
            kv_h = jax.lax.dot_general(krb[:, sl], vb[:, sl],
                                       (((0,), (0,)), ((), ())),
                                       preferred_element_type=jnp.float32) * inv_n
            kv_ref[sl, sl] = kv_h

        # --- single full-width q-side matmul over the block-diagonal kv ------
        attn = jnp.dot(q_rope.astype(jnp.bfloat16), kv_ref[...].astype(jnp.bfloat16),
                       preferred_element_type=jnp.float32) * z + lepe

        # --- gate, out_proj, shortcut residual --------------------------------
        gated = (attn * act_ref[0].astype(jnp.float32)).astype(jnp.bfloat16)
        x2 = short_ref[0].astype(jnp.float32) + (
            jnp.dot(gated, ow_ref[...], preferred_element_type=jnp.float32)
            + ob_ref[...])

        # --- cpe2 depthwise conv + residual (fused epilogue) ------------------
        _fill_pads(x2, pad_c, pad_r, pad_l, L, W)
        x3 = x2 + _dw3x3_flat(pad_c, pad_r, pad_l, cpe2_w_ref[...], cpe2_b_ref[...],
                              m0, mW, L, W)
        o_ref[0] = x3.astype(o_ref.dtype)
    return kernel


def attention_block(xi, act_res, shortcut, m0, mW, p, cos_f, sin_f, ones_blk,
                    num_heads, W):
    B, L, C = xi.shape
    tok = pl.BlockSpec((1, L, C), lambda i: (i, 0, 0))
    return pl.pallas_call(
        _make_attn_kernel(L, W, C, num_heads),
        out_shape=jax.ShapeDtypeStruct((B, L, C), jnp.bfloat16),
        grid=(B,),
        in_specs=[tok, tok, tok,
                  _full_spec(m0.shape), _full_spec(mW.shape),
                  _full_spec(p["dwc_w"].shape), _full_spec(p["dwc_b"].shape),
                  _full_spec(p["lepe_w"].shape), _full_spec(p["lepe_b"].shape),
                  _full_spec(p["q_w"].shape), _full_spec(p["q_b"].shape),
                  _full_spec(p["k_w"].shape), _full_spec(p["k_b"].shape),
                  _full_spec(cos_f.shape), _full_spec(sin_f.shape),
                  _full_spec(ones_blk.shape),
                  _full_spec(p["out_proj_w"].shape), _full_spec(p["out_proj_b"].shape),
                  _full_spec(p["cpe2_w"].shape), _full_spec(p["cpe2_b"].shape)],
        out_specs=tok,
        scratch_shapes=[pltpu.VMEM((L + 2 * W, C), jnp.float32),
                        pltpu.VMEM((L + 2 * W, C), jnp.float32),
                        pltpu.VMEM((L + 2 * W, C), jnp.float32),
                        pltpu.VMEM((C, C), jnp.float32)],
        compiler_params=_compiler_params(parallel=False),
    )(xi, act_res, shortcut, m0, mW,
      p["dwc_w"], p["dwc_b"], p["lepe_w"], p["lepe_b"],
      p["q_w"], p["q_b"], p["k_w"], p["k_b"],
      cos_f, sin_f, ones_blk,
      p["out_proj_w"], p["out_proj_b"], p["cpe2_w"], p["cpe2_b"])


# ----------------------------------------------------------------------------
# kernel 4: MLP (norm2 + fc1 + GELU + fc2 + residual; hidden stays in VMEM)
# ----------------------------------------------------------------------------
def _mlp_kernel(x_ref, g_ref, b_ref, w1_ref, b1_ref, w2_ref, b2_ref, o_ref):
    x = x_ref[...].astype(jnp.float32)
    xn = _layernorm(x, g_ref[...], b_ref[...])
    h = jnp.dot(xn.astype(jnp.bfloat16), w1_ref[...],
                preferred_element_type=jnp.float32) + b1_ref[...]
    h = _gelu_tanh(h)
    y = jnp.dot(h.astype(jnp.bfloat16), w2_ref[...],
                preferred_element_type=jnp.float32) + b2_ref[...]
    o_ref[...] = (x + y).astype(o_ref.dtype)


def mlp_block(x, g, b, w1, b1, w2, b2):
    M, C = x.shape
    Hd = w1.shape[1]
    TM = _row_tile(M, row_bytes=12 * C + 6 * Hd)
    return pl.pallas_call(
        _mlp_kernel,
        out_shape=jax.ShapeDtypeStruct((M, C), jnp.float32),
        grid=(M // TM,),
        in_specs=[pl.BlockSpec((TM, C), lambda i: (i, 0)),
                  _full_spec(g.shape), _full_spec(b.shape),
                  _full_spec(w1.shape), _full_spec(b1.shape),
                  _full_spec(w2.shape), _full_spec(b2.shape)],
        out_specs=pl.BlockSpec((TM, C), lambda i: (i, 0)),
        compiler_params=_compiler_params(parallel=True),
    )(x, g, b, w1, b1, w2, b2)


# ----------------------------------------------------------------------------
# MLLABlock forward
# ----------------------------------------------------------------------------
def mlla_block_forward(x, params, H, W, num_heads, rope_cos_f, rope_sin_f):
    B, L, C = x.shape
    assert L == H * W, "input feature has wrong size"
    assert C % num_heads == 0 and (C // num_heads) % 2 == 0 and C % 4 == 0
    p = params

    # column-wrap masks for the flattened depthwise convs and the per-head
    # block-ones matrix (z denominator broadcast / block-diagonal attention).
    j = jnp.arange(L, dtype=jnp.int32) % W
    m0 = (j != 0).astype(jnp.float32)[:, None]       # (L, 1): j-1 tap valid
    mW = (j != W - 1).astype(jnp.float32)[:, None]   # (L, 1): j+1 tap valid
    d = C // num_heads
    hid = jnp.arange(C, dtype=jnp.int32) // d
    ones_blk = (hid[:, None] == hid[None, :]).astype(jnp.float32)     # (C, C)

    # 1. cpe1 depthwise conv + residual
    x1 = cpe_conv_residual(x, m0, mW, p["cpe1_w"], p["cpe1_b"], W)

    # 2. norm1 -> act_proj(+SiLU) and in_proj (one LayerNorm, two MXU matmuls)
    act_res, xi = norm1_dual_proj(x1.reshape(B * L, C), p["norm1_g"], p["norm1_b"],
                                  p["act_proj_w"], p["act_proj_b"],
                                  p["in_proj_w"], p["in_proj_b"])

    # 3. fused attention block (dwc+SiLU, LePE, qk+ELU+RoPE, block-diag linear
    #    attention, gating, out_proj + shortcut, cpe2 + residual)
    x3 = attention_block(xi.reshape(B, L, C), act_res.reshape(B, L, C), x1,
                         m0, mW, p, rope_cos_f, rope_sin_f, ones_blk,
                         num_heads, W)

    # 4. MLP: norm2 + fc1 + GELU + fc2 + residual (hidden never leaves VMEM)
    out = mlp_block(x3.reshape(B * L, C), p["norm2_g"], p["norm2_b"],
                    p["fc1_w"], p["fc1_b"], p["fc2_w"], p["fc2_b"])
    return out.reshape(B, L, C)


# ----------------------------------------------------------------------------
# deterministic parameter init + RoPE tables (interleaved, full channel width)
# ----------------------------------------------------------------------------
def init_params(key, C, hidden):
    ks = jax.random.split(key, 10)

    def lin(k, fan_in, fan_out):
        kw, kb = jax.random.split(k)
        w = (jax.random.normal(kw, (fan_in, fan_out), jnp.float32)
             / math.sqrt(fan_in)).astype(jnp.bfloat16)
        b = jax.random.normal(kb, (1, fan_out), jnp.float32) * 0.02
        return w, b

    def dwc(k):
        kw, kb = jax.random.split(k)
        w = jax.random.normal(kw, (9, C), jnp.float32) / 3.0
        b = jax.random.normal(kb, (1, C), jnp.float32) * 0.02
        return w, b

    p = {}
    p["cpe1_w"], p["cpe1_b"] = dwc(ks[0])
    p["norm1_g"], p["norm1_b"] = jnp.ones((1, C), jnp.float32), jnp.zeros((1, C), jnp.float32)
    p["in_proj_w"], p["in_proj_b"] = lin(ks[1], C, C)
    p["act_proj_w"], p["act_proj_b"] = lin(ks[2], C, C)
    p["dwc_w"], p["dwc_b"] = dwc(ks[3])
    qk_w, qk_b = lin(ks[4], C, 2 * C)                 # PyTorch qk Linear, split
    p["q_w"], p["k_w"] = qk_w[:, :C], qk_w[:, C:]
    p["q_b"], p["k_b"] = qk_b[:, :C], qk_b[:, C:]
    p["lepe_w"], p["lepe_b"] = dwc(ks[5])
    p["out_proj_w"], p["out_proj_b"] = lin(ks[6], C, C)
    p["cpe2_w"], p["cpe2_b"] = dwc(ks[7])
    p["norm2_g"], p["norm2_b"] = jnp.ones((1, C), jnp.float32), jnp.zeros((1, C), jnp.float32)
    p["fc1_w"], p["fc1_b"] = lin(ks[8], C, hidden)
    p["fc2_w"], p["fc2_b"] = lin(ks[9], hidden, C)
    return p


def rope_tables(H, W, C, base=10000.0):
    # interleaved full-width tables so in-kernel RoPE is: q*cos_f + pair_swap(q)*sin_f
    k_max = C // 4                                    # C // (2 * num_spatial_dims)
    theta = 1.0 / (base ** (jnp.arange(k_max, dtype=jnp.float32) / k_max))
    hh = jnp.arange(H, dtype=jnp.float32)
    ww = jnp.arange(W, dtype=jnp.float32)
    ang_h = jnp.broadcast_to(hh[:, None, None] * theta[None, None, :], (H, W, k_max))
    ang_w = jnp.broadcast_to(ww[None, :, None] * theta[None, None, :], (H, W, k_max))
    angles = jnp.concatenate([ang_h, ang_w], axis=-1).reshape(H * W, C // 2)
    cos_f = jnp.repeat(jnp.cos(angles), 2, axis=-1)                    # cos_j at 2j, 2j+1
    sign = jnp.tile(jnp.array([-1.0, 1.0], jnp.float32), C // 2)       # -sin at 2j, +sin at 2j+1
    sin_f = jnp.repeat(jnp.sin(angles), 2, axis=-1) * sign
    return cos_f, sin_f


# ----------------------------------------------------------------------------
if __name__ == "__main__":
    # small but lane-dense demo (C = 128 fills the 128-wide lane dimension)
    B, H, W, C, num_heads = 2, 8, 8, 128, 4
    L = H * W
    mlp_ratio = 4.0
    hidden = int(C * mlp_ratio)

    key = jax.random.PRNGKey(0)
    kx, kp = jax.random.split(key)
    x = jax.random.normal(kx, (B, L, C), jnp.float32)
    params = init_params(kp, C, hidden)
    rope_cos_f, rope_sin_f = rope_tables(H, W, C)

    fwd = jax.jit(mlla_block_forward, static_argnums=(2, 3, 4))
    out = fwd(x, params, H, W, num_heads, rope_cos_f, rope_sin_f)
    out = jax.block_until_ready(out)

    assert out.shape == (B, L, C), out.shape
    assert bool(jnp.all(jnp.isfinite(out)))
    print("KERNEL_OK")
</pallas_src>

<mosaic_0001>
module attributes {stable_mosaic.version = 11 : i64} {
  func.func @kernel(%arg0: i32, %arg1: memref<1x64x128xf32, #tpu.memory_space<vmem>>, %arg2: memref<64x1xf32, #tpu.memory_space<vmem>>, %arg3: memref<64x1xf32, #tpu.memory_space<vmem>>, %arg4: memref<9x128xf32, #tpu.memory_space<vmem>>, %arg5: memref<1x128xf32, #tpu.memory_space<vmem>>, %arg6: memref<1x64x128xbf16, #tpu.memory_space<vmem>>, %arg7: memref<80x128xf32, #tpu.memory_space<vmem>>, %arg8: memref<80x128xf32, #tpu.memory_space<vmem>>, %arg9: memref<80x128xf32, #tpu.memory_space<vmem>>) attributes {dimension_semantics = [#tpu.dimension_semantics<arbitrary>], iteration_bounds = array<i64: 2>, scalar_prefetch = 0 : i64, scratch_operands = 3 : i64, tpu.core_type = #tpu.core_type<tc>, window_params = [{transform_indices = @transform_0, window_bounds = array<i64: 1, 64, 128>}, {pipeline_mode = #tpu.pipeline_mode<synchronous>, transform_indices = @transform_1, window_bounds = array<i64: 64, 1>}, {pipeline_mode = #tpu.pipeline_mode<synchronous>, transform_indices = @transform_2, window_bounds = array<i64: 64, 1>}, {pipeline_mode = #tpu.pipeline_mode<synchronous>, transform_indices = @transform_3, window_bounds = array<i64: 9, 128>}, {pipeline_mode = #tpu.pipeline_mode<synchronous>, transform_indices = @transform_4, window_bounds = array<i64: 1, 128>}, {transform_indices = @transform_5, window_bounds = array<i64: 1, 64, 128>}]} {
    %c0_i32 = arith.constant 0 : i32
    %0 = arith.cmpi eq, %arg0, %c0_i32 : i32
    %1 = arith.extui %0 : i1 to i32
    %c0_i32_0 = arith.constant 0 : i32
    %2 = arith.cmpi ne, %1, %c0_i32_0 : i32
    scf.if %2 {
      %cst = arith.constant 0.000000e+00 : f32
      %67 = vector.broadcast %cst : f32 to vector<80x128xf32>
      %c0_34 = arith.constant 0 : index
      %c0_35 = arith.constant 0 : index
      %68 = vector.load %arg7[%c0_34, %c0_35] : memref<80x128xf32, #tpu.memory_space<vmem>>, vector<80x128xf32>
      tpu.vector_store %arg7[%c0_34, %c0_35], %67 {strides = array<i32>} : memref<80x128xf32, #tpu.memory_space<vmem>>, vector<80x128xf32>,
      %cst_36 = arith.constant 0.000000e+00 : f32
      %69 = vector.broadcast %cst_36 : f32 to vector<80x128xf32>
      %c0_37 = arith.constant 0 : index
      %c0_38 = arith.constant 0 : index
      %70 = vector.load %arg8[%c0_37, %c0_38] : memref<80x128xf32, #tpu.memory_space<vmem>>, vector<80x128xf32>
      tpu.vector_store %arg8[%c0_37, %c0_38], %69 {strides = array<i32>} : memref<80x128xf32, #tpu.memory_space<vmem>>, vector<80x128xf32>,
      %cst_39 = arith.constant 0.000000e+00 : f32
      %71 = vector.broadcast %cst_39 : f32 to vector<80x128xf32>
      %c0_40 = arith.constant 0 : index
      %c0_41 = arith.constant 0 : index
      %72 = vector.load %arg9[%c0_40, %c0_41] : memref<80x128xf32, #tpu.memory_space<vmem>>, vector<80x128xf32>
      tpu.vector_store %arg9[%c0_40, %c0_41], %71 {strides = array<i32>} : memref<80x128xf32, #tpu.memory_space<vmem>>, vector<80x128xf32>,
    } else {
    }
    %c0 = arith.constant 0 : index
    %c0_1 = arith.constant 0 : index
    %c0_2 = arith.constant 0 : index
    %3 = vector.load %arg1[%c0, %c0_1, %c0_2] : memref<1x64x128xf32, #tpu.memory_space<vmem>>, vector<1x64x128xf32>
    %4 = vector.shape_cast %3 : vector<1x64x128xf32> to vector<64x128xf32>
    %c8 = arith.constant 8 : index
    %c0_3 = arith.constant 0 : index
    %5 = vector.load %arg7[%c8, %c0_3] : memref<80x128xf32, #tpu.memory_space<vmem>>, vector<64x128xf32>
    tpu.vector_store %arg7[%c8, %c0_3], %4 {strides = array<i32>} : memref<80x128xf32, #tpu.memory_space<vmem>>, vector<64x128xf32>,
    %c9 = arith.constant 9 : index
    %c0_4 = arith.constant 0 : index
    %6 = vector.load %arg8[%c9, %c0_4] : memref<80x128xf32, #tpu.memory_space<vmem>>, vector<64x128xf32>
    tpu.vector_store %arg8[%c9, %c0_4], %4 {strides = array<i32>} : memref<80x128xf32, #tpu.memory_space<vmem>>, vector<64x128xf32>,
    %c7 = arith.constant 7 : index
    %c0_5 = arith.constant 0 : index
    %7 = vector.load %arg9[%c7, %c0_5] : memref<80x128xf32, #tpu.memory_space<vmem>>, vector<64x128xf32>
    tpu.vector_store %arg9[%c7, %c0_5], %4 {strides = array<i32>} : memref<80x128xf32, #tpu.memory_space<vmem>>, vector<64x128xf32>,
    %c0_6 = arith.constant 0 : index
    %c0_7 = arith.constant 0 : index
    %8 = vector.load %arg4[%c0_6, %c0_7] : memref<9x128xf32, #tpu.memory_space<vmem>>, vector<9x128xf32>
    %c0_8 = arith.constant 0 : index
    %c0_9 = arith.constant 0 : index
    %9 = vector.load %arg5[%c0_8, %c0_9] : memref<1x128xf32, #tpu.memory_space<vmem>>, vector<1x128xf32>
    %c0_10 = arith.constant 0 : index
    %c0_11 = arith.constant 0 : index
    %10 = vector.load %arg2[%c0_10, %c0_11] : memref<64x1xf32, #tpu.memory_space<vmem>>, vector<64x1xf32>
    %c0_12 = arith.constant 0 : index
    %c0_13 = arith.constant 0 : index
    %11 = vector.load %arg3[%c0_12, %c0_13] : memref<64x1xf32, #tpu.memory_space<vmem>>, vector<64x1xf32>
    %c0_14 = arith.constant 0 : index
    %c0_15 = arith.constant 0 : index
    %12 = vector.load %arg8[%c0_14, %c0_15] : memref<80x128xf32, #tpu.memory_space<vmem>>, vector<64x128xf32>
    %13 = vector.extract_strided_slice %8 {offsets = [0, 0], sizes = [1, 128], strides = [1, 1]} : vector<9x128xf32> to vector<1x128xf32>
    %14 = vector.broadcast %13 : vector<1x128xf32> to vector<64x128xf32>
    %15 = arith.mulf %12, %14 : vector<64x128xf32>
    %c0_16 = arith.constant 0 : index
    %c0_17 = arith.constant 0 : index
    %16 = vector.load %arg7[%c0_16, %c0_17] : memref<80x128xf32, #tpu.memory_space<vmem>>, vector<64x128xf32>
    %17 = vector.extract_strided_slice %8 {offsets = [1, 0], sizes = [1, 128], strides = [1, 1]} : vector<9x128xf32> to vector<1x128xf32>
    %18 = vector.broadcast %17 : vector<1x128xf32> to vector<64x128xf32>
    %19 = arith.mulf %16, %18 : vector<64x128xf32>
    %c0_18 = arith.constant 0 : index
    %c0_19 = arith.constant 0 : index
    %20 = vector.load %arg9[%c0_18, %c0_19] : memref<80x128xf32, #tpu.memory_space<vmem>>, vector<64x128xf32>
    %21 = vector.extract_strided_slice %8 {offsets = [2, 0], sizes = [1, 128], strides = [1, 1]} : vector<9x128xf32> to vector<1x128xf32>
    %22 = vector.broadcast %21 : vector<1x128xf32> to vector<64x128xf32>
    %23 = arith.mulf %20, %22 : vector<64x128xf32>
    %c8_20 = arith.constant 8 : index
    %c0_21 = arith.constant 0 : index
    %24 = vector.load %arg8[%c8_20, %c0_21] : memref<80x128xf32, #tpu.memory_space<vmem>>, vector<64x128xf32>
    %25 = vector.extract_strided_slice %8 {offsets = [3, 0], sizes = [1, 128], strides = [1, 1]} : vector<9x128xf32> to vector<1x128xf32>
    %26 = vector.broadcast %25 : vector<1x128xf32> to vector<64x128xf32>
    %27 = arith.mulf %24, %26 : vector<64x128xf32>
    %c8_22 = arith.constant 8 : index
    %c0_23 = arith.constant 0 : index
    %28 = vector.load %arg7[%c8_22, %c0_23] : memref<80x128xf32, #tpu.memory_space<vmem>>, vector<64x128xf32>
    %29 = vector.extract_strided_slice %8 {offsets = [4, 0], sizes = [1, 128], strides = [1, 1]} : vector<9x128xf32> to vector<1x128xf32>
    %30 = vector.broadcast %29 : vector<1x128xf32> to vector<64x128xf32>
    %31 = arith.mulf %28, %30 : vector<64x128xf32>
    %c8_24 = arith.constant 8 : index
    %c0_25 = arith.constant 0 : index
    %32 = vector.load %arg9[%c8_24, %c0_25] : memref<80x128xf32, #tpu.memory_space<vmem>>, vector<64x128xf32>
    %33 = vector.extract_strided_slice %8 {offsets = [5, 0], sizes = [1, 128], strides = [1, 1]} : vector<9x128xf32> to vector<1x128xf32>
    %34 = vector.broadcast %33 : vector<1x128xf32> to vector<64x128xf32>
    %35 = arith.mulf %32, %34 : vector<64x128xf32>
    %36 = arith.addf %15, %27 : vector<64x128xf32>
    %37 = arith.addf %19, %31 : vector<64x128xf32>
    %38 = arith.addf %23, %35 : vector<64x128xf32>
    %c16 = arith.constant 16 : index
    %c0_26 = arith.constant 0 : index
    %39 = vector.load %arg8[%c16, %c0_26] : memref<80x128xf32, #tpu.memory_space<vmem>>, vector<64x128xf32>
    %40 = vector.extract_strided_slice %8 {offsets = [6, 0], sizes = [1, 128], strides = [1, 1]} : vector<9x128xf32> to vector<1x128xf32>
    %41 = vector.broadcast %40 : vector<1x128xf32> to vector<64x128xf32>
    %42 = arith.mulf %39, %41 : vector<64x128xf32>
    %c16_27 = arith.constant 16 : index
    %c0_28 = arith.constant 0 : index
    %43 = vector.load %arg7[%c16_27, %c0_28] : memref<80x128xf32, #tpu.memory_space<vmem>>, vector<64x128xf32>
    %44 = vector.extract_strided_slice %8 {offsets = [7, 0], sizes = [1, 128], strides = [1, 1]} : vector<9x128xf32> to vector<1x128xf32>
    %45 = vector.broadcast %44 : vector<1x128xf32> to vector<64x128xf32>
    %46 = arith.mulf %43, %45 : vector<64x128xf32>
    %c16_29 = arith.constant 16 : index
    %c0_30 = arith.constant 0 : index
    %47 = vector.load %arg9[%c16_29, %c0_30] : memref<80x128xf32, #tpu.memory_space<vmem>>, vector<64x128xf32>
    %48 = vector.extract_strided_slice %8 {offsets = [8, 0], sizes = [1, 128], strides = [1, 1]} : vector<9x128xf32> to vector<1x128xf32>
    %49 = vector.broadcast %48 : vector<1x128xf32> to vector<64x128xf32>
    %50 = arith.mulf %47, %49 : vector<64x128xf32>
    %51 = arith.addf %36, %42 : vector<64x128xf32>
    %52 = arith.addf %37, %46 : vector<64x128xf32>
    %53 = arith.addf %38, %50 : vector<64x128xf32>
    %54 = vector.broadcast %10 : vector<64x1xf32> to vector<64x128xf32>
    %55 = arith.mulf %51, %54 : vector<64x128xf32>
    %56 = arith.addf %55, %52 : vector<64x128xf32>
    %57 = vector.broadcast %11 : vector<64x1xf32> to vector<64x128xf32>
    %58 = arith.mulf %53, %57 : vector<64x128xf32>
    %59 = arith.addf %56, %58 : vector<64x128xf32>
    %60 = vector.broadcast %9 : vector<1x128xf32> to vector<64x128xf32>
    %61 = arith.addf %59, %60 : vector<64x128xf32>
    %62 = arith.addf %4, %61 : vector<64x128xf32>
    %63 = arith.truncf %62 : vector<64x128xf32> to vector<64x128xbf16>
    %c0_31 = arith.constant 0 : index
    %c0_32 = arith.constant 0 : index
    %c0_33 = arith.constant 0 : index
    %64 = vector.load %arg6[%c0_31, %c0_32, %c0_33] : memref<1x64x128xbf16, #tpu.memory_space<vmem>>, vector<1x64x128xbf16>
    %65 = vector.shape_cast %64 : vector<1x64x128xbf16> to vector<64x128xbf16>
    %66 = vector.shape_cast %63 : vector<64x128xbf16> to vector<1x64x128xbf16>
    tpu.vector_store %arg6[%c0_31, %c0_32, %c0_33], %66 {strides = array<i32>} : memref<1x64x128xbf16, #tpu.memory_space<vmem>>, vector<1x64x128xbf16>,
    return
  }
  func.func @transform_0(%arg0: i32) -> (i32, i32, i32) {
    %c0_i32 = arith.constant 0 : i32
    %c0_i32_0 = arith.constant 0 : i32
    %c0_i32_1 = arith.constant 0 : i32
    return %arg0, %c0_i32, %c0_i32_0 : i32, i32, i32
  }
  func.func @transform_1(%arg0: i32) -> (i32, i32) {
    %c0_i32 = arith.constant 0 : i32
    %c0_i32_0 = arith.constant 0 : i32
    %c0_i32_1 = arith.constant 0 : i32
    return %c0_i32, %c0_i32_0 : i32, i32
  }
  func.func @transform_2(%arg0: i32) -> (i32, i32) {
    %c0_i32 = arith.constant 0 : i32
    %c0_i32_0 = arith.constant 0 : i32
    %c0_i32_1 = arith.constant 0 : i32
    return %c0_i32, %c0_i32_0 : i32, i32
  }
  func.func @transform_3(%arg0: i32) -> (i32, i32) {
    %c0_i32 = arith.constant 0 : i32
    %c0_i32_0 = arith.constant 0 : i32
    %c0_i32_1 = arith.constant 0 : i32
    return %c0_i32, %c0_i32_0 : i32, i32
  }
  func.func @transform_4(%arg0: i32) -> (i32, i32) {
    %c0_i32 = arith.constant 0 : i32
    %c0_i32_0 = arith.constant 0 : i32
    %c0_i32_1 = arith.constant 0 : i32
    return %c0_i32, %c0_i32_0 : i32, i32
  }
  func.func @transform_5(%arg0: i32) -> (i32, i32, i32) {
    %c0_i32 = arith.constant 0 : i32
    %c0_i32_0 = arith.constant 0 : i32
    %c0_i32_1 = arith.constant 0 : i32
    return %arg0, %c0_i32, %c0_i32_0 : i32, i32, i32
  }
}

module attributes {stable_mosaic.version = 11 : i64} {
  func.func @_norm_dual_proj_kernel(%arg0: i32, %arg1: memref<128x128xbf16, #tpu.memory_space<vmem>>, %arg2: memref<1x128xf32, #tpu.memory_space<vmem>>, %arg3: memref<1x128xf32, #tpu.memory_space<vmem>>, %arg4: memref<128x128xbf16, #tpu.memory_space<vmem>>, %arg5: memref<1x128xf32, #tpu.memory_space<vmem>>, %arg6: memref<128x128xbf16, #tpu.memory_space<vmem>>, %arg7: memref<1x128xf32, #tpu.memory_space<vmem>>, %arg8: memref<128x128xbf16, #tpu.memory_space<vmem>>, %arg9: memref<128x128xbf16, #tpu.memory_space<vmem>>) attributes {dimension_semantics = [#tpu.dimension_semantics<parallel>], iteration_bounds = array<i64: 1>, scalar_prefetch = 0 : i64, scratch_operands = 0 : i64, tpu.core_type = #tpu.core_type<tc>, window_params = [{transform_indices = @transform_0, window_bounds = array<i64: 128, 128>}, {pipeline_mode = #tpu.pipeline_mode<synchronous>, transform_indices = @transform_1, window_bounds = array<i64: 1, 128>}, {pipeline_mode = #tpu.pipeline_mode<synchronous>, transform_indices = @transform_2, window_bounds = array<i64: 1, 128>}, {pipeline_mode = #tpu.pipeline_mode<synchronous>, transform_indices = @transform_3, window_bounds = array<i64: 128, 128>}, {pipeline_mode = #tpu.pipeline_mode<synchronous>, transform_indices = @transform_4, window_bounds = array<i64: 1, 128>}, {pipeline_mode = #tpu.pipeline_mode<synchronous>, transform_indices = @transform_5, window_bounds = array<i64: 128, 128>}, {pipeline_mode = #tpu.pipeline_mode<synchronous>, transform_indices = @transform_6, window_bounds = array<i64: 1, 128>}, {transform_indices = @transform_7, window_bounds = array<i64: 128, 128>}, {transform_indices = @transform_8, window_bounds = array<i64: 128, 128>}]} {
    %c0 = arith.constant 0 : index
    %c0_0 = arith.constant 0 : index
    %0 = vector.load %arg1[%c0, %c0_0] : memref<128x128xbf16, #tpu.memory_space<vmem>>, vector<128x128xbf16>
    %1 = arith.extf %0 : vector<128x128xbf16> to vector<128x128xf32>
    %c0_1 = arith.constant 0 : index
    %c0_2 = arith.constant 0 : index
    %2 = vector.load %arg2[%c0_1, %c0_2] : memref<1x128xf32, #tpu.memory_space<vmem>>, vector<1x128xf32>
    %c0_3 = arith.constant 0 : index
    %c0_4 = arith.constant 0 : index
    %3 = vector.load %arg3[%c0_3, %c0_4] : memref<1x128xf32, #tpu.memory_space<vmem>>, vector<1x128xf32>
    %cst = arith.constant dense<0.000000e+00> : vector<128xf32>
    %4 = vector.multi_reduction <add>, %1, %cst [1] : vector<128x128xf32> to vector<128xf32>
    %5 = vector.shape_cast %4 : vector<128xf32> to vector<128x1xf32>
    %cst_5 = arith.constant 1.280000e+02 : f32
    %6 = vector.broadcast %cst_5 : f32 to vector<128x1xf32>
    %7 = arith.divf %5, %6 : vector<128x1xf32>
    %8 = vector.broadcast %7 : vector<128x1xf32> to vector<128x128xf32>
    %9 = arith.subf %1, %8 : vector<128x128xf32>
    %10 = arith.mulf %9, %9 : vector<128x128xf32>
    %cst_6 = arith.constant dense<0.000000e+00> : vector<128xf32>
    %11 = vector.multi_reduction <add>, %10, %cst_6 [1] : vector<128x128xf32> to vector<128xf32>
    %12 = vector.shape_cast %11 : vector<128xf32> to vector<128x1xf32>
    %cst_7 = arith.constant 1.280000e+02 : f32
    %13 = vector.broadcast %cst_7 : f32 to vector<128x1xf32>
    %14 = arith.divf %12, %13 : vector<128x1xf32>
    %15 = vector.broadcast %7 : vector<128x1xf32> to vector<128x128xf32>
    %16 = arith.subf %1, %15 : vector<128x128xf32>
    %cst_8 = arith.constant 9.99999974E-6 : f32
    %17 = vector.broadcast %cst_8 : f32 to vector<128x1xf32>
    %18 = arith.addf %14, %17 : vector<128x1xf32>
    %19 = math.rsqrt %18 : vector<128x1xf32>
    %20 = vector.broadcast %19 : vector<128x1xf32> to vector<128x128xf32>
    %21 = arith.mulf %16, %20 : vector<128x128xf32>
    %22 = vector.broadcast %2 : vector<1x128xf32> to vector<128x128xf32>
    %23 = arith.mulf %21, %22 : vector<128x128xf32>
    %24 = vector.broadcast %3 : vector<1x128xf32> to vector<128x128xf32>
    %25 = arith.addf %23, %24 : vector<128x128xf32>
    %26 = arith.truncf %25 : vector<128x128xf32> to vector<128x128xbf16>
    %c0_9 = arith.constant 0 : index
    %c0_10 = arith.constant 0 : index
    %27 = vector.load %arg4[%c0_9, %c0_10] : memref<128x128xbf16, #tpu.memory_space<vmem>>, vector<128x128xbf16>
    %cst_11 = arith.constant dense<0.000000e+00> : vector<128x128xf32>
    %28 = tpu.matmul %26, %27, %cst_11 {dimension_numbers = #tpu.dot_dimension_numbers<[1], [0], [0], [1], [0, 0, 1, 1], [], []>} : vector<128x128xbf16>, vector<128x128xbf16>, vector<128x128xf32> -> vector<128x128xf32>
    %c0_12 = arith.constant 0 : index
    %c0_13 = arith.constant 0 : index
    %29 = vector.load %arg5[%c0_12, %c0_13] : memref<1x128xf32, #tpu.memory_space<vmem>>, vector<1x128xf32>
    %30 = vector.broadcast %29 : vector<1x128xf32> to vector<128x128xf32>
    %31 = arith.addf %28, %30 : vector<128x128xf32>
    %32 = math.absf %31 : vector<128x128xf32>
    %cst_14 = arith.constant 0.000000e+00 : f32
    %33 = vector.broadcast %cst_14 : f32 to vector<128x128xf32>
    %34 = arith.subf %33, %32 : vector<128x128xf32>
    %35 = math.exp %34 : vector<128x128xf32>
    %cst_15 = arith.constant 0.000000e+00 : f32
    %36 = vector.broadcast %cst_15 : f32 to vector<128x128xf32>
    %37 = arith.cmpf oge, %31, %36 : vector<128x128xf32>
    %cst_16 = arith.constant 1.000000e+00 : f32
    %38 = vector.broadcast %cst_16 : f32 to vector<128x128xf32>
    %39 = arith.addf %38, %35 : vector<128x128xf32>
    %cst_17 = arith.constant 1.000000e+00 : f32
    %40 = vector.broadcast %cst_17 : f32 to vector<128x128xf32>
    %41 = arith.divf %40, %39 : vector<128x128xf32>
    %cst_18 = arith.constant 1.000000e+00 : f32
    %42 = vector.broadcast %cst_18 : f32 to vector<128x128xf32>
    %43 = arith.addf %42, %35 : vector<128x128xf32>
    %44 = arith.divf %35, %43 : vector<128x128xf32>
    %45 = arith.select %37, %41, %44 : vector<128x128xi1>, vector<128x128xf32>
    %46 = arith.mulf %31, %45 : vector<128x128xf32>
    %47 = arith.truncf %46 : vector<128x128xf32> to vector<128x128xbf16>
    %c0_19 = arith.constant 0 : index
    %c0_20 = arith.constant 0 : index
    %48 = vector.load %arg8[%c0_19, %c0_20] : memref<128x128xbf16, #tpu.memory_space<vmem>>, vector<128x128xbf16>
    tpu.vector_store %arg8[%c0_19, %c0_20], %47 {strides = array<i32>} : memref<128x128xbf16, #tpu.memory_space<vmem>>, vector<128x128xbf16>,
    %c0_21 = arith.constant 0 : index
    %c0_22 = arith.constant 0 : index
    %49 = vector.load %arg6[%c0_21, %c0_22] : memref<128x128xbf16, #tpu.memory_space<vmem>>, vector<128x128xbf16>
    %cst_23 = arith.constant dense<0.000000e+00> : vector<128x128xf32>
    %50 = tpu.matmul %26, %49, %cst_23 {dimension_numbers = #tpu.dot_dimension_numbers<[1], [0], [0], [1], [0, 0, 1, 1], [], []>} : vector<128x128xbf16>, vector<128x128xbf16>, vector<128x128xf32> -> vector<128x128xf32>
    %c0_24 = arith.constant 0 : index
    %c0_25 = arith.constant 0 : index
    %51 = vector.load %arg7[%c0_24, %c0_25] : memref<1x128xf32, #tpu.memory_space<vmem>>, vector<1x128xf32>
    %52 = vector.broadcast %51 : vector<1x128xf32> to vector<128x128xf32>
    %53 = arith.addf %50, %52 : vector<128x128xf32>
    %54 = arith.truncf %53 : vector<128x128xf32> to vector<128x128xbf16>
    %c0_26 = arith.constant 0 : index
    %c0_27 = arith.constant 0 : index
    %55 = vector.load %arg9[%c0_26, %c0_27] : memref<128x128xbf16, #tpu.memory_space<vmem>>, vector<128x128xbf16>
    tpu.vector_store %arg9[%c0_26, %c0_27], %54 {strides = array<i32>} : memref<128x128xbf16, #tpu.memory_space<vmem>>, vector<128x128xbf16>,
    return
  }
  func.func @transform_0(%arg0: i32) -> (i32, i32) {
    %c0_i32 = arith.constant 0 : i32
    %c0_i32_0 = arith.constant 0 : i32
    return %arg0, %c0_i32 : i32, i32
  }
  func.func @transform_1(%arg0: i32) -> (i32, i32) {
    %c0_i32 = arith.constant 0 : i32
    %c0_i32_0 = arith.constant 0 : i32
    %c0_i32_1 = arith.constant 0 : i32
    return %c0_i32, %c0_i32_0 : i32, i32
  }
  func.func @transform_2(%arg0: i32) -> (i32, i32) {
    %c0_i32 = arith.constant 0 : i32
    %c0_i32_0 = arith.constant 0 : i32
    %c0_i32_1 = arith.constant 0 : i32
    return %c0_i32, %c0_i32_0 : i32, i32
  }
  func.func @transform_3(%arg0: i32) -> (i32, i32) {
    %c0_i32 = arith.constant 0 : i32
    %c0_i32_0 = arith.constant 0 : i32
    %c0_i32_1 = arith.constant 0 : i32
    return %c0_i32, %c0_i32_0 : i32, i32
  }
  func.func @transform_4(%arg0: i32) -> (i32, i32) {
    %c0_i32 = arith.constant 0 : i32
    %c0_i32_0 = arith.constant 0 : i32
    %c0_i32_1 = arith.constant 0 : i32
    return %c0_i32, %c0_i32_0 : i32, i32
  }
  func.func @transform_5(%arg0: i32) -> (i32, i32) {
    %c0_i32 = arith.constant 0 : i32
    %c0_i32_0 = arith.constant 0 : i32
    %c0_i32_1 = arith.constant 0 : i32
    return %c0_i32, %c0_i32_0 : i32, i32
  }
  func.func @transform_6(%arg0: i32) -> (i32, i32) {
    %c0_i32 = arith.constant 0 : i32
    %c0_i32_0 = arith.constant 0 : i32
    %c0_i32_1 = arith.constant 0 : i32
    return %c0_i32, %c0_i32_0 : i32, i32
  }
  func.func @transform_7(%arg0: i32) -> (i32, i32) {
    %c0_i32 = arith.constant 0 : i32
    %c0_i32_0 = arith.constant 0 : i32
    return %arg0, %c0_i32 : i32, i32
  }
  func.func @transform_8(%arg0: i32) -> (i32, i32) {
    %c0_i32 = arith.constant 0 : i32
    %c0_i32_0 = arith.constant 0 : i32
    return %arg0, %c0_i32 : i32, i32
  }
}

module attributes {stable_mosaic.version = 11 : i64} {
  func.func @kernel(%arg0: i32, %arg1: memref<1x64x128xbf16, #tpu.memory_space<vmem>>, %arg2: memref<1x64x128xbf16, #tpu.memory_space<vmem>>, %arg3: memref<1x64x128xbf16, #tpu.memory_space<vmem>>, %arg4: memref<64x1xf32, #tpu.memory_space<vmem>>, %arg5: memref<64x1xf32, #tpu.memory_space<vmem>>, %arg6: memref<9x128xf32, #tpu.memory_space<vmem>>, %arg7: memref<1x128xf32, #tpu.memory_space<vmem>>, %arg8: memref<9x128xf32, #tpu.memory_space<vmem>>, %arg9: memref<1x128xf32, #tpu.memory_space<vmem>>, %arg10: memref<128x128xbf16, #tpu.memory_space<vmem>>, %arg11: memref<1x128xf32, #tpu.memory_space<vmem>>, %arg12: memref<128x128xbf16, #tpu.memory_space<vmem>>, %arg13: memref<1x128xf32, #tpu.memory_space<vmem>>, %arg14: memref<64x128xf32, #tpu.memory_space<vmem>>, %arg15: memref<64x128xf32, #tpu.memory_space<vmem>>, %arg16: memref<128x128xf32, #tpu.memory_space<vmem>>, %arg17: memref<128x128xbf16, #tpu.memory_space<vmem>>, %arg18: memref<1x128xf32, #tpu.memory_space<vmem>>, %arg19: memref<9x128xf32, #tpu.memory_space<vmem>>, %arg20: memref<1x128xf32, #tpu.memory_space<vmem>>, %arg21: memref<1x64x128xbf16, #tpu.memory_space<vmem>>, %arg22: memref<80x128xf32, #tpu.memory_space<vmem>>, %arg23: memref<80x128xf32, #tpu.memory_space<vmem>>, %arg24: memref<80x128xf32, #tpu.memory_space<vmem>>, %arg25: memref<128x128xf32, #tpu.memory_space<vmem>>) attributes {dimension_semantics = [#tpu.dimension_semantics<arbitrary>], iteration_bounds = array<i64: 2>, scalar_prefetch = 0 : i64, scratch_operands = 4 : i64, tpu.core_type = #tpu.core_type<tc>, window_params = [{transform_indices = @transform_0, window_bounds = array<i64: 1, 64, 128>}, {transform_indices = @transform_1, window_bounds = array<i64: 1, 64, 128>}, {transform_indices = @transform_2, window_bounds = array<i64: 1, 64, 128>}, {pipeline_mode = #tpu.pipeline_mode<synchronous>, transform_indices = @transform_3, window_bounds = array<i64: 64, 1>}, {pipeline_mode = #tpu.pipeline_mode<synchronous>, transform_indices = @transform_4, window_bounds = array<i64: 64, 1>}, {pipeline_mode = #tpu.pipeline_mode<synchronous>, transform_indices = @transform_5, window_bounds = array<i64: 9, 128>}, {pipeline_mode = #tpu.pipeline_mode<synchronous>, transform_indices = @transform_6, window_bounds = array<i64: 1, 128>}, {pipeline_mode = #tpu.pipeline_mode<synchronous>, transform_indices = @transform_7, window_bounds = array<i64: 9, 128>}, {pipeline_mode = #tpu.pipeline_mode<synchronous>, transform_indices = @transform_8, window_bounds = array<i64: 1, 128>}, {pipeline_mode = #tpu.pipeline_mode<synchronous>, transform_indices = @transform_9, window_bounds = array<i64: 128, 128>}, {pipeline_mode = #tpu.pipeline_mode<synchronous>, transform_indices = @transform_10, window_bounds = array<i64: 1, 128>}, {pipeline_mode = #tpu.pipeline_mode<synchronous>, transform_indices = @transform_11, window_bounds = array<i64: 128, 128>}, {pipeline_mode = #tpu.pipeline_mode<synchronous>, transform_indices = @transform_12, window_bounds = array<i64: 1, 128>}, {pipeline_mode = #tpu.pipeline_mode<synchronous>, transform_indices = @transform_13, window_bounds = array<i64: 64, 128>}, {pipeline_mode = #tpu.pipeline_mode<synchronous>, transform_indices = @transform_14, window_bounds = array<i64: 64, 128>}, {pipeline_mode = #tpu.pipeline_mode<synchronous>, transform_indices = @transform_15, window_bounds = array<i64: 128, 128>}, {pipeline_mode = #tpu.pipeline_mode<synchronous>, transform_indices = @transform_16, window_bounds = array<i64: 128, 128>}, {pipeline_mode = #tpu.pipeline_mode<synchronous>, transform_indices = @transform_17, window_bounds = array<i64: 1, 128>}, {pipeline_mode = #tpu.pipeline_mode<synchronous>, transform_indices = @transform_18, window_bounds = array<i64: 9, 128>}, {pipeline_mode = #tpu.pipeline_mode<synchronous>, transform_indices = @transform_19, window_bounds = array<i64: 1, 128>}, {transform_indices = @transform_20, window_bounds = array<i64: 1, 64, 128>}]} {
    %c0_i32 = arith.constant 0 : i32
    %0 = arith.cmpi eq, %arg0, %c0_i32 : i32
    %1 = arith.extui %0 : i1 to i32
    %c0_i32_0 = arith.constant 0 : i32
    %2 = arith.cmpi ne, %1, %c0_i32_0 : i32
    scf.if %2 {
      %cst_155 = arith.constant 0.000000e+00 : f32
      %309 = vector.broadcast %cst_155 : f32 to vector<80x128xf32>
      %c0_156 = arith.constant 0 : index
      %c0_157 = arith.constant 0 : index
      %310 = vector.load %arg22[%c0_156, %c0_157] : memref<80x128xf32, #tpu.memory_space<vmem>>, vector<80x128xf32>
      tpu.vector_store %arg22[%c0_156, %c0_157], %309 {strides = array<i32>} : memref<80x128xf32, #tpu.memory_space<vmem>>, vector<80x128xf32>,
      %cst_158 = arith.constant 0.000000e+00 : f32
      %311 = vector.broadcast %cst_158 : f32 to vector<80x128xf32>
      %c0_159 = arith.constant 0 : index
      %c0_160 = arith.constant 0 : index
      %312 = vector.load %arg23[%c0_159, %c0_160] : memref<80x128xf32, #tpu.memory_space<vmem>>, vector<80x128xf32>
      tpu.vector_store %arg23[%c0_159, %c0_160], %311 {strides = array<i32>} : memref<80x128xf32, #tpu.memory_space<vmem>>, vector<80x128xf32>,
      %cst_161 = arith.constant 0.000000e+00 : f32
      %313 = vector.broadcast %cst_161 : f32 to vector<80x128xf32>
      %c0_162 = arith.constant 0 : index
      %c0_163 = arith.constant 0 : index
      %314 = vector.load %arg24[%c0_162, %c0_163] : memref<80x128xf32, #tpu.memory_space<vmem>>, vector<80x128xf32>
      tpu.vector_store %arg24[%c0_162, %c0_163], %313 {strides = array<i32>} : memref<80x128xf32, #tpu.memory_space<vmem>>, vector<80x128xf32>,
      %cst_164 = arith.constant 0.000000e+00 : f32
      %315 = vector.broadcast %cst_164 : f32 to vector<128x128xf32>
      %c0_165 = arith.constant 0 : index
      %c0_166 = arith.constant 0 : index
      %316 = vector.load %arg25[%c0_165, %c0_166] : memref<128x128xf32, #tpu.memory_space<vmem>>, vector<128x128xf32>
      tpu.vector_store %arg25[%c0_165, %c0_166], %315 {strides = array<i32>} : memref<128x128xf32, #tpu.memory_space<vmem>>, vector<128x128xf32>,
    } else {
    }
    %c0 = arith.constant 0 : index
    %c0_1 = arith.constant 0 : index
    %3 = vector.load %arg4[%c0, %c0_1] : memref<64x1xf32, #tpu.memory_space<vmem>>, vector<64x1xf32>
    %c0_2 = arith.constant 0 : index
    %c0_3 = arith.constant 0 : index
    %4 = vector.load %arg5[%c0_2, %c0_3] : memref<64x1xf32, #tpu.memory_space<vmem>>, vector<64x1xf32>
    %c0_4 = arith.constant 0 : index
    %c0_5 = arith.constant 0 : index
    %c0_6 = arith.constant 0 : index
    %5 = vector.load %arg1[%c0_4, %c0_5, %c0_6] : memref<1x64x128xbf16, #tpu.memory_space<vmem>>, vector<1x64x128xbf16>
    %6 = vector.shape_cast %5 : vector<1x64x128xbf16> to vector<64x128xbf16>
    %7 = arith.extf %6 : vector<64x128xbf16> to vector<64x128xf32>
    %c8 = arith.constant 8 : index
    %c0_7 = arith.constant 0 : index
    %8 = vector.load %arg22[%c8, %c0_7] : memref<80x128xf32, #tpu.memory_space<vmem>>, vector<64x128xf32>
    tpu.vector_store %arg22[%c8, %c0_7], %7 {strides = array<i32>} : memref<80x128xf32, #tpu.memory_space<vmem>>, vector<64x128xf32>,
    %c9 = arith.constant 9 : index
    %c0_8 = arith.constant 0 : index
    %9 = vector.load %arg23[%c9, %c0_8] : memref<80x128xf32, #tpu.memory_space<vmem>>, vector<64x128xf32>
    tpu.vector_store %arg23[%c9, %c0_8], %7 {strides = array<i32>} : memref<80x128xf32, #tpu.memory_space<vmem>>, vector<64x128xf32>,
    %c7 = arith.constant 7 : index
    %c0_9 = arith.constant 0 : index
    %10 = vector.load %arg24[%c7, %c0_9] : memref<80x128xf32, #tpu.memory_space<vmem>>, vector<64x128xf32>
    tpu.vector_store %arg24[%c7, %c0_9], %7 {strides = array<i32>} : memref<80x128xf32, #tpu.memory_space<vmem>>, vector<64x128xf32>,
    %c0_10 = arith.constant 0 : index
    %c0_11 = arith.constant 0 : index
    %11 = vector.load %arg6[%c0_10, %c0_11] : memref<9x128xf32, #tpu.memory_space<vmem>>, vector<9x128xf32>
    %c0_12 = arith.constant 0 : index
    %c0_13 = arith.constant 0 : index
    %12 = vector.load %arg7[%c0_12, %c0_13] : memref<1x128xf32, #tpu.memory_space<vmem>>, vector<1x128xf32>
    %c0_14 = arith.constant 0 : index
    %c0_15 = arith.constant 0 : index
    %13 = vector.load %arg23[%c0_14, %c0_15] : memref<80x128xf32, #tpu.memory_space<vmem>>, vector<64x128xf32>
    %14 = vector.extract_strided_slice %11 {offsets = [0, 0], sizes = [1, 128], strides = [1, 1]} : vector<9x128xf32> to vector<1x128xf32>
    %15 = vector.broadcast %14 : vector<1x128xf32> to vector<64x128xf32>
    %16 = arith.mulf %13, %15 : vector<64x128xf32>
    %c0_16 = arith.constant 0 : index
    %c0_17 = arith.constant 0 : index
    %17 = vector.load %arg22[%c0_16, %c0_17] : memref<80x128xf32, #tpu.memory_space<vmem>>, vector<64x128xf32>
    %18 = vector.extract_strided_slice %11 {offsets = [1, 0], sizes = [1, 128], strides = [1, 1]} : vector<9x128xf32> to vector<1x128xf32>
    %19 = vector.broadcast %18 : vector<1x128xf32> to vector<64x128xf32>
    %20 = arith.mulf %17, %19 : vector<64x128xf32>
    %c0_18 = arith.constant 0 : index
    %c0_19 = arith.constant 0 : index
    %21 = vector.load %arg24[%c0_18, %c0_19] : memref<80x128xf32, #tpu.memory_space<vmem>>, vector<64x128xf32>
    %22 = vector.extract_strided_slice %11 {offsets = [2, 0], sizes = [1, 128], strides = [1, 1]} : vector<9x128xf32> to vector<1x128xf32>
    %23 = vector.broadcast %22 : vector<1x128xf32> to vector<64x128xf32>
    %24 = arith.mulf %21, %23 : vector<64x128xf32>
    %c8_20 = arith.constant 8 : index
    %c0_21 = arith.constant 0 : index
    %25 = vector.load %arg23[%c8_20, %c0_21] : memref<80x128xf32, #tpu.memory_space<vmem>>, vector<64x128xf32>
    %26 = vector.extract_strided_slice %11 {offsets = [3, 0], sizes = [1, 128], strides = [1, 1]} : vector<9x128xf32> to vector<1x128xf32>
    %27 = vector.broadcast %26 : vector<1x128xf32> to vector<64x128xf32>
    %28 = arith.mulf %25, %27 : vector<64x128xf32>
    %c8_22 = arith.constant 8 : index
    %c0_23 = arith.constant 0 : index
    %29 = vector.load %arg22[%c8_22, %c0_23] : memref<80x128xf32, #tpu.memory_space<vmem>>, vector<64x128xf32>
    %30 = vector.extract_strided_slice %11 {offsets = [4, 0], sizes = [1, 128], strides = [1, 1]} : vector<9x128xf32> to vector<1x128xf32>
    %31 = vector.broadcast %30 : vector<1x128xf32> to vector<64x128xf32>
    %32 = arith.mulf %29, %31 : vector<64x128xf32>
    %c8_24 = arith.constant 8 : index
    %c0_25 = arith.constant 0 : index
    %33 = vector.load %arg24[%c8_24, %c0_25] : memref<80x128xf32, #tpu.memory_space<vmem>>, vector<64x128xf32>
    %34 = vector.extract_strided_slice %11 {offsets = [5, 0], sizes = [1, 128], strides = [1, 1]} : vector<9x128xf32> to vector<1x128xf32>
    %35 = vector.broadcast %34 : vector<1x128xf32> to vector<64x128xf32>
    %36 = arith.mulf %33, %35 : vector<64x128xf32>
    %37 = arith.addf %16, %28 : vector<64x128xf32>
    %38 = arith.addf %20, %32 : vector<64x128xf32>
    %39 = arith.addf %24, %36 : vector<64x128xf32>
    %c16 = arith.constant 16 : index
    %c0_26 = arith.constant 0 : index
    %40 = vector.load %arg23[%c16, %c0_26] : memref<80x128xf32, #tpu.memory_space<vmem>>, vector<64x128xf32>
    %41 = vector.extract_strided_slice %11 {offsets = [6, 0], sizes = [1, 128], strides = [1, 1]} : vector<9x128xf32> to vector<1x128xf32>
    %42 = vector.broadcast %41 : vector<1x128xf32> to vector<64x128xf32>
    %43 = arith.mulf %40, %42 : vector<64x128xf32>
    %c16_27 = arith.constant 16 : index
    %c0_28 = arith.constant 0 : index
    %44 = vector.load %arg22[%c16_27, %c0_28] : memref<80x128xf32, #tpu.memory_space<vmem>>, vector<64x128xf32>
    %45 = vector.extract_strided_slice %11 {offsets = [7, 0], sizes = [1, 128], strides = [1, 1]} : vector<9x128xf32> to vector<1x128xf32>
    %46 = vector.broadcast %45 : vector<1x128xf32> to vector<64x128xf32>
    %47 = arith.mulf %44, %46 : vector<64x128xf32>
    %c16_29 = arith.constant 16 : index
    %c0_30 = arith.constant 0 : index
    %48 = vector.load %arg24[%c16_29, %c0_30] : memref<80x128xf32, #tpu.memory_space<vmem>>, vector<64x128xf32>
    %49 = vector.extract_strided_slice %11 {offsets = [8, 0], sizes = [1, 128], strides = [1, 1]} : vector<9x128xf32> to vector<1x128xf32>
    %50 = vector.broadcast %49 : vector<1x128xf32> to vector<64x128xf32>
    %51 = arith.mulf %48, %50 : vector<64x128xf32>
    %52 = arith.addf %37, %43 : vector<64x128xf32>
    %53 = arith.addf %38, %47 : vector<64x128xf32>
    %54 = arith.addf %39, %51 : vector<64x128xf32>
    %55 = vector.broadcast %3 : vector<64x1xf32> to vector<64x128xf32>
    %56 = arith.mulf %52, %55 : vector<64x128xf32>
    %57 = arith.addf %56, %53 : vector<64x128xf32>
    %58 = vector.broadcast %4 : vector<64x1xf32> to vector<64x128xf32>
    %59 = arith.mulf %54, %58 : vector<64x128xf32>
    %60 = arith.addf %57, %59 : vector<64x128xf32>
    %61 = vector.broadcast %12 : vector<1x128xf32> to vector<64x128xf32>
    %62 = arith.addf %60, %61 : vector<64x128xf32>
    %63 = math.absf %62 : vector<64x128xf32>
    %cst = arith.constant 0.000000e+00 : f32
    %64 = vector.broadcast %cst : f32 to vector<64x128xf32>
    %65 = arith.subf %64, %63 : vector<64x128xf32>
    %66 = math.exp %65 : vector<64x128xf32>
    %cst_31 = arith.constant 0.000000e+00 : f32
    %67 = vector.broadcast %cst_31 : f32 to vector<64x128xf32>
    %68 = arith.cmpf oge, %62, %67 : vector<64x128xf32>
    %cst_32 = arith.constant 1.000000e+00 : f32
    %69 = vector.broadcast %cst_32 : f32 to vector<64x128xf32>
    %70 = arith.addf %69, %66 : vector<64x128xf32>
    %cst_33 = arith.constant 1.000000e+00 : f32
    %71 = vector.broadcast %cst_33 : f32 to vector<64x128xf32>
    %72 = arith.divf %71, %70 : vector<64x128xf32>
    %cst_34 = arith.constant 1.000000e+00 : f32
    %73 = vector.broadcast %cst_34 : f32 to vector<64x128xf32>
    %74 = arith.addf %73, %66 : vector<64x128xf32>
    %75 = arith.divf %66, %74 : vector<64x128xf32>
    %76 = arith.select %68, %72, %75 : vector<64x128xi1>, vector<64x128xf32>
    %77 = arith.mulf %62, %76 : vector<64x128xf32>
    %c8_35 = arith.constant 8 : index
    %c0_36 = arith.constant 0 : index
    %78 = vector.load %arg22[%c8_35, %c0_36] : memref<80x128xf32, #tpu.memory_space<vmem>>, vector<64x128xf32>
    tpu.vector_store %arg22[%c8_35, %c0_36], %77 {strides = array<i32>} : memref<80x128xf32, #tpu.memory_space<vmem>>, vector<64x128xf32>,
    %c9_37 = arith.constant 9 : index
    %c0_38 = arith.constant 0 : index
    %79 = vector.load %arg23[%c9_37, %c0_38] : memref<80x128xf32, #tpu.memory_space<vmem>>, vector<64x128xf32>
    tpu.vector_store %arg23[%c9_37, %c0_38], %77 {strides = array<i32>} : memref<80x128xf32, #tpu.memory_space<vmem>>, vector<64x128xf32>,
    %c7_39 = arith.constant 7 : index
    %c0_40 = arith.constant 0 : index
    %80 = vector.load %arg24[%c7_39, %c0_40] : memref<80x128xf32, #tpu.memory_space<vmem>>, vector<64x128xf32>
    tpu.vector_store %arg24[%c7_39, %c0_40], %77 {strides = array<i32>} : memref<80x128xf32, #tpu.memory_space<vmem>>, vector<64x128xf32>,
    %c0_41 = arith.constant 0 : index
    %c0_42 = arith.constant 0 : index
    %81 = vector.load %arg8[%c0_41, %c0_42] : memref<9x128xf32, #tpu.memory_space<vmem>>, vector<9x128xf32>
    %c0_43 = arith.constant 0 : index
    %c0_44 = arith.constant 0 : index
    %82 = vector.load %arg9[%c0_43, %c0_44] : memref<1x128xf32, #tpu.memory_space<vmem>>, vector<1x128xf32>
    %c0_45 = arith.constant 0 : index
    %c0_46 = arith.constant 0 : index
    %83 = vector.load %arg23[%c0_45, %c0_46] : memref<80x128xf32, #tpu.memory_space<vmem>>, vector<64x128xf32>
    %84 = vector.extract_strided_slice %81 {offsets = [0, 0], sizes = [1, 128], strides = [1, 1]} : vector<9x128xf32> to vector<1x128xf32>
    %85 = vector.broadcast %84 : vector<1x128xf32> to vector<64x128xf32>
    %86 = arith.mulf %83, %85 : vector<64x128xf32>
    %c0_47 = arith.constant 0 : index
    %c0_48 = arith.constant 0 : index
    %87 = vector.load %arg22[%c0_47, %c0_48] : memref<80x128xf32, #tpu.memory_space<vmem>>, vector<64x128xf32>
    %88 = vector.extract_strided_slice %81 {offsets = [1, 0], sizes = [1, 128], strides = [1, 1]} : vector<9x128xf32> to vector<1x128xf32>
    %89 = vector.broadcast %88 : vector<1x128xf32> to vector<64x128xf32>
    %90 = arith.mulf %87, %89 : vector<64x128xf32>
    %c0_49 = arith.constant 0 : index
    %c0_50 = arith.constant 0 : index
    %91 = vector.load %arg24[%c0_49, %c0_50] : memref<80x128xf32, #tpu.memory_space<vmem>>, vector<64x128xf32>
    %92 = vector.extract_strided_slice %81 {offsets = [2, 0], sizes = [1, 128], strides = [1, 1]} : vector<9x128xf32> to vector<1x128xf32>
    %93 = vector.broadcast %92 : vector<1x128xf32> to vector<64x128xf32>
    %94 = arith.mulf %91, %93 : vector<64x128xf32>
    %c8_51 = arith.constant 8 : index
    %c0_52 = arith.constant 0 : index
    %95 = vector.load %arg23[%c8_51, %c0_52] : memref<80x128xf32, #tpu.memory_space<vmem>>, vector<64x128xf32>
    %96 = vector.extract_strided_slice %81 {offsets = [3, 0], sizes = [1, 128], strides = [1, 1]} : vector<9x128xf32> to vector<1x128xf32>
    %97 = vector.broadcast %96 : vector<1x128xf32> to vector<64x128xf32>
    %98 = arith.mulf %95, %97 : vector<64x128xf32>
    %c8_53 = arith.constant 8 : index
    %c0_54 = arith.constant 0 : index
    %99 = vector.load %arg22[%c8_53, %c0_54] : memref<80x128xf32, #tpu.memory_space<vmem>>, vector<64x128xf32>
    %100 = vector.extract_strided_slice %81 {offsets = [4, 0], sizes = [1, 128], strides = [1, 1]} : vector<9x128xf32> to vector<1x128xf32>
    %101 = vector.broadcast %100 : vector<1x128xf32> to vector<64x128xf32>
    %102 = arith.mulf %99, %101 : vector<64x128xf32>
    %c8_55 = arith.constant 8 : index
    %c0_56 = arith.constant 0 : index
    %103 = vector.load %arg24[%c8_55, %c0_56] : memref<80x128xf32, #tpu.memory_space<vmem>>, vector<64x128xf32>
    %104 = vector.extract_strided_slice %81 {offsets = [5, 0], sizes = [1, 128], strides = [1, 1]} : vector<9x128xf32> to vector<1x128xf32>
    %105 = vector.broadcast %104 : vector<1x128xf32> to vector<64x128xf32>
    %106 = arith.mulf %103, %105 : vector<64x128xf32>
    %107 = arith.addf %86, %98 : vector<64x128xf32>
    %108 = arith.addf %90, %102 : vector<64x128xf32>
    %109 = arith.addf %94, %106 : vector<64x128xf32>
    %c16_57 = arith.constant 16 : index
    %c0_58 = arith.constant 0 : index
    %110 = vector.load %arg23[%c16_57, %c0_58] : memref<80x128xf32, #tpu.memory_space<vmem>>, vector<64x128xf32>
    %111 = vector.extract_strided_slice %81 {offsets = [6, 0], sizes = [1, 128], strides = [1, 1]} : vector<9x128xf32> to vector<1x128xf32>
    %112 = vector.broadcast %111 : vector<1x128xf32> to vector<64x128xf32>
    %113 = arith.mulf %110, %112 : vector<64x128xf32>
    %c16_59 = arith.constant 16 : index
    %c0_60 = arith.constant 0 : index
    %114 = vector.load %arg22[%c16_59, %c0_60] : memref<80x128xf32, #tpu.memory_space<vmem>>, vector<64x128xf32>
    %115 = vector.extract_strided_slice %81 {offsets = [7, 0], sizes = [1, 128], strides = [1, 1]} : vector<9x128xf32> to vector<1x128xf32>
    %116 = vector.broadcast %115 : vector<1x128xf32> to vector<64x128xf32>
    %117 = arith.mulf %114, %116 : vector<64x128xf32>
    %c16_61 = arith.constant 16 : index
    %c0_62 = arith.constant 0 : index
    %118 = vector.load %arg24[%c16_61, %c0_62] : memref<80x128xf32, #tpu.memory_space<vmem>>, vector<64x128xf32>
    %119 = vector.extract_strided_slice %81 {offsets = [8, 0], sizes = [1, 128], strides = [1, 1]} : vector<9x128xf32> to vector<1x128xf32>
    %120 = vector.broadcast %119 : vector<1x128xf32> to vector<64x128xf32>
    %121 = arith.mulf %118, %120 : vector<64x128xf32>
    %122 = arith.addf %107, %113 : vector<64x128xf32>
    %123 = arith.addf %108, %117 : vector<64x128xf32>
    %124 = arith.addf %109, %121 : vector<64x128xf32>
    %125 = vector.broadcast %3 : vector<64x1xf32> to vector<64x128xf32>
    %126 = arith.mulf %122, %125 : vector<64x128xf32>
    %127 = arith.addf %126, %123 : vector<64x128xf32>
    %128 = vector.broadcast %4 : vector<64x1xf32> to vector<64x128xf32>
    %129 = arith.mulf %124, %128 : vector<64x128xf32>
    %130 = arith.addf %127, %129 : vector<64x128xf32>
    %131 = vector.broadcast %82 : vector<1x128xf32> to vector<64x128xf32>
    %132 = arith.addf %130, %131 : vector<64x128xf32>
    %133 = arith.truncf %77 : vector<64x128xf32> to vector<64x128xbf16>
    %c0_63 = arith.constant 0 : index
    %c0_64 = arith.constant 0 : index
    %134 = vector.load %arg10[%c0_63, %c0_64] : memref<128x128xbf16, #tpu.memory_space<vmem>>, vector<128x128xbf16>
    %cst_65 = arith.constant dense<0.000000e+00> : vector<64x128xf32>
    %135 = tpu.matmul %133, %134, %cst_65 {dimension_numbers = #tpu.dot_dimension_numbers<[1], [0], [0], [1], [0, 0, 1, 1], [], []>} : vector<64x128xbf16>, vector<128x128xbf16>, vector<64x128xf32> -> vector<64x128xf32>
    %c0_66 = arith.constant 0 : index
    %c0_67 = arith.constant 0 : index
    %136 = vector.load %arg11[%c0_66, %c0_67] : memref<1x128xf32, #tpu.memory_space<vmem>>, vector<1x128xf32>
    %137 = vector.broadcast %136 : vector<1x128xf32> to vector<64x128xf32>
    %138 = arith.addf %135, %137 : vector<64x128xf32>
    %cst_68 = arith.constant 0.000000e+00 : f32
    %139 = vector.broadcast %cst_68 : f32 to vector<64x128xf32>
    %140 = arith.cmpf ogt, %138, %139 : vector<64x128xf32>
    %cst_69 = arith.constant 1.000000e+00 : f32
    %141 = vector.broadcast %cst_69 : f32 to vector<64x128xf32>
    %142 = arith.addf %138, %141 : vector<64x128xf32>
    %cst_70 = arith.constant 0.000000e+00 : f32
    %143 = vector.broadcast %cst_70 : f32 to vector<64x128xf32>
    %144 = arith.minimumf %138, %143 : vector<64x128xf32>
    %145 = math.exp %144 : vector<64x128xf32>
    %146 = arith.select %140, %142, %145 : vector<64x128xi1>, vector<64x128xf32>
    %c0_71 = arith.constant 0 : index
    %c0_72 = arith.constant 0 : index
    %147 = vector.load %arg12[%c0_71, %c0_72] : memref<128x128xbf16, #tpu.memory_space<vmem>>, vector<128x128xbf16>
    %cst_73 = arith.constant dense<0.000000e+00> : vector<64x128xf32>
    %148 = tpu.matmul %133, %147, %cst_73 {dimension_numbers = #tpu.dot_dimension_numbers<[1], [0], [0], [1], [0, 0, 1, 1], [], []>} : vector<64x128xbf16>, vector<128x128xbf16>, vector<64x128xf32> -> vector<64x128xf32>
    %c0_74 = arith.constant 0 : index
    %c0_75 = arith.constant 0 : index
    %149 = vector.load %arg13[%c0_74, %c0_75] : memref<1x128xf32, #tpu.memory_space<vmem>>, vector<1x128xf32>
    %150 = vector.broadcast %149 : vector<1x128xf32> to vector<64x128xf32>
    %151 = arith.addf %148, %150 : vector<64x128xf32>
    %cst_76 = arith.constant 0.000000e+00 : f32
    %152 = vector.broadcast %cst_76 : f32 to vector<64x128xf32>
    %153 = arith.cmpf ogt, %151, %152 : vector<64x128xf32>
    %cst_77 = arith.constant 1.000000e+00 : f32
    %154 = vector.broadcast %cst_77 : f32 to vector<64x128xf32>
    %155 = arith.addf %151, %154 : vector<64x128xf32>
    %cst_78 = arith.constant 0.000000e+00 : f32
    %156 = vector.broadcast %cst_78 : f32 to vector<64x128xf32>
    %157 = arith.minimumf %151, %156 : vector<64x128xf32>
    %158 = math.exp %157 : vector<64x128xf32>
    %159 = arith.select %153, %155, %158 : vector<64x128xi1>, vector<64x128xf32>
    %c0_79 = arith.constant 0 : index
    %c0_80 = arith.constant 0 : index
    %160 = vector.load %arg14[%c0_79, %c0_80] : memref<64x128xf32, #tpu.memory_space<vmem>>, vector<64x128xf32>
    %c0_81 = arith.constant 0 : index
    %c0_82 = arith.constant 0 : index
    %161 = vector.load %arg15[%c0_81, %c0_82] : memref<64x128xf32, #tpu.memory_space<vmem>>, vector<64x128xf32>
    %162 = tpu.iota {dimensions = array<i32: 1>} : vector<64x128xi32>
    %c2_i32 = arith.constant 2 : i32
    %c0_i32_83 = arith.constant 0 : i32
    %163 = arith.cmpi eq, %c2_i32, %c0_i32_83 : i32
    %c1_i32 = arith.constant 1 : i32
    %164 = arith.select %163, %c1_i32, %c2_i32 : i32
    %165 = vector.broadcast %164 : i32 to vector<64x128xi32>
    %166 = arith.remsi %162, %165 : vector<64x128xi32>
    %c0_i32_84 = arith.constant 0 : i32
    %167 = vector.broadcast %c0_i32_84 : i32 to vector<64x128xi32>
    %168 = arith.cmpi ne, %166, %167 : vector<64x128xi32>
    %c0_i32_85 = arith.constant 0 : i32
    %169 = vector.broadcast %c0_i32_85 : i32 to vector<64x128xi32>
    %170 = arith.cmpi slt, %166, %169 : vector<64x128xi32>
    %c0_i32_86 = arith.constant 0 : i32
    %171 = arith.cmpi slt, %164, %c0_i32_86 : i32
    %172 = vector.broadcast %171 : i1 to vector<64x128xi1>
    %173 = vector.broadcast %172 : vector<64x128xi1> to vector<64x128xi1>
    %174 = arith.xori %170, %173 : vector<64x128xi1>
    %175 = arith.andi %174, %168 : vector<64x128xi1>
    %176 = vector.broadcast %164 : i32 to vector<64x128xi32>
    %177 = arith.addi %166, %176 : vector<64x128xi32>
    %178 = arith.select %175, %177, %166 : vector<64x128xi1>, vector<64x128xi32>
    %c0_i32_87 = arith.constant 0 : i32
    %179 = vector.broadcast %c0_i32_87 : i32 to vector<64x128xi32>
    %180 = arith.cmpi eq, %178, %179 : vector<64x128xi32>
    %c127_i32 = arith.constant 127 : i32
    %181 = tpu.dynamic_rotate %146 by %c127_i32 dim 1 : vector<64x128xf32>, i32 -> vector<64x128xf32>
    %c1_i32_88 = arith.constant 1 : i32
    %182 = tpu.dynamic_rotate %146 by %c1_i32_88 dim 1 : vector<64x128xf32>, i32 -> vector<64x128xf32>
    %183 = arith.mulf %146, %160 : vector<64x128xf32>
    %184 = arith.select %180, %181, %182 : vector<64x128xi1>, vector<64x128xf32>
    %185 = arith.mulf %184, %161 : vector<64x128xf32>
    %186 = arith.addf %183, %185 : vector<64x128xf32>
    %c127_i32_89 = arith.constant 127 : i32
    %187 = tpu.dynamic_rotate %159 by %c127_i32_89 dim 1 : vector<64x128xf32>, i32 -> vector<64x128xf32>
    %c1_i32_90 = arith.constant 1 : i32
    %188 = tpu.dynamic_rotate %159 by %c1_i32_90 dim 1 : vector<64x128xf32>, i32 -> vector<64x128xf32>
    %189 = arith.mulf %159, %160 : vector<64x128xf32>
    %190 = arith.select %180, %187, %188 : vector<64x128xi1>, vector<64x128xf32>
    %191 = arith.mulf %190, %161 : vector<64x128xf32>
    %192 = arith.addf %189, %191 : vector<64x128xf32>
    %cst_91 = arith.constant dense<0.000000e+00> : vector<128xf32>
    %193 = vector.multi_reduction <add>, %159, %cst_91 [0] : vector<64x128xf32> to vector<128xf32>
    %194 = vector.shape_cast %193 : vector<128xf32> to vector<1x128xf32>
    %cst_92 = arith.constant 6.400000e+01 : f32
    %195 = vector.broadcast %cst_92 : f32 to vector<1x128xf32>
    %196 = arith.divf %194, %195 : vector<1x128xf32>
    %197 = vector.broadcast %196 : vector<1x128xf32> to vector<64x128xf32>
    %198 = arith.mulf %146, %197 : vector<64x128xf32>
    %c0_93 = arith.constant 0 : index
    %c0_94 = arith.constant 0 : index
    %199 = vector.load %arg16[%c0_93, %c0_94] : memref<128x128xf32, #tpu.memory_space<vmem>>, vector<128x128xf32>
    %cst_95 = arith.constant dense<0.000000e+00> : vector<64x128xf32>
    %200 = tpu.matmul %198, %199, %cst_95 {dimension_numbers = #tpu.dot_dimension_numbers<[1], [0], [0], [1], [0, 0, 1, 1], [], []>} : vector<64x128xf32>, vector<128x128xf32>, vector<64x128xf32> -> vector<64x128xf32>
    %cst_96 = arith.constant 9.99999997E-7 : f32
    %201 = vector.broadcast %cst_96 : f32 to vector<64x128xf32>
    %202 = arith.addf %200, %201 : vector<64x128xf32>
    %203 = tpu.reciprocal %202 {approx = true} : vector<64x128xf32> -> vector<64x128xf32>
    %204 = arith.truncf %192 : vector<64x128xf32> to vector<64x128xbf16>
    %205 = vector.extract_strided_slice %204 {offsets = [0, 0], sizes = [64, 32], strides = [1, 1]} : vector<64x128xbf16> to vector<64x32xbf16>
    %206 = vector.extract_strided_slice %133 {offsets = [0, 0], sizes = [64, 32], strides = [1, 1]} : vector<64x128xbf16> to vector<64x32xbf16>
    %cst_97 = arith.constant dense<0.000000e+00> : vector<32x32xf32>
    %207 = tpu.matmul %205, %206, %cst_97 {dimension_numbers = #tpu.dot_dimension_numbers<[0], [0], [1], [1], [0, 1, 1, 1], [], []>} : vector<64x32xbf16>, vector<64x32xbf16>, vector<32x32xf32> -> vector<32x32xf32>
    %cst_98 = arith.constant 1.562500e-02 : f32
    %208 = vector.broadcast %cst_98 : f32 to vector<32x32xf32>
    %209 = arith.mulf %207, %208 : vector<32x32xf32>
    %c0_99 = arith.constant 0 : index
    %c0_100 = arith.constant 0 : index
    %210 = vector.load %arg25[%c0_99, %c0_100] : memref<128x128xf32, #tpu.memory_space<vmem>>, vector<32x32xf32>
    tpu.vector_store %arg25[%c0_99, %c0_100], %209 {strides = array<i32>} : memref<128x128xf32, #tpu.memory_space<vmem>>, vector<32x32xf32>,
    %211 = vector.extract_strided_slice %204 {offsets = [0, 32], sizes = [64, 32], strides = [1, 1]} : vector<64x128xbf16> to vector<64x32xbf16>
    %212 = vector.extract_strided_slice %133 {offsets = [0, 32], sizes = [64, 32], strides = [1, 1]} : vector<64x128xbf16> to vector<64x32xbf16>
    %cst_101 = arith.constant dense<0.000000e+00> : vector<32x32xf32>
    %213 = tpu.matmul %211, %212, %cst_101 {dimension_numbers = #tpu.dot_dimension_numbers<[0], [0], [1], [1], [0, 1, 1, 1], [], []>} : vector<64x32xbf16>, vector<64x32xbf16>, vector<32x32xf32> -> vector<32x32xf32>
    %cst_102 = arith.constant 1.562500e-02 : f32
    %214 = vector.broadcast %cst_102 : f32 to vector<32x32xf32>
    %215 = arith.mulf %213, %214 : vector<32x32xf32>
    %c32 = arith.constant 32 : index
    %c32_103 = arith.constant 32 : index
    %216 = vector.load %arg25[%c32, %c32_103] : memref<128x128xf32, #tpu.memory_space<vmem>>, vector<32x32xf32>
    tpu.vector_store %arg25[%c32, %c32_103], %215 {strides = array<i32>} : memref<128x128xf32, #tpu.memory_space<vmem>>, vector<32x32xf32>,
    %217 = vector.extract_strided_slice %204 {offsets = [0, 64], sizes = [64, 32], strides = [1, 1]} : vector<64x128xbf16> to vector<64x32xbf16>
    %218 = vector.extract_strided_slice %133 {offsets = [0, 64], sizes = [64, 32], strides = [1, 1]} : vector<64x128xbf16> to vector<64x32xbf16>
    %cst_104 = arith.constant dense<0.000000e+00> : vector<32x32xf32>
    %219 = tpu.matmul %217, %218, %cst_104 {dimension_numbers = #tpu.dot_dimension_numbers<[0], [0], [1], [1], [0, 1, 1, 1], [], []>} : vector<64x32xbf16>, vector<64x32xbf16>, vector<32x32xf32> -> vector<32x32xf32>
    %cst_105 = arith.constant 1.562500e-02 : f32
    %220 = vector.broadcast %cst_105 : f32 to vector<32x32xf32>
    %221 = arith.mulf %219, %220 : vector<32x32xf32>
    %c64 = arith.constant 64 : index
    %c64_106 = arith.constant 64 : index
    %222 = vector.load %arg25[%c64, %c64_106] : memref<128x128xf32, #tpu.memory_space<vmem>>, vector<32x32xf32>
    tpu.vector_store %arg25[%c64, %c64_106], %221 {strides = array<i32>} : memref<128x128xf32, #tpu.memory_space<vmem>>, vector<32x32xf32>,
    %223 = vector.extract_strided_slice %204 {offsets = [0, 96], sizes = [64, 32], strides = [1, 1]} : vector<64x128xbf16> to vector<64x32xbf16>
    %224 = vector.extract_strided_slice %133 {offsets = [0, 96], sizes = [64, 32], strides = [1, 1]} : vector<64x128xbf16> to vector<64x32xbf16>
    %cst_107 = arith.constant dense<0.000000e+00> : vector<32x32xf32>
    %225 = tpu.matmul %223, %224, %cst_107 {dimension_numbers = #tpu.dot_dimension_numbers<[0], [0], [1], [1], [0, 1, 1, 1], [], []>} : vector<64x32xbf16>, vector<64x32xbf16>, vector<32x32xf32> -> vector<32x32xf32>
    %cst_108 = arith.constant 1.562500e-02 : f32
    %226 = vector.broadcast %cst_108 : f32 to vector<32x32xf32>
    %227 = arith.mulf %225, %226 : vector<32x32xf32>
    %c96 = arith.constant 96 : index
    %c96_109 = arith.constant 96 : index
    %228 = vector.load %arg25[%c96, %c96_109] : memref<128x128xf32, #tpu.memory_space<vmem>>, vector<32x32xf32>
    tpu.vector_store %arg25[%c96, %c96_109], %227 {strides = array<i32>} : memref<128x128xf32, #tpu.memory_space<vmem>>, vector<32x32xf32>,
    %229 = arith.truncf %186 : vector<64x128xf32> to vector<64x128xbf16>
    %c0_110 = arith.constant 0 : index
    %c0_111 = arith.constant 0 : index
    %230 = vector.load %arg25[%c0_110, %c0_111] : memref<128x128xf32, #tpu.memory_space<vmem>>, vector<128x128xf32>
    %231 = arith.truncf %230 : vector<128x128xf32> to vector<128x128xbf16>
    %cst_112 = arith.constant dense<0.000000e+00> : vector<64x128xf32>
    %232 = tpu.matmul %229, %231, %cst_112 {dimension_numbers = #tpu.dot_dimension_numbers<[1], [0], [0], [1], [0, 0, 1, 1], [], []>} : vector<64x128xbf16>, vector<128x128xbf16>, vector<64x128xf32> -> vector<64x128xf32>
    %233 = arith.mulf %232, %203 : vector<64x128xf32>
    %234 = arith.addf %233, %132 : vector<64x128xf32>
    %c0_113 = arith.constant 0 : index
    %c0_114 = arith.constant 0 : index
    %c0_115 = arith.constant 0 : index
    %235 = vector.load %arg2[%c0_113, %c0_114, %c0_115] : memref<1x64x128xbf16, #tpu.memory_space<vmem>>, vector<1x64x128xbf16>
    %236 = vector.shape_cast %235 : vector<1x64x128xbf16> to vector<64x128xbf16>
    %237 = arith.extf %236 : vector<64x128xbf16> to vector<64x128xf32>
    %238 = arith.mulf %234, %237 : vector<64x128xf32>
    %239 = arith.truncf %238 : vector<64x128xf32> to vector<64x128xbf16>
    %c0_116 = arith.constant 0 : index
    %c0_117 = arith.constant 0 : index
    %c0_118 = arith.constant 0 : index
    %240 = vector.load %arg3[%c0_116, %c0_117, %c0_118] : memref<1x64x128xbf16, #tpu.memory_space<vmem>>, vector<1x64x128xbf16>
    %241 = vector.shape_cast %240 : vector<1x64x128xbf16> to vector<64x128xbf16>
    %242 = arith.extf %241 : vector<64x128xbf16> to vector<64x128xf32>
    %c0_119 = arith.constant 0 : index
    %c0_120 = arith.constant 0 : index
    %243 = vector.load %arg17[%c0_119, %c0_120] : memref<128x128xbf16, #tpu.memory_space<vmem>>, vector<128x128xbf16>
    %cst_121 = arith.constant dense<0.000000e+00> : vector<64x128xf32>
    %244 = tpu.matmul %239, %243, %cst_121 {dimension_numbers = #tpu.dot_dimension_numbers<[1], [0], [0], [1], [0, 0, 1, 1], [], []>} : vector<64x128xbf16>, vector<128x128xbf16>, vector<64x128xf32> -> vector<64x128xf32>
    %c0_122 = arith.constant 0 : index
    %c0_123 = arith.constant 0 : index
    %245 = vector.load %arg18[%c0_122, %c0_123] : memref<1x128xf32, #tpu.memory_space<vmem>>, vector<1x128xf32>
    %246 = vector.broadcast %245 : vector<1x128xf32> to vector<64x128xf32>
    %247 = arith.addf %244, %246 : vector<64x128xf32>
    %248 = arith.addf %242, %247 : vector<64x128xf32>
    %c8_124 = arith.constant 8 : index
    %c0_125 = arith.constant 0 : index
    %249 = vector.load %arg22[%c8_124, %c0_125] : memref<80x128xf32, #tpu.memory_space<vmem>>, vector<64x128xf32>
    tpu.vector_store %arg22[%c8_124, %c0_125], %248 {strides = array<i32>} : memref<80x128xf32, #tpu.memory_space<vmem>>, vector<64x128xf32>,
    %c9_126 = arith.constant 9 : index
    %c0_127 = arith.constant 0 : index
    %250 = vector.load %arg23[%c9_126, %c0_127] : memref<80x128xf32, #tpu.memory_space<vmem>>, vector<64x128xf32>
    tpu.vector_store %arg23[%c9_126, %c0_127], %248 {strides = array<i32>} : memref<80x128xf32, #tpu.memory_space<vmem>>, vector<64x128xf32>,
    %c7_128 = arith.constant 7 : index
    %c0_129 = arith.constant 0 : index
    %251 = vector.load %arg24[%c7_128, %c0_129] : memref<80x128xf32, #tpu.memory_space<vmem>>, vector<64x128xf32>
    tpu.vector_store %arg24[%c7_128, %c0_129], %248 {strides = array<i32>} : memref<80x128xf32, #tpu.memory_space<vmem>>, vector<64x128xf32>,
    %c0_130 = arith.constant 0 : index
    %c0_131 = arith.constant 0 : index
    %252 = vector.load %arg19[%c0_130, %c0_131] : memref<9x128xf32, #tpu.memory_space<vmem>>, vector<9x128xf32>
    %c0_132 = arith.constant 0 : index
    %c0_133 = arith.constant 0 : index
    %253 = vector.load %arg20[%c0_132, %c0_133] : memref<1x128xf32, #tpu.memory_space<vmem>>, vector<1x128xf32>
    %c0_134 = arith.constant 0 : index
    %c0_135 = arith.constant 0 : index
    %254 = vector.load %arg23[%c0_134, %c0_135] : memref<80x128xf32, #tpu.memory_space<vmem>>, vector<64x128xf32>
    %255 = vector.extract_strided_slice %252 {offsets = [0, 0], sizes = [1, 128], strides = [1, 1]} : vector<9x128xf32> to vector<1x128xf32>
    %256 = vector.broadcast %255 : vector<1x128xf32> to vector<64x128xf32>
    %257 = arith.mulf %254, %256 : vector<64x128xf32>
    %c0_136 = arith.constant 0 : index
    %c0_137 = arith.constant 0 : index
    %258 = vector.load %arg22[%c0_136, %c0_137] : memref<80x128xf32, #tpu.memory_space<vmem>>, vector<64x128xf32>
    %259 = vector.extract_strided_slice %252 {offsets = [1, 0], sizes = [1, 128], strides = [1, 1]} : vector<9x128xf32> to vector<1x128xf32>
    %260 = vector.broadcast %259 : vector<1x128xf32> to vector<64x128xf32>
    %261 = arith.mulf %258, %260 : vector<64x128xf32>
    %c0_138 = arith.constant 0 : index
    %c0_139 = arith.constant 0 : index
    %262 = vector.load %arg24[%c0_138, %c0_139] : memref<80x128xf32, #tpu.memory_space<vmem>>, vector<64x128xf32>
    %263 = vector.extract_strided_slice %252 {offsets = [2, 0], sizes = [1, 128], strides = [1, 1]} : vector<9x128xf32> to vector<1x128xf32>
    %264 = vector.broadcast %263 : vector<1x128xf32> to vector<64x128xf32>
    %265 = arith.mulf %262, %264 : vector<64x128xf32>
    %c8_140 = arith.constant 8 : index
    %c0_141 = arith.constant 0 : index
    %266 = vector.load %arg23[%c8_140, %c0_141] : memref<80x128xf32, #tpu.memory_space<vmem>>, vector<64x128xf32>
    %267 = vector.extract_strided_slice %252 {offsets = [3, 0], sizes = [1, 128], strides = [1, 1]} : vector<9x128xf32> to vector<1x128xf32>
    %268 = vector.broadcast %267 : vector<1x128xf32> to vector<64x128xf32>
    %269 = arith.mulf %266, %268 : vector<64x128xf32>
    %c8_142 = arith.constant 8 : index
    %c0_143 = arith.constant 0 : index
    %270 = vector.load %arg22[%c8_142, %c0_143] : memref<80x128xf32, #tpu.memory_space<vmem>>, vector<64x128xf32>
    %271 = vector.extract_strided_slice %252 {offsets = [4, 0], sizes = [1, 128], strides = [1, 1]} : vector<9x128xf32> to vector<1x128xf32>
    %272 = vector.broadcast %271 : vector<1x128xf32> to vector<64x128xf32>
    %273 = arith.mulf %270, %272 : vector<64x128xf32>
    %c8_144 = arith.constant 8 : index
    %c0_145 = arith.constant 0 : index
    %274 = vector.load %arg24[%c8_144, %c0_145] : memref<80x128xf32, #tpu.memory_space<vmem>>, vector<64x128xf32>
    %275 = vector.extract_strided_slice %252 {offsets = [5, 0], sizes = [1, 128], strides = [1, 1]} : vector<9x128xf32> to vector<1x128xf32>
    %276 = vector.broadcast %275 : vector<1x128xf32> to vector<64x128xf32>
    %277 = arith.mulf %274, %276 : vector<64x128xf32>
    %278 = arith.addf %257, %269 : vector<64x128xf32>
    %279 = arith.addf %261, %273 : vector<64x128xf32>
    %280 = arith.addf %265, %277 : vector<64x128xf32>
    %c16_146 = arith.constant 16 : index
    %c0_147 = arith.constant 0 : index
    %281 = vector.load %arg23[%c16_146, %c0_147] : memref<80x128xf32, #tpu.memory_space<vmem>>, vector<64x128xf32>
    %282 = vector.extract_strided_slice %252 {offsets = [6, 0], sizes = [1, 128], strides = [1, 1]} : vector<9x128xf32> to vector<1x128xf32>
    %283 = vector.broadcast %282 : vector<1x128xf32> to vector<64x128xf32>
    %284 = arith.mulf %281, %283 : vector<64x128xf32>
    %c16_148 = arith.constant 16 : index
    %c0_149 = arith.constant 0 : index
    %285 = vector.load %arg22[%c16_148, %c0_149] : memref<80x128xf32, #tpu.memory_space<vmem>>, vector<64x128xf32>
    %286 = vector.extract_strided_slice %252 {offsets = [7, 0], sizes = [1, 128], strides = [1, 1]} : vector<9x128xf32> to vector<1x128xf32>
    %287 = vector.broadcast %286 : vector<1x128xf32> to vector<64x128xf32>
    %288 = arith.mulf %285, %287 : vector<64x128xf32>
    %c16_150 = arith.constant 16 : index
    %c0_151 = arith.constant 0 : index
    %289 = vector.load %arg24[%c16_150, %c0_151] : memref<80x128xf32, #tpu.memory_space<vmem>>, vector<64x128xf32>
    %290 = vector.extract_strided_slice %252 {offsets = [8, 0], sizes = [1, 128], strides = [1, 1]} : vector<9x128xf32> to vector<1x128xf32>
    %291 = vector.broadcast %290 : vector<1x128xf32> to vector<64x128xf32>
    %292 = arith.mulf %289, %291 : vector<64x128xf32>
    %293 = arith.addf %278, %284 : vector<64x128xf32>
    %294 = arith.addf %279, %288 : vector<64x128xf32>
    %295 = arith.addf %280, %292 : vector<64x128xf32>
    %296 = vector.broadcast %3 : vector<64x1xf32> to vector<64x128xf32>
    %297 = arith.mulf %293, %296 : vector<64x128xf32>
    %298 = arith.addf %297, %294 : vector<64x128xf32>
    %299 = vector.broadcast %4 : vector<64x1xf32> to vector<64x128xf32>
    %300 = arith.mulf %295, %299 : vector<64x128xf32>
    %301 = arith.addf %298, %300 : vector<64x128xf32>
    %302 = vector.broadcast %253 : vector<1x128xf32> to vector<64x128xf32>
    %303 = arith.addf %301, %302 : vector<64x128xf32>
    %304 = arith.addf %248, %303 : vector<64x128xf32>
    %305 = arith.truncf %304 : vector<64x128xf32> to vector<64x128xbf16>
    %c0_152 = arith.constant 0 : index
    %c0_153 = arith.constant 0 : index
    %c0_154 = arith.constant 0 : index
    %306 = vector.load %arg21[%c0_152, %c0_153, %c0_154] : memref<1x64x128xbf16, #tpu.memory_space<vmem>>, vector<1x64x128xbf16>
    %307 = vector.shape_cast %306 : vector<1x64x128xbf16> to vector<64x128xbf16>
    %308 = vector.shape_cast %305 : vector<64x128xbf16> to vector<1x64x128xbf16>
    tpu.vector_store %arg21[%c0_152, %c0_153, %c0_154], %308 {strides = array<i32>} : memref<1x64x128xbf16, #tpu.memory_space<vmem>>, vector<1x64x128xbf16>,
    return
  }
  func.func @transform_0(%arg0: i32) -> (i32, i32, i32) {
    %c0_i32 = arith.constant 0 : i32
    %c0_i32_0 = arith.constant 0 : i32
    %c0_i32_1 = arith.constant 0 : i32
    return %arg0, %c0_i32, %c0_i32_0 : i32, i32, i32
  }
  func.func @transform_1(%arg0: i32) -> (i32, i32, i32) {
    %c0_i32 = arith.constant 0 : i32
    %c0_i32_0 = arith.constant 0 : i32
    %c0_i32_1 = arith.constant 0 : i32
    return %arg0, %c0_i32, %c0_i32_0 : i32, i32, i32
  }
  func.func @transform_2(%arg0: i32) -> (i32, i32, i32) {
    %c0_i32 = arith.constant 0 : i32
    %c0_i32_0 = arith.constant 0 : i32
    %c0_i32_1 = arith.constant 0 : i32
    return %arg0, %c0_i32, %c0_i32_0 : i32, i32, i32
  }
  func.func @transform_3(%arg0: i32) -> (i32, i32) {
    %c0_i32 = arith.constant 0 : i32
    %c0_i32_0 = arith.constant 0 : i32
    %c0_i32_1 = arith.constant 0 : i32
    return %c0_i32, %c0_i32_0 : i32, i32
  }
  func.func @transform_4(%arg0: i32) -> (i32, i32) {
    %c0_i32 = arith.constant 0 : i32
    %c0_i32_0 = arith.constant 0 : i32
    %c0_i32_1 = arith.constant 0 : i32
    return %c0_i32, %c0_i32_0 : i32, i32
  }
  func.func @transform_5(%arg0: i32) -> (i32, i32) {
    %c0_i32 = arith.constant 0 : i32
    %c0_i32_0 = arith.constant 0 : i32
    %c0_i32_1 = arith.constant 0 : i32
    return %c0_i32, %c0_i32_0 : i32, i32
  }
  func.func @transform_6(%arg0: i32) -> (i32, i32) {
    %c0_i32 = arith.constant 0 : i32
    %c0_i32_0 = arith.constant 0 : i32
    %c0_i32_1 = arith.constant 0 : i32
    return %c0_i32, %c0_i32_0 : i32, i32
  }
  func.func @transform_7(%arg0: i32) -> (i32, i32) {
    %c0_i32 = arith.constant 0 : i32
    %c0_i32_0 = arith.constant 0 : i32
    %c0_i32_1 = arith.constant 0 : i32
    return %c0_i32, %c0_i32_0 : i32, i32
  }
  func.func @transform_8(%arg0: i32) -> (i32, i32) {
    %c0_i32 = arith.constant 0 : i32
    %c0_i32_0 = arith.constant 0 : i32
    %c0_i32_1 = arith.constant 0 : i32
    return %c0_i32, %c0_i32_0 : i32, i32
  }
  func.func @transform_9(%arg0: i32) -> (i32, i32) {
    %c0_i32 = arith.constant 0 : i32
    %c0_i32_0 = arith.constant 0 : i32
    %c0_i32_1 = arith.constant 0 : i32
    return %c0_i32, %c0_i32_0 : i32, i32
  }
  func.func @transform_10(%arg0: i32) -> (i32, i32) {
    %c0_i32 = arith.constant 0 : i32
    %c0_i32_0 = arith.constant 0 : i32
    %c0_i32_1 = arith.constant 0 : i32
    return %c0_i32, %c0_i32_0 : i32, i32
  }
  func.func @transform_11(%arg0: i32) -> (i32, i32) {
    %c0_i32 = arith.constant 0 : i32
    %c0_i32_0 = arith.constant 0 : i32
    %c0_i32_1 = arith.constant 0 : i32
    return %c0_i32, %c0_i32_0 : i32, i32
  }
  func.func @transform_12(%arg0: i32) -> (i32, i32) {
    %c0_i32 = arith.constant 0 : i32
    %c0_i32_0 = arith.constant 0 : i32
    %c0_i32_1 = arith.constant 0 : i32
    return %c0_i32, %c0_i32_0 : i32, i32
  }
  func.func @transform_13(%arg0: i32) -> (i32, i32) {
    %c0_i32 = arith.constant 0 : i32
    %c0_i32_0 = arith.constant 0 : i32
    %c0_i32_1 = arith.constant 0 : i32
    return %c0_i32, %c0_i32_0 : i32, i32
  }
  func.func @transform_14(%arg0: i32) -> (i32, i32) {
    %c0_i32 = arith.constant 0 : i32
    %c0_i32_0 = arith.constant 0 : i32
    %c0_i32_1 = arith.constant 0 : i32
    return %c0_i32, %c0_i32_0 : i32, i32
  }
  func.func @transform_15(%arg0: i32) -> (i32, i32) {
    %c0_i32 = arith.constant 0 : i32
    %c0_i32_0 = arith.constant 0 : i32
    %c0_i32_1 = arith.constant 0 : i32
    return %c0_i32, %c0_i32_0 : i32, i32
  }
  func.func @transform_16(%arg0: i32) -> (i32, i32) {
    %c0_i32 = arith.constant 0 : i32
    %c0_i32_0 = arith.constant 0 : i32
    %c0_i32_1 = arith.constant 0 : i32
    return %c0_i32, %c0_i32_0 : i32, i32
  }
  func.func @transform_17(%arg0: i32) -> (i32, i32) {
    %c0_i32 = arith.constant 0 : i32
    %c0_i32_0 = arith.constant 0 : i32
    %c0_i32_1 = arith.constant 0 : i32
    return %c0_i32, %c0_i32_0 : i32, i32
  }
  func.func @transform_18(%arg0: i32) -> (i32, i32) {
    %c0_i32 = arith.constant 0 : i32
    %c0_i32_0 = arith.constant 0 : i32
    %c0_i32_1 = arith.constant 0 : i32
    return %c0_i32, %c0_i32_0 : i32, i32
  }
  func.func @transform_19(%arg0: i32) -> (i32, i32) {
    %c0_i32 = arith.constant 0 : i32
    %c0_i32_0 = arith.constant 0 : i32
    %c0_i32_1 = arith.constant 0 : i32
    return %c0_i32, %c0_i32_0 : i32, i32
  }
  func.func @transform_20(%arg0: i32) -> (i32, i32, i32) {
    %c0_i32 = arith.constant 0 : i32
    %c0_i32_0 = arith.constant 0 : i32
    %c0_i32_1 = arith.constant 0 : i32
    return %arg0, %c0_i32, %c0_i32_0 : i32, i32, i32
  }
}

module attributes {stable_mosaic.version = 11 : i64} {
  func.func @_mlp_kernel(%arg0: i32, %arg1: memref<128x128xbf16, #tpu.memory_space<vmem>>, %arg2: memref<1x128xf32, #tpu.memory_space<vmem>>, %arg3: memref<1x128xf32, #tpu.memory_space<vmem>>, %arg4: memref<128x512xbf16, #tpu.memory_space<vmem>>, %arg5: memref<1x512xf32, #tpu.memory_space<vmem>>, %arg6: memref<512x128xbf16, #tpu.memory_space<vmem>>, %arg7: memref<1x128xf32, #tpu.memory_space<vmem>>, %arg8: memref<128x128xf32, #tpu.memory_space<vmem>>) attributes {dimension_semantics = [#tpu.dimension_semantics<parallel>], iteration_bounds = array<i64: 1>, scalar_prefetch = 0 : i64, scratch_operands = 0 : i64, tpu.core_type = #tpu.core_type<tc>, window_params = [{transform_indices = @transform_0, window_bounds = array<i64: 128, 128>}, {pipeline_mode = #tpu.pipeline_mode<synchronous>, transform_indices = @transform_1, window_bounds = array<i64: 1, 128>}, {pipeline_mode = #tpu.pipeline_mode<synchronous>, transform_indices = @transform_2, window_bounds = array<i64: 1, 128>}, {pipeline_mode = #tpu.pipeline_mode<synchronous>, transform_indices = @transform_3, window_bounds = array<i64: 128, 512>}, {pipeline_mode = #tpu.pipeline_mode<synchronous>, transform_indices = @transform_4, window_bounds = array<i64: 1, 512>}, {pipeline_mode = #tpu.pipeline_mode<synchronous>, transform_indices = @transform_5, window_bounds = array<i64: 512, 128>}, {pipeline_mode = #tpu.pipeline_mode<synchronous>, transform_indices = @transform_6, window_bounds = array<i64: 1, 128>}, {transform_indices = @transform_7, window_bounds = array<i64: 128, 128>}]} {
    %c0 = arith.constant 0 : index
    %c0_0 = arith.constant 0 : index
    %0 = vector.load %arg1[%c0, %c0_0] : memref<128x128xbf16, #tpu.memory_space<vmem>>, vector<128x128xbf16>
    %1 = arith.extf %0 : vector<128x128xbf16> to vector<128x128xf32>
    %c0_1 = arith.constant 0 : index
    %c0_2 = arith.constant 0 : index
    %2 = vector.load %arg2[%c0_1, %c0_2] : memref<1x128xf32, #tpu.memory_space<vmem>>, vector<1x128xf32>
    %c0_3 = arith.constant 0 : index
    %c0_4 = arith.constant 0 : index
    %3 = vector.load %arg3[%c0_3, %c0_4] : memref<1x128xf32, #tpu.memory_space<vmem>>, vector<1x128xf32>
    %cst = arith.constant dense<0.000000e+00> : vector<128xf32>
    %4 = vector.multi_reduction <add>, %1, %cst [1] : vector<128x128xf32> to vector<128xf32>
    %5 = vector.shape_cast %4 : vector<128xf32> to vector<128x1xf32>
    %cst_5 = arith.constant 1.280000e+02 : f32
    %6 = vector.broadcast %cst_5 : f32 to vector<128x1xf32>
    %7 = arith.divf %5, %6 : vector<128x1xf32>
    %8 = vector.broadcast %7 : vector<128x1xf32> to vector<128x128xf32>
    %9 = arith.subf %1, %8 : vector<128x128xf32>
    %10 = arith.mulf %9, %9 : vector<128x128xf32>
    %cst_6 = arith.constant dense<0.000000e+00> : vector<128xf32>
    %11 = vector.multi_reduction <add>, %10, %cst_6 [1] : vector<128x128xf32> to vector<128xf32>
    %12 = vector.shape_cast %11 : vector<128xf32> to vector<128x1xf32>
    %cst_7 = arith.constant 1.280000e+02 : f32
    %13 = vector.broadcast %cst_7 : f32 to vector<128x1xf32>
    %14 = arith.divf %12, %13 : vector<128x1xf32>
    %15 = vector.broadcast %7 : vector<128x1xf32> to vector<128x128xf32>
    %16 = arith.subf %1, %15 : vector<128x128xf32>
    %cst_8 = arith.constant 9.99999974E-6 : f32
    %17 = vector.broadcast %cst_8 : f32 to vector<128x1xf32>
    %18 = arith.addf %14, %17 : vector<128x1xf32>
    %19 = math.rsqrt %18 : vector<128x1xf32>
    %20 = vector.broadcast %19 : vector<128x1xf32> to vector<128x128xf32>
    %21 = arith.mulf %16, %20 : vector<128x128xf32>
    %22 = vector.broadcast %2 : vector<1x128xf32> to vector<128x128xf32>
    %23 = arith.mulf %21, %22 : vector<128x128xf32>
    %24 = vector.broadcast %3 : vector<1x128xf32> to vector<128x128xf32>
    %25 = arith.addf %23, %24 : vector<128x128xf32>
    %26 = arith.truncf %25 : vector<128x128xf32> to vector<128x128xbf16>
    %c0_9 = arith.constant 0 : index
    %c0_10 = arith.constant 0 : index
    %27 = vector.load %arg4[%c0_9, %c0_10] : memref<128x512xbf16, #tpu.memory_space<vmem>>, vector<128x512xbf16>
    %cst_11 = arith.constant dense<0.000000e+00> : vector<128x512xf32>
    %28 = tpu.matmul %26, %27, %cst_11 {dimension_numbers = #tpu.dot_dimension_numbers<[1], [0], [0], [1], [0, 0, 1, 1], [], []>} : vector<128x128xbf16>, vector<128x512xbf16>, vector<128x512xf32> -> vector<128x512xf32>
    %c0_12 = arith.constant 0 : index
    %c0_13 = arith.constant 0 : index
    %29 = vector.load %arg5[%c0_12, %c0_13] : memref<1x512xf32, #tpu.memory_space<vmem>>, vector<1x512xf32>
    %30 = vector.broadcast %29 : vector<1x512xf32> to vector<128x512xf32>
    %31 = arith.addf %28, %30 : vector<128x512xf32>
    %cst_14 = arith.constant 5.000000e-01 : f32
    %32 = vector.broadcast %cst_14 : f32 to vector<128x512xf32>
    %33 = arith.mulf %32, %31 : vector<128x512xf32>
    %cst_15 = arith.constant 4.471500e-02 : f32
    %34 = vector.broadcast %cst_15 : f32 to vector<128x512xf32>
    %35 = arith.mulf %34, %31 : vector<128x512xf32>
    %36 = arith.mulf %35, %31 : vector<128x512xf32>
    %37 = arith.mulf %36, %31 : vector<128x512xf32>
    %38 = arith.addf %31, %37 : vector<128x512xf32>
    %cst_16 = arith.constant 0.797884583 : f32
    %39 = vector.broadcast %cst_16 : f32 to vector<128x512xf32>
    %40 = arith.mulf %39, %38 : vector<128x512xf32>
    %41 = math.tanh %40 : vector<128x512xf32>
    %cst_17 = arith.constant 1.000000e+00 : f32
    %42 = vector.broadcast %cst_17 : f32 to vector<128x512xf32>
    %43 = arith.addf %42, %41 : vector<128x512xf32>
    %44 = arith.mulf %33, %43 : vector<128x512xf32>
    %45 = arith.truncf %44 : vector<128x512xf32> to vector<128x512xbf16>
    %c0_18 = arith.constant 0 : index
    %c0_19 = arith.constant 0 : index
    %46 = vector.load %arg6[%c0_18, %c0_19] : memref<512x128xbf16, #tpu.memory_space<vmem>>, vector<512x128xbf16>
    %cst_20 = arith.constant dense<0.000000e+00> : vector<128x128xf32>
    %47 = tpu.matmul %45, %46, %cst_20 {dimension_numbers = #tpu.dot_dimension_numbers<[1], [0], [0], [1], [0, 0, 1, 1], [], []>} : vector<128x512xbf16>, vector<512x128xbf16>, vector<128x128xf32> -> vector<128x128xf32>
    %c0_21 = arith.constant 0 : index
    %c0_22 = arith.constant 0 : index
    %48 = vector.load %arg7[%c0_21, %c0_22] : memref<1x128xf32, #tpu.memory_space<vmem>>, vector<1x128xf32>
    %49 = vector.broadcast %48 : vector<1x128xf32> to vector<128x128xf32>
    %50 = arith.addf %47, %49 : vector<128x128xf32>
    %51 = arith.addf %1, %50 : vector<128x128xf32>
    %c0_23 = arith.constant 0 : index
    %c0_24 = arith.constant 0 : index
    %52 = vector.load %arg8[%c0_23, %c0_24] : memref<128x128xf32, #tpu.memory_space<vmem>>, vector<128x128xf32>
    tpu.vector_store %arg8[%c0_23, %c0_24], %51 {strides = array<i32>} : memref<128x128xf32, #tpu.memory_space<vmem>>, vector<128x128xf32>,
    return
  }
  func.func @transform_0(%arg0: i32) -> (i32, i32) {
    %c0_i32 = arith.constant 0 : i32
    %c0_i32_0 = arith.constant 0 : i32
    return %arg0, %c0_i32 : i32, i32
  }
  func.func @transform_1(%arg0: i32) -> (i32, i32) {
    %c0_i32 = arith.constant 0 : i32
    %c0_i32_0 = arith.constant 0 : i32
    %c0_i32_1 = arith.constant 0 : i32
    return %c0_i32, %c0_i32_0 : i32, i32
  }
  func.func @transform_2(%arg0: i32) -> (i32, i32) {
    %c0_i32 = arith.constant 0 : i32
    %c0_i32_0 = arith.constant 0 : i32
    %c0_i32_1 = arith.constant 0 : i32
    return %c0_i32, %c0_i32_0 : i32, i32
  }
  func.func @transform_3(%arg0: i32) -> (i32, i32) {
    %c0_i32 = arith.constant 0 : i32
    %c0_i32_0 = arith.constant 0 : i32
    %c0_i32_1 = arith.constant 0 : i32
    return %c0_i32, %c0_i32_0 : i32, i32
  }
  func.func @transform_4(%arg0: i32) -> (i32, i32) {
    %c0_i32 = arith.constant 0 : i32
    %c0_i32_0 = arith.constant 0 : i32
    %c0_i32_1 = arith.constant 0 : i32
    return %c0_i32, %c0_i32_0 : i32, i32
  }
  func.func @transform_5(%arg0: i32) -> (i32, i32) {
    %c0_i32 = arith.constant 0 : i32
    %c0_i32_0 = arith.constant 0 : i32
    %c0_i32_1 = arith.constant 0 : i32
    return %c0_i32, %c0_i32_0 : i32, i32
  }
  func.func @transform_6(%arg0: i32) -> (i32, i32) {
    %c0_i32 = arith.constant 0 : i32
    %c0_i32_0 = arith.constant 0 : i32
    %c0_i32_1 = arith.constant 0 : i32
    return %c0_i32, %c0_i32_0 : i32, i32
  }
  func.func @transform_7(%arg0: i32) -> (i32, i32) {
    %c0_i32 = arith.constant 0 : i32
    %c0_i32_0 = arith.constant 0 : i32
    return %arg0, %c0_i32 : i32, i32
  }
}

</mosaic_0001>

<llo_original>
// kernel: mlla_block_forward.4
$region0: #{mlla_block_forward.4}
  #allocation0 [shape = 'u32[]', space=smem, size = 0x4, offset = 0x4, fixed_abs, tag = 'smem constant byte address 0x4 - core index']
  #allocation1 [shape = 'u32[144,128]{1,0:T(1,128)}', space=vmem, size = 0x12000, scoped, tag = 'internal scratch']
  #allocation2 [shape = 'f32[80,128]{1,0:T(8,128)}', space=vmem, size = 0xa000, scoped, tag = 'scratch operand']
  #allocation3 [shape = 'f32[80,128]{1,0:T(8,128)}', space=vmem, size = 0xa000, scoped, tag = 'scratch operand']
  #allocation4 [shape = 'f32[80,128]{1,0:T(8,128)}', space=vmem, size = 0xa000, scoped, tag = 'scratch operand']
  %s0 = inlined_call_operand.vmem [shape: f32[2,64,128], index: 0, kind: input, shape index: {}]
  %s1 = inlined_call_operand.vmem [shape: f32[64,1], index: 1, kind: input, shape index: {}]
  %s2 = inlined_call_operand.vmem [shape: f32[64,1], index: 2, kind: input, shape index: {}]
  %s3 = inlined_call_operand.vmem [shape: f32[9,128], index: 3, kind: input, shape index: {}]
  %s4 = inlined_call_operand.vmem [shape: f32[1,128], index: 4, kind: input, shape index: {}]
  %s5 = inlined_call_operand.vmem [shape: bf16[2,64,128], index: 5, kind: output, shape index: {}]
  %s6 = sld [smem:[#allocation0]]
  $region57: #{mlla_block_forward.4} parent=0
    _
  %s8 = ssub.s32 1, %s6
  %s9 = scalar_select 0, %s8, %s6
  loop: start=0, step=1, limit=4
  $region2: #{mlla_block_forward.4} parent=0 // loop_pre_header
    _
  $region3: #{mlla_block_forward.4} parent=0 // loop_header
    %s11 = sphi 0, %s15
    %p12 = scmp.ge.s32.totalorder %s11, 4
    %s21 = sphi 0, %s23
    %s24 = sphi 0, %s21
    %s25 = sphi 0, %s24
    %s41 = sphi 0, %s25
    %s45 = sphi 0, %s45
    %s47 = sphi 0, %s45
    %s48 = sphi 0, %s47
    %s62 = sphi 0, %s48
    %s66 = sphi 0, %s66
    %s68 = sphi 0, %s66
    %s69 = sphi 0, %s68
    %s83 = sphi 0, %s69
    %s87 = sphi 0, %s87
    %s89 = sphi 0, %s87
    %s90 = sphi 0, %s89
    %s104 = sphi 0, %s90
    %s108 = sphi 0, %s108
    %s110 = sphi 0, %s108
    %s111 = sphi 0, %s110
    %s125 = sphi 0, %s111
    %s131 = sphi 0, %s133
    %s134 = sphi 0, %s131
    %s135 = sphi 0, %s134
    %s151 = sphi 0, %s135
  $region4: #{mlla_block_forward.4} parent=0 // loop_header_branch
    %14 = sbr.rel (%p12) target = $region8
  $region5: #{mlla_block_forward.4} parent=0 // loop_body
    %s16 = ssub.s32 %s11, 1
    %s17 = ssub.s32 %s11, 2
    %s18 = sadd.s32 %s11, 1
    %s19 = ssub.s32 %s11, %s18
    %p20 = scmp.eq.s32.totalorder %s19, 0
    %s22 = sadd.s32 %s21, 1
    %s23 = scalar_select %p20, %s21, %s22
    %p26 = pneg %p20
    %p27 = scmp.eq.s32.totalorder %s11, 1
    %p28 = por %p26, %p27
    %p29 = scmp.ne.s32.totalorder %s21, %s24
    %p30 = scmp.eq.s32.totalorder %s11, 0
    %p31 = por %p29, %p30
    %p32 = scmp.ne.s32.totalorder %s21, %s24
    %p33 = scmp.eq.s32.totalorder %s16, 1
    %p34 = por %p32, %p33
    %p35 = scmp.ne.s32.totalorder %s24, %s25
    %p36 = scmp.eq.s32.totalorder %s16, 0
    %p37 = por %p35, %p36
    %p38 = scmp.ne.s32.totalorder %s24, %s25
    %p39 = scmp.eq.s32.totalorder %s17, 1
    %p40 = por %p38, %p39
    %p42 = scmp.ne.s32.totalorder %s25, %s41
    %p43 = scmp.eq.s32.totalorder %s17, 0
    %p44 = por %p42, %p43
    %s46 = sadd.s32 %s45, 1
    %p49 = scmp.eq.s32.totalorder %s11, 1
    %p50 = scmp.ne.s32.totalorder %s45, %s47
    %p51 = scmp.eq.s32.totalorder %s11, 0
    %p52 = por %p50, %p51
    %p53 = scmp.ne.s32.totalorder %s45, %s47
    %p54 = scmp.eq.s32.totalorder %s16, 1
    %p55 = por %p53, %p54
    %p56 = scmp.ne.s32.totalorder %s47, %s48
    %p57 = scmp.eq.s32.totalorder %s16, 0
    %p58 = por %p56, %p57
    %p59 = scmp.ne.s32.totalorder %s47, %s48
    %p60 = scmp.eq.s32.totalorder %s17, 1
    %p61 = por %p59, %p60
    %p63 = scmp.ne.s32.totalorder %s48, %s62
    %p64 = scmp.eq.s32.totalorder %s17, 0
    %p65 = por %p63, %p64
    %s67 = sadd.s32 %s66, 1
    %p70 = scmp.eq.s32.totalorder %s11, 1
    %p71 = scmp.ne.s32.totalorder %s66, %s68
    %p72 = scmp.eq.s32.totalorder %s11, 0
    %p73 = por %p71, %p72
    %p74 = scmp.ne.s32.totalorder %s66, %s68
    %p75 = scmp.eq.s32.totalorder %s16, 1
    %p76 = por %p74, %p75
    %p77 = scmp.ne.s32.totalorder %s68, %s69
    %p78 = scmp.eq.s32.totalorder %s16, 0
    %p79 = por %p77, %p78
    %p80 = scmp.ne.s32.totalorder %s68, %s69
    %p81 = scmp.eq.s32.totalorder %s17, 1
    %p82 = por %p80, %p81
    %p84 = scmp.ne.s32.totalorder %s69, %s83
    %p85 = scmp.eq.s32.totalorder %s17, 0
    %p86 = por %p84, %p85
    %s88 = sadd.s32 %s87, 1
    %p91 = scmp.eq.s32.totalorder %s11, 1
    %p92 = scmp.ne.s32.totalorder %s87, %s89
    %p93 = scmp.eq.s32.totalorder %s11, 0
    %p94 = por %p92, %p93
    %p95 = scmp.ne.s32.totalorder %s87, %s89
    %p96 = scmp.eq.s32.totalorder %s16, 1
    %p97 = por %p95, %p96
    %p98 = scmp.ne.s32.totalorder %s89, %s90
    %p99 = scmp.eq.s32.totalorder %s16, 0
    %p100 = por %p98, %p99
    %p101 = scmp.ne.s32.totalorder %s89, %s90
    %p102 = scmp.eq.s32.totalorder %s17, 1
    %p103 = por %p101, %p102
    %p105 = scmp.ne.s32.totalorder %s90, %s104
    %p106 = scmp.eq.s32.totalorder %s17, 0
    %p107 = por %p105, %p106
    %s109 = sadd.s32 %s108, 1
    %p112 = scmp.eq.s32.totalorder %s11, 1
    %p113 = scmp.ne.s32.totalorder %s108, %s110
    %p114 = scmp.eq.s32.totalorder %s11, 0
    %p115 = por %p113, %p114
    %p116 = scmp.ne.s32.totalorder %s108, %s110
    %p117 = scmp.eq.s32.totalorder %s16, 1
    %p118 = por %p116, %p117
    %p119 = scmp.ne.s32.totalorder %s110, %s111
    %p120 = scmp.eq.s32.totalorder %s16, 0
    %p121 = por %p119, %p120
    %p122 = scmp.ne.s32.totalorder %s110, %s111
    %p123 = scmp.eq.s32.totalorder %s17, 1
    %p124 = por %p122, %p123
    %p126 = scmp.ne.s32.totalorder %s111, %s125
    %p127 = scmp.eq.s32.totalorder %s17, 0
    %p128 = por %p126, %p127
    %s129 = ssub.s32 %s11, %s18
    %p130 = scmp.eq.s32.totalorder %s129, 0
    %s132 = sadd.s32 %s131, 1
    %s133 = scalar_select %p130, %s131, %s132
    %p136 = pneg %p130
    %p137 = scmp.eq.s32.totalorder %s11, 1
    %p138 = por %p136, %p137
    %p139 = scmp.ne.s32.totalorder %s131, %s134
    %p140 = scmp.eq.s32.totalorder %s11, 0
    %p141 = por %p139, %p140
    %p142 = scmp.ne.s32.totalorder %s131, %s134
    %p143 = scmp.eq.s32.totalorder %s16, 1
    %p144 = por %p142, %p143
    %p145 = scmp.ne.s32.totalorder %s134, %s135
    %p146 = scmp.eq.s32.totalorder %s16, 0
    %p147 = por %p145, %p146
    %p148 = scmp.ne.s32.totalorder %s134, %s135
    %p149 = scmp.eq.s32.totalorder %s17, 1
    %p150 = por %p148, %p149
    %p152 = scmp.ne.s32.totalorder %s135, %s151
    %p153 = scmp.eq.s32.totalorder %s17, 0
    %p154 = por %p152, %p153
    %p155 = scmp.le.s32.totalorder 1, %s11
    %p156 = scmp.lt.s32.totalorder %s11, 3
    %p157 = pnand %p155, %p156
    %p158 = pneg %p157
    // Predicated region
    $region9: #{mlla_block_forward.4} parent=5 // pred_check
      _
    $region10: #{mlla_block_forward.4} parent=5 // pred_check_branch
      %160 = sbr.rel (%p157) target = $region12
    $region11: #{mlla_block_forward.4} parent=5 // pred_region
      %s161 = ssub.s32 %s11, 1
      // Predicated region
      $region13: #{mlla_block_forward.4} parent=11 // pred_check
        %p162 = pneg %p58
      $region14: #{mlla_block_forward.4} parent=11 // pred_check_branch
        %164 = sbr.rel (%p162) target = $region16
      $region15: #{mlla_block_forward.4} parent=11 // pred_region
        _
      $region16: #{mlla_block_forward.4} parent=11 // pred_fallthru
        _
      // Predicated region
      $region17: #{mlla_block_forward.4} parent=11 // pred_check
        %p165 = pneg %p79
      $region18: #{mlla_block_forward.4} parent=11 // pred_check_branch
        %167 = sbr.rel (%p165) target = $region20
      $region19: #{mlla_block_forward.4} parent=11 // pred_region
        _
      $region20: #{mlla_block_forward.4} parent=11 // pred_fallthru
        _
      // Predicated region
      $region21: #{mlla_block_forward.4} parent=11 // pred_check
        %p168 = pneg %p100
      $region22: #{mlla_block_forward.4} parent=11 // pred_check_branch
        %170 = sbr.rel (%p168) target = $region24
      $region23: #{mlla_block_forward.4} parent=11 // pred_region
        _
      $region24: #{mlla_block_forward.4} parent=11 // pred_fallthru
        _
      // Predicated region
      $region25: #{mlla_block_forward.4} parent=11 // pred_check
        %p171 = pneg %p121
      $region26: #{mlla_block_forward.4} parent=11 // pred_check_branch
        %173 = sbr.rel (%p171) target = $region28
      $region27: #{mlla_block_forward.4} parent=11 // pred_region
        _
      $region28: #{mlla_block_forward.4} parent=11 // pred_fallthru
        _
    $region12: #{mlla_block_forward.4} parent=5 // pred_fallthru
      _
    %p174 = scmp.lt.s32.totalorder %s11, 2
    // Predicated region
    $region29: #{mlla_block_forward.4} parent=5 // pred_check
      %p175 = pneg %p174
    $region30: #{mlla_block_forward.4} parent=5 // pred_check_branch
      %177 = sbr.rel (%p175) target = $region32
    $region31: #{mlla_block_forward.4} parent=5 // pred_region
      // Predicated region
      $region33: #{mlla_block_forward.4} parent=31 // pred_check
        %p178 = pneg %p31
      $region34: #{mlla_block_forward.4} parent=31 // pred_check_branch
        %180 = sbr.rel (%p178) target = $region36
      $region35: #{mlla_block_forward.4} parent=31 // pred_region
        %p181 = scmp.lt.s32.totalorder %s11, 1
        %s182 = scalar_select %p181, %s11, 1
        %s183 = smul.addr %s182, 8
        %s184 = smul.addr %s183, 8
        %s185 = scalar_lea.vmem %s0, %s184
      $region36: #{mlla_block_forward.4} parent=31 // pred_fallthru
        _
    $region32: #{mlla_block_forward.4} parent=5 // pred_fallthru
      _
    %p186 = scmp.le.s32.totalorder 1, %s11
    %p187 = scmp.lt.s32.totalorder %s11, 3
    %p188 = pnand %p186, %p187
    %p189 = pneg %p188
    // Predicated region
    $region37: #{mlla_block_forward.4} parent=5 // pred_check
      _
    $region38: #{mlla_block_forward.4} parent=5 // pred_check_branch
      %191 = sbr.rel (%p188) target = $region40
    $region39: #{mlla_block_forward.4} parent=5 // pred_region
      %s192 = ssub.s32 %s11, 1
      %p193 = scmp.lt.s32.totalorder %s16, 1
      %s194 = scalar_select %p193, %s16, 1
      %s195 = smul.addr %s194, 8
      %s196 = smul.addr %s195, 8
      %s197 = scalar_lea.vmem %s0, %s196
      %p198 = pneg %p37
      %p199 = pneg %p34
      %p200 = pneg %p58
      %p201 = pneg %p55
      %p202 = pneg %p79
      %p203 = pneg %p76
      %p204 = pneg %p100
      %p205 = pneg %p97
      %p206 = pneg %p121
      %p207 = pneg %p118
      %p208 = pneg %p147
      %p209 = pneg %p144
      %p210 = scmp.lt.s32.totalorder %s16, 1
      %s211 = scalar_select %p210, %s16, 1
      %s212 = smul.addr %s211, 8
      %s213 = smul.addr %s212, 4
      %s214 = scalar_lea.vmem %s5, %s213
      %p215 = scmp.lt.s32.totalorder %s16, 1
      %s216 = scalar_select %p215, %s16, 1
      %s217 = smul.addr %s216, 8
      %s218 = smul.addr %s217, 8
      %s219 = scalar_lea.vmem %s0, %s218
      %p220 = scmp.lt.s32.totalorder %s16, 1
      %s221 = scalar_select %p220, %s16, 1
      %s222 = smul.addr %s221, 8
      %s223 = smul.addr %s222, 4
      %s224 = scalar_lea.vmem %s5, %s223
      %p225 = scmp.eq.s32.totalorder %s16, 0
      // Predicated region
      $region41: #{mlla_block_forward.4} parent=39 // pred_check
        %p226 = pneg %p225
      $region42: #{mlla_block_forward.4} parent=39 // pred_check_branch
        %228 = sbr.rel (%p226) target = $region44
      $region43: #{mlla_block_forward.4} parent=39 // pred_region
        %229 = vst [vmem:[#allocation2] sm:$0xff] 0.0
        %230 = vst [vmem:[#allocation2 + $0x8] sm:$0xff] 0.0
        %231 = vst [vmem:[#allocation2 + $0x10] sm:$0xff] 0.0
        %232 = vst [vmem:[#allocation2 + $0x18] sm:$0xff] 0.0
        %233 = vst [vmem:[#allocation2 + $0x20] sm:$0xff] 0.0
        %234 = vst [vmem:[#allocation2 + $0x28] sm:$0xff] 0.0
        %235 = vst [vmem:[#allocation2 + $0x30] sm:$0xff] 0.0
        %236 = vst [vmem:[#allocation2 + $0x38] sm:$0xff] 0.0
        %237 = vst [vmem:[#allocation2 + $0x40] sm:$0xff] 0.0
        %238 = vst [vmem:[#allocation2 + $0x48] sm:$0xff] 0.0
        %239 = vst [vmem:[#allocation3] sm:$0xff] 0.0
        %240 = vst [vmem:[#allocation3 + $0x8] sm:$0xff] 0.0
        %241 = vst [vmem:[#allocation3 + $0x10] sm:$0xff] 0.0
        %242 = vst [vmem:[#allocation3 + $0x18] sm:$0xff] 0.0
        %243 = vst [vmem:[#allocation3 + $0x20] sm:$0xff] 0.0
        %244 = vst [vmem:[#allocation3 + $0x28] sm:$0xff] 0.0
        %245 = vst [vmem:[#allocation3 + $0x30] sm:$0xff] 0.0
        %246 = vst [vmem:[#allocation3 + $0x38] sm:$0xff] 0.0
        %247 = vst [vmem:[#allocation3 + $0x40] sm:$0xff] 0.0
        %248 = vst [vmem:[#allocation3 + $0x48] sm:$0xff] 0.0
        %249 = vst [vmem:[#allocation4] sm:$0xff] 0.0
        %250 = vst [vmem:[#allocation4 + $0x8] sm:$0xff] 0.0
        %251 = vst [vmem:[#allocation4 + $0x10] sm:$0xff] 0.0
        %252 = vst [vmem:[#allocation4 + $0x18] sm:$0xff] 0.0
        %253 = vst [vmem:[#allocation4 + $0x20] sm:$0xff] 0.0
        %254 = vst [vmem:[#allocation4 + $0x28] sm:$0xff] 0.0
        %255 = vst [vmem:[#allocation4 + $0x30] sm:$0xff] 0.0
        %256 = vst [vmem:[#allocation4 + $0x38] sm:$0xff] 0.0
        %257 = vst [vmem:[#allocation4 + $0x40] sm:$0xff] 0.0
        %258 = vst [vmem:[#allocation4 + $0x48] sm:$0xff] 0.0
      $region44: #{mlla_block_forward.4} parent=39 // pred_fallthru
        _
      %v259 = vld [vmem:[%s219] sm:$0xff]
      %v260 = vld [vmem:[%s219 + $0x8] sm:$0xff]
      %v261 = vld [vmem:[%s219 + $0x10] sm:$0xff]
      %v262 = vld [vmem:[%s219 + $0x18] sm:$0xff]
      %v263 = vld [vmem:[%s219 + $0x20] sm:$0xff]
      %v264 = vld [vmem:[%s219 + $0x28] sm:$0xff]
      %v265 = vld [vmem:[%s219 + $0x30] sm:$0xff]
      %v266 = vld [vmem:[%s219 + $0x38] sm:$0xff]
      %267 = vst [vmem:[#allocation2 + $0x8] sm:$0xff] %v259
      %268 = vst [vmem:[#allocation2 + $0x10] sm:$0xff] %v260
      %269 = vst [vmem:[#allocation2 + $0x18] sm:$0xff] %v261
      %270 = vst [vmem:[#allocation2 + $0x20] sm:$0xff] %v262
      %271 = vst [vmem:[#allocation2 + $0x28] sm:$0xff] %v263
      %272 = vst [vmem:[#allocation2 + $0x30] sm:$0xff] %v264
      %273 = vst [vmem:[#allocation2 + $0x38] sm:$0xff] %v265
      %274 = vst [vmem:[#allocation2 + $0x40] sm:$0xff] %v266
      %275 = vst [vmem:[#allocation3 + $0x9] sm:$0xff] %v259
      %276 = vst [vmem:[#allocation3 + $0x11] sm:$0xff] %v260
      %277 = vst [vmem:[#allocation3 + $0x19] sm:$0xff] %v261
      %278 = vst [vmem:[#allocation3 + $0x21] sm:$0xff] %v262
      %279 = vst [vmem:[#allocation3 + $0x29] sm:$0xff] %v263
      %280 = vst [vmem:[#allocation3 + $0x31] sm:$0xff] %v264
      %281 = vst [vmem:[#allocation3 + $0x39] sm:$0xff] %v265
      %282 = vst [vmem:[#allocation3 + $0x41] sm:$0xff] %v266
      %283 = vst [vmem:[#allocation4 + $0x7] sm:$0xff] %v259
      %284 = vst [vmem:[#allocation4 + $0xf] sm:$0xff] %v260
      %285 = vst [vmem:[#allocation4 + $0x17] sm:$0xff] %v261
      %286 = vst [vmem:[#allocation4 + $0x1f] sm:$0xff] %v262
      %287 = vst [vmem:[#allocation4 + $0x27] sm:$0xff] %v263
      %288 = vst [vmem:[#allocation4 + $0x2f] sm:$0xff] %v264
      %289 = vst [vmem:[#allocation4 + $0x37] sm:$0xff] %v265
      %290 = vst [vmem:[#allocation4 + $0x3f] sm:$0xff] %v266
      %v291 = vld [vmem:[%s3] sm:$0xff]
      %v292 = vld [vmem:[%s3 + $0x8] sm:$0x1]
      %v293 = vld [vmem:[%s4] sm:$0x1]
      %v294 = vld [vmem:[%s1] sm:$0xff]
      %v295 = vld [vmem:[%s1 + $0x8] sm:$0xff]
      %v296 = vld [vmem:[%s1 + $0x10] sm:$0xff]
      %v297 = vld [vmem:[%s1 + $0x18] sm:$0xff]
      %v298 = vld [vmem:[%s1 + $0x20] sm:$0xff]
      %v299 = vld [vmem:[%s1 + $0x28] sm:$0xff]
      %v300 = vld [vmem:[%s1 + $0x30] sm:$0xff]
      %v301 = vld [vmem:[%s1 + $0x38] sm:$0xff]
      %v302 = vld [vmem:[%s2] sm:$0xff]
      %v303 = vld [vmem:[%s2 + $0x8] sm:$0xff]
      %v304 = vld [vmem:[%s2 + $0x10] sm:$0xff]
      %v305 = vld [vmem:[%s2 + $0x18] sm:$0xff]
      %v306 = vld [vmem:[%s2 + $0x20] sm:$0xff]
      %v307 = vld [vmem:[%s2 + $0x28] sm:$0xff]
      %v308 = vld [vmem:[%s2 + $0x30] sm:$0xff]
      %v309 = vld [vmem:[%s2 + $0x38] sm:$0xff]
      %v310 = vld [vmem:[#allocation3] sm:$0xff]
      %v311 = vld [vmem:[#allocation3 + $0x8] sm:$0xff]
      %v312 = vld [vmem:[#allocation3 + $0x10] sm:$0xff]
      %v313 = vld [vmem:[#allocation3 + $0x18] sm:$0xff]
      %v314 = vld [vmem:[#allocation3 + $0x20] sm:$0xff]
      %v315 = vld [vmem:[#allocation3 + $0x28] sm:$0xff]
      %v316 = vld [vmem:[#allocation3 + $0x30] sm:$0xff]
      %v317 = vld [vmem:[#allocation3 + $0x38] sm:$0xff]
      %v318 = vlaneseq
      %v319 = vshrl.u32 %v318, 7
      %v320 = vsub.s32 0, %v319
      %v321 = vrot.slane %v291, %v320
      %v322 = vmul.f32 %v310, %v321
      %v323 = vmul.f32 %v311, %v321
      %v324 = vmul.f32 %v312, %v321
      %v325 = vmul.f32 %v313, %v321
      %v326 = vmul.f32 %v314, %v321
      %v327 = vmul.f32 %v315, %v321
      %v328 = vmul.f32 %v316, %v321
      %v329 = vmul.f32 %v317, %v321
      %v330 = vld [vmem:[#allocation2] sm:$0xff]
      %v331 = vld [vmem:[#allocation2 + $0x8] sm:$0xff]
      %v332 = vld [vmem:[#allocation2 + $0x10] sm:$0xff]
      %v333 = vld [vmem:[#allocation2 + $0x18] sm:$0xff]
      %v334 = vld [vmem:[#allocation2 + $0x20] sm:$0xff]
      %v335 = vld [vmem:[#allocation2 + $0x28] sm:$0xff]
      %v336 = vld [vmem:[#allocation2 + $0x30] sm:$0xff]
      %v337 = vld [vmem:[#allocation2 + $0x38] sm:$0xff]
      %v338 = vlaneseq
      %v339 = vshrl.u32 %v338, 7
      %v340 = vsub.s32 1, %v339
      %v341 = vrot.slane %v291, %v340
      %v342 = vmul.f32 %v330, %v341
      %v343 = vmul.f32 %v331, %v341
      %v344 = vmul.f32 %v332, %v341
      %v345 = vmul.f32 %v333, %v341
      %v346 = vmul.f32 %v334, %v341
      %v347 = vmul.f32 %v335, %v341
      %v348 = vmul.f32 %v336, %v341
      %v349 = vmul.f32 %v337, %v341
      %v350 = vld [vmem:[#allocation4] sm:$0xff]
      %v351 = vld [vmem:[#allocation4 + $0x8] sm:$0xff]
      %v352 = vld [vmem:[#allocation4 + $0x10] sm:$0xff]
      %v353 = vld [vmem:[#allocation4 + $0x18] sm:$0xff]
      %v354 = vld [vmem:[#allocation4 + $0x20] sm:$0xff]
      %v355 = vld [vmem:[#allocation4 + $0x28] sm:$0xff]
      %v356 = vld [vmem:[#allocation4 + $0x30] sm:$0xff]
      %v357 = vld [vmem:[#allocation4 + $0x38] sm:$0xff]
      %v358 = vlaneseq
      %v359 = vshrl.u32 %v358, 7
      %v360 = vsub.s32 2, %v359
      %v361 = vrot.slane %v291, %v360
      %v362 = vmul.f32 %v350, %v361
      %v363 = vmul.f32 %v351, %v361
      %v364 = vmul.f32 %v352, %v361
      %v365 = vmul.f32 %v353, %v361
      %v366 = vmul.f32 %v354, %v361
      %v367 = vmul.f32 %v355, %v361
      %v368 = vmul.f32 %v356, %v361
      %v369 = vmul.f32 %v357, %v361
      %v370 = vld [vmem:[#allocation3 + $0x40] sm:$0xff]
      %v371 = vlaneseq
      %v372 = vshrl.u32 %v371, 7
      %v373 = vsub.s32 3, %v372
      %v374 = vrot.slane %v291, %v373
      %v375 = vmul.f32 %v311, %v374
      %v376 = vmul.f32 %v312, %v374
      %v377 = vmul.f32 %v313, %v374
      %v378 = vmul.f32 %v314, %v374
      %v379 = vmul.f32 %v315, %v374
      %v380 = vmul.f32 %v316, %v374
      %v381 = vmul.f32 %v317, %v374
      %v382 = vmul.f32 %v370, %v374
      %v383 = vld [vmem:[#allocation2 + $0x40] sm:$0xff]
      %v384 = vlaneseq
      %v385 = vshrl.u32 %v384, 7
      %v386 = vsub.s32 4, %v385
      %v387 = vrot.slane %v291, %v386
      %v388 = vmul.f32 %v331, %v387
      %v389 = vmul.f32 %v332, %v387
      %v390 = vmul.f32 %v333, %v387
      %v391 = vmul.f32 %v334, %v387
      %v392 = vmul.f32 %v335, %v387
      %v393 = vmul.f32 %v336, %v387
      %v394 = vmul.f32 %v337, %v387
      %v395 = vmul.f32 %v383, %v387
      %v396 = vld [vmem:[#allocation4 + $0x40] sm:$0xff]
      %v397 = vlaneseq
      %v398 = vshrl.u32 %v397, 7
      %v399 = vsub.s32 5, %v398
      %v400 = vrot.slane %v291, %v399
      %v401 = vmul.f32 %v351, %v400
      %v402 = vmul.f32 %v352, %v400
      %v403 = vmul.f32 %v353, %v400
      %v404 = vmul.f32 %v354, %v400
      %v405 = vmul.f32 %v355, %v400
      %v406 = vmul.f32 %v356, %v400
      %v407 = vmul.f32 %v357, %v400
      %v408 = vmul.f32 %v396, %v400
      %v409 = vadd.f32 %v322, %v375
      %v410 = vadd.f32 %v323, %v376
      %v411 = vadd.f32 %v324, %v377
      %v412 = vadd.f32 %v325, %v378
      %v413 = vadd.f32 %v326, %v379
      %v414 = vadd.f32 %v327, %v380
      %v415 = vadd.f32 %v328, %v381
      %v416 = vadd.f32 %v329, %v382
      %v417 = vadd.f32 %v342, %v388
      %v418 = vadd.f32 %v343, %v389
      %v419 = vadd.f32 %v344, %v390
      %v420 = vadd.f32 %v345, %v391
      %v421 = vadd.f32 %v346, %v392
      %v422 = vadd.f32 %v347, %v393
      %v423 = vadd.f32 %v348, %v394
      %v424 = vadd.f32 %v349, %v395
      %v425 = vadd.f32 %v362, %v401
      %v426 = vadd.f32 %v363, %v402
      %v427 = vadd.f32 %v364, %v403
      %v428 = vadd.f32 %v365, %v404
      %v429 = vadd.f32 %v366, %v405
      %v430 = vadd.f32 %v367, %v406
      %v431 = vadd.f32 %v368, %v407
      %v432 = vadd.f32 %v369, %v408
      %v433 = vld [vmem:[#allocation3 + $0x10] sm:$0xff]
      %v434 = vld [vmem:[#allocation3 + $0x18] sm:$0xff]
      %v435 = vld [vmem:[#allocation3 + $0x20] sm:$0xff]
      %v436 = vld [vmem:[#allocation3 + $0x28] sm:$0xff]
      %v437 = vld [vmem:[#allocation3 + $0x30] sm:$0xff]
      %v438 = vld [vmem:[#allocation3 + $0x38] sm:$0xff]
      %v439 = vld [vmem:[#allocation3 + $0x40] sm:$0xff]
      %v440 = vld [vmem:[#allocation3 + $0x48] sm:$0xff]
      %v441 = vlaneseq
      %v442 = vshrl.u32 %v441, 7
      %v443 = vsub.s32 6, %v442
      %v444 = vrot.slane %v291, %v443
      %v445 = vmul.f32 %v433, %v444
      %v446 = vmul.f32 %v434, %v444
      %v447 = vmul.f32 %v435, %v444
      %v448 = vmul.f32 %v436, %v444
      %v449 = vmul.f32 %v437, %v444
      %v450 = vmul.f32 %v438, %v444
      %v451 = vmul.f32 %v439, %v444
      %v452 = vmul.f32 %v440, %v444
      %v453 = vld [vmem:[#allocation2 + $0x10] sm:$0xff]
      %v454 = vld [vmem:[#allocation2 + $0x18] sm:$0xff]
      %v455 = vld [vmem:[#allocation2 + $0x20] sm:$0xff]
      %v456 = vld [vmem:[#allocation2 + $0x28] sm:$0xff]
      %v457 = vld [vmem:[#allocation2 + $0x30] sm:$0xff]
      %v458 = vld [vmem:[#allocation2 + $0x38] sm:$0xff]
      %v459 = vld [vmem:[#allocation2 + $0x40] sm:$0xff]
      %v460 = vld [vmem:[#allocation2 + $0x48] sm:$0xff]
      %v461 = vlaneseq
      %v462 = vshrl.u32 %v461, 7
      %v463 = vsub.s32 7, %v462
      %v464 = vrot.slane %v291, %v463
      %v465 = vmul.f32 %v453, %v464
      %v466 = vmul.f32 %v454, %v464
      %v467 = vmul.f32 %v455, %v464
      %v468 = vmul.f32 %v456, %v464
      %v469 = vmul.f32 %v457, %v464
      %v470 = vmul.f32 %v458, %v464
      %v471 = vmul.f32 %v459, %v464
      %v472 = vmul.f32 %v460, %v464
      %v473 = vld [vmem:[#allocation4 + $0x10] sm:$0xff]
      %v474 = vld [vmem:[#allocation4 + $0x18] sm:$0xff]
      %v475 = vld [vmem:[#allocation4 + $0x20] sm:$0xff]
      %v476 = vld [vmem:[#allocation4 + $0x28] sm:$0xff]
      %v477 = vld [vmem:[#allocation4 + $0x30] sm:$0xff]
      %v478 = vld [vmem:[#allocation4 + $0x38] sm:$0xff]
      %v479 = vld [vmem:[#allocation4 + $0x40] sm:$0xff]
      %v480 = vld [vmem:[#allocation4 + $0x48] sm:$0xff]
      %v481 = vlaneseq
      %v482 = vshrl.u32 %v481, 7
      %v483 = vsub.s32 0, %v482
      %v484 = vrot.slane %v292, %v483
      %v485 = vmul.f32 %v473, %v484
      %v486 = vmul.f32 %v474, %v484
      %v487 = vmul.f32 %v475, %v484
      %v488 = vmul.f32 %v476, %v484
      %v489 = vmul.f32 %v477, %v484
      %v490 = vmul.f32 %v478, %v484
      %v491 = vmul.f32 %v479, %v484
      %v492 = vmul.f32 %v480, %v484
      %v493 = vadd.f32 %v409, %v445
      %v494 = vadd.f32 %v410, %v446
      %v495 = vadd.f32 %v411, %v447
      %v496 = vadd.f32 %v412, %v448
      %v497 = vadd.f32 %v413, %v449
      %v498 = vadd.f32 %v414, %v450
      %v499 = vadd.f32 %v415, %v451
      %v500 = vadd.f32 %v416, %v452
      %v501 = vadd.f32 %v417, %v465
      %v502 = vadd.f32 %v418, %v466
      %v503 = vadd.f32 %v419, %v467
      %v504 = vadd.f32 %v420, %v468
      %v505 = vadd.f32 %v421, %v469
      %v506 = vadd.f32 %v422, %v470
      %v507 = vadd.f32 %v423, %v471
      %v508 = vadd.f32 %v424, %v472
      %v509 = vadd.f32 %v425, %v485
      %v510 = vadd.f32 %v426, %v486
      %v511 = vadd.f32 %v427, %v487
      %v512 = vadd.f32 %v428, %v488
      %v513 = vadd.f32 %v429, %v489
      %v514 = vadd.f32 %v430, %v490
      %v515 = vadd.f32 %v431, %v491
      %v516 = vadd.f32 %v432, %v492
      %518 = vset.pattern.permute.xlu0 0
      %519 = vperm.xlu0 %518, %v294
      %v520 = vpop.permute.xlu0 %519
      %523 = vset.pattern.permute.xlu0 0
      %524 = vperm.xlu0 %523, %v295
      %v525 = vpop.permute.xlu0 %524
      %528 = vset.pattern.permute.xlu0 0
      %529 = vperm.xlu0 %528, %v296
      %v530 = vpop.permute.xlu0 %529
      %533 = vset.pattern.permute.xlu0 0
      %534 = vperm.xlu0 %533, %v297
      %v535 = vpop.permute.xlu0 %534
      %538 = vset.pattern.permute.xlu0 0
      %539 = vperm.xlu0 %538, %v298
      %v540 = vpop.permute.xlu0 %539
      %543 = vset.pattern.permute.xlu0 0
      %544 = vperm.xlu0 %543, %v299
      %v545 = vpop.permute.xlu0 %544
      %548 = vset.pattern.permute.xlu0 0
      %549 = vperm.xlu0 %548, %v300
      %v550 = vpop.permute.xlu0 %549
      %553 = vset.pattern.permute.xlu0 0
      %554 = vperm.xlu0 %553, %v301
      %v555 = vpop.permute.xlu0 %554
      %v557 = vmul.f32 %v493, %v520
      %v558 = vmul.f32 %v494, %v525
      %v559 = vmul.f32 %v495, %v530
      %v560 = vmul.f32 %v496, %v535
      %v561 = vmul.f32 %v497, %v540
      %v562 = vmul.f32 %v498, %v545
      %v563 = vmul.f32 %v499, %v550
      %v564 = vmul.f32 %v500, %v555
      %v565 = vadd.f32 %v557, %v501
      %v566 = vadd.f32 %v558, %v502
      %v567 = vadd.f32 %v559, %v503
      %v568 = vadd.f32 %v560, %v504
      %v569 = vadd.f32 %v561, %v505
      %v570 = vadd.f32 %v562, %v506
      %v571 = vadd.f32 %v563, %v507
      %v572 = vadd.f32 %v564, %v508
      %574 = vset.pattern.permute.xlu0 0
      %575 = vperm.xlu0 %574, %v302
      %v576 = vpop.permute.xlu0 %575
      %579 = vset.pattern.permute.xlu0 0
      %580 = vperm.xlu0 %579, %v303
      %v581 = vpop.permute.xlu0 %580
      %584 = vset.pattern.permute.xlu0 0
      %585 = vperm.xlu0 %584, %v304
      %v586 = vpop.permute.xlu0 %585
      %589 = vset.pattern.permute.xlu0 0
      %590 = vperm.xlu0 %589, %v305
      %v591 = vpop.permute.xlu0 %590
      %594 = vset.pattern.permute.xlu0 0
      %595 = vperm.xlu0 %594, %v306
      %v596 = vpop.permute.xlu0 %595
      %599 = vset.pattern.permute.xlu0 0
      %600 = vperm.xlu0 %599, %v307
      %v601 = vpop.permute.xlu0 %600
      %604 = vset.pattern.permute.xlu0 0
      %605 = vperm.xlu0 %604, %v308
      %v606 = vpop.permute.xlu0 %605
      %609 = vset.pattern.permute.xlu0 0
      %610 = vperm.xlu0 %609, %v309
      %v611 = vpop.permute.xlu0 %610
      %v613 = vmul.f32 %v509, %v576
      %v614 = vmul.f32 %v510, %v581
      %v615 = vmul.f32 %v511, %v586
      %v616 = vmul.f32 %v512, %v591
      %v617 = vmul.f32 %v513, %v596
      %v618 = vmul.f32 %v514, %v601
      %v619 = vmul.f32 %v515, %v606
      %v620 = vmul.f32 %v516, %v611
      %v621 = vadd.f32 %v565, %v613
      %v622 = vadd.f32 %v566, %v614
      %v623 = vadd.f32 %v567, %v615
      %v624 = vadd.f32 %v568, %v616
      %v625 = vadd.f32 %v569, %v617
      %v626 = vadd.f32 %v570, %v618
      %v627 = vadd.f32 %v571, %v619
      %v628 = vadd.f32 %v572, %v620
      %v630 = vlaneseq
      %v631 = vshrl.u32 %v630, 7
      %v632 = vsub.s32 0, %v631
      %v633 = vrot.slane %v293, %v632
      %v635 = vadd.f32 %v621, %v633
      %v636 = vadd.f32 %v622, %v633
      %v637 = vadd.f32 %v623, %v633
      %v638 = vadd.f32 %v624, %v633
      %v639 = vadd.f32 %v625, %v633
      %v640 = vadd.f32 %v626, %v633
      %v641 = vadd.f32 %v627, %v633
      %v642 = vadd.f32 %v628, %v633
      %v643 = vadd.f32 %v259, %v635
      %v644 = vadd.f32 %v260, %v636
      %v645 = vadd.f32 %v261, %v637
      %v646 = vadd.f32 %v262, %v638
      %v647 = vadd.f32 %v263, %v639
      %v648 = vadd.f32 %v264, %v640
      %v649 = vadd.f32 %v265, %v641
      %v650 = vadd.f32 %v266, %v642
      %v651 = vpack.c.bf16 %v644, %v643
      %v652 = vpack.c.bf16 %v646, %v645
      %v653 = vpack.c.bf16 %v648, %v647
      %v654 = vpack.c.bf16 %v650, %v649
      %v659 = vunpack.c.l.b16 %v651
      %v660 = vunpack.c.h.b16 %v651
      %v661 = vunpack.c.l.b16 %v652
      %v662 = vunpack.c.h.b16 %v652
      %v663 = vunpack.c.l.b16 %v653
      %v664 = vunpack.c.h.b16 %v653
      %v665 = vunpack.c.l.b16 %v654
      %v666 = vunpack.c.h.b16 %v654
      %v667 = vpack.c.b16 %v659, %v659
      %v668 = vpack.c.b16 %v660, %v660
      %v669 = vpack.c.b16 %v661, %v661
      %v670 = vpack.c.b16 %v662, %v662
      %v671 = vpack.c.b16 %v663, %v663
      %v672 = vpack.c.b16 %v664, %v664
      %v673 = vpack.c.b16 %v665, %v665
      %v674 = vpack.c.b16 %v666, %v666
      %683 = vst [vmem:[%s224] sm:$0xf] %v667
      %684 = vst [vmem:[%s224 + $0x4] sm:$0xf] %v668
      %685 = vst [vmem:[%s224 + $0x8] sm:$0xf] %v669
      %686 = vst [vmem:[%s224 + $0xc] sm:$0xf] %v670
      %687 = vst [vmem:[%s224 + $0x10] sm:$0xf] %v671
      %688 = vst [vmem:[%s224 + $0x14] sm:$0xf] %v672
      %689 = vst [vmem:[%s224 + $0x18] sm:$0xf] %v673
      %690 = vst [vmem:[%s224 + $0x1c] sm:$0xf] %v674
      %p691 = scmp.lt.s32.totalorder %s16, 1
      %s692 = scalar_select %p691, %s16, 1
      %s693 = smul.addr %s692, 8
      %s694 = smul.addr %s693, 4
      %s695 = scalar_lea.vmem %s5, %s694
      // Predicated region
      $region45: #{mlla_block_forward.4} parent=39 // pred_check
        %p696 = pneg %p144
      $region46: #{mlla_block_forward.4} parent=39 // pred_check_branch
        %698 = sbr.rel (%p696) target = $region48
      $region47: #{mlla_block_forward.4} parent=39 // pred_region
        _
      $region48: #{mlla_block_forward.4} parent=39 // pred_fallthru
        _
    $region40: #{mlla_block_forward.4} parent=5 // pred_fallthru
      _
    %p699 = scmp.le.s32.totalorder 2, %s11
    // Predicated region
    $region49: #{mlla_block_forward.4} parent=5 // pred_check
      %p700 = pneg %p699
    $region50: #{mlla_block_forward.4} parent=5 // pred_check_branch
      %702 = sbr.rel (%p700) target = $region52
    $region51: #{mlla_block_forward.4} parent=5 // pred_region
      %s703 = ssub.s32 %s11, 2
      // Predicated region
      $region53: #{mlla_block_forward.4} parent=51 // pred_check
        %p704 = pneg %p150
      $region54: #{mlla_block_forward.4} parent=51 // pred_check_branch
        %706 = sbr.rel (%p704) target = $region56
      $region55: #{mlla_block_forward.4} parent=51 // pred_region
        %p707 = scmp.lt.s32.totalorder %s17, 1
        %s708 = scalar_select %p707, %s17, 1
        %s709 = smul.addr %s708, 8
        %s710 = smul.addr %s709, 4
        %s711 = scalar_lea.vmem %s5, %s710
      $region56: #{mlla_block_forward.4} parent=51 // pred_fallthru
        _
    $region52: #{mlla_block_forward.4} parent=5 // pred_fallthru
      _
  $region6: #{mlla_block_forward.4} parent=0 // loop_footer
    %s15 = sadd.s32 1, %s11
  $region7: #{mlla_block_forward.4} parent=0 // loop_footer_branch
    %10 = sbr.rel target = $region3
  $region8: #{mlla_block_forward.4} parent=0 // loop_exit
    _

// kernel: mlla_block_forward.5
$region0: #{mlla_block_forward.5}
  #allocation0 [shape = 'u32[]', space=smem, size = 0x4, offset = 0x4, fixed_abs, tag = 'smem constant byte address 0x4 - core index']
  #allocation1 [shape = 'u32[144,128]{1,0:T(1,128)}', space=vmem, size = 0x12000, scoped, tag = 'internal scratch']
  %s0 = inlined_call_operand.vmem [shape: bf16[128,128], index: 0, kind: input, shape index: {}]
  %s1 = inlined_call_operand.vmem [shape: f32[1,128], index: 1, kind: input, shape index: {}]
  %s2 = inlined_call_operand.vmem [shape: f32[1,128], index: 2, kind: input, shape index: {}]
  %s3 = inlined_call_operand.vmem [shape: bf16[128,128], index: 3, kind: input, shape index: {}]
  %s4 = inlined_call_operand.vmem [shape: f32[1,128], index: 4, kind: input, shape index: {}]
  %s5 = inlined_call_operand.vmem [shape: bf16[128,128], index: 5, kind: input, shape index: {}]
  %s6 = inlined_call_operand.vmem [shape: f32[1,128], index: 6, kind: input, shape index: {}]
  %s7 = inlined_call_operand.vmem [shape: bf16[128,128], index: 7, kind: output, shape index: {0}]
  %s8 = inlined_call_operand.vmem [shape: bf16[128,128], index: 8, kind: output, shape index: {1}]
  %9 = xla_tuple %s7, %s8
  %s10 = sld [smem:[#allocation0]]
  $region46: #{mlla_block_forward.5} parent=0
    _
  %s12 = ssub.s32 1, %s10
  %s13 = scalar_select 0, %s12, %s10
  // Predicated region
  $region2: #{mlla_block_forward.5} parent=0 // pred_check
    _
  $region3: #{mlla_block_forward.5} parent=0 // pred_check_branch
    %15 = sbr.rel (0) target = $region5
  $region4: #{mlla_block_forward.5} parent=0 // pred_region
    _
  $region5: #{mlla_block_forward.5} parent=0 // pred_fallthru
    _
  // Predicated region
  $region6: #{mlla_block_forward.5} parent=0 // pred_check
    _
  $region7: #{mlla_block_forward.5} parent=0 // pred_check_branch
    %17 = sbr.rel (0) target = $region9
  $region8: #{mlla_block_forward.5} parent=0 // pred_region
    _
  $region9: #{mlla_block_forward.5} parent=0 // pred_fallthru
    _
  // Predicated region
  $region10: #{mlla_block_forward.5} parent=0 // pred_check
    _
  $region11: #{mlla_block_forward.5} parent=0 // pred_check_branch
    %19 = sbr.rel (0) target = $region13
  $region12: #{mlla_block_forward.5} parent=0 // pred_region
    _
  $region13: #{mlla_block_forward.5} parent=0 // pred_fallthru
    _
  // Predicated region
  $region14: #{mlla_block_forward.5} parent=0 // pred_check
    _
  $region15: #{mlla_block_forward.5} parent=0 // pred_check_branch
    %21 = sbr.rel (0) target = $region17
  $region16: #{mlla_block_forward.5} parent=0 // pred_region
    _
  $region17: #{mlla_block_forward.5} parent=0 // pred_fallthru
    _
  // Predicated region
  $region18: #{mlla_block_forward.5} parent=0 // pred_check
    _
  $region19: #{mlla_block_forward.5} parent=0 // pred_check_branch
    %23 = sbr.rel (0) target = $region21
  $region20: #{mlla_block_forward.5} parent=0 // pred_region
    _
  $region21: #{mlla_block_forward.5} parent=0 // pred_fallthru
    _
  // Predicated region
  $region22: #{mlla_block_forward.5} parent=0 // pred_check
    _
  $region23: #{mlla_block_forward.5} parent=0 // pred_check_branch
    %25 = sbr.rel (0) target = $region25
  $region24: #{mlla_block_forward.5} parent=0 // pred_region
    _
  $region25: #{mlla_block_forward.5} parent=0 // pred_fallthru
    _
  // Predicated region
  $region26: #{mlla_block_forward.5} parent=0 // pred_check
    _
  $region27: #{mlla_block_forward.5} parent=0 // pred_check_branch
    %27 = sbr.rel (0) target = $region29
  $region28: #{mlla_block_forward.5} parent=0 // pred_region
    _
  $region29: #{mlla_block_forward.5} parent=0 // pred_fallthru
    _
  %v29 = vld [vmem:[%s0] sm:$0xf]
  %v30 = vld [vmem:[%s0 + $0x4] sm:$0xf]
  %v31 = vld [vmem:[%s0 + $0x8] sm:$0xf]
  %v32 = vld [vmem:[%s0 + $0xc] sm:$0xf]
  %v33 = vld [vmem:[%s0 + $0x10] sm:$0xf]
  %v34 = vld [vmem:[%s0 + $0x14] sm:$0xf]
  %v35 = vld [vmem:[%s0 + $0x18] sm:$0xf]
  %v36 = vld [vmem:[%s0 + $0x1c] sm:$0xf]
  %v37 = vld [vmem:[%s0 + $0x20] sm:$0xf]
  %v38 = vld [vmem:[%s0 + $0x24] sm:$0xf]
  %v39 = vld [vmem:[%s0 + $0x28] sm:$0xf]
  %v40 = vld [vmem:[%s0 + $0x2c] sm:$0xf]
  %v41 = vld [vmem:[%s0 + $0x30] sm:$0xf]
  %v42 = vld [vmem:[%s0 + $0x34] sm:$0xf]
  %v43 = vld [vmem:[%s0 + $0x38] sm:$0xf]
  %v44 = vld [vmem:[%s0 + $0x3c] sm:$0xf]
  %v45 = vunpack.c.l.bf16 %v29
  %v46 = vunpack.c.l.bf16 %v30
  %v47 = vunpack.c.l.bf16 %v31
  %v48 = vunpack.c.l.bf16 %v32
  %v49 = vunpack.c.l.bf16 %v33
  %v50 = vunpack.c.l.bf16 %v34
  %v51 = vunpack.c.l.bf16 %v35
  %v52 = vunpack.c.l.bf16 %v36
  %v53 = vunpack.c.l.bf16 %v37
  %v54 = vunpack.c.l.bf16 %v38
  %v55 = vunpack.c.l.bf16 %v39
  %v56 = vunpack.c.l.bf16 %v40
  %v57 = vunpack.c.l.bf16 %v41
  %v58 = vunpack.c.l.bf16 %v42
  %v59 = vunpack.c.l.bf16 %v43
  %v60 = vunpack.c.l.bf16 %v44
  %v61 = vld [vmem:[%s1] sm:$0x1]
  %v62 = vld [vmem:[%s2] sm:$0x1]
  %63 = vadd.xlane.f32.xlu0 %v45
  %v64 = vpop.xlane.xlu0 %63
  %65 = vadd.xlane.f32.xlu0 %v46
  %v66 = vpop.xlane.xlu0 %65
  %67 = vadd.xlane.f32.xlu0 %v47
  %v68 = vpop.xlane.xlu0 %67
  %69 = vadd.xlane.f32.xlu0 %v48
  %v70 = vpop.xlane.xlu0 %69
  %71 = vadd.xlane.f32.xlu0 %v49
  %v72 = vpop.xlane.xlu0 %71
  %73 = vadd.xlane.f32.xlu0 %v50
  %v74 = vpop.xlane.xlu0 %73
  %75 = vadd.xlane.f32.xlu0 %v51
  %v76 = vpop.xlane.xlu0 %75
  %77 = vadd.xlane.f32.xlu0 %v52
  %v78 = vpop.xlane.xlu0 %77
  %79 = vadd.xlane.f32.xlu0 %v53
  %v80 = vpop.xlane.xlu0 %79
  %81 = vadd.xlane.f32.xlu0 %v54
  %v82 = vpop.xlane.xlu0 %81
  %83 = vadd.xlane.f32.xlu0 %v55
  %v84 = vpop.xlane.xlu0 %83
  %85 = vadd.xlane.f32.xlu0 %v56
  %v86 = vpop.xlane.xlu0 %85
  %87 = vadd.xlane.f32.xlu0 %v57
  %v88 = vpop.xlane.xlu0 %87
  %89 = vadd.xlane.f32.xlu0 %v58
  %v90 = vpop.xlane.xlu0 %89
  %91 = vadd.xlane.f32.xlu0 %v59
  %v92 = vpop.xlane.xlu0 %91
  %93 = vadd.xlane.f32.xlu0 %v60
  %v94 = vpop.xlane.xlu0 %93
  %v95 = vrcp.pop 128.0
  %v96 = vmul.f32 %v64, %v95
  %v97 = vmul.f32 %v66, %v95
  %v98 = vmul.f32 %v68, %v95
  %v99 = vmul.f32 %v70, %v95
  %v100 = vmul.f32 %v72, %v95
  %v101 = vmul.f32 %v74, %v95
  %v102 = vmul.f32 %v76, %v95
  %v103 = vmul.f32 %v78, %v95
  %v104 = vmul.f32 %v80, %v95
  %v105 = vmul.f32 %v82, %v95
  %v106 = vmul.f32 %v84, %v95
  %v107 = vmul.f32 %v86, %v95
  %v108 = vmul.f32 %v88, %v95
  %v109 = vmul.f32 %v90, %v95
  %v110 = vmul.f32 %v92, %v95
  %v111 = vmul.f32 %v94, %v95
  %v112 = vsub.f32 %v45, %v96
  %v113 = vsub.f32 %v46, %v97
  %v114 = vsub.f32 %v47, %v98
  %v115 = vsub.f32 %v48, %v99
  %v116 = vsub.f32 %v49, %v100
  %v117 = vsub.f32 %v50, %v101
  %v118 = vsub.f32 %v51, %v102
  %v119 = vsub.f32 %v52, %v103
  %v120 = vsub.f32 %v53, %v104
  %v121 = vsub.f32 %v54, %v105
  %v122 = vsub.f32 %v55, %v106
  %v123 = vsub.f32 %v56, %v107
  %v124 = vsub.f32 %v57, %v108
  %v125 = vsub.f32 %v58, %v109
  %v126 = vsub.f32 %v59, %v110
  %v127 = vsub.f32 %v60, %v111
  %v128 = vmul.f32 %v112, %v112
  %v129 = vmul.f32 %v113, %v113
  %v130 = vmul.f32 %v114, %v114
  %v131 = vmul.f32 %v115, %v115
  %v132 = vmul.f32 %v116, %v116
  %v133 = vmul.f32 %v117, %v117
  %v134 = vmul.f32 %v118, %v118
  %v135 = vmul.f32 %v119, %v119
  %v136 = vmul.f32 %v120, %v120
  %v137 = vmul.f32 %v121, %v121
  %v138 = vmul.f32 %v122, %v122
  %v139 = vmul.f32 %v123, %v123
  %v140 = vmul.f32 %v124, %v124
  %v141 = vmul.f32 %v125, %v125
  %v142 = vmul.f32 %v126, %v126
  %v143 = vmul.f32 %v127, %v127
  %144 = vadd.xlane.f32.xlu0 %v128
  %v145 = vpop.xlane.xlu0 %144
  %146 = vadd.xlane.f32.xlu0 %v129
  %v147 = vpop.xlane.xlu0 %146
  %148 = vadd.xlane.f32.xlu0 %v130
  %v149 = vpop.xlane.xlu0 %148
  %150 = vadd.xlane.f32.xlu0 %v131
  %v151 = vpop.xlane.xlu0 %150
  %152 = vadd.xlane.f32.xlu0 %v132
  %v153 = vpop.xlane.xlu0 %152
  %154 = vadd.xlane.f32.xlu0 %v133
  %v155 = vpop.xlane.xlu0 %154
  %156 = vadd.xlane.f32.xlu0 %v134
  %v157 = vpop.xlane.xlu0 %156
  %158 = vadd.xlane.f32.xlu0 %v135
  %v159 = vpop.xlane.xlu0 %158
  %160 = vadd.xlane.f32.xlu0 %v136
  %v161 = vpop.xlane.xlu0 %160
  %162 = vadd.xlane.f32.xlu0 %v137
  %v163 = vpop.xlane.xlu0 %162
  %164 = vadd.xlane.f32.xlu0 %v138
  %v165 = vpop.xlane.xlu0 %164
  %166 = vadd.xlane.f32.xlu0 %v139
  %v167 = vpop.xlane.xlu0 %166
  %168 = vadd.xlane.f32.xlu0 %v140
  %v169 = vpop.xlane.xlu0 %168
  %170 = vadd.xlane.f32.xlu0 %v141
  %v171 = vpop.xlane.xlu0 %170
  %172 = vadd.xlane.f32.xlu0 %v142
  %v173 = vpop.xlane.xlu0 %172
  %174 = vadd.xlane.f32.xlu0 %v143
  %v175 = vpop.xlane.xlu0 %174
  %v176 = vmul.f32 %v145, %v95
  %v177 = vmul.f32 %v147, %v95
  %v178 = vmul.f32 %v149, %v95
  %v179 = vmul.f32 %v151, %v95
  %v180 = vmul.f32 %v153, %v95
  %v181 = vmul.f32 %v155, %v95
  %v182 = vmul.f32 %v157, %v95
  %v183 = vmul.f32 %v159, %v95
  %v184 = vmul.f32 %v161, %v95
  %v185 = vmul.f32 %v163, %v95
  %v186 = vmul.f32 %v165, %v95
  %v187 = vmul.f32 %v167, %v95
  %v188 = vmul.f32 %v169, %v95
  %v189 = vmul.f32 %v171, %v95
  %v190 = vmul.f32 %v173, %v95
  %v191 = vmul.f32 %v175, %v95
  %v192 = vadd.f32 %v176, 1e-05
  %v193 = vadd.f32 %v177, 1e-05
  %v194 = vadd.f32 %v178, 1e-05
  %v195 = vadd.f32 %v179, 1e-05
  %v196 = vadd.f32 %v180, 1e-05
  %v197 = vadd.f32 %v181, 1e-05
  %v198 = vadd.f32 %v182, 1e-05
  %v199 = vadd.f32 %v183, 1e-05
  %v200 = vadd.f32 %v184, 1e-05
  %v201 = vadd.f32 %v185, 1e-05
  %v202 = vadd.f32 %v186, 1e-05
  %v203 = vadd.f32 %v187, 1e-05
  %v204 = vadd.f32 %v188, 1e-05
  %v205 = vadd.f32 %v189, 1e-05
  %v206 = vadd.f32 %v190, 1e-05
  %v207 = vadd.f32 %v191, 1e-05
  %v208 = vrsqrt.pop %v192
  %v209 = vrsqrt.pop %v193
  %v210 = vrsqrt.pop %v194
  %v211 = vrsqrt.pop %v195
  %v212 = vrsqrt.pop %v196
  %v213 = vrsqrt.pop %v197
  %v214 = vrsqrt.pop %v198
  %v215 = vrsqrt.pop %v199
  %v216 = vrsqrt.pop %v200
  %v217 = vrsqrt.pop %v201
  %v218 = vrsqrt.pop %v202
  %v219 = vrsqrt.pop %v203
  %v220 = vrsqrt.pop %v204
  %v221 = vrsqrt.pop %v205
  %v222 = vrsqrt.pop %v206
  %v223 = vrsqrt.pop %v207
  %v224 = vmul.f32 %v112, %v208
  %v225 = vmul.f32 %v113, %v209
  %v226 = vmul.f32 %v114, %v210
  %v227 = vmul.f32 %v115, %v211
  %v228 = vmul.f32 %v116, %v212
  %v229 = vmul.f32 %v117, %v213
  %v230 = vmul.f32 %v118, %v214
  %v231 = vmul.f32 %v119, %v215
  %v232 = vmul.f32 %v120, %v216
  %v233 = vmul.f32 %v121, %v217
  %v234 = vmul.f32 %v122, %v218
  %v235 = vmul.f32 %v123, %v219
  %v236 = vmul.f32 %v124, %v220
  %v237 = vmul.f32 %v125, %v221
  %v238 = vmul.f32 %v126, %v222
  %v239 = vmul.f32 %v127, %v223
  %v241 = vlaneseq
  %v242 = vshrl.u32 %v241, 7
  %v243 = vsub.s32 0, %v242
  %v244 = vrot.slane %v61, %v243
  %v246 = vmul.f32 %v224, %v244
  %v247 = vmul.f32 %v225, %v244
  %v248 = vmul.f32 %v226, %v244
  %v249 = vmul.f32 %v227, %v244
  %v250 = vmul.f32 %v228, %v244
  %v251 = vmul.f32 %v229, %v244
  %v252 = vmul.f32 %v230, %v244
  %v253 = vmul.f32 %v231, %v244
  %v254 = vmul.f32 %v232, %v244
  %v255 = vmul.f32 %v233, %v244
  %v256 = vmul.f32 %v234, %v244
  %v257 = vmul.f32 %v235, %v244
  %v258 = vmul.f32 %v236, %v244
  %v259 = vmul.f32 %v237, %v244
  %v260 = vmul.f32 %v238, %v244
  %v261 = vmul.f32 %v239, %v244
  %v263 = vlaneseq
  %v264 = vshrl.u32 %v263, 7
  %v265 = vsub.s32 0, %v264
  %v266 = vrot.slane %v62, %v265
  %v268 = vadd.f32 %v246, %v266
  %v269 = vadd.f32 %v247, %v266
  %v270 = vadd.f32 %v248, %v266
  %v271 = vadd.f32 %v249, %v266
  %v272 = vadd.f32 %v250, %v266
  %v273 = vadd.f32 %v251, %v266
  %v274 = vadd.f32 %v252, %v266
  %v275 = vadd.f32 %v253, %v266
  %v276 = vadd.f32 %v254, %v266
  %v277 = vadd.f32 %v255, %v266
  %v278 = vadd.f32 %v256, %v266
  %v279 = vadd.f32 %v257, %v266
  %v280 = vadd.f32 %v258, %v266
  %v281 = vadd.f32 %v259, %v266
  %v282 = vadd.f32 %v260, %v266
  %v283 = vadd.f32 %v261, %v266
  %v284 = vpack.c.bf16 %v269, %v268
  %v285 = vpack.c.bf16 %v271, %v270
  %v286 = vpack.c.bf16 %v273, %v272
  %v287 = vpack.c.bf16 %v275, %v274
  %v288 = vpack.c.bf16 %v277, %v276
  %v289 = vpack.c.bf16 %v279, %v278
  %v290 = vpack.c.bf16 %v281, %v280
  %v291 = vpack.c.bf16 %v283, %v282
  %v292 = vld [vmem:[%s3] sm:$0xf]
  %v293 = vld [vmem:[%s3 + $0x4] sm:$0xf]
  %v294 = vld [vmem:[%s3 + $0x8] sm:$0xf]
  %v295 = vld [vmem:[%s3 + $0xc] sm:$0xf]
  %v296 = vld [vmem:[%s3 + $0x10] sm:$0xf]
  %v297 = vld [vmem:[%s3 + $0x14] sm:$0xf]
  %v298 = vld [vmem:[%s3 + $0x18] sm:$0xf]
  %v299 = vld [vmem:[%s3 + $0x1c] sm:$0xf]
  %v300 = vld [vmem:[%s3 + $0x20] sm:$0xf]
  %v301 = vld [vmem:[%s3 + $0x24] sm:$0xf]
  %v302 = vld [vmem:[%s3 + $0x28] sm:$0xf]
  %v303 = vld [vmem:[%s3 + $0x2c] sm:$0xf]
  %v304 = vld [vmem:[%s3 + $0x30] sm:$0xf]
  %v305 = vld [vmem:[%s3 + $0x34] sm:$0xf]
  %v306 = vld [vmem:[%s3 + $0x38] sm:$0xf]
  %v307 = vld [vmem:[%s3 + $0x3c] sm:$0xf]
  %v308 = vld [vmem:[%s4] sm:$0x1]
  %v310 = vlaneseq
  %v311 = vshrl.u32 %v310, 7
  %v312 = vsub.s32 0, %v311
  %v313 = vrot.slane %v308, %v312
  %v331 = vunpack.c.l.b16 %v292
  %v332 = vunpack.c.l.b16 %v293
  %v333 = vunpack.c.l.b16 %v294
  %v334 = vunpack.c.l.b16 %v295
  %v335 = vunpack.c.l.b16 %v296
  %v336 = vunpack.c.l.b16 %v297
  %v337 = vunpack.c.l.b16 %v298
  %v338 = vunpack.c.l.b16 %v299
  %v339 = vunpack.c.l.b16 %v300
  %v340 = vunpack.c.l.b16 %v301
  %v341 = vunpack.c.l.b16 %v302
  %v342 = vunpack.c.l.b16 %v303
  %v343 = vunpack.c.l.b16 %v304
  %v344 = vunpack.c.l.b16 %v305
  %v345 = vunpack.c.l.b16 %v306
  %v346 = vunpack.c.l.b16 %v307
  %v347 = vpack.c.b16 %v332, %v331
  %v348 = vpack.c.b16 %v334, %v333
  %v349 = vpack.c.b16 %v336, %v335
  %v350 = vpack.c.b16 %v338, %v337
  %v351 = vpack.c.b16 %v340, %v339
  %v352 = vpack.c.b16 %v342, %v341
  %v353 = vpack.c.b16 %v344, %v343
  %v354 = vpack.c.b16 %v346, %v345
  %363 = vmatprep.subr.bf16.mxu0 0
  %364 = vmatpush1.bf16.msra.mxu0 %v354
  %365 = vmatprep.subr.bf16.mxu0 0
  %366 = vmatpush1.bf16.msra.mxu0 %v353
  %367 = vmatprep.subr.bf16.mxu0 0
  %368 = vmatpush1.bf16.msra.mxu0 %v352
  %369 = vmatprep.subr.bf16.mxu0 0
  %370 = vmatpush1.bf16.msra.mxu0 %v351
  %371 = vmatprep.subr.bf16.mxu0 0
  %372 = vmatpush1.bf16.msra.mxu0 %v350
  %373 = vmatprep.subr.bf16.mxu0 0
  %374 = vmatpush1.bf16.msra.mxu0 %v349
  %375 = vmatprep.subr.bf16.mxu0 0
  %376 = vmatpush1.bf16.msra.mxu0 %v348
  %377 = vmatprep.subr.bf16.mxu0 0
  %378 = vmatpush1.bf16.msra.mxu0 %v347
  %379 = vmatprep.subr.bf16.mxu0 0
  %380 = vmatpush2.bf16.msra.mxu0 0
  %381 = vmatprep.subr.bf16.mxu0 0
  %382 = vmatpush2.bf16.msra.mxu0 0
  %383 = vmatprep.subr.bf16.mxu0 0
  %384 = vmatpush2.bf16.msra.mxu0 0
  %385 = vmatprep.subr.bf16.mxu0 0
  %386 = vmatpush2.bf16.msra.mxu0 0
  %387 = vmatprep.subr.bf16.mxu0 0
  %388 = vmatpush2.bf16.msra.mxu0 0
  %389 = vmatprep.subr.bf16.mxu0 0
  %390 = vmatpush2.bf16.msra.mxu0 0
  %391 = vmatprep.subr.bf16.mxu0 0
  %392 = vmatpush2.bf16.msra.mxu0 0
  %393 = vmatprep.subr.bf16.mxu0 0
  %394 = vmatpush2.bf16.msra.mxu0 0
  %395 = vmatprep.mubr.bf16.mxu0 0
  %396 = vmatmul.mubr.bf16.gmra.mxu0 %v284
  %v397 = vpop.f32.mrf.mxu0
  %v398 = vadd.f32 %v313, %v397
  %v399 = vpop.f32.mrf.mxu0
  %v400 = vpop.f32.mrf.mxu0
  %v401 = vadd.f32 %v313, %v400
  %v402 = vpop.f32.mrf.mxu0
  %403 = vmatprep.mubr.bf16.mxu0 0
  %404 = vmatmul.mubr.bf16.gmra.mxu0 %v285
  %v405 = vpop.f32.mrf.mxu0
  %v406 = vadd.f32 %v313, %v405
  %v407 = vpop.f32.mrf.mxu0
  %v408 = vpop.f32.mrf.mxu0
  %v409 = vadd.f32 %v313, %v408
  %v410 = vpop.f32.mrf.mxu0
  %411 = vmatprep.mubr.bf16.mxu0 0
  %412 = vmatmul.mubr.bf16.gmra.mxu0 %v286
  %v413 = vpop.f32.mrf.mxu0
  %v414 = vadd.f32 %v313, %v413
  %v415 = vpop.f32.mrf.mxu0
  %v416 = vpop.f32.mrf.mxu0
  %v417 = vadd.f32 %v313, %v416
  %v418 = vpop.f32.mrf.mxu0
  %419 = vmatprep.mubr.bf16.mxu0 0
  %420 = vmatmul.mubr.bf16.gmra.mxu0 %v287
  %v421 = vpop.f32.mrf.mxu0
  %v422 = vadd.f32 %v313, %v421
  %v423 = vpop.f32.mrf.mxu0
  %v424 = vpop.f32.mrf.mxu0
  %v425 = vadd.f32 %v313, %v424
  %v426 = vpop.f32.mrf.mxu0
  %427 = vmatprep.mubr.bf16.mxu0 0
  %428 = vmatmul.mubr.bf16.gmra.mxu0 %v288
  %v429 = vpop.f32.mrf.mxu0
  %v430 = vadd.f32 %v313, %v429
  %v431 = vpop.f32.mrf.mxu0
  %v432 = vpop.f32.mrf.mxu0
  %v433 = vadd.f32 %v313, %v432
  %v434 = vpop.f32.mrf.mxu0
  %435 = vmatprep.mubr.bf16.mxu0 0
  %436 = vmatmul.mubr.bf16.gmra.mxu0 %v289
  %v437 = vpop.f32.mrf.mxu0
  %v438 = vadd.f32 %v313, %v437
  %v439 = vpop.f32.mrf.mxu0
  %v440 = vpop.f32.mrf.mxu0
  %v441 = vadd.f32 %v313, %v440
  %v442 = vpop.f32.mrf.mxu0
  %443 = vmatprep.mubr.bf16.mxu0 0
  %444 = vmatmul.mubr.bf16.gmra.mxu0 %v290
  %v445 = vpop.f32.mrf.mxu0
  %v446 = vadd.f32 %v313, %v445
  %v447 = vpop.f32.mrf.mxu0
  %v448 = vpop.f32.mrf.mxu0
  %v449 = vadd.f32 %v313, %v448
  %v450 = vpop.f32.mrf.mxu0
  %451 = vmatprep.mubr.bf16.mxu0 0
  %452 = vmatmul.mubr.bf16.gmra.mxu0 %v291
  %v453 = vpop.f32.mrf.mxu0
  %v454 = vadd.f32 %v313, %v453
  %v455 = vpop.f32.mrf.mxu0
  %v456 = vpop.f32.mrf.mxu0
  %v457 = vadd.f32 %v313, %v456
  %v458 = vpop.f32.mrf.mxu0
  %459 = vdwg.mxu0
  %v460 = vand.u32 2147483647, %v398
  %v461 = vand.u32 2147483647, %v401
  %v462 = vand.u32 2147483647, %v406
  %v463 = vand.u32 2147483647, %v409
  %v464 = vand.u32 2147483647, %v414
  %v465 = vand.u32 2147483647, %v417
  %v466 = vand.u32 2147483647, %v422
  %v467 = vand.u32 2147483647, %v425
  %v468 = vand.u32 2147483647, %v430
  %v469 = vand.u32 2147483647, %v433
  %v470 = vand.u32 2147483647, %v438
  %v471 = vand.u32 2147483647, %v441
  %v472 = vand.u32 2147483647, %v446
  %v473 = vand.u32 2147483647, %v449
  %v474 = vand.u32 2147483647, %v454
  %v475 = vand.u32 2147483647, %v457
  %v476 = vsub.f32 0.0, %v460
  %v477 = vsub.f32 0.0, %v461
  %v478 = vsub.f32 0.0, %v462
  %v479 = vsub.f32 0.0, %v463
  %v480 = vsub.f32 0.0, %v464
  %v481 = vsub.f32 0.0, %v465
  %v482 = vsub.f32 0.0, %v466
  %v483 = vsub.f32 0.0, %v467
  %v484 = vsub.f32 0.0, %v468
  %v485 = vsub.f32 0.0, %v469
  %v486 = vsub.f32 0.0, %v470
  %v487 = vsub.f32 0.0, %v471
  %v488 = vsub.f32 0.0, %v472
  %v489 = vsub.f32 0.0, %v473
  %v490 = vsub.f32 0.0, %v474
  %v491 = vsub.f32 0.0, %v475
  %v492 = vmul.f32 %v476, 1.442695
  %v493 = vpow.pop %v492
  %v494 = vmul.f32 %v477, 1.442695
  %v495 = vpow.pop %v494
  %v496 = vmul.f32 %v478, 1.442695
  %v497 = vpow.pop %v496
  %v498 = vmul.f32 %v479, 1.442695
  %v499 = vpow.pop %v498
  %v500 = vmul.f32 %v480, 1.442695
  %v501 = vpow.pop %v500
  %v502 = vmul.f32 %v481, 1.442695
  %v503 = vpow.pop %v502
  %v504 = vmul.f32 %v482, 1.442695
  %v505 = vpow.pop %v504
  %v506 = vmul.f32 %v483, 1.442695
  %v507 = vpow.pop %v506
  %v508 = vmul.f32 %v484, 1.442695
  %v509 = vpow.pop %v508
  %v510 = vmul.f32 %v485, 1.442695
  %v511 = vpow.pop %v510
  %v512 = vmul.f32 %v486, 1.442695
  %v513 = vpow.pop %v512
  %v514 = vmul.f32 %v487, 1.442695
  %v515 = vpow.pop %v514
  %v516 = vmul.f32 %v488, 1.442695
  %v517 = vpow.pop %v516
  %v518 = vmul.f32 %v489, 1.442695
  %v519 = vpow.pop %v518
  %v520 = vmul.f32 %v490, 1.442695
  %v521 = vpow.pop %v520
  %v522 = vmul.f32 %v491, 1.442695
  %v523 = vpow.pop %v522
  %vm524 = vcmp.ge.f32.partialorder %v398, 0.0
  %vm525 = vcmp.ge.f32.partialorder %v401, 0.0
  %vm526 = vcmp.ge.f32.partialorder %v406, 0.0
  %vm527 = vcmp.ge.f32.partialorder %v409, 0.0
  %vm528 = vcmp.ge.f32.partialorder %v414, 0.0
  %vm529 = vcmp.ge.f32.partialorder %v417, 0.0
  %vm530 = vcmp.ge.f32.partialorder %v422, 0.0
  %vm531 = vcmp.ge.f32.partialorder %v425, 0.0
  %vm532 = vcmp.ge.f32.partialorder %v430, 0.0
  %vm533 = vcmp.ge.f32.partialorder %v433, 0.0
  %vm534 = vcmp.ge.f32.partialorder %v438, 0.0
  %vm535 = vcmp.ge.f32.partialorder %v441, 0.0
  %vm536 = vcmp.ge.f32.partialorder %v446, 0.0
  %vm537 = vcmp.ge.f32.partialorder %v449, 0.0
  %vm538 = vcmp.ge.f32.partialorder %v454, 0.0
  %vm539 = vcmp.ge.f32.partialorder %v457, 0.0
  %v540 = vadd.f32 %v493, 1.0
  %v541 = vadd.f32 %v495, 1.0
  %v542 = vadd.f32 %v497, 1.0
  %v543 = vadd.f32 %v499, 1.0
  %v544 = vadd.f32 %v501, 1.0
  %v545 = vadd.f32 %v503, 1.0
  %v546 = vadd.f32 %v505, 1.0
  %v547 = vadd.f32 %v507, 1.0
  %v548 = vadd.f32 %v509, 1.0
  %v549 = vadd.f32 %v511, 1.0
  %v550 = vadd.f32 %v513, 1.0
  %v551 = vadd.f32 %v515, 1.0
  %v552 = vadd.f32 %v517, 1.0
  %v553 = vadd.f32 %v519, 1.0
  %v554 = vadd.f32 %v521, 1.0
  %v555 = vadd.f32 %v523, 1.0
  %v556 = vrcp.pop %v540
  %v557 = vmul.f32 1.0, %v556
  %v558 = vrcp.pop %v541
  %v559 = vmul.f32 1.0, %v558
  %v560 = vrcp.pop %v542
  %v561 = vmul.f32 1.0, %v560
  %v562 = vrcp.pop %v543
  %v563 = vmul.f32 1.0, %v562
  %v564 = vrcp.pop %v544
  %v565 = vmul.f32 1.0, %v564
  %v566 = vrcp.pop %v545
  %v567 = vmul.f32 1.0, %v566
  %v568 = vrcp.pop %v546
  %v569 = vmul.f32 1.0, %v568
  %v570 = vrcp.pop %v547
  %v571 = vmul.f32 1.0, %v570
  %v572 = vrcp.pop %v548
  %v573 = vmul.f32 1.0, %v572
  %v574 = vrcp.pop %v549
  %v575 = vmul.f32 1.0, %v574
  %v576 = vrcp.pop %v550
  %v577 = vmul.f32 1.0, %v576
  %v578 = vrcp.pop %v551
  %v579 = vmul.f32 1.0, %v578
  %v580 = vrcp.pop %v552
  %v581 = vmul.f32 1.0, %v580
  %v582 = vrcp.pop %v553
  %v583 = vmul.f32 1.0, %v582
  %v584 = vrcp.pop %v554
  %v585 = vmul.f32 1.0, %v584
  %v586 = vrcp.pop %v555
  %v587 = vmul.f32 1.0, %v586
  %v588 = vmul.f32 %v493, %v556
  %v589 = vmul.f32 %v495, %v558
  %v590 = vmul.f32 %v497, %v560
  %v591 = vmul.f32 %v499, %v562
  %v592 = vmul.f32 %v501, %v564
  %v593 = vmul.f32 %v503, %v566
  %v594 = vmul.f32 %v505, %v568
  %v595 = vmul.f32 %v507, %v570
  %v596 = vmul.f32 %v509, %v572
  %v597 = vmul.f32 %v511, %v574
  %v598 = vmul.f32 %v513, %v576
  %v599 = vmul.f32 %v515, %v578
  %v600 = vmul.f32 %v517, %v580
  %v601 = vmul.f32 %v519, %v582
  %v602 = vmul.f32 %v521, %v584
  %v603 = vmul.f32 %v523, %v586
  %v604 = vsel %vm524, %v557, %v588
  %v605 = vsel %vm525, %v559, %v589
  %v606 = vsel %vm526, %v561, %v590
  %v607 = vsel %vm527, %v563, %v591
  %v608 = vsel %vm528, %v565, %v592
  %v609 = vsel %vm529, %v567, %v593
  %v610 = vsel %vm530, %v569, %v594
  %v611 = vsel %vm531, %v571, %v595
  %v612 = vsel %vm532, %v573, %v596
  %v613 = vsel %vm533, %v575, %v597
  %v614 = vsel %vm534, %v577, %v598
  %v615 = vsel %vm535, %v579, %v599
  %v616 = vsel %vm536, %v581, %v600
  %v617 = vsel %vm537, %v583, %v601
  %v618 = vsel %vm538, %v585, %v602
  %v619 = vsel %vm539, %v587, %v603
  %v620 = vmul.f32 %v398, %v604
  %v621 = vmul.f32 %v401, %v605
  %v622 = vmul.f32 %v406, %v606
  %v623 = vmul.f32 %v409, %v607
  %v624 = vmul.f32 %v414, %v608
  %v625 = vmul.f32 %v417, %v609
  %v626 = vmul.f32 %v422, %v610
  %v627 = vmul.f32 %v425, %v611
  %v628 = vmul.f32 %v430, %v612
  %v629 = vmul.f32 %v433, %v613
  %v630 = vmul.f32 %v438, %v614
  %v631 = vmul.f32 %v441, %v615
  %v632 = vmul.f32 %v446, %v616
  %v633 = vmul.f32 %v449, %v617
  %v634 = vmul.f32 %v454, %v618
  %v635 = vmul.f32 %v457, %v619
  %v636 = vpack.c.bf16 %v621, %v620
  %v637 = vpack.c.bf16 %v623, %v622
  %v638 = vpack.c.bf16 %v625, %v624
  %v639 = vpack.c.bf16 %v627, %v626
  %v640 = vpack.c.bf16 %v629, %v628
  %v641 = vpack.c.bf16 %v631, %v630
  %v642 = vpack.c.bf16 %v633, %v632
  %v643 = vpack.c.bf16 %v635, %v634
  %v652 = vunpack.c.l.b16 %v636
  %v653 = vunpack.c.h.b16 %v636
  %v654 = vunpack.c.l.b16 %v637
  %v655 = vunpack.c.h.b16 %v637
  %v656 = vunpack.c.l.b16 %v638
  %v657 = vunpack.c.h.b16 %v638
  %v658 = vunpack.c.l.b16 %v639
  %v659 = vunpack.c.h.b16 %v639
  %v660 = vunpack.c.l.b16 %v640
  %v661 = vunpack.c.h.b16 %v640
  %v662 = vunpack.c.l.b16 %v641
  %v663 = vunpack.c.h.b16 %v641
  %v664 = vunpack.c.l.b16 %v642
  %v665 = vunpack.c.h.b16 %v642
  %v666 = vunpack.c.l.b16 %v643
  %v667 = vunpack.c.h.b16 %v643
  %v668 = vpack.c.b16 %v652, %v652
  %v669 = vpack.c.b16 %v653, %v653
  %v670 = vpack.c.b16 %v654, %v654
  %v671 = vpack.c.b16 %v655, %v655
  %v672 = vpack.c.b16 %v656, %v656
  %v673 = vpack.c.b16 %v657, %v657
  %v674 = vpack.c.b16 %v658, %v658
  %v675 = vpack.c.b16 %v659, %v659
  %v676 = vpack.c.b16 %v660, %v660
  %v677 = vpack.c.b16 %v661, %v661
  %v678 = vpack.c.b16 %v662, %v662
  %v679 = vpack.c.b16 %v663, %v663
  %v680 = vpack.c.b16 %v664, %v664
  %v681 = vpack.c.b16 %v665, %v665
  %v682 = vpack.c.b16 %v666, %v666
  %v683 = vpack.c.b16 %v667, %v667
  %700 = vst [vmem:[%s7] sm:$0xf] %v668
  %701 = vst [vmem:[%s7 + $0x4] sm:$0xf] %v669
  %702 = vst [vmem:[%s7 + $0x8] sm:$0xf] %v670
  %703 = vst [vmem:[%s7 + $0xc] sm:$0xf] %v671
  %704 = vst [vmem:[%s7 + $0x10] sm:$0xf] %v672
  %705 = vst [vmem:[%s7 + $0x14] sm:$0xf] %v673
  %706 = vst [vmem:[%s7 + $0x18] sm:$0xf] %v674
  %707 = vst [vmem:[%s7 + $0x1c] sm:$0xf] %v675
  %708 = vst [vmem:[%s7 + $0x20] sm:$0xf] %v676
  %709 = vst [vmem:[%s7 + $0x24] sm:$0xf] %v677
  %710 = vst [vmem:[%s7 + $0x28] sm:$0xf] %v678
  %711 = vst [vmem:[%s7 + $0x2c] sm:$0xf] %v679
  %712 = vst [vmem:[%s7 + $0x30] sm:$0xf] %v680
  %713 = vst [vmem:[%s7 + $0x34] sm:$0xf] %v681
  %714 = vst [vmem:[%s7 + $0x38] sm:$0xf] %v682
  %715 = vst [vmem:[%s7 + $0x3c] sm:$0xf] %v683
  %v716 = vld [vmem:[%s5] sm:$0xf]
  %v717 = vld [vmem:[%s5 + $0x4] sm:$0xf]
  %v718 = vld [vmem:[%s5 + $0x8] sm:$0xf]
  %v719 = vld [vmem:[%s5 + $0xc] sm:$0xf]
  %v720 = vld [vmem:[%s5 + $0x10] sm:$0xf]
  %v721 = vld [vmem:[%s5 + $0x14] sm:$0xf]
  %v722 = vld [vmem:[%s5 + $0x18] sm:$0xf]
  %v723 = vld [vmem:[%s5 + $0x1c] sm:$0xf]
  %v724 = vld [vmem:[%s5 + $0x20] sm:$0xf]
  %v725 = vld [vmem:[%s5 + $0x24] sm:$0xf]
  %v726 = vld [vmem:[%s5 + $0x28] sm:$0xf]
  %v727 = vld [vmem:[%s5 + $0x2c] sm:$0xf]
  %v728 = vld [vmem:[%s5 + $0x30] sm:$0xf]
  %v729 = vld [vmem:[%s5 + $0x34] sm:$0xf]
  %v730 = vld [vmem:[%s5 + $0x38] sm:$0xf]
  %v731 = vld [vmem:[%s5 + $0x3c] sm:$0xf]
  %v732 = vld [vmem:[%s6] sm:$0x1]
  %v734 = vlaneseq
  %v735 = vshrl.u32 %v734, 7
  %v736 = vsub.s32 0, %v735
  %v737 = vrot.slane %v732, %v736
  %v755 = vunpack.c.l.b16 %v716
  %v756 = vunpack.c.l.b16 %v717
  %v757 = vunpack.c.l.b16 %v718
  %v758 = vunpack.c.l.b16 %v719
  %v759 = vunpack.c.l.b16 %v720
  %v760 = vunpack.c.l.b16 %v721
  %v761 = vunpack.c.l.b16 %v722
  %v762 = vunpack.c.l.b16 %v723
  %v763 = vunpack.c.l.b16 %v724
  %v764 = vunpack.c.l.b16 %v725
  %v765 = vunpack.c.l.b16 %v726
  %v766 = vunpack.c.l.b16 %v727
  %v767 = vunpack.c.l.b16 %v728
  %v768 = vunpack.c.l.b16 %v729
  %v769 = vunpack.c.l.b16 %v730
  %v770 = vunpack.c.l.b16 %v731
  %v771 = vpack.c.b16 %v756, %v755
  %v772 = vpack.c.b16 %v758, %v757
  %v773 = vpack.c.b16 %v760, %v759
  %v774 = vpack.c.b16 %v762, %v761
  %v775 = vpack.c.b16 %v764, %v763
  %v776 = vpack.c.b16 %v766, %v765
  %v777 = vpack.c.b16 %v768, %v767
  %v778 = vpack.c.b16 %v770, %v769
  %787 = vmatprep.subr.bf16.mxu0 0
  %788 = vmatpush1.bf16.msra.mxu0 %v778
  %789 = vmatprep.subr.bf16.mxu0 0
  %790 = vmatpush1.bf16.msra.mxu0 %v777
  %791 = vmatprep.subr.bf16.mxu0 0
  %792 = vmatpush1.bf16.msra.mxu0 %v776
  %793 = vmatprep.subr.bf16.mxu0 0
  %794 = vmatpush1.bf16.msra.mxu0 %v775
  %795 = vmatprep.subr.bf16.mxu0 0
  %796 = vmatpush1.bf16.msra.mxu0 %v774
  %797 = vmatprep.subr.bf16.mxu0 0
  %798 = vmatpush1.bf16.msra.mxu0 %v773
  %799 = vmatprep.subr.bf16.mxu0 0
  %800 = vmatpush1.bf16.msra.mxu0 %v772
  %801 = vmatprep.subr.bf16.mxu0 0
  %802 = vmatpush1.bf16.msra.mxu0 %v771
  %803 = vmatprep.subr.bf16.mxu0 0
  %804 = vmatpush2.bf16.msra.mxu0 0
  %805 = vmatprep.subr.bf16.mxu0 0
  %806 = vmatpush2.bf16.msra.mxu0 0
  %807 = vmatprep.subr.bf16.mxu0 0
  %808 = vmatpush2.bf16.msra.mxu0 0
  %809 = vmatprep.subr.bf16.mxu0 0
  %810 = vmatpush2.bf16.msra.mxu0 0
  %811 = vmatprep.subr.bf16.mxu0 0
  %812 = vmatpush2.bf16.msra.mxu0 0
  %813 = vmatprep.subr.bf16.mxu0 0
  %814 = vmatpush2.bf16.msra.mxu0 0
  %815 = vmatprep.subr.bf16.mxu0 0
  %816 = vmatpush2.bf16.msra.mxu0 0
  %817 = vmatprep.subr.bf16.mxu0 0
  %818 = vmatpush2.bf16.msra.mxu0 0
  %819 = vmatprep.mubr.bf16.mxu0 0
  %820 = vmatmul.mubr.bf16.gmra.mxu0 %v284
  %v821 = vpop.f32.mrf.mxu0
  %v822 = vadd.f32 %v737, %v821
  %v823 = vpop.f32.mrf.mxu0
  %v824 = vpop.f32.mrf.mxu0
  %v825 = vadd.f32 %v737, %v824
  %v826 = vpop.f32.mrf.mxu0
  %827 = vmatprep.mubr.bf16.mxu0 0
  %828 = vmatmul.mubr.bf16.gmra.mxu0 %v285
  %v829 = vpop.f32.mrf.mxu0
  %v830 = vadd.f32 %v737, %v829
  %v831 = vpop.f32.mrf.mxu0
  %v832 = vpop.f32.mrf.mxu0
  %v833 = vadd.f32 %v737, %v832
  %v834 = vpop.f32.mrf.mxu0
  %835 = vmatprep.mubr.bf16.mxu0 0
  %836 = vmatmul.mubr.bf16.gmra.mxu0 %v286
  %v837 = vpop.f32.mrf.mxu0
  %v838 = vadd.f32 %v737, %v837
  %v839 = vpop.f32.mrf.mxu0
  %v840 = vpop.f32.mrf.mxu0
  %v841 = vadd.f32 %v737, %v840
  %v842 = vpop.f32.mrf.mxu0
  %843 = vmatprep.mubr.bf16.mxu0 0
  %844 = vmatmul.mubr.bf16.gmra.mxu0 %v287
  %v845 = vpop.f32.mrf.mxu0
  %v846 = vadd.f32 %v737, %v845
  %v847 = vpop.f32.mrf.mxu0
  %v848 = vpop.f32.mrf.mxu0
  %v849 = vadd.f32 %v737, %v848
  %v850 = vpop.f32.mrf.mxu0
  %851 = vmatprep.mubr.bf16.mxu0 0
  %852 = vmatmul.mubr.bf16.gmra.mxu0 %v288
  %v853 = vpop.f32.mrf.mxu0
  %v854 = vadd.f32 %v737, %v853
  %v855 = vpop.f32.mrf.mxu0
  %v856 = vpop.f32.mrf.mxu0
  %v857 = vadd.f32 %v737, %v856
  %v858 = vpop.f32.mrf.mxu0
  %859 = vmatprep.mubr.bf16.mxu0 0
  %860 = vmatmul.mubr.bf16.gmra.mxu0 %v289
  %v861 = vpop.f32.mrf.mxu0
  %v862 = vadd.f32 %v737, %v861
  %v863 = vpop.f32.mrf.mxu0
  %v864 = vpop.f32.mrf.mxu0
  %v865 = vadd.f32 %v737, %v864
  %v866 = vpop.f32.mrf.mxu0
  %867 = vmatprep.mubr.bf16.mxu0 0
  %868 = vmatmul.mubr.bf16.gmra.mxu0 %v290
  %v869 = vpop.f32.mrf.mxu0
  %v870 = vadd.f32 %v737, %v869
  %v871 = vpop.f32.mrf.mxu0
  %v872 = vpop.f32.mrf.mxu0
  %v873 = vadd.f32 %v737, %v872
  %v874 = vpop.f32.mrf.mxu0
  %875 = vmatprep.mubr.bf16.mxu0 0
  %876 = vmatmul.mubr.bf16.gmra.mxu0 %v291
  %v877 = vpop.f32.mrf.mxu0
  %v878 = vadd.f32 %v737, %v877
  %v879 = vpop.f32.mrf.mxu0
  %v880 = vpop.f32.mrf.mxu0
  %v881 = vadd.f32 %v737, %v880
  %v882 = vpop.f32.mrf.mxu0
  %883 = vdwg.mxu0
  %v884 = vpack.c.bf16 %v825, %v822
  %v885 = vpack.c.bf16 %v833, %v830
  %v886 = vpack.c.bf16 %v841, %v838
  %v887 = vpack.c.bf16 %v849, %v846
  %v888 = vpack.c.bf16 %v857, %v854
  %v889 = vpack.c.bf16 %v865, %v862
  %v890 = vpack.c.bf16 %v873, %v870
  %v891 = vpack.c.bf16 %v881, %v878
  %v900 = vunpack.c.l.b16 %v884
  %v901 = vunpack.c.h.b16 %v884
  %v902 = vunpack.c.l.b16 %v885
  %v903 = vunpack.c.h.b16 %v885
  %v904 = vunpack.c.l.b16 %v886
  %v905 = vunpack.c.h.b16 %v886
  %v906 = vunpack.c.l.b16 %v887
  %v907 = vunpack.c.h.b16 %v887
  %v908 = vunpack.c.l.b16 %v888
  %v909 = vunpack.c.h.b16 %v888
  %v910 = vunpack.c.l.b16 %v889
  %v911 = vunpack.c.h.b16 %v889
  %v912 = vunpack.c.l.b16 %v890
  %v913 = vunpack.c.h.b16 %v890
  %v914 = vunpack.c.l.b16 %v891
  %v915 = vunpack.c.h.b16 %v891
  %v916 = vpack.c.b16 %v900, %v900
  %v917 = vpack.c.b16 %v901, %v901
  %v918 = vpack.c.b16 %v902, %v902
  %v919 = vpack.c.b16 %v903, %v903
  %v920 = vpack.c.b16 %v904, %v904
  %v921 = vpack.c.b16 %v905, %v905
  %v922 = vpack.c.b16 %v906, %v906
  %v923 = vpack.c.b16 %v907, %v907
  %v924 = vpack.c.b16 %v908, %v908
  %v925 = vpack.c.b16 %v909, %v909
  %v926 = vpack.c.b16 %v910, %v910
  %v927 = vpack.c.b16 %v911, %v911
  %v928 = vpack.c.b16 %v912, %v912
  %v929 = vpack.c.b16 %v913, %v913
  %v930 = vpack.c.b16 %v914, %v914
  %v931 = vpack.c.b16 %v915, %v915
  %948 = vst [vmem:[%s8] sm:$0xf] %v916
  %949 = vst [vmem:[%s8 + $0x4] sm:$0xf] %v917
  %950 = vst [vmem:[%s8 + $0x8] sm:$0xf] %v918
  %951 = vst [vmem:[%s8 + $0xc] sm:$0xf] %v919
  %952 = vst [vmem:[%s8 + $0x10] sm:$0xf] %v920
  %953 = vst [vmem:[%s8 + $0x14] sm:$0xf] %v921
  %954 = vst [vmem:[%s8 + $0x18] sm:$0xf] %v922
  %955 = vst [vmem:[%s8 + $0x1c] sm:$0xf] %v923
  %956 = vst [vmem:[%s8 + $0x20] sm:$0xf] %v924
  %957 = vst [vmem:[%s8 + $0x24] sm:$0xf] %v925
  %958 = vst [vmem:[%s8 + $0x28] sm:$0xf] %v926
  %959 = vst [vmem:[%s8 + $0x2c] sm:$0xf] %v927
  %960 = vst [vmem:[%s8 + $0x30] sm:$0xf] %v928
  %961 = vst [vmem:[%s8 + $0x34] sm:$0xf] %v929
  %962 = vst [vmem:[%s8 + $0x38] sm:$0xf] %v930
  %963 = vst [vmem:[%s8 + $0x3c] sm:$0xf] %v931
  // Predicated region
  $region30: #{mlla_block_forward.5} parent=0 // pred_check
    _
  $region31: #{mlla_block_forward.5} parent=0 // pred_check_branch
    %965 = sbr.rel (0) target = $region33
  $region32: #{mlla_block_forward.5} parent=0 // pred_region
    _
  $region33: #{mlla_block_forward.5} parent=0 // pred_fallthru
    _
  // Predicated region
  $region34: #{mlla_block_forward.5} parent=0 // pred_check
    _
  $region35: #{mlla_block_forward.5} parent=0 // pred_check_branch
    %967 = sbr.rel (0) target = $region37
  $region36: #{mlla_block_forward.5} parent=0 // pred_region
    _
  $region37: #{mlla_block_forward.5} parent=0 // pred_fallthru
    _
  // Predicated region
  $region38: #{mlla_block_forward.5} parent=0 // pred_check
    _
  $region39: #{mlla_block_forward.5} parent=0 // pred_check_branch
    %969 = sbr.rel (0) target = $region41
  $region40: #{mlla_block_forward.5} parent=0 // pred_region
    _
  $region41: #{mlla_block_forward.5} parent=0 // pred_fallthru
    _
  // Predicated region
  $region42: #{mlla_block_forward.5} parent=0 // pred_check
    _
  $region43: #{mlla_block_forward.5} parent=0 // pred_check_branch
    %971 = sbr.rel (0) target = $region45
  $region44: #{mlla_block_forward.5} parent=0 // pred_region
    _
  $region45: #{mlla_block_forward.5} parent=0 // pred_fallthru
    _

// kernel: mlla_block_forward.7
$region0: #{mlla_block_forward.7}
  #allocation0 [shape = 'u32[]', space=smem, size = 0x4, offset = 0x4, fixed_abs, tag = 'smem constant byte address 0x4 - core index']
  #allocation1 [shape = 'u32[144,128]{1,0:T(1,128)}', space=vmem, size = 0x12000, scoped, tag = 'internal scratch']
  %s0 = inlined_call_operand.vmem [shape: bf16[128,128], index: 0, kind: input, shape index: {}]
  %s1 = inlined_call_operand.vmem [shape: f32[1,128], index: 1, kind: input, shape index: {}]
  %s2 = inlined_call_operand.vmem [shape: f32[1,128], index: 2, kind: input, shape index: {}]
  %s3 = inlined_call_operand.vmem [shape: bf16[128,512], index: 3, kind: input, shape index: {}]
  %s4 = inlined_call_operand.vmem [shape: f32[1,512], index: 4, kind: input, shape index: {}]
  %s5 = inlined_call_operand.vmem [shape: bf16[512,128], index: 5, kind: input, shape index: {}]
  %s6 = inlined_call_operand.vmem [shape: f32[1,128], index: 6, kind: input, shape index: {}]
  %s7 = inlined_call_operand.hbm [shape: f32[128,128], index: 7, kind: output, shape index: {}]
  %s8 = sld [smem:[#allocation0]]
  $region38: #{mlla_block_forward.7} parent=0
    _
  %s10 = ssub.s32 1, %s8
  %s11 = scalar_select 0, %s10, %s8
  $region1: #{mlla_block_forward.7} parent=0
    #allocation2 [shape = 'u8[65536]{0}', space=vmem, size = 0x10000, scoped, tag = 'output window, operand 0, single buffered']
    #allocation3 [shape = 's32[1]{0}', space=sflag, size = 0x4, scoped, tag = 'scoped memory for mlla_block_forward.7']
    %12 = vsyncpa [#allocation3], 0
    // Predicated region
    $region2: #{mlla_block_forward.7} parent=1 // pred_check
      _
    $region3: #{mlla_block_forward.7} parent=1 // pred_check_branch
      %14 = sbr.rel (0) target = $region5
    $region4: #{mlla_block_forward.7} parent=1 // pred_region
      _
    $region5: #{mlla_block_forward.7} parent=1 // pred_fallthru
      _
    // Predicated region
    $region6: #{mlla_block_forward.7} parent=1 // pred_check
      _
    $region7: #{mlla_block_forward.7} parent=1 // pred_check_branch
      %16 = sbr.rel (0) target = $region9
    $region8: #{mlla_block_forward.7} parent=1 // pred_region
      _
    $region9: #{mlla_block_forward.7} parent=1 // pred_fallthru
      _
    // Predicated region
    $region10: #{mlla_block_forward.7} parent=1 // pred_check
      _
    $region11: #{mlla_block_forward.7} parent=1 // pred_check_branch
      %18 = sbr.rel (0) target = $region13
    $region12: #{mlla_block_forward.7} parent=1 // pred_region
      _
    $region13: #{mlla_block_forward.7} parent=1 // pred_fallthru
      _
    // Predicated region
    $region14: #{mlla_block_forward.7} parent=1 // pred_check
      _
    $region15: #{mlla_block_forward.7} parent=1 // pred_check_branch
      %20 = sbr.rel (0) target = $region17
    $region16: #{mlla_block_forward.7} parent=1 // pred_region
      _
    $region17: #{mlla_block_forward.7} parent=1 // pred_fallthru
      _
    // Predicated region
    $region18: #{mlla_block_forward.7} parent=1 // pred_check
      _
    $region19: #{mlla_block_forward.7} parent=1 // pred_check_branch
      %22 = sbr.rel (0) target = $region21
    $region20: #{mlla_block_forward.7} parent=1 // pred_region
      _
    $region21: #{mlla_block_forward.7} parent=1 // pred_fallthru
      _
    // Predicated region
    $region22: #{mlla_block_forward.7} parent=1 // pred_check
      _
    $region23: #{mlla_block_forward.7} parent=1 // pred_check_branch
      %24 = sbr.rel (0) target = $region25
    $region24: #{mlla_block_forward.7} parent=1 // pred_region
      _
    $region25: #{mlla_block_forward.7} parent=1 // pred_fallthru
      _
    // Predicated region
    $region26: #{mlla_block_forward.7} parent=1 // pred_check
      _
    $region27: #{mlla_block_forward.7} parent=1 // pred_check_branch
      %26 = sbr.rel (0) target = $region29
    $region28: #{mlla_block_forward.7} parent=1 // pred_region
      _
    $region29: #{mlla_block_forward.7} parent=1 // pred_fallthru
      _
    %v28 = vld [vmem:[%s0] sm:$0xf]
    %v29 = vld [vmem:[%s0 + $0x4] sm:$0xf]
    %v30 = vld [vmem:[%s0 + $0x8] sm:$0xf]
    %v31 = vld [vmem:[%s0 + $0xc] sm:$0xf]
    %v32 = vld [vmem:[%s0 + $0x10] sm:$0xf]
    %v33 = vld [vmem:[%s0 + $0x14] sm:$0xf]
    %v34 = vld [vmem:[%s0 + $0x18] sm:$0xf]
    %v35 = vld [vmem:[%s0 + $0x1c] sm:$0xf]
    %v36 = vld [vmem:[%s0 + $0x20] sm:$0xf]
    %v37 = vld [vmem:[%s0 + $0x24] sm:$0xf]
    %v38 = vld [vmem:[%s0 + $0x28] sm:$0xf]
    %v39 = vld [vmem:[%s0 + $0x2c] sm:$0xf]
    %v40 = vld [vmem:[%s0 + $0x30] sm:$0xf]
    %v41 = vld [vmem:[%s0 + $0x34] sm:$0xf]
    %v42 = vld [vmem:[%s0 + $0x38] sm:$0xf]
    %v43 = vld [vmem:[%s0 + $0x3c] sm:$0xf]
    %v44 = vunpack.c.l.bf16 %v28
    %v45 = vunpack.c.l.bf16 %v29
    %v46 = vunpack.c.l.bf16 %v30
    %v47 = vunpack.c.l.bf16 %v31
    %v48 = vunpack.c.l.bf16 %v32
    %v49 = vunpack.c.l.bf16 %v33
    %v50 = vunpack.c.l.bf16 %v34
    %v51 = vunpack.c.l.bf16 %v35
    %v52 = vunpack.c.l.bf16 %v36
    %v53 = vunpack.c.l.bf16 %v37
    %v54 = vunpack.c.l.bf16 %v38
    %v55 = vunpack.c.l.bf16 %v39
    %v56 = vunpack.c.l.bf16 %v40
    %v57 = vunpack.c.l.bf16 %v41
    %v58 = vunpack.c.l.bf16 %v42
    %v59 = vunpack.c.l.bf16 %v43
    %v60 = vld [vmem:[%s1] sm:$0x1]
    %v61 = vld [vmem:[%s2] sm:$0x1]
    %62 = vadd.xlane.f32.xlu0 %v44
    %v63 = vpop.xlane.xlu0 %62
    %64 = vadd.xlane.f32.xlu0 %v45
    %v65 = vpop.xlane.xlu0 %64
    %66 = vadd.xlane.f32.xlu0 %v46
    %v67 = vpop.xlane.xlu0 %66
    %68 = vadd.xlane.f32.xlu0 %v47
    %v69 = vpop.xlane.xlu0 %68
    %70 = vadd.xlane.f32.xlu0 %v48
    %v71 = vpop.xlane.xlu0 %70
    %72 = vadd.xlane.f32.xlu0 %v49
    %v73 = vpop.xlane.xlu0 %72
    %74 = vadd.xlane.f32.xlu0 %v50
    %v75 = vpop.xlane.xlu0 %74
    %76 = vadd.xlane.f32.xlu0 %v51
    %v77 = vpop.xlane.xlu0 %76
    %78 = vadd.xlane.f32.xlu0 %v52
    %v79 = vpop.xlane.xlu0 %78
    %80 = vadd.xlane.f32.xlu0 %v53
    %v81 = vpop.xlane.xlu0 %80
    %82 = vadd.xlane.f32.xlu0 %v54
    %v83 = vpop.xlane.xlu0 %82
    %84 = vadd.xlane.f32.xlu0 %v55
    %v85 = vpop.xlane.xlu0 %84
    %86 = vadd.xlane.f32.xlu0 %v56
    %v87 = vpop.xlane.xlu0 %86
    %88 = vadd.xlane.f32.xlu0 %v57
    %v89 = vpop.xlane.xlu0 %88
    %90 = vadd.xlane.f32.xlu0 %v58
    %v91 = vpop.xlane.xlu0 %90
    %92 = vadd.xlane.f32.xlu0 %v59
    %v93 = vpop.xlane.xlu0 %92
    %v94 = vrcp.pop 128.0
    %v95 = vmul.f32 %v63, %v94
    %v96 = vmul.f32 %v65, %v94
    %v97 = vmul.f32 %v67, %v94
    %v98 = vmul.f32 %v69, %v94
    %v99 = vmul.f32 %v71, %v94
    %v100 = vmul.f32 %v73, %v94
    %v101 = vmul.f32 %v75, %v94
    %v102 = vmul.f32 %v77, %v94
    %v103 = vmul.f32 %v79, %v94
    %v104 = vmul.f32 %v81, %v94
    %v105 = vmul.f32 %v83, %v94
    %v106 = vmul.f32 %v85, %v94
    %v107 = vmul.f32 %v87, %v94
    %v108 = vmul.f32 %v89, %v94
    %v109 = vmul.f32 %v91, %v94
    %v110 = vmul.f32 %v93, %v94
    %v111 = vsub.f32 %v44, %v95
    %v112 = vsub.f32 %v45, %v96
    %v113 = vsub.f32 %v46, %v97
    %v114 = vsub.f32 %v47, %v98
    %v115 = vsub.f32 %v48, %v99
    %v116 = vsub.f32 %v49, %v100
    %v117 = vsub.f32 %v50, %v101
    %v118 = vsub.f32 %v51, %v102
    %v119 = vsub.f32 %v52, %v103
    %v120 = vsub.f32 %v53, %v104
    %v121 = vsub.f32 %v54, %v105
    %v122 = vsub.f32 %v55, %v106
    %v123 = vsub.f32 %v56, %v107
    %v124 = vsub.f32 %v57, %v108
    %v125 = vsub.f32 %v58, %v109
    %v126 = vsub.f32 %v59, %v110
    %v127 = vmul.f32 %v111, %v111
    %v128 = vmul.f32 %v112, %v112
    %v129 = vmul.f32 %v113, %v113
    %v130 = vmul.f32 %v114, %v114
    %v131 = vmul.f32 %v115, %v115
    %v132 = vmul.f32 %v116, %v116
    %v133 = vmul.f32 %v117, %v117
    %v134 = vmul.f32 %v118, %v118
    %v135 = vmul.f32 %v119, %v119
    %v136 = vmul.f32 %v120, %v120
    %v137 = vmul.f32 %v121, %v121
    %v138 = vmul.f32 %v122, %v122
    %v139 = vmul.f32 %v123, %v123
    %v140 = vmul.f32 %v124, %v124
    %v141 = vmul.f32 %v125, %v125
    %v142 = vmul.f32 %v126, %v126
    %143 = vadd.xlane.f32.xlu0 %v127
    %v144 = vpop.xlane.xlu0 %143
    %145 = vadd.xlane.f32.xlu0 %v128
    %v146 = vpop.xlane.xlu0 %145
    %147 = vadd.xlane.f32.xlu0 %v129
    %v148 = vpop.xlane.xlu0 %147
    %149 = vadd.xlane.f32.xlu0 %v130
    %v150 = vpop.xlane.xlu0 %149
    %151 = vadd.xlane.f32.xlu0 %v131
    %v152 = vpop.xlane.xlu0 %151
    %153 = vadd.xlane.f32.xlu0 %v132
    %v154 = vpop.xlane.xlu0 %153
    %155 = vadd.xlane.f32.xlu0 %v133
    %v156 = vpop.xlane.xlu0 %155
    %157 = vadd.xlane.f32.xlu0 %v134
    %v158 = vpop.xlane.xlu0 %157
    %159 = vadd.xlane.f32.xlu0 %v135
    %v160 = vpop.xlane.xlu0 %159
    %161 = vadd.xlane.f32.xlu0 %v136
    %v162 = vpop.xlane.xlu0 %161
    %163 = vadd.xlane.f32.xlu0 %v137
    %v164 = vpop.xlane.xlu0 %163
    %165 = vadd.xlane.f32.xlu0 %v138
    %v166 = vpop.xlane.xlu0 %165
    %167 = vadd.xlane.f32.xlu0 %v139
    %v168 = vpop.xlane.xlu0 %167
    %169 = vadd.xlane.f32.xlu0 %v140
    %v170 = vpop.xlane.xlu0 %169
    %171 = vadd.xlane.f32.xlu0 %v141
    %v172 = vpop.xlane.xlu0 %171
    %173 = vadd.xlane.f32.xlu0 %v142
    %v174 = vpop.xlane.xlu0 %173
    %v175 = vmul.f32 %v144, %v94
    %v176 = vmul.f32 %v146, %v94
    %v177 = vmul.f32 %v148, %v94
    %v178 = vmul.f32 %v150, %v94
    %v179 = vmul.f32 %v152, %v94
    %v180 = vmul.f32 %v154, %v94
    %v181 = vmul.f32 %v156, %v94
    %v182 = vmul.f32 %v158, %v94
    %v183 = vmul.f32 %v160, %v94
    %v184 = vmul.f32 %v162, %v94
    %v185 = vmul.f32 %v164, %v94
    %v186 = vmul.f32 %v166, %v94
    %v187 = vmul.f32 %v168, %v94
    %v188 = vmul.f32 %v170, %v94
    %v189 = vmul.f32 %v172, %v94
    %v190 = vmul.f32 %v174, %v94
    %v191 = vadd.f32 %v175, 1e-05
    %v192 = vadd.f32 %v176, 1e-05
    %v193 = vadd.f32 %v177, 1e-05
    %v194 = vadd.f32 %v178, 1e-05
    %v195 = vadd.f32 %v179, 1e-05
    %v196 = vadd.f32 %v180, 1e-05
    %v197 = vadd.f32 %v181, 1e-05
    %v198 = vadd.f32 %v182, 1e-05
    %v199 = vadd.f32 %v183, 1e-05
    %v200 = vadd.f32 %v184, 1e-05
    %v201 = vadd.f32 %v185, 1e-05
    %v202 = vadd.f32 %v186, 1e-05
    %v203 = vadd.f32 %v187, 1e-05
    %v204 = vadd.f32 %v188, 1e-05
    %v205 = vadd.f32 %v189, 1e-05
    %v206 = vadd.f32 %v190, 1e-05
    %v207 = vrsqrt.pop %v191
    %v208 = vrsqrt.pop %v192
    %v209 = vrsqrt.pop %v193
    %v210 = vrsqrt.pop %v194
    %v211 = vrsqrt.pop %v195
    %v212 = vrsqrt.pop %v196
    %v213 = vrsqrt.pop %v197
    %v214 = vrsqrt.pop %v198
    %v215 = vrsqrt.pop %v199
    %v216 = vrsqrt.pop %v200
    %v217 = vrsqrt.pop %v201
    %v218 = vrsqrt.pop %v202
    %v219 = vrsqrt.pop %v203
    %v220 = vrsqrt.pop %v204
    %v221 = vrsqrt.pop %v205
    %v222 = vrsqrt.pop %v206
    %v223 = vmul.f32 %v111, %v207
    %v224 = vmul.f32 %v112, %v208
    %v225 = vmul.f32 %v113, %v209
    %v226 = vmul.f32 %v114, %v210
    %v227 = vmul.f32 %v115, %v211
    %v228 = vmul.f32 %v116, %v212
    %v229 = vmul.f32 %v117, %v213
    %v230 = vmul.f32 %v118, %v214
    %v231 = vmul.f32 %v119, %v215
    %v232 = vmul.f32 %v120, %v216
    %v233 = vmul.f32 %v121, %v217
    %v234 = vmul.f32 %v122, %v218
    %v235 = vmul.f32 %v123, %v219
    %v236 = vmul.f32 %v124, %v220
    %v237 = vmul.f32 %v125, %v221
    %v238 = vmul.f32 %v126, %v222
    %v240 = vlaneseq
    %v241 = vshrl.u32 %v240, 7
    %v242 = vsub.s32 0, %v241
    %v243 = vrot.slane %v60, %v242
    %v245 = vmul.f32 %v223, %v243
    %v246 = vmul.f32 %v224, %v243
    %v247 = vmul.f32 %v225, %v243
    %v248 = vmul.f32 %v226, %v243
    %v249 = vmul.f32 %v227, %v243
    %v250 = vmul.f32 %v228, %v243
    %v251 = vmul.f32 %v229, %v243
    %v252 = vmul.f32 %v230, %v243
    %v253 = vmul.f32 %v231, %v243
    %v254 = vmul.f32 %v232, %v243
    %v255 = vmul.f32 %v233, %v243
    %v256 = vmul.f32 %v234, %v243
    %v257 = vmul.f32 %v235, %v243
    %v258 = vmul.f32 %v236, %v243
    %v259 = vmul.f32 %v237, %v243
    %v260 = vmul.f32 %v238, %v243
    %v262 = vlaneseq
    %v263 = vshrl.u32 %v262, 7
    %v264 = vsub.s32 0, %v263
    %v265 = vrot.slane %v61, %v264
    %v267 = vadd.f32 %v245, %v265
    %v268 = vadd.f32 %v246, %v265
    %v269 = vadd.f32 %v247, %v265
    %v270 = vadd.f32 %v248, %v265
    %v271 = vadd.f32 %v249, %v265
    %v272 = vadd.f32 %v250, %v265
    %v273 = vadd.f32 %v251, %v265
    %v274 = vadd.f32 %v252, %v265
    %v275 = vadd.f32 %v253, %v265
    %v276 = vadd.f32 %v254, %v265
    %v277 = vadd.f32 %v255, %v265
    %v278 = vadd.f32 %v256, %v265
    %v279 = vadd.f32 %v257, %v265
    %v280 = vadd.f32 %v258, %v265
    %v281 = vadd.f32 %v259, %v265
    %v282 = vadd.f32 %v260, %v265
    %v283 = vpack.c.bf16 %v268, %v267
    %v284 = vpack.c.bf16 %v270, %v269
    %v285 = vpack.c.bf16 %v272, %v271
    %v286 = vpack.c.bf16 %v274, %v273
    %v287 = vpack.c.bf16 %v276, %v275
    %v288 = vpack.c.bf16 %v278, %v277
    %v289 = vpack.c.bf16 %v280, %v279
    %v290 = vpack.c.bf16 %v282, %v281
    %v291 = vld [vmem:[%s3] sm:$0xff]
    %v292 = vld [vmem:[%s3 + $0x8] sm:$0xff]
    %v293 = vld [vmem:[%s3 + $0x10] sm:$0xff]
    %v294 = vld [vmem:[%s3 + $0x18] sm:$0xff]
    %v295 = vld [vmem:[%s3 + $0x20] sm:$0xff]
    %v296 = vld [vmem:[%s3 + $0x28] sm:$0xff]
    %v297 = vld [vmem:[%s3 + $0x30] sm:$0xff]
    %v298 = vld [vmem:[%s3 + $0x38] sm:$0xff]
    %v299 = vld [vmem:[%s3 + $0x40] sm:$0xff]
    %v300 = vld [vmem:[%s3 + $0x48] sm:$0xff]
    %v301 = vld [vmem:[%s3 + $0x50] sm:$0xff]
    %v302 = vld [vmem:[%s3 + $0x58] sm:$0xff]
    %v303 = vld [vmem:[%s3 + $0x60] sm:$0xff]
    %v304 = vld [vmem:[%s3 + $0x68] sm:$0xff]
    %v305 = vld [vmem:[%s3 + $0x70] sm:$0xff]
    %v306 = vld [vmem:[%s3 + $0x78] sm:$0xff]
    %v307 = vld [vmem:[%s3 + $0x80] sm:$0xff]
    %v308 = vld [vmem:[%s3 + $0x88] sm:$0xff]
    %v309 = vld [vmem:[%s3 + $0x90] sm:$0xff]
    %v310 = vld [vmem:[%s3 + $0x98] sm:$0xff]
    %v311 = vld [vmem:[%s3 + $0xa0] sm:$0xff]
    %v312 = vld [vmem:[%s3 + $0xa8] sm:$0xff]
    %v313 = vld [vmem:[%s3 + $0xb0] sm:$0xff]
    %v314 = vld [vmem:[%s3 + $0xb8] sm:$0xff]
    %v315 = vld [vmem:[%s3 + $0xc0] sm:$0xff]
    %v316 = vld [vmem:[%s3 + $0xc8] sm:$0xff]
    %v317 = vld [vmem:[%s3 + $0xd0] sm:$0xff]
    %v318 = vld [vmem:[%s3 + $0xd8] sm:$0xff]
    %v319 = vld [vmem:[%s3 + $0xe0] sm:$0xff]
    %v320 = vld [vmem:[%s3 + $0xe8] sm:$0xff]
    %v321 = vld [vmem:[%s3 + $0xf0] sm:$0xff]
    %v322 = vld [vmem:[%s3 + $0xf8] sm:$0xff]
    %v323 = vld [vmem:[%s4] sm:$0xf]
    %v325 = vlaneseq
    %v326 = vshrl.u32 %v325, 7
    %v327 = vsub.s32 0, %v326
    %v328 = vrot.slane %v323, %v327
    %v329 = vlaneseq
    %v330 = vshrl.u32 %v329, 7
    %v331 = vsub.s32 1, %v330
    %v332 = vrot.slane %v323, %v331
    %v333 = vlaneseq
    %v334 = vshrl.u32 %v333, 7
    %v335 = vsub.s32 2, %v334
    %v336 = vrot.slane %v323, %v335
    %v337 = vlaneseq
    %v338 = vshrl.u32 %v337, 7
    %v339 = vsub.s32 3, %v338
    %v340 = vrot.slane %v323, %v339
    %v377 = vunpack.c.l.b16 %v291
    %v378 = vunpack.c.h.b16 %v291
    %v379 = vunpack.c.l.b16 %v292
    %v380 = vunpack.c.h.b16 %v292
    %v381 = vunpack.c.l.b16 %v293
    %v382 = vunpack.c.h.b16 %v293
    %v383 = vunpack.c.l.b16 %v294
    %v384 = vunpack.c.h.b16 %v294
    %v385 = vunpack.c.l.b16 %v295
    %v386 = vunpack.c.h.b16 %v295
    %v387 = vunpack.c.l.b16 %v296
    %v388 = vunpack.c.h.b16 %v296
    %v389 = vunpack.c.l.b16 %v297
    %v390 = vunpack.c.h.b16 %v297
    %v391 = vunpack.c.l.b16 %v298
    %v392 = vunpack.c.h.b16 %v298
    %v393 = vunpack.c.l.b16 %v299
    %v394 = vunpack.c.h.b16 %v299
    %v395 = vunpack.c.l.b16 %v300
    %v396 = vunpack.c.h.b16 %v300
    %v397 = vunpack.c.l.b16 %v301
    %v398 = vunpack.c.h.b16 %v301
    %v399 = vunpack.c.l.b16 %v302
    %v400 = vunpack.c.h.b16 %v302
    %v401 = vunpack.c.l.b16 %v303
    %v402 = vunpack.c.h.b16 %v303
    %v403 = vunpack.c.l.b16 %v304
    %v404 = vunpack.c.h.b16 %v304
    %v405 = vunpack.c.l.b16 %v305
    %v406 = vunpack.c.h.b16 %v305
    %v407 = vunpack.c.l.b16 %v306
    %v408 = vunpack.c.h.b16 %v306
    %v409 = vunpack.c.l.b16 %v307
    %v410 = vunpack.c.h.b16 %v307
    %v411 = vunpack.c.l.b16 %v308
    %v412 = vunpack.c.h.b16 %v308
    %v413 = vunpack.c.l.b16 %v309
    %v414 = vunpack.c.h.b16 %v309
    %v415 = vunpack.c.l.b16 %v310
    %v416 = vunpack.c.h.b16 %v310
    %v417 = vunpack.c.l.b16 %v311
    %v418 = vunpack.c.h.b16 %v311
    %v419 = vunpack.c.l.b16 %v312
    %v420 = vunpack.c.h.b16 %v312
    %v421 = vunpack.c.l.b16 %v313
    %v422 = vunpack.c.h.b16 %v313
    %v423 = vunpack.c.l.b16 %v314
    %v424 = vunpack.c.h.b16 %v314
    %v425 = vunpack.c.l.b16 %v315
    %v426 = vunpack.c.h.b16 %v315
    %v427 = vunpack.c.l.b16 %v316
    %v428 = vunpack.c.h.b16 %v316
    %v429 = vunpack.c.l.b16 %v317
    %v430 = vunpack.c.h.b16 %v317
    %v431 = vunpack.c.l.b16 %v318
    %v432 = vunpack.c.h.b16 %v318
    %v433 = vunpack.c.l.b16 %v319
    %v434 = vunpack.c.h.b16 %v319
    %v435 = vunpack.c.l.b16 %v320
    %v436 = vunpack.c.h.b16 %v320
    %v437 = vunpack.c.l.b16 %v321
    %v438 = vunpack.c.h.b16 %v321
    %v439 = vunpack.c.l.b16 %v322
    %v440 = vunpack.c.h.b16 %v322
    %v441 = vpack.c.b16 %v381, %v377
    %v442 = vpack.c.b16 %v382, %v378
    %v443 = vpack.c.b16 %v383, %v379
    %v444 = vpack.c.b16 %v384, %v380
    %v445 = vpack.c.b16 %v389, %v385
    %v446 = vpack.c.b16 %v390, %v386
    %v447 = vpack.c.b16 %v391, %v387
    %v448 = vpack.c.b16 %v392, %v388
    %v449 = vpack.c.b16 %v397, %v393
    %v450 = vpack.c.b16 %v398, %v394
    %v451 = vpack.c.b16 %v399, %v395
    %v452 = vpack.c.b16 %v400, %v396
    %v453 = vpack.c.b16 %v405, %v401
    %v454 = vpack.c.b16 %v406, %v402
    %v455 = vpack.c.b16 %v407, %v403
    %v456 = vpack.c.b16 %v408, %v404
    %v457 = vpack.c.b16 %v413, %v409
    %v458 = vpack.c.b16 %v414, %v410
    %v459 = vpack.c.b16 %v415, %v411
    %v460 = vpack.c.b16 %v416, %v412
    %v461 = vpack.c.b16 %v421, %v417
    %v462 = vpack.c.b16 %v422, %v418
    %v463 = vpack.c.b16 %v423, %v419
    %v464 = vpack.c.b16 %v424, %v420
    %v465 = vpack.c.b16 %v429, %v425
    %v466 = vpack.c.b16 %v430, %v426
    %v467 = vpack.c.b16 %v431, %v427
    %v468 = vpack.c.b16 %v432, %v428
    %v469 = vpack.c.b16 %v437, %v433
    %v470 = vpack.c.b16 %v438, %v434
    %v471 = vpack.c.b16 %v439, %v435
    %v472 = vpack.c.b16 %v440, %v436
    %505 = vmatprep.subr.bf16.mxu0 %v470
    %506 = vmatpush1.bf16.msra.mxu0 %v469
    %507 = vmatprep.subr.bf16.mxu0 %v466
    %508 = vmatpush1.bf16.msra.mxu0 %v465
    %509 = vmatprep.subr.bf16.mxu0 %v462
    %510 = vmatpush1.bf16.msra.mxu0 %v461
    %511 = vmatprep.subr.bf16.mxu0 %v458
    %512 = vmatpush1.bf16.msra.mxu0 %v457
    %513 = vmatprep.subr.bf16.mxu0 %v454
    %514 = vmatpush1.bf16.msra.mxu0 %v453
    %515 = vmatprep.subr.bf16.mxu0 %v450
    %516 = vmatpush1.bf16.msra.mxu0 %v449
    %517 = vmatprep.subr.bf16.mxu0 %v446
    %518 = vmatpush1.bf16.msra.mxu0 %v445
    %519 = vmatprep.subr.bf16.mxu0 %v442
    %520 = vmatpush1.bf16.msra.mxu0 %v441
    %521 = vmatprep.subr.bf16.mxu0 0
    %522 = vmatpush2.bf16.msra.mxu0 0
    %523 = vmatprep.subr.bf16.mxu0 0
    %524 = vmatpush2.bf16.msra.mxu0 0
    %525 = vmatprep.subr.bf16.mxu0 0
    %526 = vmatpush2.bf16.msra.mxu0 0
    %527 = vmatprep.subr.bf16.mxu0 0
    %528 = vmatpush2.bf16.msra.mxu0 0
    %529 = vmatprep.subr.bf16.mxu0 0
    %530 = vmatpush2.bf16.msra.mxu0 0
    %531 = vmatprep.subr.bf16.mxu0 0
    %532 = vmatpush2.bf16.msra.mxu0 0
    %533 = vmatprep.subr.bf16.mxu0 0
    %534 = vmatpush2.bf16.msra.mxu0 0
    %535 = vmatprep.subr.bf16.mxu0 0
    %536 = vmatpush2.bf16.msra.mxu0 0
    %537 = vmatprep.mubr.bf16.mxu0 0
    %538 = vmatmul.mubr.bf16.gmra.mxu0 %v283
    %v539 = vpop.f32.mrf.mxu0
    %v540 = vadd.f32 %v328, %v539
    %v541 = vpop.f32.mrf.mxu0
    %v542 = vadd.f32 %v332, %v541
    %v543 = vpop.f32.mrf.mxu0
    %v544 = vadd.f32 %v328, %v543
    %v545 = vpop.f32.mrf.mxu0
    %v546 = vadd.f32 %v332, %v545
    %547 = vmatprep.mubr.bf16.mxu0 0
    %548 = vmatmul.mubr.bf16.gmra.mxu0 %v284
    %v549 = vpop.f32.mrf.mxu0
    %v550 = vadd.f32 %v328, %v549
    %v551 = vpop.f32.mrf.mxu0
    %v552 = vadd.f32 %v332, %v551
    %v553 = vpop.f32.mrf.mxu0
    %v554 = vadd.f32 %v328, %v553
    %v555 = vpop.f32.mrf.mxu0
    %v556 = vadd.f32 %v332, %v555
    %557 = vmatprep.mubr.bf16.mxu0 0
    %558 = vmatmul.mubr.bf16.gmra.mxu0 %v285
    %v559 = vpop.f32.mrf.mxu0
    %v560 = vadd.f32 %v328, %v559
    %v561 = vpop.f32.mrf.mxu0
    %v562 = vadd.f32 %v332, %v561
    %v563 = vpop.f32.mrf.mxu0
    %v564 = vadd.f32 %v328, %v563
    %v565 = vpop.f32.mrf.mxu0
    %v566 = vadd.f32 %v332, %v565
    %567 = vmatprep.mubr.bf16.mxu0 0
    %568 = vmatmul.mubr.bf16.gmra.mxu0 %v286
    %v569 = vpop.f32.mrf.mxu0
    %v570 = vadd.f32 %v328, %v569
    %v571 = vpop.f32.mrf.mxu0
    %v572 = vadd.f32 %v332, %v571
    %v573 = vpop.f32.mrf.mxu0
    %v574 = vadd.f32 %v328, %v573
    %v575 = vpop.f32.mrf.mxu0
    %v576 = vadd.f32 %v332, %v575
    %577 = vmatprep.mubr.bf16.mxu0 0
    %578 = vmatmul.mubr.bf16.gmra.mxu0 %v287
    %v579 = vpop.f32.mrf.mxu0
    %v580 = vadd.f32 %v328, %v579
    %v581 = vpop.f32.mrf.mxu0
    %v582 = vadd.f32 %v332, %v581
    %v583 = vpop.f32.mrf.mxu0
    %v584 = vadd.f32 %v328, %v583
    %v585 = vpop.f32.mrf.mxu0
    %v586 = vadd.f32 %v332, %v585
    %587 = vmatprep.mubr.bf16.mxu0 0
    %588 = vmatmul.mubr.bf16.gmra.mxu0 %v288
    %v589 = vpop.f32.mrf.mxu0
    %v590 = vadd.f32 %v328, %v589
    %v591 = vpop.f32.mrf.mxu0
    %v592 = vadd.f32 %v332, %v591
    %v593 = vpop.f32.mrf.mxu0
    %v594 = vadd.f32 %v328, %v593
    %v595 = vpop.f32.mrf.mxu0
    %v596 = vadd.f32 %v332, %v595
    %597 = vmatprep.mubr.bf16.mxu0 0
    %598 = vmatmul.mubr.bf16.gmra.mxu0 %v289
    %v599 = vpop.f32.mrf.mxu0
    %v600 = vadd.f32 %v328, %v599
    %v601 = vpop.f32.mrf.mxu0
    %v602 = vadd.f32 %v332, %v601
    %v603 = vpop.f32.mrf.mxu0
    %v604 = vadd.f32 %v328, %v603
    %v605 = vpop.f32.mrf.mxu0
    %v606 = vadd.f32 %v332, %v605
    %607 = vmatprep.mubr.bf16.mxu0 0
    %608 = vmatmul.mubr.bf16.gmra.mxu0 %v290
    %v609 = vpop.f32.mrf.mxu0
    %v610 = vadd.f32 %v328, %v609
    %v611 = vpop.f32.mrf.mxu0
    %v612 = vadd.f32 %v332, %v611
    %v613 = vpop.f32.mrf.mxu0
    %v614 = vadd.f32 %v328, %v613
    %v615 = vpop.f32.mrf.mxu0
    %v616 = vadd.f32 %v332, %v615
    %617 = vdwg.mxu0
    %618 = vmatprep.subr.bf16.mxu0 %v472
    %619 = vmatpush1.bf16.msra.mxu0 %v471
    %620 = vmatprep.subr.bf16.mxu0 %v468
    %621 = vmatpush1.bf16.msra.mxu0 %v467
    %622 = vmatprep.subr.bf16.mxu0 %v464
    %623 = vmatpush1.bf16.msra.mxu0 %v463
    %624 = vmatprep.subr.bf16.mxu0 %v460
    %625 = vmatpush1.bf16.msra.mxu0 %v459
    %626 = vmatprep.subr.bf16.mxu0 %v456
    %627 = vmatpush1.bf16.msra.mxu0 %v455
    %628 = vmatprep.subr.bf16.mxu0 %v452
    %629 = vmatpush1.bf16.msra.mxu0 %v451
    %630 = vmatprep.subr.bf16.mxu0 %v448
    %631 = vmatpush1.bf16.msra.mxu0 %v447
    %632 = vmatprep.subr.bf16.mxu0 %v444
    %633 = vmatpush1.bf16.msra.mxu0 %v443
    %634 = vmatprep.subr.bf16.mxu0 0
    %635 = vmatpush2.bf16.msra.mxu0 0
    %636 = vmatprep.subr.bf16.mxu0 0
    %637 = vmatpush2.bf16.msra.mxu0 0
    %638 = vmatprep.subr.bf16.mxu0 0
    %639 = vmatpush2.bf16.msra.mxu0 0
    %640 = vmatprep.subr.bf16.mxu0 0
    %641 = vmatpush2.bf16.msra.mxu0 0
    %642 = vmatprep.subr.bf16.mxu0 0
    %643 = vmatpush2.bf16.msra.mxu0 0
    %644 = vmatprep.subr.bf16.mxu0 0
    %645 = vmatpush2.bf16.msra.mxu0 0
    %646 = vmatprep.subr.bf16.mxu0 0
    %647 = vmatpush2.bf16.msra.mxu0 0
    %648 = vmatprep.subr.bf16.mxu0 0
    %649 = vmatpush2.bf16.msra.mxu0 0
    %650 = vmatprep.mubr.bf16.mxu0 0
    %651 = vmatmul.mubr.bf16.gmra.mxu0 %v283
    %v652 = vpop.f32.mrf.mxu0
    %v653 = vadd.f32 %v336, %v652
    %v654 = vpop.f32.mrf.mxu0
    %v655 = vadd.f32 %v340, %v654
    %v656 = vpop.f32.mrf.mxu0
    %v657 = vadd.f32 %v336, %v656
    %v658 = vpop.f32.mrf.mxu0
    %v659 = vadd.f32 %v340, %v658
    %660 = vmatprep.mubr.bf16.mxu0 0
    %661 = vmatmul.mubr.bf16.gmra.mxu0 %v284
    %v662 = vpop.f32.mrf.mxu0
    %v663 = vadd.f32 %v336, %v662
    %v664 = vpop.f32.mrf.mxu0
    %v665 = vadd.f32 %v340, %v664
    %v666 = vpop.f32.mrf.mxu0
    %v667 = vadd.f32 %v336, %v666
    %v668 = vpop.f32.mrf.mxu0
    %v669 = vadd.f32 %v340, %v668
    %670 = vmatprep.mubr.bf16.mxu0 0
    %671 = vmatmul.mubr.bf16.gmra.mxu0 %v285
    %v672 = vpop.f32.mrf.mxu0
    %v673 = vadd.f32 %v336, %v672
    %v674 = vpop.f32.mrf.mxu0
    %v675 = vadd.f32 %v340, %v674
    %v676 = vpop.f32.mrf.mxu0
    %v677 = vadd.f32 %v336, %v676
    %v678 = vpop.f32.mrf.mxu0
    %v679 = vadd.f32 %v340, %v678
    %680 = vmatprep.mubr.bf16.mxu0 0
    %681 = vmatmul.mubr.bf16.gmra.mxu0 %v286
    %v682 = vpop.f32.mrf.mxu0
    %v683 = vadd.f32 %v336, %v682
    %v684 = vpop.f32.mrf.mxu0
    %v685 = vadd.f32 %v340, %v684
    %v686 = vpop.f32.mrf.mxu0
    %v687 = vadd.f32 %v336, %v686
    %v688 = vpop.f32.mrf.mxu0
    %v689 = vadd.f32 %v340, %v688
    %690 = vmatprep.mubr.bf16.mxu0 0
    %691 = vmatmul.mubr.bf16.gmra.mxu0 %v287
    %v692 = vpop.f32.mrf.mxu0
    %v693 = vadd.f32 %v336, %v692
    %v694 = vpop.f32.mrf.mxu0
    %v695 = vadd.f32 %v340, %v694
    %v696 = vpop.f32.mrf.mxu0
    %v697 = vadd.f32 %v336, %v696
    %v698 = vpop.f32.mrf.mxu0
    %v699 = vadd.f32 %v340, %v698
    %700 = vmatprep.mubr.bf16.mxu0 0
    %701 = vmatmul.mubr.bf16.gmra.mxu0 %v288
    %v702 = vpop.f32.mrf.mxu0
    %v703 = vadd.f32 %v336, %v702
    %v704 = vpop.f32.mrf.mxu0
    %v705 = vadd.f32 %v340, %v704
    %v706 = vpop.f32.mrf.mxu0
    %v707 = vadd.f32 %v336, %v706
    %v708 = vpop.f32.mrf.mxu0
    %v709 = vadd.f32 %v340, %v708
    %710 = vmatprep.mubr.bf16.mxu0 0
    %711 = vmatmul.mubr.bf16.gmra.mxu0 %v289
    %v712 = vpop.f32.mrf.mxu0
    %v713 = vadd.f32 %v336, %v712
    %v714 = vpop.f32.mrf.mxu0
    %v715 = vadd.f32 %v340, %v714
    %v716 = vpop.f32.mrf.mxu0
    %v717 = vadd.f32 %v336, %v716
    %v718 = vpop.f32.mrf.mxu0
    %v719 = vadd.f32 %v340, %v718
    %720 = vmatprep.mubr.bf16.mxu0 0
    %721 = vmatmul.mubr.bf16.gmra.mxu0 %v290
    %v722 = vpop.f32.mrf.mxu0
    %v723 = vadd.f32 %v336, %v722
    %v724 = vpop.f32.mrf.mxu0
    %v725 = vadd.f32 %v340, %v724
    %v726 = vpop.f32.mrf.mxu0
    %v727 = vadd.f32 %v336, %v726
    %v728 = vpop.f32.mrf.mxu0
    %v729 = vadd.f32 %v340, %v728
    %730 = vdwg.mxu0
    %v731 = vmul.f32 %v540, 0.5
    %v732 = vmul.f32 %v542, 0.5
    %v733 = vmul.f32 %v653, 0.5
    %v734 = vmul.f32 %v655, 0.5
    %v735 = vmul.f32 %v544, 0.5
    %v736 = vmul.f32 %v546, 0.5
    %v737 = vmul.f32 %v657, 0.5
    %v738 = vmul.f32 %v659, 0.5
    %v739 = vmul.f32 %v550, 0.5
    %v740 = vmul.f32 %v552, 0.5
    %v741 = vmul.f32 %v663, 0.5
    %v742 = vmul.f32 %v665, 0.5
    %v743 = vmul.f32 %v554, 0.5
    %v744 = vmul.f32 %v556, 0.5
    %v745 = vmul.f32 %v667, 0.5
    %v746 = vmul.f32 %v669, 0.5
    %v747 = vmul.f32 %v560, 0.5
    %v748 = vmul.f32 %v562, 0.5
    %v749 = vmul.f32 %v673, 0.5
    %v750 = vmul.f32 %v675, 0.5
    %v751 = vmul.f32 %v564, 0.5
    %v752 = vmul.f32 %v566, 0.5
    %v753 = vmul.f32 %v677, 0.5
    %v754 = vmul.f32 %v679, 0.5
    %v755 = vmul.f32 %v570, 0.5
    %v756 = vmul.f32 %v572, 0.5
    %v757 = vmul.f32 %v683, 0.5
    %v758 = vmul.f32 %v685, 0.5
    %v759 = vmul.f32 %v574, 0.5
    %v760 = vmul.f32 %v576, 0.5
    %v761 = vmul.f32 %v687, 0.5
    %v762 = vmul.f32 %v689, 0.5
    %v763 = vmul.f32 %v580, 0.5
    %v764 = vmul.f32 %v582, 0.5
    %v765 = vmul.f32 %v693, 0.5
    %v766 = vmul.f32 %v695, 0.5
    %v767 = vmul.f32 %v584, 0.5
    %v768 = vmul.f32 %v586, 0.5
    %v769 = vmul.f32 %v697, 0.5
    %v770 = vmul.f32 %v699, 0.5
    %v771 = vmul.f32 %v590, 0.5
    %v772 = vmul.f32 %v592, 0.5
    %v773 = vmul.f32 %v703, 0.5
    %v774 = vmul.f32 %v705, 0.5
    %v775 = vmul.f32 %v594, 0.5
    %v776 = vmul.f32 %v596, 0.5
    %v777 = vmul.f32 %v707, 0.5
    %v778 = vmul.f32 %v709, 0.5
    %v779 = vmul.f32 %v600, 0.5
    %v780 = vmul.f32 %v602, 0.5
    %v781 = vmul.f32 %v713, 0.5
    %v782 = vmul.f32 %v715, 0.5
    %v783 = vmul.f32 %v604, 0.5
    %v784 = vmul.f32 %v606, 0.5
    %v785 = vmul.f32 %v717, 0.5
    %v786 = vmul.f32 %v719, 0.5
    %v787 = vmul.f32 %v610, 0.5
    %v788 = vmul.f32 %v612, 0.5
    %v789 = vmul.f32 %v723, 0.5
    %v790 = vmul.f32 %v725, 0.5
    %v791 = vmul.f32 %v614, 0.5
    %v792 = vmul.f32 %v616, 0.5
    %v793 = vmul.f32 %v727, 0.5
    %v794 = vmul.f32 %v729, 0.5
    %v795 = vmul.f32 %v540, 0.044715
    %v796 = vmul.f32 %v542, 0.044715
    %v797 = vmul.f32 %v653, 0.044715
    %v798 = vmul.f32 %v655, 0.044715
    %v799 = vmul.f32 %v544, 0.044715
    %v800 = vmul.f32 %v546, 0.044715
    %v801 = vmul.f32 %v657, 0.044715
    %v802 = vmul.f32 %v659, 0.044715
    %v803 = vmul.f32 %v550, 0.044715
    %v804 = vmul.f32 %v552, 0.044715
    %v805 = vmul.f32 %v663, 0.044715
    %v806 = vmul.f32 %v665, 0.044715
    %v807 = vmul.f32 %v554, 0.044715
    %v808 = vmul.f32 %v556, 0.044715
    %v809 = vmul.f32 %v667, 0.044715
    %v810 = vmul.f32 %v669, 0.044715
    %v811 = vmul.f32 %v560, 0.044715
    %v812 = vmul.f32 %v562, 0.044715
    %v813 = vmul.f32 %v673, 0.044715
    %v814 = vmul.f32 %v675, 0.044715
    %v815 = vmul.f32 %v564, 0.044715
    %v816 = vmul.f32 %v566, 0.044715
    %v817 = vmul.f32 %v677, 0.044715
    %v818 = vmul.f32 %v679, 0.044715
    %v819 = vmul.f32 %v570, 0.044715
    %v820 = vmul.f32 %v572, 0.044715
    %v821 = vmul.f32 %v683, 0.044715
    %v822 = vmul.f32 %v685, 0.044715
    %v823 = vmul.f32 %v574, 0.044715
    %v824 = vmul.f32 %v576, 0.044715
    %v825 = vmul.f32 %v687, 0.044715
    %v826 = vmul.f32 %v689, 0.044715
    %v827 = vmul.f32 %v580, 0.044715
    %v828 = vmul.f32 %v582, 0.044715
    %v829 = vmul.f32 %v693, 0.044715
    %v830 = vmul.f32 %v695, 0.044715
    %v831 = vmul.f32 %v584, 0.044715
    %v832 = vmul.f32 %v586, 0.044715
    %v833 = vmul.f32 %v697, 0.044715
    %v834 = vmul.f32 %v699, 0.044715
    %v835 = vmul.f32 %v590, 0.044715
    %v836 = vmul.f32 %v592, 0.044715
    %v837 = vmul.f32 %v703, 0.044715
    %v838 = vmul.f32 %v705, 0.044715
    %v839 = vmul.f32 %v594, 0.044715
    %v840 = vmul.f32 %v596, 0.044715
    %v841 = vmul.f32 %v707, 0.044715
    %v842 = vmul.f32 %v709, 0.044715
    %v843 = vmul.f32 %v600, 0.044715
    %v844 = vmul.f32 %v602, 0.044715
    %v845 = vmul.f32 %v713, 0.044715
    %v846 = vmul.f32 %v715, 0.044715
    %v847 = vmul.f32 %v604, 0.044715
    %v848 = vmul.f32 %v606, 0.044715
    %v849 = vmul.f32 %v717, 0.044715
    %v850 = vmul.f32 %v719, 0.044715
    %v851 = vmul.f32 %v610, 0.044715
    %v852 = vmul.f32 %v612, 0.044715
    %v853 = vmul.f32 %v723, 0.044715
    %v854 = vmul.f32 %v725, 0.044715
    %v855 = vmul.f32 %v614, 0.044715
    %v856 = vmul.f32 %v616, 0.044715
    %v857 = vmul.f32 %v727, 0.044715
    %v858 = vmul.f32 %v729, 0.044715
    %v859 = vmul.f32 %v795, %v540
    %v860 = vmul.f32 %v796, %v542
    %v861 = vmul.f32 %v797, %v653
    %v862 = vmul.f32 %v798, %v655
    %v863 = vmul.f32 %v799, %v544
    %v864 = vmul.f32 %v800, %v546
    %v865 = vmul.f32 %v801, %v657
    %v866 = vmul.f32 %v802, %v659
    %v867 = vmul.f32 %v803, %v550
    %v868 = vmul.f32 %v804, %v552
    %v869 = vmul.f32 %v805, %v663
    %v870 = vmul.f32 %v806, %v665
    %v871 = vmul.f32 %v807, %v554
    %v872 = vmul.f32 %v808, %v556
    %v873 = vmul.f32 %v809, %v667
    %v874 = vmul.f32 %v810, %v669
    %v875 = vmul.f32 %v811, %v560
    %v876 = vmul.f32 %v812, %v562
    %v877 = vmul.f32 %v813, %v673
    %v878 = vmul.f32 %v814, %v675
    %v879 = vmul.f32 %v815, %v564
    %v880 = vmul.f32 %v816, %v566
    %v881 = vmul.f32 %v817, %v677
    %v882 = vmul.f32 %v818, %v679
    %v883 = vmul.f32 %v819, %v570
    %v884 = vmul.f32 %v820, %v572
    %v885 = vmul.f32 %v821, %v683
    %v886 = vmul.f32 %v822, %v685
    %v887 = vmul.f32 %v823, %v574
    %v888 = vmul.f32 %v824, %v576
    %v889 = vmul.f32 %v825, %v687
    %v890 = vmul.f32 %v826, %v689
    %v891 = vmul.f32 %v827, %v580
    %v892 = vmul.f32 %v828, %v582
    %v893 = vmul.f32 %v829, %v693
    %v894 = vmul.f32 %v830, %v695
    %v895 = vmul.f32 %v831, %v584
    %v896 = vmul.f32 %v832, %v586
    %v897 = vmul.f32 %v833, %v697
    %v898 = vmul.f32 %v834, %v699
    %v899 = vmul.f32 %v835, %v590
    %v900 = vmul.f32 %v836, %v592
    %v901 = vmul.f32 %v837, %v703
    %v902 = vmul.f32 %v838, %v705
    %v903 = vmul.f32 %v839, %v594
    %v904 = vmul.f32 %v840, %v596
    %v905 = vmul.f32 %v841, %v707
    %v906 = vmul.f32 %v842, %v709
    %v907 = vmul.f32 %v843, %v600
    %v908 = vmul.f32 %v844, %v602
    %v909 = vmul.f32 %v845, %v713
    %v910 = vmul.f32 %v846, %v715
    %v911 = vmul.f32 %v847, %v604
    %v912 = vmul.f32 %v848, %v606
    %v913 = vmul.f32 %v849, %v717
    %v914 = vmul.f32 %v850, %v719
    %v915 = vmul.f32 %v851, %v610
    %v916 = vmul.f32 %v852, %v612
    %v917 = vmul.f32 %v853, %v723
    %v918 = vmul.f32 %v854, %v725
    %v919 = vmul.f32 %v855, %v614
    %v920 = vmul.f32 %v856, %v616
    %v921 = vmul.f32 %v857, %v727
    %v922 = vmul.f32 %v858, %v729
    %v923 = vmul.f32 %v859, %v540
    %v924 = vmul.f32 %v860, %v542
    %v925 = vmul.f32 %v861, %v653
    %v926 = vmul.f32 %v862, %v655
    %v927 = vmul.f32 %v863, %v544
    %v928 = vmul.f32 %v864, %v546
    %v929 = vmul.f32 %v865, %v657
    %v930 = vmul.f32 %v866, %v659
    %v931 = vmul.f32 %v867, %v550
    %v932 = vmul.f32 %v868, %v552
    %v933 = vmul.f32 %v869, %v663
    %v934 = vmul.f32 %v870, %v665
    %v935 = vmul.f32 %v871, %v554
    %v936 = vmul.f32 %v872, %v556
    %v937 = vmul.f32 %v873, %v667
    %v938 = vmul.f32 %v874, %v669
    %v939 = vmul.f32 %v875, %v560
    %v940 = vmul.f32 %v876, %v562
    %v941 = vmul.f32 %v877, %v673
    %v942 = vmul.f32 %v878, %v675
    %v943 = vmul.f32 %v879, %v564
    %v944 = vmul.f32 %v880, %v566
    %v945 = vmul.f32 %v881, %v677
    %v946 = vmul.f32 %v882, %v679
    %v947 = vmul.f32 %v883, %v570
    %v948 = vmul.f32 %v884, %v572
    %v949 = vmul.f32 %v885, %v683
    %v950 = vmul.f32 %v886, %v685
    %v951 = vmul.f32 %v887, %v574
    %v952 = vmul.f32 %v888, %v576
    %v953 = vmul.f32 %v889, %v687
    %v954 = vmul.f32 %v890, %v689
    %v955 = vmul.f32 %v891, %v580
    %v956 = vmul.f32 %v892, %v582
    %v957 = vmul.f32 %v893, %v693
    %v958 = vmul.f32 %v894, %v695
    %v959 = vmul.f32 %v895, %v584
    %v960 = vmul.f32 %v896, %v586
    %v961 = vmul.f32 %v897, %v697
    %v962 = vmul.f32 %v898, %v699
    %v963 = vmul.f32 %v899, %v590
    %v964 = vmul.f32 %v900, %v592
    %v965 = vmul.f32 %v901, %v703
    %v966 = vmul.f32 %v902, %v705
    %v967 = vmul.f32 %v903, %v594
    %v968 = vmul.f32 %v904, %v596
    %v969 = vmul.f32 %v905, %v707
    %v970 = vmul.f32 %v906, %v709
    %v971 = vmul.f32 %v907, %v600
    %v972 = vmul.f32 %v908, %v602
    %v973 = vmul.f32 %v909, %v713
    %v974 = vmul.f32 %v910, %v715
    %v975 = vmul.f32 %v911, %v604
    %v976 = vmul.f32 %v912, %v606
    %v977 = vmul.f32 %v913, %v717
    %v978 = vmul.f32 %v914, %v719
    %v979 = vmul.f32 %v915, %v610
    %v980 = vmul.f32 %v916, %v612
    %v981 = vmul.f32 %v917, %v723
    %v982 = vmul.f32 %v918, %v725
    %v983 = vmul.f32 %v919, %v614
    %v984 = vmul.f32 %v920, %v616
    %v985 = vmul.f32 %v921, %v727
    %v986 = vmul.f32 %v922, %v729
    %v987 = vadd.f32 %v540, %v923
    %v988 = vadd.f32 %v542, %v924
    %v989 = vadd.f32 %v653, %v925
    %v990 = vadd.f32 %v655, %v926
    %v991 = vadd.f32 %v544, %v927
    %v992 = vadd.f32 %v546, %v928
    %v993 = vadd.f32 %v657, %v929
    %v994 = vadd.f32 %v659, %v930
    %v995 = vadd.f32 %v550, %v931
    %v996 = vadd.f32 %v552, %v932
    %v997 = vadd.f32 %v663, %v933
    %v998 = vadd.f32 %v665, %v934
    %v999 = vadd.f32 %v554, %v935
    %v1000 = vadd.f32 %v556, %v936
    %v1001 = vadd.f32 %v667, %v937
    %v1002 = vadd.f32 %v669, %v938
    %v1003 = vadd.f32 %v560, %v939
    %v1004 = vadd.f32 %v562, %v940
    %v1005 = vadd.f32 %v673, %v941
    %v1006 = vadd.f32 %v675, %v942
    %v1007 = vadd.f32 %v564, %v943
    %v1008 = vadd.f32 %v566, %v944
    %v1009 = vadd.f32 %v677, %v945
    %v1010 = vadd.f32 %v679, %v946
    %v1011 = vadd.f32 %v570, %v947
    %v1012 = vadd.f32 %v572, %v948
    %v1013 = vadd.f32 %v683, %v949
    %v1014 = vadd.f32 %v685, %v950
    %v1015 = vadd.f32 %v574, %v951
    %v1016 = vadd.f32 %v576, %v952
    %v1017 = vadd.f32 %v687, %v953
    %v1018 = vadd.f32 %v689, %v954
    %v1019 = vadd.f32 %v580, %v955
    %v1020 = vadd.f32 %v582, %v956
    %v1021 = vadd.f32 %v693, %v957
    %v1022 = vadd.f32 %v695, %v958
    %v1023 = vadd.f32 %v584, %v959
    %v1024 = vadd.f32 %v586, %v960
    %v1025 = vadd.f32 %v697, %v961
    %v1026 = vadd.f32 %v699, %v962
    %v1027 = vadd.f32 %v590, %v963
    %v1028 = vadd.f32 %v592, %v964
    %v1029 = vadd.f32 %v703, %v965
    %v1030 = vadd.f32 %v705, %v966
    %v1031 = vadd.f32 %v594, %v967
    %v1032 = vadd.f32 %v596, %v968
    %v1033 = vadd.f32 %v707, %v969
    %v1034 = vadd.f32 %v709, %v970
    %v1035 = vadd.f32 %v600, %v971
    %v1036 = vadd.f32 %v602, %v972
    %v1037 = vadd.f32 %v713, %v973
    %v1038 = vadd.f32 %v715, %v974
    %v1039 = vadd.f32 %v604, %v975
    %v1040 = vadd.f32 %v606, %v976
    %v1041 = vadd.f32 %v717, %v977
    %v1042 = vadd.f32 %v719, %v978
    %v1043 = vadd.f32 %v610, %v979
    %v1044 = vadd.f32 %v612, %v980
    %v1045 = vadd.f32 %v723, %v981
    %v1046 = vadd.f32 %v725, %v982
    %v1047 = vadd.f32 %v614, %v983
    %v1048 = vadd.f32 %v616, %v984
    %v1049 = vadd.f32 %v727, %v985
    %v1050 = vadd.f32 %v729, %v986
    %v1051 = vmul.f32 %v987, 0.7978846
    %v1052 = vmul.f32 %v988, 0.7978846
    %v1053 = vmul.f32 %v989, 0.7978846
    %v1054 = vmul.f32 %v990, 0.7978846
    %v1055 = vmul.f32 %v991, 0.7978846
    %v1056 = vmul.f32 %v992, 0.7978846
    %v1057 = vmul.f32 %v993, 0.7978846
    %v1058 = vmul.f32 %v994, 0.7978846
    %v1059 = vmul.f32 %v995, 0.7978846
    %v1060 = vmul.f32 %v996, 0.7978846
    %v1061 = vmul.f32 %v997, 0.7978846
    %v1062 = vmul.f32 %v998, 0.7978846
    %v1063 = vmul.f32 %v999, 0.7978846
    %v1064 = vmul.f32 %v1000, 0.7978846
    %v1065 = vmul.f32 %v1001, 0.7978846
    %v1066 = vmul.f32 %v1002, 0.7978846
    %v1067 = vmul.f32 %v1003, 0.7978846
    %v1068 = vmul.f32 %v1004, 0.7978846
    %v1069 = vmul.f32 %v1005, 0.7978846
    %v1070 = vmul.f32 %v1006, 0.7978846
    %v1071 = vmul.f32 %v1007, 0.7978846
    %v1072 = vmul.f32 %v1008, 0.7978846
    %v1073 = vmul.f32 %v1009, 0.7978846
    %v1074 = vmul.f32 %v1010, 0.7978846
    %v1075 = vmul.f32 %v1011, 0.7978846
    %v1076 = vmul.f32 %v1012, 0.7978846
    %v1077 = vmul.f32 %v1013, 0.7978846
    %v1078 = vmul.f32 %v1014, 0.7978846
    %v1079 = vmul.f32 %v1015, 0.7978846
    %v1080 = vmul.f32 %v1016, 0.7978846
    %v1081 = vmul.f32 %v1017, 0.7978846
    %v1082 = vmul.f32 %v1018, 0.7978846
    %v1083 = vmul.f32 %v1019, 0.7978846
    %v1084 = vmul.f32 %v1020, 0.7978846
    %v1085 = vmul.f32 %v1021, 0.7978846
    %v1086 = vmul.f32 %v1022, 0.7978846
    %v1087 = vmul.f32 %v1023, 0.7978846
    %v1088 = vmul.f32 %v1024, 0.7978846
    %v1089 = vmul.f32 %v1025, 0.7978846
    %v1090 = vmul.f32 %v1026, 0.7978846
    %v1091 = vmul.f32 %v1027, 0.7978846
    %v1092 = vmul.f32 %v1028, 0.7978846
    %v1093 = vmul.f32 %v1029, 0.7978846
    %v1094 = vmul.f32 %v1030, 0.7978846
    %v1095 = vmul.f32 %v1031, 0.7978846
    %v1096 = vmul.f32 %v1032, 0.7978846
    %v1097 = vmul.f32 %v1033, 0.7978846
    %v1098 = vmul.f32 %v1034, 0.7978846
    %v1099 = vmul.f32 %v1035, 0.7978846
    %v1100 = vmul.f32 %v1036, 0.7978846
    %v1101 = vmul.f32 %v1037, 0.7978846
    %v1102 = vmul.f32 %v1038, 0.7978846
    %v1103 = vmul.f32 %v1039, 0.7978846
    %v1104 = vmul.f32 %v1040, 0.7978846
    %v1105 = vmul.f32 %v1041, 0.7978846
    %v1106 = vmul.f32 %v1042, 0.7978846
    %v1107 = vmul.f32 %v1043, 0.7978846
    %v1108 = vmul.f32 %v1044, 0.7978846
    %v1109 = vmul.f32 %v1045, 0.7978846
    %v1110 = vmul.f32 %v1046, 0.7978846
    %v1111 = vmul.f32 %v1047, 0.7978846
    %v1112 = vmul.f32 %v1048, 0.7978846
    %v1113 = vmul.f32 %v1049, 0.7978846
    %v1114 = vmul.f32 %v1050, 0.7978846
    %v1115 = vtanh.pop %v1051
    %v1116 = vtanh.pop %v1052
    %v1117 = vtanh.pop %v1053
    %v1118 = vtanh.pop %v1054
    %v1119 = vtanh.pop %v1055
    %v1120 = vtanh.pop %v1056
    %v1121 = vtanh.pop %v1057
    %v1122 = vtanh.pop %v1058
    %v1123 = vtanh.pop %v1059
    %v1124 = vtanh.pop %v1060
    %v1125 = vtanh.pop %v1061
    %v1126 = vtanh.pop %v1062
    %v1127 = vtanh.pop %v1063
    %v1128 = vtanh.pop %v1064
    %v1129 = vtanh.pop %v1065
    %v1130 = vtanh.pop %v1066
    %v1131 = vtanh.pop %v1067
    %v1132 = vtanh.pop %v1068
    %v1133 = vtanh.pop %v1069
    %v1134 = vtanh.pop %v1070
    %v1135 = vtanh.pop %v1071
    %v1136 = vtanh.pop %v1072
    %v1137 = vtanh.pop %v1073
    %v1138 = vtanh.pop %v1074
    %v1139 = vtanh.pop %v1075
    %v1140 = vtanh.pop %v1076
    %v1141 = vtanh.pop %v1077
    %v1142 = vtanh.pop %v1078
    %v1143 = vtanh.pop %v1079
    %v1144 = vtanh.pop %v1080
    %v1145 = vtanh.pop %v1081
    %v1146 = vtanh.pop %v1082
    %v1147 = vtanh.pop %v1083
    %v1148 = vtanh.pop %v1084
    %v1149 = vtanh.pop %v1085
    %v1150 = vtanh.pop %v1086
    %v1151 = vtanh.pop %v1087
    %v1152 = vtanh.pop %v1088
    %v1153 = vtanh.pop %v1089
    %v1154 = vtanh.pop %v1090
    %v1155 = vtanh.pop %v1091
    %v1156 = vtanh.pop %v1092
    %v1157 = vtanh.pop %v1093
    %v1158 = vtanh.pop %v1094
    %v1159 = vtanh.pop %v1095
    %v1160 = vtanh.pop %v1096
    %v1161 = vtanh.pop %v1097
    %v1162 = vtanh.pop %v1098
    %v1163 = vtanh.pop %v1099
    %v1164 = vtanh.pop %v1100
    %v1165 = vtanh.pop %v1101
    %v1166 = vtanh.pop %v1102
    %v1167 = vtanh.pop %v1103
    %v1168 = vtanh.pop %v1104
    %v1169 = vtanh.pop %v1105
    %v1170 = vtanh.pop %v1106
    %v1171 = vtanh.pop %v1107
    %v1172 = vtanh.pop %v1108
    %v1173 = vtanh.pop %v1109
    %v1174 = vtanh.pop %v1110
    %v1175 = vtanh.pop %v1111
    %v1176 = vtanh.pop %v1112
    %v1177 = vtanh.pop %v1113
    %v1178 = vtanh.pop %v1114
    %v1179 = vadd.f32 %v1115, 1.0
    %v1180 = vadd.f32 %v1116, 1.0
    %v1181 = vadd.f32 %v1117, 1.0
    %v1182 = vadd.f32 %v1118, 1.0
    %v1183 = vadd.f32 %v1119, 1.0
    %v1184 = vadd.f32 %v1120, 1.0
    %v1185 = vadd.f32 %v1121, 1.0
    %v1186 = vadd.f32 %v1122, 1.0
    %v1187 = vadd.f32 %v1123, 1.0
    %v1188 = vadd.f32 %v1124, 1.0
    %v1189 = vadd.f32 %v1125, 1.0
    %v1190 = vadd.f32 %v1126, 1.0
    %v1191 = vadd.f32 %v1127, 1.0
    %v1192 = vadd.f32 %v1128, 1.0
    %v1193 = vadd.f32 %v1129, 1.0
    %v1194 = vadd.f32 %v1130, 1.0
    %v1195 = vadd.f32 %v1131, 1.0
    %v1196 = vadd.f32 %v1132, 1.0
    %v1197 = vadd.f32 %v1133, 1.0
    %v1198 = vadd.f32 %v1134, 1.0
    %v1199 = vadd.f32 %v1135, 1.0
    %v1200 = vadd.f32 %v1136, 1.0
    %v1201 = vadd.f32 %v1137, 1.0
    %v1202 = vadd.f32 %v1138, 1.0
    %v1203 = vadd.f32 %v1139, 1.0
    %v1204 = vadd.f32 %v1140, 1.0
    %v1205 = vadd.f32 %v1141, 1.0
    %v1206 = vadd.f32 %v1142, 1.0
    %v1207 = vadd.f32 %v1143, 1.0
    %v1208 = vadd.f32 %v1144, 1.0
    %v1209 = vadd.f32 %v1145, 1.0
    %v1210 = vadd.f32 %v1146, 1.0
    %v1211 = vadd.f32 %v1147, 1.0
    %v1212 = vadd.f32 %v1148, 1.0
    %v1213 = vadd.f32 %v1149, 1.0
    %v1214 = vadd.f32 %v1150, 1.0
    %v1215 = vadd.f32 %v1151, 1.0
    %v1216 = vadd.f32 %v1152, 1.0
    %v1217 = vadd.f32 %v1153, 1.0
    %v1218 = vadd.f32 %v1154, 1.0
    %v1219 = vadd.f32 %v1155, 1.0
    %v1220 = vadd.f32 %v1156, 1.0
    %v1221 = vadd.f32 %v1157, 1.0
    %v1222 = vadd.f32 %v1158, 1.0
    %v1223 = vadd.f32 %v1159, 1.0
    %v1224 = vadd.f32 %v1160, 1.0
    %v1225 = vadd.f32 %v1161, 1.0
    %v1226 = vadd.f32 %v1162, 1.0
    %v1227 = vadd.f32 %v1163, 1.0
    %v1228 = vadd.f32 %v1164, 1.0
    %v1229 = vadd.f32 %v1165, 1.0
    %v1230 = vadd.f32 %v1166, 1.0
    %v1231 = vadd.f32 %v1167, 1.0
    %v1232 = vadd.f32 %v1168, 1.0
    %v1233 = vadd.f32 %v1169, 1.0
    %v1234 = vadd.f32 %v1170, 1.0
    %v1235 = vadd.f32 %v1171, 1.0
    %v1236 = vadd.f32 %v1172, 1.0
    %v1237 = vadd.f32 %v1173, 1.0
    %v1238 = vadd.f32 %v1174, 1.0
    %v1239 = vadd.f32 %v1175, 1.0
    %v1240 = vadd.f32 %v1176, 1.0
    %v1241 = vadd.f32 %v1177, 1.0
    %v1242 = vadd.f32 %v1178, 1.0
    %v1243 = vmul.f32 %v731, %v1179
    %v1244 = vmul.f32 %v732, %v1180
    %v1245 = vmul.f32 %v733, %v1181
    %v1246 = vmul.f32 %v734, %v1182
    %v1247 = vmul.f32 %v735, %v1183
    %v1248 = vmul.f32 %v736, %v1184
    %v1249 = vmul.f32 %v737, %v1185
    %v1250 = vmul.f32 %v738, %v1186
    %v1251 = vmul.f32 %v739, %v1187
    %v1252 = vmul.f32 %v740, %v1188
    %v1253 = vmul.f32 %v741, %v1189
    %v1254 = vmul.f32 %v742, %v1190
    %v1255 = vmul.f32 %v743, %v1191
    %v1256 = vmul.f32 %v744, %v1192
    %v1257 = vmul.f32 %v745, %v1193
    %v1258 = vmul.f32 %v746, %v1194
    %v1259 = vmul.f32 %v747, %v1195
    %v1260 = vmul.f32 %v748, %v1196
    %v1261 = vmul.f32 %v749, %v1197
    %v1262 = vmul.f32 %v750, %v1198
    %v1263 = vmul.f32 %v751, %v1199
    %v1264 = vmul.f32 %v752, %v1200
    %v1265 = vmul.f32 %v753, %v1201
    %v1266 = vmul.f32 %v754, %v1202
    %v1267 = vmul.f32 %v755, %v1203
    %v1268 = vmul.f32 %v756, %v1204
    %v1269 = vmul.f32 %v757, %v1205
    %v1270 = vmul.f32 %v758, %v1206
    %v1271 = vmul.f32 %v759, %v1207
    %v1272 = vmul.f32 %v760, %v1208
    %v1273 = vmul.f32 %v761, %v1209
    %v1274 = vmul.f32 %v762, %v1210
    %v1275 = vmul.f32 %v763, %v1211
    %v1276 = vmul.f32 %v764, %v1212
    %v1277 = vmul.f32 %v765, %v1213
    %v1278 = vmul.f32 %v766, %v1214
    %v1279 = vmul.f32 %v767, %v1215
    %v1280 = vmul.f32 %v768, %v1216
    %v1281 = vmul.f32 %v769, %v1217
    %v1282 = vmul.f32 %v770, %v1218
    %v1283 = vmul.f32 %v771, %v1219
    %v1284 = vmul.f32 %v772, %v1220
    %v1285 = vmul.f32 %v773, %v1221
    %v1286 = vmul.f32 %v774, %v1222
    %v1287 = vmul.f32 %v775, %v1223
    %v1288 = vmul.f32 %v776, %v1224
    %v1289 = vmul.f32 %v777, %v1225
    %v1290 = vmul.f32 %v778, %v1226
    %v1291 = vmul.f32 %v779, %v1227
    %v1292 = vmul.f32 %v780, %v1228
    %v1293 = vmul.f32 %v781, %v1229
    %v1294 = vmul.f32 %v782, %v1230
    %v1295 = vmul.f32 %v783, %v1231
    %v1296 = vmul.f32 %v784, %v1232
    %v1297 = vmul.f32 %v785, %v1233
    %v1298 = vmul.f32 %v786, %v1234
    %v1299 = vmul.f32 %v787, %v1235
    %v1300 = vmul.f32 %v788, %v1236
    %v1301 = vmul.f32 %v789, %v1237
    %v1302 = vmul.f32 %v790, %v1238
    %v1303 = vmul.f32 %v791, %v1239
    %v1304 = vmul.f32 %v792, %v1240
    %v1305 = vmul.f32 %v793, %v1241
    %v1306 = vmul.f32 %v794, %v1242
    %v1307 = vpack.c.bf16 %v1247, %v1243
    %v1308 = vpack.c.bf16 %v1248, %v1244
    %v1309 = vpack.c.bf16 %v1249, %v1245
    %v1310 = vpack.c.bf16 %v1250, %v1246
    %v1311 = vpack.c.bf16 %v1255, %v1251
    %v1312 = vpack.c.bf16 %v1256, %v1252
    %v1313 = vpack.c.bf16 %v1257, %v1253
    %v1314 = vpack.c.bf16 %v1258, %v1254
    %v1315 = vpack.c.bf16 %v1263, %v1259
    %v1316 = vpack.c.bf16 %v1264, %v1260
    %v1317 = vpack.c.bf16 %v1265, %v1261
    %v1318 = vpack.c.bf16 %v1266, %v1262
    %v1319 = vpack.c.bf16 %v1271, %v1267
    %v1320 = vpack.c.bf16 %v1272, %v1268
    %v1321 = vpack.c.bf16 %v1273, %v1269
    %v1322 = vpack.c.bf16 %v1274, %v1270
    %v1323 = vpack.c.bf16 %v1279, %v1275
    %v1324 = vpack.c.bf16 %v1280, %v1276
    %v1325 = vpack.c.bf16 %v1281, %v1277
    %v1326 = vpack.c.bf16 %v1282, %v1278
    %v1327 = vpack.c.bf16 %v1287, %v1283
    %v1328 = vpack.c.bf16 %v1288, %v1284
    %v1329 = vpack.c.bf16 %v1289, %v1285
    %v1330 = vpack.c.bf16 %v1290, %v1286
    %v1331 = vpack.c.bf16 %v1295, %v1291
    %v1332 = vpack.c.bf16 %v1296, %v1292
    %v1333 = vpack.c.bf16 %v1297, %v1293
    %v1334 = vpack.c.bf16 %v1298, %v1294
    %v1335 = vpack.c.bf16 %v1303, %v1299
    %v1336 = vpack.c.bf16 %v1304, %v1300
    %v1337 = vpack.c.bf16 %v1305, %v1301
    %v1338 = vpack.c.bf16 %v1306, %v1302
    %v1339 = vld [vmem:[%s5] sm:$0xf]
    %v1340 = vld [vmem:[%s5 + $0x4] sm:$0xf]
    %v1341 = vld [vmem:[%s5 + $0x8] sm:$0xf]
    %v1342 = vld [vmem:[%s5 + $0xc] sm:$0xf]
    %v1343 = vld [vmem:[%s5 + $0x10] sm:$0xf]
    %v1344 = vld [vmem:[%s5 + $0x14] sm:$0xf]
    %v1345 = vld [vmem:[%s5 + $0x18] sm:$0xf]
    %v1346 = vld [vmem:[%s5 + $0x1c] sm:$0xf]
    %v1347 = vld [vmem:[%s5 + $0x20] sm:$0xf]
    %v1348 = vld [vmem:[%s5 + $0x24] sm:$0xf]
    %v1349 = vld [vmem:[%s5 + $0x28] sm:$0xf]
    %v1350 = vld [vmem:[%s5 + $0x2c] sm:$0xf]
    %v1351 = vld [vmem:[%s5 + $0x30] sm:$0xf]
    %v1352 = vld [vmem:[%s5 + $0x34] sm:$0xf]
    %v1353 = vld [vmem:[%s5 + $0x38] sm:$0xf]
    %v1354 = vld [vmem:[%s5 + $0x3c] sm:$0xf]
    %v1355 = vld [vmem:[%s5 + $0x40] sm:$0xf]
    %v1356 = vld [vmem:[%s5 + $0x44] sm:$0xf]
    %v1357 = vld [vmem:[%s5 + $0x48] sm:$0xf]
    %v1358 = vld [vmem:[%s5 + $0x4c] sm:$0xf]
    %v1359 = vld [vmem:[%s5 + $0x50] sm:$0xf]
    %v1360 = vld [vmem:[%s5 + $0x54] sm:$0xf]
    %v1361 = vld [vmem:[%s5 + $0x58] sm:$0xf]
    %v1362 = vld [vmem:[%s5 + $0x5c] sm:$0xf]
    %v1363 = vld [vmem:[%s5 + $0x60] sm:$0xf]
    %v1364 = vld [vmem:[%s5 + $0x64] sm:$0xf]
    %v1365 = vld [vmem:[%s5 + $0x68] sm:$0xf]
    %v1366 = vld [vmem:[%s5 + $0x6c] sm:$0xf]
    %v1367 = vld [vmem:[%s5 + $0x70] sm:$0xf]
    %v1368 = vld [vmem:[%s5 + $0x74] sm:$0xf]
    %v1369 = vld [vmem:[%s5 + $0x78] sm:$0xf]
    %v1370 = vld [vmem:[%s5 + $0x7c] sm:$0xf]
    %v1371 = vld [vmem:[%s5 + $0x80] sm:$0xf]
    %v1372 = vld [vmem:[%s5 + $0x84] sm:$0xf]
    %v1373 = vld [vmem:[%s5 + $0x88] sm:$0xf]
    %v1374 = vld [vmem:[%s5 + $0x8c] sm:$0xf]
    %v1375 = vld [vmem:[%s5 + $0x90] sm:$0xf]
    %v1376 = vld [vmem:[%s5 + $0x94] sm:$0xf]
    %v1377 = vld [vmem:[%s5 + $0x98] sm:$0xf]
    %v1378 = vld [vmem:[%s5 + $0x9c] sm:$0xf]
    %v1379 = vld [vmem:[%s5 + $0xa0] sm:$0xf]
    %v1380 = vld [vmem:[%s5 + $0xa4] sm:$0xf]
    %v1381 = vld [vmem:[%s5 + $0xa8] sm:$0xf]
    %v1382 = vld [vmem:[%s5 + $0xac] sm:$0xf]
    %v1383 = vld [vmem:[%s5 + $0xb0] sm:$0xf]
    %v1384 = vld [vmem:[%s5 + $0xb4] sm:$0xf]
    %v1385 = vld [vmem:[%s5 + $0xb8] sm:$0xf]
    %v1386 = vld [vmem:[%s5 + $0xbc] sm:$0xf]
    %v1387 = vld [vmem:[%s5 + $0xc0] sm:$0xf]
    %v1388 = vld [vmem:[%s5 + $0xc4] sm:$0xf]
    %v1389 = vld [vmem:[%s5 + $0xc8] sm:$0xf]
    %v1390 = vld [vmem:[%s5 + $0xcc] sm:$0xf]
    %v1391 = vld [vmem:[%s5 + $0xd0] sm:$0xf]
    %v1392 = vld [vmem:[%s5 + $0xd4] sm:$0xf]
    %v1393 = vld [vmem:[%s5 + $0xd8] sm:$0xf]
    %v1394 = vld [vmem:[%s5 + $0xdc] sm:$0xf]
    %v1395 = vld [vmem:[%s5 + $0xe0] sm:$0xf]
    %v1396 = vld [vmem:[%s5 + $0xe4] sm:$0xf]
    %v1397 = vld [vmem:[%s5 + $0xe8] sm:$0xf]
    %v1398 = vld [vmem:[%s5 + $0xec] sm:$0xf]
    %v1399 = vld [vmem:[%s5 + $0xf0] sm:$0xf]
    %v1400 = vld [vmem:[%s5 + $0xf4] sm:$0xf]
    %v1401 = vld [vmem:[%s5 + $0xf8] sm:$0xf]
    %v1402 = vld [vmem:[%s5 + $0xfc] sm:$0xf]
    %v1403 = vld [vmem:[%s6] sm:$0x1]
    %v1405 = vlaneseq
    %v1406 = vshrl.u32 %v1405, 7
    %v1407 = vsub.s32 0, %v1406
    %v1408 = vrot.slane %v1403, %v1407
    %v1474 = vunpack.c.l.b16 %v1339
    %v1475 = vunpack.c.l.b16 %v1340
    %v1476 = vunpack.c.l.b16 %v1341
    %v1477 = vunpack.c.l.b16 %v1342
    %v1478 = vunpack.c.l.b16 %v1343
    %v1479 = vunpack.c.l.b16 %v1344
    %v1480 = vunpack.c.l.b16 %v1345
    %v1481 = vunpack.c.l.b16 %v1346
    %v1482 = vunpack.c.l.b16 %v1347
    %v1483 = vunpack.c.l.b16 %v1348
    %v1484 = vunpack.c.l.b16 %v1349
    %v1485 = vunpack.c.l.b16 %v1350
    %v1486 = vunpack.c.l.b16 %v1351
    %v1487 = vunpack.c.l.b16 %v1352
    %v1488 = vunpack.c.l.b16 %v1353
    %v1489 = vunpack.c.l.b16 %v1354
    %v1490 = vunpack.c.l.b16 %v1355
    %v1491 = vunpack.c.l.b16 %v1356
    %v1492 = vunpack.c.l.b16 %v1357
    %v1493 = vunpack.c.l.b16 %v1358
    %v1494 = vunpack.c.l.b16 %v1359
    %v1495 = vunpack.c.l.b16 %v1360
    %v1496 = vunpack.c.l.b16 %v1361
    %v1497 = vunpack.c.l.b16 %v1362
    %v1498 = vunpack.c.l.b16 %v1363
    %v1499 = vunpack.c.l.b16 %v1364
    %v1500 = vunpack.c.l.b16 %v1365
    %v1501 = vunpack.c.l.b16 %v1366
    %v1502 = vunpack.c.l.b16 %v1367
    %v1503 = vunpack.c.l.b16 %v1368
    %v1504 = vunpack.c.l.b16 %v1369
    %v1505 = vunpack.c.l.b16 %v1370
    %v1506 = vunpack.c.l.b16 %v1371
    %v1507 = vunpack.c.l.b16 %v1372
    %v1508 = vunpack.c.l.b16 %v1373
    %v1509 = vunpack.c.l.b16 %v1374
    %v1510 = vunpack.c.l.b16 %v1375
    %v1511 = vunpack.c.l.b16 %v1376
    %v1512 = vunpack.c.l.b16 %v1377
    %v1513 = vunpack.c.l.b16 %v1378
    %v1514 = vunpack.c.l.b16 %v1379
    %v1515 = vunpack.c.l.b16 %v1380
    %v1516 = vunpack.c.l.b16 %v1381
    %v1517 = vunpack.c.l.b16 %v1382
    %v1518 = vunpack.c.l.b16 %v1383
    %v1519 = vunpack.c.l.b16 %v1384
    %v1520 = vunpack.c.l.b16 %v1385
    %v1521 = vunpack.c.l.b16 %v1386
    %v1522 = vunpack.c.l.b16 %v1387
    %v1523 = vunpack.c.l.b16 %v1388
    %v1524 = vunpack.c.l.b16 %v1389
    %v1525 = vunpack.c.l.b16 %v1390
    %v1526 = vunpack.c.l.b16 %v1391
    %v1527 = vunpack.c.l.b16 %v1392
    %v1528 = vunpack.c.l.b16 %v1393
    %v1529 = vunpack.c.l.b16 %v1394
    %v1530 = vunpack.c.l.b16 %v1395
    %v1531 = vunpack.c.l.b16 %v1396
    %v1532 = vunpack.c.l.b16 %v1397
    %v1533 = vunpack.c.l.b16 %v1398
    %v1534 = vunpack.c.l.b16 %v1399
    %v1535 = vunpack.c.l.b16 %v1400
    %v1536 = vunpack.c.l.b16 %v1401
    %v1537 = vunpack.c.l.b16 %v1402
    %v1538 = vpack.c.b16 %v1475, %v1474
    %v1539 = vpack.c.b16 %v1477, %v1476
    %v1540 = vpack.c.b16 %v1479, %v1478
    %v1541 = vpack.c.b16 %v1481, %v1480
    %v1542 = vpack.c.b16 %v1483, %v1482
    %v1543 = vpack.c.b16 %v1485, %v1484
    %v1544 = vpack.c.b16 %v1487, %v1486
    %v1545 = vpack.c.b16 %v1489, %v1488
    %v1546 = vpack.c.b16 %v1491, %v1490
    %v1547 = vpack.c.b16 %v1493, %v1492
    %v1548 = vpack.c.b16 %v1495, %v1494
    %v1549 = vpack.c.b16 %v1497, %v1496
    %v1550 = vpack.c.b16 %v1499, %v1498
    %v1551 = vpack.c.b16 %v1501, %v1500
    %v1552 = vpack.c.b16 %v1503, %v1502
    %v1553 = vpack.c.b16 %v1505, %v1504
    %v1554 = vpack.c.b16 %v1507, %v1506
    %v1555 = vpack.c.b16 %v1509, %v1508
    %v1556 = vpack.c.b16 %v1511, %v1510
    %v1557 = vpack.c.b16 %v1513, %v1512
    %v1558 = vpack.c.b16 %v1515, %v1514
    %v1559 = vpack.c.b16 %v1517, %v1516
    %v1560 = vpack.c.b16 %v1519, %v1518
    %v1561 = vpack.c.b16 %v1521, %v1520
    %v1562 = vpack.c.b16 %v1523, %v1522
    %v1563 = vpack.c.b16 %v1525, %v1524
    %v1564 = vpack.c.b16 %v1527, %v1526
    %v1565 = vpack.c.b16 %v1529, %v1528
    %v1566 = vpack.c.b16 %v1531, %v1530
    %v1567 = vpack.c.b16 %v1533, %v1532
    %v1568 = vpack.c.b16 %v1535, %v1534
    %v1569 = vpack.c.b16 %v1537, %v1536
    %1602 = vmatprep.subr.bf16.mxu0 0
    %1603 = vmatpush1.bf16.msra.mxu0 %v1545
    %1604 = vmatprep.subr.bf16.mxu0 0
    %1605 = vmatpush1.bf16.msra.mxu0 %v1544
    %1606 = vmatprep.subr.bf16.mxu0 0
    %1607 = vmatpush1.bf16.msra.mxu0 %v1543
    %1608 = vmatprep.subr.bf16.mxu0 0
    %1609 = vmatpush1.bf16.msra.mxu0 %v1542
    %1610 = vmatprep.subr.bf16.mxu0 0
    %1611 = vmatpush1.bf16.msra.mxu0 %v1541
    %1612 = vmatprep.subr.bf16.mxu0 0
    %1613 = vmatpush1.bf16.msra.mxu0 %v1540
    %1614 = vmatprep.subr.bf16.mxu0 0
    %1615 = vmatpush1.bf16.msra.mxu0 %v1539
    %1616 = vmatprep.subr.bf16.mxu0 0
    %1617 = vmatpush1.bf16.msra.mxu0 %v1538
    %1618 = vmatprep.subr.bf16.mxu0 0
    %1619 = vmatpush2.bf16.msra.mxu0 %v1553
    %1620 = vmatprep.subr.bf16.mxu0 0
    %1621 = vmatpush2.bf16.msra.mxu0 %v1552
    %1622 = vmatprep.subr.bf16.mxu0 0
    %1623 = vmatpush2.bf16.msra.mxu0 %v1551
    %1624 = vmatprep.subr.bf16.mxu0 0
    %1625 = vmatpush2.bf16.msra.mxu0 %v1550
    %1626 = vmatprep.subr.bf16.mxu0 0
    %1627 = vmatpush2.bf16.msra.mxu0 %v1549
    %1628 = vmatprep.subr.bf16.mxu0 0
    %1629 = vmatpush2.bf16.msra.mxu0 %v1548
    %1630 = vmatprep.subr.bf16.mxu0 0
    %1631 = vmatpush2.bf16.msra.mxu0 %v1547
    %1632 = vmatprep.subr.bf16.mxu0 0
    %1633 = vmatpush2.bf16.msra.mxu0 %v1546
    %1634 = vmatprep.mubr.bf16.mxu0 %v1308
    %1635 = vmatmul.mubr.bf16.gmra.mxu0 %v1307
    %v1636 = vpop.f32.mrf.mxu0
    %v1637 = vadd.f32 %v1408, %v1636
    %v1638 = vpop.f32.mrf.mxu0
    %v1639 = vpop.f32.mrf.mxu0
    %v1640 = vadd.f32 %v1408, %v1639
    %v1641 = vpop.f32.mrf.mxu0
    %1642 = vmatprep.mubr.bf16.mxu0 %v1312
    %1643 = vmatmul.mubr.bf16.gmra.mxu0 %v1311
    %v1644 = vpop.f32.mrf.mxu0
    %v1645 = vadd.f32 %v1408, %v1644
    %v1646 = vpop.f32.mrf.mxu0
    %v1647 = vpop.f32.mrf.mxu0
    %v1648 = vadd.f32 %v1408, %v1647
    %v1649 = vpop.f32.mrf.mxu0
    %1650 = vmatprep.mubr.bf16.mxu0 %v1316
    %1651 = vmatmul.mubr.bf16.gmra.mxu0 %v1315
    %v1652 = vpop.f32.mrf.mxu0
    %v1653 = vadd.f32 %v1408, %v1652
    %v1654 = vpop.f32.mrf.mxu0
    %v1655 = vpop.f32.mrf.mxu0
    %v1656 = vadd.f32 %v1408, %v1655
    %v1657 = vpop.f32.mrf.mxu0
    %1658 = vmatprep.mubr.bf16.mxu0 %v1320
    %1659 = vmatmul.mubr.bf16.gmra.mxu0 %v1319
    %v1660 = vpop.f32.mrf.mxu0
    %v1661 = vadd.f32 %v1408, %v1660
    %v1662 = vpop.f32.mrf.mxu0
    %v1663 = vpop.f32.mrf.mxu0
    %v1664 = vadd.f32 %v1408, %v1663
    %v1665 = vpop.f32.mrf.mxu0
    %1666 = vmatprep.mubr.bf16.mxu0 %v1324
    %1667 = vmatmul.mubr.bf16.gmra.mxu0 %v1323
    %v1668 = vpop.f32.mrf.mxu0
    %v1669 = vadd.f32 %v1408, %v1668
    %v1670 = vpop.f32.mrf.mxu0
    %v1671 = vpop.f32.mrf.mxu0
    %v1672 = vadd.f32 %v1408, %v1671
    %v1673 = vpop.f32.mrf.mxu0
    %1674 = vmatprep.mubr.bf16.mxu0 %v1328
    %1675 = vmatmul.mubr.bf16.gmra.mxu0 %v1327
    %v1676 = vpop.f32.mrf.mxu0
    %v1677 = vadd.f32 %v1408, %v1676
    %v1678 = vpop.f32.mrf.mxu0
    %v1679 = vpop.f32.mrf.mxu0
    %v1680 = vadd.f32 %v1408, %v1679
    %v1681 = vpop.f32.mrf.mxu0
    %1682 = vmatprep.mubr.bf16.mxu0 %v1332
    %1683 = vmatmul.mubr.bf16.gmra.mxu0 %v1331
    %v1684 = vpop.f32.mrf.mxu0
    %v1685 = vadd.f32 %v1408, %v1684
    %v1686 = vpop.f32.mrf.mxu0
    %v1687 = vpop.f32.mrf.mxu0
    %v1688 = vadd.f32 %v1408, %v1687
    %v1689 = vpop.f32.mrf.mxu0
    %1690 = vmatprep.mubr.bf16.mxu0 %v1336
    %1691 = vmatmul.mubr.bf16.gmra.mxu0 %v1335
    %v1692 = vpop.f32.mrf.mxu0
    %v1693 = vadd.f32 %v1408, %v1692
    %v1694 = vpop.f32.mrf.mxu0
    %v1695 = vpop.f32.mrf.mxu0
    %v1696 = vadd.f32 %v1408, %v1695
    %v1697 = vpop.f32.mrf.mxu0
    %1698 = vdwg.mxu0
    %1699 = vmatprep.subr.bf16.mxu0 0
    %1700 = vmatpush1.bf16.msra.mxu0 %v1561
    %1701 = vmatprep.subr.bf16.mxu0 0
    %1702 = vmatpush1.bf16.msra.mxu0 %v1560
    %1703 = vmatprep.subr.bf16.mxu0 0
    %1704 = vmatpush1.bf16.msra.mxu0 %v1559
    %1705 = vmatprep.subr.bf16.mxu0 0
    %1706 = vmatpush1.bf16.msra.mxu0 %v1558
    %1707 = vmatprep.subr.bf16.mxu0 0
    %1708 = vmatpush1.bf16.msra.mxu0 %v1557
    %1709 = vmatprep.subr.bf16.mxu0 0
    %1710 = vmatpush1.bf16.msra.mxu0 %v1556
    %1711 = vmatprep.subr.bf16.mxu0 0
    %1712 = vmatpush1.bf16.msra.mxu0 %v1555
    %1713 = vmatprep.subr.bf16.mxu0 0
    %1714 = vmatpush1.bf16.msra.mxu0 %v1554
    %1715 = vmatprep.subr.bf16.mxu0 0
    %1716 = vmatpush2.bf16.msra.mxu0 %v1569
    %1717 = vmatprep.subr.bf16.mxu0 0
    %1718 = vmatpush2.bf16.msra.mxu0 %v1568
    %1719 = vmatprep.subr.bf16.mxu0 0
    %1720 = vmatpush2.bf16.msra.mxu0 %v1567
    %1721 = vmatprep.subr.bf16.mxu0 0
    %1722 = vmatpush2.bf16.msra.mxu0 %v1566
    %1723 = vmatprep.subr.bf16.mxu0 0
    %1724 = vmatpush2.bf16.msra.mxu0 %v1565
    %1725 = vmatprep.subr.bf16.mxu0 0
    %1726 = vmatpush2.bf16.msra.mxu0 %v1564
    %1727 = vmatprep.subr.bf16.mxu0 0
    %1728 = vmatpush2.bf16.msra.mxu0 %v1563
    %1729 = vmatprep.subr.bf16.mxu0 0
    %1730 = vmatpush2.bf16.msra.mxu0 %v1562
    %1731 = vmatprep.mubr.bf16.mxu0 %v1310
    %1732 = vmatmul.mubr.bf16.gmra.mxu0 %v1309
    %v1733 = vpop.f32.mrf.mxu0
    %v1734 = vadd.f32 %v1637, %v1733
    %v1735 = vpop.f32.mrf.mxu0
    %v1736 = vpop.f32.mrf.mxu0
    %v1737 = vadd.f32 %v1640, %v1736
    %v1738 = vpop.f32.mrf.mxu0
    %1739 = vmatprep.mubr.bf16.mxu0 %v1314
    %1740 = vmatmul.mubr.bf16.gmra.mxu0 %v1313
    %v1741 = vpop.f32.mrf.mxu0
    %v1742 = vadd.f32 %v1645, %v1741
    %v1743 = vpop.f32.mrf.mxu0
    %v1744 = vpop.f32.mrf.mxu0
    %v1745 = vadd.f32 %v1648, %v1744
    %v1746 = vpop.f32.mrf.mxu0
    %1747 = vmatprep.mubr.bf16.mxu0 %v1318
    %1748 = vmatmul.mubr.bf16.gmra.mxu0 %v1317
    %v1749 = vpop.f32.mrf.mxu0
    %v1750 = vadd.f32 %v1653, %v1749
    %v1751 = vpop.f32.mrf.mxu0
    %v1752 = vpop.f32.mrf.mxu0
    %v1753 = vadd.f32 %v1656, %v1752
    %v1754 = vpop.f32.mrf.mxu0
    %1755 = vmatprep.mubr.bf16.mxu0 %v1322
    %1756 = vmatmul.mubr.bf16.gmra.mxu0 %v1321
    %v1757 = vpop.f32.mrf.mxu0
    %v1758 = vadd.f32 %v1661, %v1757
    %v1759 = vpop.f32.mrf.mxu0
    %v1760 = vpop.f32.mrf.mxu0
    %v1761 = vadd.f32 %v1664, %v1760
    %v1762 = vpop.f32.mrf.mxu0
    %1763 = vmatprep.mubr.bf16.mxu0 %v1326
    %1764 = vmatmul.mubr.bf16.gmra.mxu0 %v1325
    %v1765 = vpop.f32.mrf.mxu0
    %v1766 = vadd.f32 %v1669, %v1765
    %v1767 = vpop.f32.mrf.mxu0
    %v1768 = vpop.f32.mrf.mxu0
    %v1769 = vadd.f32 %v1672, %v1768
    %v1770 = vpop.f32.mrf.mxu0
    %1771 = vmatprep.mubr.bf16.mxu0 %v1330
    %1772 = vmatmul.mubr.bf16.gmra.mxu0 %v1329
    %v1773 = vpop.f32.mrf.mxu0
    %v1774 = vadd.f32 %v1677, %v1773
    %v1775 = vpop.f32.mrf.mxu0
    %v1776 = vpop.f32.mrf.mxu0
    %v1777 = vadd.f32 %v1680, %v1776
    %v1778 = vpop.f32.mrf.mxu0
    %1779 = vmatprep.mubr.bf16.mxu0 %v1334
    %1780 = vmatmul.mubr.bf16.gmra.mxu0 %v1333
    %v1781 = vpop.f32.mrf.mxu0
    %v1782 = vadd.f32 %v1685, %v1781
    %v1783 = vpop.f32.mrf.mxu0
    %v1784 = vpop.f32.mrf.mxu0
    %v1785 = vadd.f32 %v1688, %v1784
    %v1786 = vpop.f32.mrf.mxu0
    %1787 = vmatprep.mubr.bf16.mxu0 %v1338
    %1788 = vmatmul.mubr.bf16.gmra.mxu0 %v1337
    %v1789 = vpop.f32.mrf.mxu0
    %v1790 = vadd.f32 %v1693, %v1789
    %v1791 = vpop.f32.mrf.mxu0
    %v1792 = vpop.f32.mrf.mxu0
    %v1793 = vadd.f32 %v1696, %v1792
    %v1794 = vpop.f32.mrf.mxu0
    %1795 = vdwg.mxu0
    %v1796 = vadd.f32 %v44, %v1734
    %v1797 = vadd.f32 %v45, %v1737
    %v1798 = vadd.f32 %v46, %v1742
    %v1799 = vadd.f32 %v47, %v1745
    %v1800 = vadd.f32 %v48, %v1750
    %v1801 = vadd.f32 %v49, %v1753
    %v1802 = vadd.f32 %v50, %v1758
    %v1803 = vadd.f32 %v51, %v1761
    %v1804 = vadd.f32 %v52, %v1766
    %v1805 = vadd.f32 %v53, %v1769
    %v1806 = vadd.f32 %v54, %v1774
    %v1807 = vadd.f32 %v55, %v1777
    %v1808 = vadd.f32 %v56, %v1782
    %v1809 = vadd.f32 %v57, %v1785
    %v1810 = vadd.f32 %v58, %v1790
    %v1811 = vadd.f32 %v59, %v1793
    %1812 = vst [vmem:[#allocation2] sm:$0xff] %v1796
    %1813 = vst [vmem:[#allocation2 + $0x8] sm:$0xff] %v1797
    %1814 = vst [vmem:[#allocation2 + $0x10] sm:$0xff] %v1798
    %1815 = vst [vmem:[#allocation2 + $0x18] sm:$0xff] %v1799
    %1816 = vst [vmem:[#allocation2 + $0x20] sm:$0xff] %v1800
    %1817 = vst [vmem:[#allocation2 + $0x28] sm:$0xff] %v1801
    %1818 = vst [vmem:[#allocation2 + $0x30] sm:$0xff] %v1802
    %1819 = vst [vmem:[#allocation2 + $0x38] sm:$0xff] %v1803
    %1820 = vst [vmem:[#allocation2 + $0x40] sm:$0xff] %v1804
    %1821 = vst [vmem:[#allocation2 + $0x48] sm:$0xff] %v1805
    %1822 = vst [vmem:[#allocation2 + $0x50] sm:$0xff] %v1806
    %1823 = vst [vmem:[#allocation2 + $0x58] sm:$0xff] %v1807
    %1824 = vst [vmem:[#allocation2 + $0x60] sm:$0xff] %v1808
    %1825 = vst [vmem:[#allocation2 + $0x68] sm:$0xff] %v1809
    %1826 = vst [vmem:[#allocation2 + $0x70] sm:$0xff] %v1810
    %1827 = vst [vmem:[#allocation2 + $0x78] sm:$0xff] %v1811
    // Predicated region
    $region30: #{mlla_block_forward.7} parent=1 // pred_check
      _
    $region31: #{mlla_block_forward.7} parent=1 // pred_check_branch
      %1829 = sbr.rel (0) target = $region33
    $region32: #{mlla_block_forward.7} parent=1 // pred_region
      %s1831 = ssub.s32 2048, 2048
      %1832 = vsyncadd [#allocation3], %s1831
      %s1833 = sshll.u32 [#allocation2], 4
      %s1834 = int_to_ptr.vmem [resolvable:$true] %s1833
      %1839 = dma.vmem_to_hbm [thread:$0]  %s1834, 2048, %s7, [#allocation3], 128, 128, 8
    $region33: #{mlla_block_forward.7} parent=1 // pred_fallthru
      _
    // Predicated region
    $region34: #{mlla_block_forward.7} parent=1 // pred_check
      _
    $region35: #{mlla_block_forward.7} parent=1 // pred_check_branch
      %1841 = sbr.rel (0) target = $region37
    $region36: #{mlla_block_forward.7} parent=1 // pred_region
      %1842 = dma.done [#allocation3], 2048
    $region37: #{mlla_block_forward.7} parent=1 // pred_fallthru
      _
    %1843 = vsyncpa [#allocation3], 1

// kernel: mlla_block_forward.6
$region0: #{mlla_block_forward.6}
  #allocation0 [shape = 'u32[]', space=smem, size = 0x4, offset = 0x4, fixed_abs, tag = 'smem constant byte address 0x4 - core index']
  #allocation1 [shape = 'u32[144,128]{1,0:T(1,128)}', space=vmem, size = 0x12000, scoped, tag = 'internal scratch']
  #allocation2 [shape = 'f32[80,128]{1,0:T(8,128)}', space=vmem, size = 0xa000, scoped, tag = 'scratch operand']
  #allocation3 [shape = 'f32[80,128]{1,0:T(8,128)}', space=vmem, size = 0xa000, scoped, tag = 'scratch operand']
  #allocation4 [shape = 'f32[80,128]{1,0:T(8,128)}', space=vmem, size = 0xa000, scoped, tag = 'scratch operand']
  #allocation5 [shape = 'f32[128,128]{1,0:T(8,128)}', space=vmem, size = 0x10000, scoped, tag = 'scratch operand']
  %s0 = inlined_call_operand.vmem [shape: bf16[2,64,128], index: 0, kind: input, shape index: {}]
  %s1 = inlined_call_operand.vmem [shape: bf16[2,64,128], index: 1, kind: input, shape index: {}]
  %s2 = inlined_call_operand.vmem [shape: bf16[2,64,128], index: 2, kind: input, shape index: {}]
  %s3 = inlined_call_operand.vmem [shape: f32[64,1], index: 3, kind: input, shape index: {}]
  %s4 = inlined_call_operand.vmem [shape: f32[64,1], index: 4, kind: input, shape index: {}]
  %s5 = inlined_call_operand.vmem [shape: f32[9,128], index: 5, kind: input, shape index: {}]
  %s6 = inlined_call_operand.vmem [shape: f32[1,128], index: 6, kind: input, shape index: {}]
  %s7 = inlined_call_operand.vmem [shape: f32[9,128], index: 7, kind: input, shape index: {}]
  %s8 = inlined_call_operand.vmem [shape: f32[1,128], index: 8, kind: input, shape index: {}]
  %s9 = inlined_call_operand.vmem [shape: bf16[128,128], index: 9, kind: input, shape index: {}]
  %s10 = inlined_call_operand.vmem [shape: f32[1,128], index: 10, kind: input, shape index: {}]
  %s11 = inlined_call_operand.vmem [shape: bf16[128,128], index: 11, kind: input, shape index: {}]
  %s12 = inlined_call_operand.vmem [shape: f32[1,128], index: 12, kind: input, shape index: {}]
  %s13 = inlined_call_operand.vmem [shape: f32[64,128], index: 13, kind: input, shape index: {}]
  %s14 = inlined_call_operand.vmem [shape: f32[64,128], index: 14, kind: input, shape index: {}]
  %s15 = inlined_call_operand.vmem [shape: f32[128,128], index: 15, kind: input, shape index: {}]
  %s16 = inlined_call_operand.vmem [shape: bf16[128,128], index: 16, kind: input, shape index: {}]
  %s17 = inlined_call_operand.vmem [shape: f32[1,128], index: 17, kind: input, shape index: {}]
  %s18 = inlined_call_operand.vmem [shape: f32[9,128], index: 18, kind: input, shape index: {}]
  %s19 = inlined_call_operand.vmem [shape: f32[1,128], index: 19, kind: input, shape index: {}]
  %s20 = inlined_call_operand.vmem [shape: bf16[2,64,128], index: 20, kind: output, shape index: {}]
  %s21 = sld [smem:[#allocation0]]
  $region117: #{mlla_block_forward.6} parent=0
    _
  %s23 = ssub.s32 1, %s21
  %s24 = scalar_select 0, %s23, %s21
  loop: start=0, step=1, limit=4
  $region2: #{mlla_block_forward.6} parent=0 // loop_pre_header
    _
  $region3: #{mlla_block_forward.6} parent=0 // loop_header
    %s26 = sphi 0, %s30
    %p27 = scmp.ge.s32.totalorder %s26, 4
    %s36 = sphi 0, %s38
    %s39 = sphi 0, %s36
    %s40 = sphi 0, %s39
    %s56 = sphi 0, %s40
    %s62 = sphi 0, %s64
    %s65 = sphi 0, %s62
    %s66 = sphi 0, %s65
    %s82 = sphi 0, %s66
    %s88 = sphi 0, %s90
    %s91 = sphi 0, %s88
    %s92 = sphi 0, %s91
    %s108 = sphi 0, %s92
    %s112 = sphi 0, %s112
    %s114 = sphi 0, %s112
    %s115 = sphi 0, %s114
    %s129 = sphi 0, %s115
    %s133 = sphi 0, %s133
    %s135 = sphi 0, %s133
    %s136 = sphi 0, %s135
    %s150 = sphi 0, %s136
    %s154 = sphi 0, %s154
    %s156 = sphi 0, %s154
    %s157 = sphi 0, %s156
    %s171 = sphi 0, %s157
    %s175 = sphi 0, %s175
    %s177 = sphi 0, %s175
    %s178 = sphi 0, %s177
    %s192 = sphi 0, %s178
    %s196 = sphi 0, %s196
    %s198 = sphi 0, %s196
    %s199 = sphi 0, %s198
    %s213 = sphi 0, %s199
    %s217 = sphi 0, %s217
    %s219 = sphi 0, %s217
    %s220 = sphi 0, %s219
    %s234 = sphi 0, %s220
    %s238 = sphi 0, %s238
    %s240 = sphi 0, %s238
    %s241 = sphi 0, %s240
    %s255 = sphi 0, %s241
    %s259 = sphi 0, %s259
    %s261 = sphi 0, %s259
    %s262 = sphi 0, %s261
    %s276 = sphi 0, %s262
    %s280 = sphi 0, %s280
    %s282 = sphi 0, %s280
    %s283 = sphi 0, %s282
    %s297 = sphi 0, %s283
    %s301 = sphi 0, %s301
    %s303 = sphi 0, %s301
    %s304 = sphi 0, %s303
    %s318 = sphi 0, %s304
    %s322 = sphi 0, %s322
    %s324 = sphi 0, %s322
    %s325 = sphi 0, %s324
    %s339 = sphi 0, %s325
    %s343 = sphi 0, %s343
    %s345 = sphi 0, %s343
    %s346 = sphi 0, %s345
    %s360 = sphi 0, %s346
    %s364 = sphi 0, %s364
    %s366 = sphi 0, %s364
    %s367 = sphi 0, %s366
    %s381 = sphi 0, %s367
    %s385 = sphi 0, %s385
    %s387 = sphi 0, %s385
    %s388 = sphi 0, %s387
    %s402 = sphi 0, %s388
    %s406 = sphi 0, %s406
    %s408 = sphi 0, %s406
    %s409 = sphi 0, %s408
    %s423 = sphi 0, %s409
    %s427 = sphi 0, %s427
    %s429 = sphi 0, %s427
    %s430 = sphi 0, %s429
    %s444 = sphi 0, %s430
    %s448 = sphi 0, %s448
    %s450 = sphi 0, %s448
    %s451 = sphi 0, %s450
    %s465 = sphi 0, %s451
    %s471 = sphi 0, %s473
    %s474 = sphi 0, %s471
    %s475 = sphi 0, %s474
    %s491 = sphi 0, %s475
  $region4: #{mlla_block_forward.6} parent=0 // loop_header_branch
    %29 = sbr.rel (%p27) target = $region8
  $region5: #{mlla_block_forward.6} parent=0 // loop_body
    %s31 = ssub.s32 %s26, 1
    %s32 = ssub.s32 %s26, 2
    %s33 = sadd.s32 %s26, 1
    %s34 = ssub.s32 %s26, %s33
    %p35 = scmp.eq.s32.totalorder %s34, 0
    %s37 = sadd.s32 %s36, 1
    %s38 = scalar_select %p35, %s36, %s37
    %p41 = pneg %p35
    %p42 = scmp.eq.s32.totalorder %s26, 1
    %p43 = por %p41, %p42
    %p44 = scmp.ne.s32.totalorder %s36, %s39
    %p45 = scmp.eq.s32.totalorder %s26, 0
    %p46 = por %p44, %p45
    %p47 = scmp.ne.s32.totalorder %s36, %s39
    %p48 = scmp.eq.s32.totalorder %s31, 1
    %p49 = por %p47, %p48
    %p50 = scmp.ne.s32.totalorder %s39, %s40
    %p51 = scmp.eq.s32.totalorder %s31, 0
    %p52 = por %p50, %p51
    %p53 = scmp.ne.s32.totalorder %s39, %s40
    %p54 = scmp.eq.s32.totalorder %s32, 1
    %p55 = por %p53, %p54
    %p57 = scmp.ne.s32.totalorder %s40, %s56
    %p58 = scmp.eq.s32.totalorder %s32, 0
    %p59 = por %p57, %p58
    %s60 = ssub.s32 %s26, %s33
    %p61 = scmp.eq.s32.totalorder %s60, 0
    %s63 = sadd.s32 %s62, 1
    %s64 = scalar_select %p61, %s62, %s63
    %p67 = pneg %p61
    %p68 = scmp.eq.s32.totalorder %s26, 1
    %p69 = por %p67, %p68
    %p70 = scmp.ne.s32.totalorder %s62, %s65
    %p71 = scmp.eq.s32.totalorder %s26, 0
    %p72 = por %p70, %p71
    %p73 = scmp.ne.s32.totalorder %s62, %s65
    %p74 = scmp.eq.s32.totalorder %s31, 1
    %p75 = por %p73, %p74
    %p76 = scmp.ne.s32.totalorder %s65, %s66
    %p77 = scmp.eq.s32.totalorder %s31, 0
    %p78 = por %p76, %p77
    %p79 = scmp.ne.s32.totalorder %s65, %s66
    %p80 = scmp.eq.s32.totalorder %s32, 1
    %p81 = por %p79, %p80
    %p83 = scmp.ne.s32.totalorder %s66, %s82
    %p84 = scmp.eq.s32.totalorder %s32, 0
    %p85 = por %p83, %p84
    %s86 = ssub.s32 %s26, %s33
    %p87 = scmp.eq.s32.totalorder %s86, 0
    %s89 = sadd.s32 %s88, 1
    %s90 = scalar_select %p87, %s88, %s89
    %p93 = pneg %p87
    %p94 = scmp.eq.s32.totalorder %s26, 1
    %p95 = por %p93, %p94
    %p96 = scmp.ne.s32.totalorder %s88, %s91
    %p97 = scmp.eq.s32.totalorder %s26, 0
    %p98 = por %p96, %p97
    %p99 = scmp.ne.s32.totalorder %s88, %s91
    %p100 = scmp.eq.s32.totalorder %s31, 1
    %p101 = por %p99, %p100
    %p102 = scmp.ne.s32.totalorder %s91, %s92
    %p103 = scmp.eq.s32.totalorder %s31, 0
    %p104 = por %p102, %p103
    %p105 = scmp.ne.s32.totalorder %s91, %s92
    %p106 = scmp.eq.s32.totalorder %s32, 1
    %p107 = por %p105, %p106
    %p109 = scmp.ne.s32.totalorder %s92, %s108
    %p110 = scmp.eq.s32.totalorder %s32, 0
    %p111 = por %p109, %p110
    %s113 = sadd.s32 %s112, 1
    %p116 = scmp.eq.s32.totalorder %s26, 1
    %p117 = scmp.ne.s32.totalorder %s112, %s114
    %p118 = scmp.eq.s32.totalorder %s26, 0
    %p119 = por %p117, %p118
    %p120 = scmp.ne.s32.totalorder %s112, %s114
    %p121 = scmp.eq.s32.totalorder %s31, 1
    %p122 = por %p120, %p121
    %p123 = scmp.ne.s32.totalorder %s114, %s115
    %p124 = scmp.eq.s32.totalorder %s31, 0
    %p125 = por %p123, %p124
    %p126 = scmp.ne.s32.totalorder %s114, %s115
    %p127 = scmp.eq.s32.totalorder %s32, 1
    %p128 = por %p126, %p127
    %p130 = scmp.ne.s32.totalorder %s115, %s129
    %p131 = scmp.eq.s32.totalorder %s32, 0
    %p132 = por %p130, %p131
    %s134 = sadd.s32 %s133, 1
    %p137 = scmp.eq.s32.totalorder %s26, 1
    %p138 = scmp.ne.s32.totalorder %s133, %s135
    %p139 = scmp.eq.s32.totalorder %s26, 0
    %p140 = por %p138, %p139
    %p141 = scmp.ne.s32.totalorder %s133, %s135
    %p142 = scmp.eq.s32.totalorder %s31, 1
    %p143 = por %p141, %p142
    %p144 = scmp.ne.s32.totalorder %s135, %s136
    %p145 = scmp.eq.s32.totalorder %s31, 0
    %p146 = por %p144, %p145
    %p147 = scmp.ne.s32.totalorder %s135, %s136
    %p148 = scmp.eq.s32.totalorder %s32, 1
    %p149 = por %p147, %p148
    %p151 = scmp.ne.s32.totalorder %s136, %s150
    %p152 = scmp.eq.s32.totalorder %s32, 0
    %p153 = por %p151, %p152
    %s155 = sadd.s32 %s154, 1
    %p158 = scmp.eq.s32.totalorder %s26, 1
    %p159 = scmp.ne.s32.totalorder %s154, %s156
    %p160 = scmp.eq.s32.totalorder %s26, 0
    %p161 = por %p159, %p160
    %p162 = scmp.ne.s32.totalorder %s154, %s156
    %p163 = scmp.eq.s32.totalorder %s31, 1
    %p164 = por %p162, %p163
    %p165 = scmp.ne.s32.totalorder %s156, %s157
    %p166 = scmp.eq.s32.totalorder %s31, 0
    %p167 = por %p165, %p166
    %p168 = scmp.ne.s32.totalorder %s156, %s157
    %p169 = scmp.eq.s32.totalorder %s32, 1
    %p170 = por %p168, %p169
    %p172 = scmp.ne.s32.totalorder %s157, %s171
    %p173 = scmp.eq.s32.totalorder %s32, 0
    %p174 = por %p172, %p173
    %s176 = sadd.s32 %s175, 1
    %p179 = scmp.eq.s32.totalorder %s26, 1
    %p180 = scmp.ne.s32.totalorder %s175, %s177
    %p181 = scmp.eq.s32.totalorder %s26, 0
    %p182 = por %p180, %p181
    %p183 = scmp.ne.s32.totalorder %s175, %s177
    %p184 = scmp.eq.s32.totalorder %s31, 1
    %p185 = por %p183, %p184
    %p186 = scmp.ne.s32.totalorder %s177, %s178
    %p187 = scmp.eq.s32.totalorder %s31, 0
    %p188 = por %p186, %p187
    %p189 = scmp.ne.s32.totalorder %s177, %s178
    %p190 = scmp.eq.s32.totalorder %s32, 1
    %p191 = por %p189, %p190
    %p193 = scmp.ne.s32.totalorder %s178, %s192
    %p194 = scmp.eq.s32.totalorder %s32, 0
    %p195 = por %p193, %p194
    %s197 = sadd.s32 %s196, 1
    %p200 = scmp.eq.s32.totalorder %s26, 1
    %p201 = scmp.ne.s32.totalorder %s196, %s198
    %p202 = scmp.eq.s32.totalorder %s26, 0
    %p203 = por %p201, %p202
    %p204 = scmp.ne.s32.totalorder %s196, %s198
    %p205 = scmp.eq.s32.totalorder %s31, 1
    %p206 = por %p204, %p205
    %p207 = scmp.ne.s32.totalorder %s198, %s199
    %p208 = scmp.eq.s32.totalorder %s31, 0
    %p209 = por %p207, %p208
    %p210 = scmp.ne.s32.totalorder %s198, %s199
    %p211 = scmp.eq.s32.totalorder %s32, 1
    %p212 = por %p210, %p211
    %p214 = scmp.ne.s32.totalorder %s199, %s213
    %p215 = scmp.eq.s32.totalorder %s32, 0
    %p216 = por %p214, %p215
    %s218 = sadd.s32 %s217, 1
    %p221 = scmp.eq.s32.totalorder %s26, 1
    %p222 = scmp.ne.s32.totalorder %s217, %s219
    %p223 = scmp.eq.s32.totalorder %s26, 0
    %p224 = por %p222, %p223
    %p225 = scmp.ne.s32.totalorder %s217, %s219
    %p226 = scmp.eq.s32.totalorder %s31, 1
    %p227 = por %p225, %p226
    %p228 = scmp.ne.s32.totalorder %s219, %s220
    %p229 = scmp.eq.s32.totalorder %s31, 0
    %p230 = por %p228, %p229
    %p231 = scmp.ne.s32.totalorder %s219, %s220
    %p232 = scmp.eq.s32.totalorder %s32, 1
    %p233 = por %p231, %p232
    %p235 = scmp.ne.s32.totalorder %s220, %s234
    %p236 = scmp.eq.s32.totalorder %s32, 0
    %p237 = por %p235, %p236
    %s239 = sadd.s32 %s238, 1
    %p242 = scmp.eq.s32.totalorder %s26, 1
    %p243 = scmp.ne.s32.totalorder %s238, %s240
    %p244 = scmp.eq.s32.totalorder %s26, 0
    %p245 = por %p243, %p244
    %p246 = scmp.ne.s32.totalorder %s238, %s240
    %p247 = scmp.eq.s32.totalorder %s31, 1
    %p248 = por %p246, %p247
    %p249 = scmp.ne.s32.totalorder %s240, %s241
    %p250 = scmp.eq.s32.totalorder %s31, 0
    %p251 = por %p249, %p250
    %p252 = scmp.ne.s32.totalorder %s240, %s241
    %p253 = scmp.eq.s32.totalorder %s32, 1
    %p254 = por %p252, %p253
    %p256 = scmp.ne.s32.totalorder %s241, %s255
    %p257 = scmp.eq.s32.totalorder %s32, 0
    %p258 = por %p256, %p257
    %s260 = sadd.s32 %s259, 1
    %p263 = scmp.eq.s32.totalorder %s26, 1
    %p264 = scmp.ne.s32.totalorder %s259, %s261
    %p265 = scmp.eq.s32.totalorder %s26, 0
    %p266 = por %p264, %p265
    %p267 = scmp.ne.s32.totalorder %s259, %s261
    %p268 = scmp.eq.s32.totalorder %s31, 1
    %p269 = por %p267, %p268
    %p270 = scmp.ne.s32.totalorder %s261, %s262
    %p271 = scmp.eq.s32.totalorder %s31, 0
    %p272 = por %p270, %p271
    %p273 = scmp.ne.s32.totalorder %s261, %s262
    %p274 = scmp.eq.s32.totalorder %s32, 1
    %p275 = por %p273, %p274
    %p277 = scmp.ne.s32.totalorder %s262, %s276
    %p278 = scmp.eq.s32.totalorder %s32, 0
    %p279 = por %p277, %p278
    %s281 = sadd.s32 %s280, 1
    %p284 = scmp.eq.s32.totalorder %s26, 1
    %p285 = scmp.ne.s32.totalorder %s280, %s282
    %p286 = scmp.eq.s32.totalorder %s26, 0
    %p287 = por %p285, %p286
    %p288 = scmp.ne.s32.totalorder %s280, %s282
    %p289 = scmp.eq.s32.totalorder %s31, 1
    %p290 = por %p288, %p289
    %p291 = scmp.ne.s32.totalorder %s282, %s283
    %p292 = scmp.eq.s32.totalorder %s31, 0
    %p293 = por %p291, %p292
    %p294 = scmp.ne.s32.totalorder %s282, %s283
    %p295 = scmp.eq.s32.totalorder %s32, 1
    %p296 = por %p294, %p295
    %p298 = scmp.ne.s32.totalorder %s283, %s297
    %p299 = scmp.eq.s32.totalorder %s32, 0
    %p300 = por %p298, %p299
    %s302 = sadd.s32 %s301, 1
    %p305 = scmp.eq.s32.totalorder %s26, 1
    %p306 = scmp.ne.s32.totalorder %s301, %s303
    %p307 = scmp.eq.s32.totalorder %s26, 0
    %p308 = por %p306, %p307
    %p309 = scmp.ne.s32.totalorder %s301, %s303
    %p310 = scmp.eq.s32.totalorder %s31, 1
    %p311 = por %p309, %p310
    %p312 = scmp.ne.s32.totalorder %s303, %s304
    %p313 = scmp.eq.s32.totalorder %s31, 0
    %p314 = por %p312, %p313
    %p315 = scmp.ne.s32.totalorder %s303, %s304
    %p316 = scmp.eq.s32.totalorder %s32, 1
    %p317 = por %p315, %p316
    %p319 = scmp.ne.s32.totalorder %s304, %s318
    %p320 = scmp.eq.s32.totalorder %s32, 0
    %p321 = por %p319, %p320
    %s323 = sadd.s32 %s322, 1
    %p326 = scmp.eq.s32.totalorder %s26, 1
    %p327 = scmp.ne.s32.totalorder %s322, %s324
    %p328 = scmp.eq.s32.totalorder %s26, 0
    %p329 = por %p327, %p328
    %p330 = scmp.ne.s32.totalorder %s322, %s324
    %p331 = scmp.eq.s32.totalorder %s31, 1
    %p332 = por %p330, %p331
    %p333 = scmp.ne.s32.totalorder %s324, %s325
    %p334 = scmp.eq.s32.totalorder %s31, 0
    %p335 = por %p333, %p334
    %p336 = scmp.ne.s32.totalorder %s324, %s325
    %p337 = scmp.eq.s32.totalorder %s32, 1
    %p338 = por %p336, %p337
    %p340 = scmp.ne.s32.totalorder %s325, %s339
    %p341 = scmp.eq.s32.totalorder %s32, 0
    %p342 = por %p340, %p341
    %s344 = sadd.s32 %s343, 1
    %p347 = scmp.eq.s32.totalorder %s26, 1
    %p348 = scmp.ne.s32.totalorder %s343, %s345
    %p349 = scmp.eq.s32.totalorder %s26, 0
    %p350 = por %p348, %p349
    %p351 = scmp.ne.s32.totalorder %s343, %s345
    %p352 = scmp.eq.s32.totalorder %s31, 1
    %p353 = por %p351, %p352
    %p354 = scmp.ne.s32.totalorder %s345, %s346
    %p355 = scmp.eq.s32.totalorder %s31, 0
    %p356 = por %p354, %p355
    %p357 = scmp.ne.s32.totalorder %s345, %s346
    %p358 = scmp.eq.s32.totalorder %s32, 1
    %p359 = por %p357, %p358
    %p361 = scmp.ne.s32.totalorder %s346, %s360
    %p362 = scmp.eq.s32.totalorder %s32, 0
    %p363 = por %p361, %p362
    %s365 = sadd.s32 %s364, 1
    %p368 = scmp.eq.s32.totalorder %s26, 1
    %p369 = scmp.ne.s32.totalorder %s364, %s366
    %p370 = scmp.eq.s32.totalorder %s26, 0
    %p371 = por %p369, %p370
    %p372 = scmp.ne.s32.totalorder %s364, %s366
    %p373 = scmp.eq.s32.totalorder %s31, 1
    %p374 = por %p372, %p373
    %p375 = scmp.ne.s32.totalorder %s366, %s367
    %p376 = scmp.eq.s32.totalorder %s31, 0
    %p377 = por %p375, %p376
    %p378 = scmp.ne.s32.totalorder %s366, %s367
    %p379 = scmp.eq.s32.totalorder %s32, 1
    %p380 = por %p378, %p379
    %p382 = scmp.ne.s32.totalorder %s367, %s381
    %p383 = scmp.eq.s32.totalorder %s32, 0
    %p384 = por %p382, %p383
    %s386 = sadd.s32 %s385, 1
    %p389 = scmp.eq.s32.totalorder %s26, 1
    %p390 = scmp.ne.s32.totalorder %s385, %s387
    %p391 = scmp.eq.s32.totalorder %s26, 0
    %p392 = por %p390, %p391
    %p393 = scmp.ne.s32.totalorder %s385, %s387
    %p394 = scmp.eq.s32.totalorder %s31, 1
    %p395 = por %p393, %p394
    %p396 = scmp.ne.s32.totalorder %s387, %s388
    %p397 = scmp.eq.s32.totalorder %s31, 0
    %p398 = por %p396, %p397
    %p399 = scmp.ne.s32.totalorder %s387, %s388
    %p400 = scmp.eq.s32.totalorder %s32, 1
    %p401 = por %p399, %p400
    %p403 = scmp.ne.s32.totalorder %s388, %s402
    %p404 = scmp.eq.s32.totalorder %s32, 0
    %p405 = por %p403, %p404
    %s407 = sadd.s32 %s406, 1
    %p410 = scmp.eq.s32.totalorder %s26, 1
    %p411 = scmp.ne.s32.totalorder %s406, %s408
    %p412 = scmp.eq.s32.totalorder %s26, 0
    %p413 = por %p411, %p412
    %p414 = scmp.ne.s32.totalorder %s406, %s408
    %p415 = scmp.eq.s32.totalorder %s31, 1
    %p416 = por %p414, %p415
    %p417 = scmp.ne.s32.totalorder %s408, %s409
    %p418 = scmp.eq.s32.totalorder %s31, 0
    %p419 = por %p417, %p418
    %p420 = scmp.ne.s32.totalorder %s408, %s409
    %p421 = scmp.eq.s32.totalorder %s32, 1
    %p422 = por %p420, %p421
    %p424 = scmp.ne.s32.totalorder %s409, %s423
    %p425 = scmp.eq.s32.totalorder %s32, 0
    %p426 = por %p424, %p425
    %s428 = sadd.s32 %s427, 1
    %p431 = scmp.eq.s32.totalorder %s26, 1
    %p432 = scmp.ne.s32.totalorder %s427, %s429
    %p433 = scmp.eq.s32.totalorder %s26, 0
    %p434 = por %p432, %p433
    %p435 = scmp.ne.s32.totalorder %s427, %s429
    %p436 = scmp.eq.s32.totalorder %s31, 1
    %p437 = por %p435, %p436
    %p438 = scmp.ne.s32.totalorder %s429, %s430
    %p439 = scmp.eq.s32.totalorder %s31, 0
    %p440 = por %p438, %p439
    %p441 = scmp.ne.s32.totalorder %s429, %s430
    %p442 = scmp.eq.s32.totalorder %s32, 1
    %p443 = por %p441, %p442
    %p445 = scmp.ne.s32.totalorder %s430, %s444
    %p446 = scmp.eq.s32.totalorder %s32, 0
    %p447 = por %p445, %p446
    %s449 = sadd.s32 %s448, 1
    %p452 = scmp.eq.s32.totalorder %s26, 1
    %p453 = scmp.ne.s32.totalorder %s448, %s450
    %p454 = scmp.eq.s32.totalorder %s26, 0
    %p455 = por %p453, %p454
    %p456 = scmp.ne.s32.totalorder %s448, %s450
    %p457 = scmp.eq.s32.totalorder %s31, 1
    %p458 = por %p456, %p457
    %p459 = scmp.ne.s32.totalorder %s450, %s451
    %p460 = scmp.eq.s32.totalorder %s31, 0
    %p461 = por %p459, %p460
    %p462 = scmp.ne.s32.totalorder %s450, %s451
    %p463 = scmp.eq.s32.totalorder %s32, 1
    %p464 = por %p462, %p463
    %p466 = scmp.ne.s32.totalorder %s451, %s465
    %p467 = scmp.eq.s32.totalorder %s32, 0
    %p468 = por %p466, %p467
    %s469 = ssub.s32 %s26, %s33
    %p470 = scmp.eq.s32.totalorder %s469, 0
    %s472 = sadd.s32 %s471, 1
    %s473 = scalar_select %p470, %s471, %s472
    %p476 = pneg %p470
    %p477 = scmp.eq.s32.totalorder %s26, 1
    %p478 = por %p476, %p477
    %p479 = scmp.ne.s32.totalorder %s471, %s474
    %p480 = scmp.eq.s32.totalorder %s26, 0
    %p481 = por %p479, %p480
    %p482 = scmp.ne.s32.totalorder %s471, %s474
    %p483 = scmp.eq.s32.totalorder %s31, 1
    %p484 = por %p482, %p483
    %p485 = scmp.ne.s32.totalorder %s474, %s475
    %p486 = scmp.eq.s32.totalorder %s31, 0
    %p487 = por %p485, %p486
    %p488 = scmp.ne.s32.totalorder %s474, %s475
    %p489 = scmp.eq.s32.totalorder %s32, 1
    %p490 = por %p488, %p489
    %p492 = scmp.ne.s32.totalorder %s475, %s491
    %p493 = scmp.eq.s32.totalorder %s32, 0
    %p494 = por %p492, %p493
    %p495 = scmp.le.s32.totalorder 1, %s26
    %p496 = scmp.lt.s32.totalorder %s26, 3
    %p497 = pnand %p495, %p496
    %p498 = pneg %p497
    // Predicated region
    $region9: #{mlla_block_forward.6} parent=5 // pred_check
      _
    $region10: #{mlla_block_forward.6} parent=5 // pred_check_branch
      %500 = sbr.rel (%p497) target = $region12
    $region11: #{mlla_block_forward.6} parent=5 // pred_region
      %s501 = ssub.s32 %s26, 1
      // Predicated region
      $region13: #{mlla_block_forward.6} parent=11 // pred_check
        %p502 = pneg %p125
      $region14: #{mlla_block_forward.6} parent=11 // pred_check_branch
        %504 = sbr.rel (%p502) target = $region16
      $region15: #{mlla_block_forward.6} parent=11 // pred_region
        _
      $region16: #{mlla_block_forward.6} parent=11 // pred_fallthru
        _
      // Predicated region
      $region17: #{mlla_block_forward.6} parent=11 // pred_check
        %p505 = pneg %p146
      $region18: #{mlla_block_forward.6} parent=11 // pred_check_branch
        %507 = sbr.rel (%p505) target = $region20
      $region19: #{mlla_block_forward.6} parent=11 // pred_region
        _
      $region20: #{mlla_block_forward.6} parent=11 // pred_fallthru
        _
      // Predicated region
      $region21: #{mlla_block_forward.6} parent=11 // pred_check
        %p508 = pneg %p167
      $region22: #{mlla_block_forward.6} parent=11 // pred_check_branch
        %510 = sbr.rel (%p508) target = $region24
      $region23: #{mlla_block_forward.6} parent=11 // pred_region
        _
      $region24: #{mlla_block_forward.6} parent=11 // pred_fallthru
        _
      // Predicated region
      $region25: #{mlla_block_forward.6} parent=11 // pred_check
        %p511 = pneg %p188
      $region26: #{mlla_block_forward.6} parent=11 // pred_check_branch
        %513 = sbr.rel (%p511) target = $region28
      $region27: #{mlla_block_forward.6} parent=11 // pred_region
        _
      $region28: #{mlla_block_forward.6} parent=11 // pred_fallthru
        _
      // Predicated region
      $region29: #{mlla_block_forward.6} parent=11 // pred_check
        %p514 = pneg %p209
      $region30: #{mlla_block_forward.6} parent=11 // pred_check_branch
        %516 = sbr.rel (%p514) target = $region32
      $region31: #{mlla_block_forward.6} parent=11 // pred_region
        _
      $region32: #{mlla_block_forward.6} parent=11 // pred_fallthru
        _
      // Predicated region
      $region33: #{mlla_block_forward.6} parent=11 // pred_check
        %p517 = pneg %p230
      $region34: #{mlla_block_forward.6} parent=11 // pred_check_branch
        %519 = sbr.rel (%p517) target = $region36
      $region35: #{mlla_block_forward.6} parent=11 // pred_region
        _
      $region36: #{mlla_block_forward.6} parent=11 // pred_fallthru
        _
      // Predicated region
      $region37: #{mlla_block_forward.6} parent=11 // pred_check
        %p520 = pneg %p251
      $region38: #{mlla_block_forward.6} parent=11 // pred_check_branch
        %522 = sbr.rel (%p520) target = $region40
      $region39: #{mlla_block_forward.6} parent=11 // pred_region
        _
      $region40: #{mlla_block_forward.6} parent=11 // pred_fallthru
        _
      // Predicated region
      $region41: #{mlla_block_forward.6} parent=11 // pred_check
        %p523 = pneg %p272
      $region42: #{mlla_block_forward.6} parent=11 // pred_check_branch
        %525 = sbr.rel (%p523) target = $region44
      $region43: #{mlla_block_forward.6} parent=11 // pred_region
        _
      $region44: #{mlla_block_forward.6} parent=11 // pred_fallthru
        _
      // Predicated region
      $region45: #{mlla_block_forward.6} parent=11 // pred_check
        %p526 = pneg %p293
      $region46: #{mlla_block_forward.6} parent=11 // pred_check_branch
        %528 = sbr.rel (%p526) target = $region48
      $region47: #{mlla_block_forward.6} parent=11 // pred_region
        _
      $region48: #{mlla_block_forward.6} parent=11 // pred_fallthru
        _
      // Predicated region
      $region49: #{mlla_block_forward.6} parent=11 // pred_check
        %p529 = pneg %p314
      $region50: #{mlla_block_forward.6} parent=11 // pred_check_branch
        %531 = sbr.rel (%p529) target = $region52
      $region51: #{mlla_block_forward.6} parent=11 // pred_region
        _
      $region52: #{mlla_block_forward.6} parent=11 // pred_fallthru
        _
      // Predicated region
      $region53: #{mlla_block_forward.6} parent=11 // pred_check
        %p532 = pneg %p335
      $region54: #{mlla_block_forward.6} parent=11 // pred_check_branch
        %534 = sbr.rel (%p532) target = $region56
      $region55: #{mlla_block_forward.6} parent=11 // pred_region
        _
      $region56: #{mlla_block_forward.6} parent=11 // pred_fallthru
        _
      // Predicated region
      $region57: #{mlla_block_forward.6} parent=11 // pred_check
        %p535 = pneg %p356
      $region58: #{mlla_block_forward.6} parent=11 // pred_check_branch
        %537 = sbr.rel (%p535) target = $region60
      $region59: #{mlla_block_forward.6} parent=11 // pred_region
        _
      $region60: #{mlla_block_forward.6} parent=11 // pred_fallthru
        _
      // Predicated region
      $region61: #{mlla_block_forward.6} parent=11 // pred_check
        %p538 = pneg %p377
      $region62: #{mlla_block_forward.6} parent=11 // pred_check_branch
        %540 = sbr.rel (%p538) target = $region64
      $region63: #{mlla_block_forward.6} parent=11 // pred_region
        _
      $region64: #{mlla_block_forward.6} parent=11 // pred_fallthru
        _
      // Predicated region
      $region65: #{mlla_block_forward.6} parent=11 // pred_check
        %p541 = pneg %p398
      $region66: #{mlla_block_forward.6} parent=11 // pred_check_branch
        %543 = sbr.rel (%p541) target = $region68
      $region67: #{mlla_block_forward.6} parent=11 // pred_region
        _
      $region68: #{mlla_block_forward.6} parent=11 // pred_fallthru
        _
      // Predicated region
      $region69: #{mlla_block_forward.6} parent=11 // pred_check
        %p544 = pneg %p419
      $region70: #{mlla_block_forward.6} parent=11 // pred_check_branch
        %546 = sbr.rel (%p544) target = $region72
      $region71: #{mlla_block_forward.6} parent=11 // pred_region
        _
      $region72: #{mlla_block_forward.6} parent=11 // pred_fallthru
        _
      // Predicated region
      $region73: #{mlla_block_forward.6} parent=11 // pred_check
        %p547 = pneg %p440
      $region74: #{mlla_block_forward.6} parent=11 // pred_check_branch
        %549 = sbr.rel (%p547) target = $region76
      $region75: #{mlla_block_forward.6} parent=11 // pred_region
        _
      $region76: #{mlla_block_forward.6} parent=11 // pred_fallthru
        _
      // Predicated region
      $region77: #{mlla_block_forward.6} parent=11 // pred_check
        %p550 = pneg %p461
      $region78: #{mlla_block_forward.6} parent=11 // pred_check_branch
        %552 = sbr.rel (%p550) target = $region80
      $region79: #{mlla_block_forward.6} parent=11 // pred_region
        _
      $region80: #{mlla_block_forward.6} parent=11 // pred_fallthru
        _
    $region12: #{mlla_block_forward.6} parent=5 // pred_fallthru
      _
    %p553 = scmp.lt.s32.totalorder %s26, 2
    // Predicated region
    $region81: #{mlla_block_forward.6} parent=5 // pred_check
      %p554 = pneg %p553
    $region82: #{mlla_block_forward.6} parent=5 // pred_check_branch
      %556 = sbr.rel (%p554) target = $region84
    $region83: #{mlla_block_forward.6} parent=5 // pred_region
      // Predicated region
      $region85: #{mlla_block_forward.6} parent=83 // pred_check
        %p557 = pneg %p46
      $region86: #{mlla_block_forward.6} parent=83 // pred_check_branch
        %559 = sbr.rel (%p557) target = $region88
      $region87: #{mlla_block_forward.6} parent=83 // pred_region
        %p560 = scmp.lt.s32.totalorder %s26, 1
        %s561 = scalar_select %p560, %s26, 1
        %s562 = smul.addr %s561, 8
        %s563 = smul.addr %s562, 4
        %s564 = scalar_lea.vmem %s0, %s563
      $region88: #{mlla_block_forward.6} parent=83 // pred_fallthru
        _
      // Predicated region
      $region89: #{mlla_block_forward.6} parent=83 // pred_check
        %p565 = pneg %p72
      $region90: #{mlla_block_forward.6} parent=83 // pred_check_branch
        %567 = sbr.rel (%p565) target = $region92
      $region91: #{mlla_block_forward.6} parent=83 // pred_region
        %p568 = scmp.lt.s32.totalorder %s26, 1
        %s569 = scalar_select %p568, %s26, 1
        %s570 = smul.addr %s569, 8
        %s571 = smul.addr %s570, 4
        %s572 = scalar_lea.vmem %s1, %s571
      $region92: #{mlla_block_forward.6} parent=83 // pred_fallthru
        _
      // Predicated region
      $region93: #{mlla_block_forward.6} parent=83 // pred_check
        %p573 = pneg %p98
      $region94: #{mlla_block_forward.6} parent=83 // pred_check_branch
        %575 = sbr.rel (%p573) target = $region96
      $region95: #{mlla_block_forward.6} parent=83 // pred_region
        %p576 = scmp.lt.s32.totalorder %s26, 1
        %s577 = scalar_select %p576, %s26, 1
        %s578 = smul.addr %s577, 8
        %s579 = smul.addr %s578, 4
        %s580 = scalar_lea.vmem %s2, %s579
      $region96: #{mlla_block_forward.6} parent=83 // pred_fallthru
        _
    $region84: #{mlla_block_forward.6} parent=5 // pred_fallthru
      _
    %p581 = scmp.le.s32.totalorder 1, %s26
    %p582 = scmp.lt.s32.totalorder %s26, 3
    %p583 = pnand %p581, %p582
    %p584 = pneg %p583
    // Predicated region
    $region97: #{mlla_block_forward.6} parent=5 // pred_check
      _
    $region98: #{mlla_block_forward.6} parent=5 // pred_check_branch
      %586 = sbr.rel (%p583) target = $region100
    $region99: #{mlla_block_forward.6} parent=5 // pred_region
      %s587 = ssub.s32 %s26, 1
      %p588 = scmp.lt.s32.totalorder %s31, 1
      %s589 = scalar_select %p588, %s31, 1
      %s590 = smul.addr %s589, 8
      %s591 = smul.addr %s590, 4
      %s592 = scalar_lea.vmem %s0, %s591
      %p593 = pneg %p52
      %p594 = pneg %p49
      %p595 = scmp.lt.s32.totalorder %s31, 1
      %s596 = scalar_select %p595, %s31, 1
      %s597 = smul.addr %s596, 8
      %s598 = smul.addr %s597, 4
      %s599 = scalar_lea.vmem %s1, %s598
      %p600 = pneg %p78
      %p601 = pneg %p75
      %p602 = scmp.lt.s32.totalorder %s31, 1
      %s603 = scalar_select %p602, %s31, 1
      %s604 = smul.addr %s603, 8
      %s605 = smul.addr %s604, 4
      %s606 = scalar_lea.vmem %s2, %s605
      %p607 = pneg %p104
      %p608 = pneg %p101
      %p609 = pneg %p125
      %p610 = pneg %p122
      %p611 = pneg %p146
      %p612 = pneg %p143
      %p613 = pneg %p167
      %p614 = pneg %p164
      %p615 = pneg %p188
      %p616 = pneg %p185
      %p617 = pneg %p209
      %p618 = pneg %p206
      %p619 = pneg %p230
      %p620 = pneg %p227
      %p621 = pneg %p251
      %p622 = pneg %p248
      %p623 = pneg %p272
      %p624 = pneg %p269
      %p625 = pneg %p293
      %p626 = pneg %p290
      %p627 = pneg %p314
      %p628 = pneg %p311
      %p629 = pneg %p335
      %p630 = pneg %p332
      %p631 = pneg %p356
      %p632 = pneg %p353
      %p633 = pneg %p377
      %p634 = pneg %p374
      %p635 = pneg %p398
      %p636 = pneg %p395
      %p637 = pneg %p419
      %p638 = pneg %p416
      %p639 = pneg %p440
      %p640 = pneg %p437
      %p641 = pneg %p461
      %p642 = pneg %p458
      %p643 = pneg %p487
      %p644 = pneg %p484
      %p645 = scmp.lt.s32.totalorder %s31, 1
      %s646 = scalar_select %p645, %s31, 1
      %s647 = smul.addr %s646, 8
      %s648 = smul.addr %s647, 4
      %s649 = scalar_lea.vmem %s20, %s648
      %p650 = scmp.lt.s32.totalorder %s31, 1
      %s651 = scalar_select %p650, %s31, 1
      %s652 = smul.addr %s651, 8
      %s653 = smul.addr %s652, 4
      %s654 = scalar_lea.vmem %s0, %s653
      %p655 = scmp.lt.s32.totalorder %s31, 1
      %s656 = scalar_select %p655, %s31, 1
      %s657 = smul.addr %s656, 8
      %s658 = smul.addr %s657, 4
      %s659 = scalar_lea.vmem %s1, %s658
      %p660 = scmp.lt.s32.totalorder %s31, 1
      %s661 = scalar_select %p660, %s31, 1
      %s662 = smul.addr %s661, 8
      %s663 = smul.addr %s662, 4
      %s664 = scalar_lea.vmem %s2, %s663
      %p665 = scmp.lt.s32.totalorder %s31, 1
      %s666 = scalar_select %p665, %s31, 1
      %s667 = smul.addr %s666, 8
      %s668 = smul.addr %s667, 4
      %s669 = scalar_lea.vmem %s20, %s668
      %p671 = scmp.eq.s32.totalorder %s31, 0
      // Predicated region
      $region101: #{mlla_block_forward.6} parent=99 // pred_check
        %p672 = pneg %p671
      $region102: #{mlla_block_forward.6} parent=99 // pred_check_branch
        %674 = sbr.rel (%p672) target = $region104
      $region103: #{mlla_block_forward.6} parent=99 // pred_region
        %675 = vst [vmem:[#allocation2] sm:$0xff] 0.0
        %676 = vst [vmem:[#allocation2 + $0x8] sm:$0xff] 0.0
        %677 = vst [vmem:[#allocation2 + $0x10] sm:$0xff] 0.0
        %678 = vst [vmem:[#allocation2 + $0x18] sm:$0xff] 0.0
        %679 = vst [vmem:[#allocation2 + $0x20] sm:$0xff] 0.0
        %680 = vst [vmem:[#allocation2 + $0x28] sm:$0xff] 0.0
        %681 = vst [vmem:[#allocation2 + $0x30] sm:$0xff] 0.0
        %682 = vst [vmem:[#allocation2 + $0x38] sm:$0xff] 0.0
        %683 = vst [vmem:[#allocation2 + $0x40] sm:$0xff] 0.0
        %684 = vst [vmem:[#allocation2 + $0x48] sm:$0xff] 0.0
        %685 = vst [vmem:[#allocation3] sm:$0xff] 0.0
        %686 = vst [vmem:[#allocation3 + $0x8] sm:$0xff] 0.0
        %687 = vst [vmem:[#allocation3 + $0x10] sm:$0xff] 0.0
        %688 = vst [vmem:[#allocation3 + $0x18] sm:$0xff] 0.0
        %689 = vst [vmem:[#allocation3 + $0x20] sm:$0xff] 0.0
        %690 = vst [vmem:[#allocation3 + $0x28] sm:$0xff] 0.0
        %691 = vst [vmem:[#allocation3 + $0x30] sm:$0xff] 0.0
        %692 = vst [vmem:[#allocation3 + $0x38] sm:$0xff] 0.0
        %693 = vst [vmem:[#allocation3 + $0x40] sm:$0xff] 0.0
        %694 = vst [vmem:[#allocation3 + $0x48] sm:$0xff] 0.0
        %695 = vst [vmem:[#allocation4] sm:$0xff] 0.0
        %696 = vst [vmem:[#allocation4 + $0x8] sm:$0xff] 0.0
        %697 = vst [vmem:[#allocation4 + $0x10] sm:$0xff] 0.0
        %698 = vst [vmem:[#allocation4 + $0x18] sm:$0xff] 0.0
        %699 = vst [vmem:[#allocation4 + $0x20] sm:$0xff] 0.0
        %700 = vst [vmem:[#allocation4 + $0x28] sm:$0xff] 0.0
        %701 = vst [vmem:[#allocation4 + $0x30] sm:$0xff] 0.0
        %702 = vst [vmem:[#allocation4 + $0x38] sm:$0xff] 0.0
        %703 = vst [vmem:[#allocation4 + $0x40] sm:$0xff] 0.0
        %704 = vst [vmem:[#allocation4 + $0x48] sm:$0xff] 0.0
        %705 = vst [vmem:[#allocation5] sm:$0xff] 0.0
        %706 = vst [vmem:[#allocation5 + $0x8] sm:$0xff] 0.0
        %707 = vst [vmem:[#allocation5 + $0x10] sm:$0xff] 0.0
        %708 = vst [vmem:[#allocation5 + $0x18] sm:$0xff] 0.0
        %709 = vst [vmem:[#allocation5 + $0x20] sm:$0xff] 0.0
        %710 = vst [vmem:[#allocation5 + $0x28] sm:$0xff] 0.0
        %711 = vst [vmem:[#allocation5 + $0x30] sm:$0xff] 0.0
        %712 = vst [vmem:[#allocation5 + $0x38] sm:$0xff] 0.0
        %713 = vst [vmem:[#allocation5 + $0x40] sm:$0xff] 0.0
        %714 = vst [vmem:[#allocation5 + $0x48] sm:$0xff] 0.0
        %715 = vst [vmem:[#allocation5 + $0x50] sm:$0xff] 0.0
        %716 = vst [vmem:[#allocation5 + $0x58] sm:$0xff] 0.0
        %717 = vst [vmem:[#allocation5 + $0x60] sm:$0xff] 0.0
        %718 = vst [vmem:[#allocation5 + $0x68] sm:$0xff] 0.0
        %719 = vst [vmem:[#allocation5 + $0x70] sm:$0xff] 0.0
        %720 = vst [vmem:[#allocation5 + $0x78] sm:$0xff] 0.0
      $region104: #{mlla_block_forward.6} parent=99 // pred_fallthru
        _
      %v721 = vld [vmem:[%s3] sm:$0xff]
      %v722 = vld [vmem:[%s3 + $0x8] sm:$0xff]
      %v723 = vld [vmem:[%s3 + $0x10] sm:$0xff]
      %v724 = vld [vmem:[%s3 + $0x18] sm:$0xff]
      %v725 = vld [vmem:[%s3 + $0x20] sm:$0xff]
      %v726 = vld [vmem:[%s3 + $0x28] sm:$0xff]
      %v727 = vld [vmem:[%s3 + $0x30] sm:$0xff]
      %v728 = vld [vmem:[%s3 + $0x38] sm:$0xff]
      %v729 = vld [vmem:[%s4] sm:$0xff]
      %v730 = vld [vmem:[%s4 + $0x8] sm:$0xff]
      %v731 = vld [vmem:[%s4 + $0x10] sm:$0xff]
      %v732 = vld [vmem:[%s4 + $0x18] sm:$0xff]
      %v733 = vld [vmem:[%s4 + $0x20] sm:$0xff]
      %v734 = vld [vmem:[%s4 + $0x28] sm:$0xff]
      %v735 = vld [vmem:[%s4 + $0x30] sm:$0xff]
      %v736 = vld [vmem:[%s4 + $0x38] sm:$0xff]
      %v737 = vld [vmem:[%s654] sm:$0xf]
      %v738 = vld [vmem:[%s654 + $0x4] sm:$0xf]
      %v739 = vld [vmem:[%s654 + $0x8] sm:$0xf]
      %v740 = vld [vmem:[%s654 + $0xc] sm:$0xf]
      %v741 = vld [vmem:[%s654 + $0x10] sm:$0xf]
      %v742 = vld [vmem:[%s654 + $0x14] sm:$0xf]
      %v743 = vld [vmem:[%s654 + $0x18] sm:$0xf]
      %v744 = vld [vmem:[%s654 + $0x1c] sm:$0xf]
      %v745 = vunpack.c.l.bf16 %v737
      %v746 = vunpack.c.l.bf16 %v738
      %v747 = vunpack.c.l.bf16 %v739
      %v748 = vunpack.c.l.bf16 %v740
      %v749 = vunpack.c.l.bf16 %v741
      %v750 = vunpack.c.l.bf16 %v742
      %v751 = vunpack.c.l.bf16 %v743
      %v752 = vunpack.c.l.bf16 %v744
      %753 = vst [vmem:[#allocation2 + $0x8] sm:$0xff] %v745
      %754 = vst [vmem:[#allocation2 + $0x10] sm:$0xff] %v746
      %755 = vst [vmem:[#allocation2 + $0x18] sm:$0xff] %v747
      %756 = vst [vmem:[#allocation2 + $0x20] sm:$0xff] %v748
      %757 = vst [vmem:[#allocation2 + $0x28] sm:$0xff] %v749
      %758 = vst [vmem:[#allocation2 + $0x30] sm:$0xff] %v750
      %759 = vst [vmem:[#allocation2 + $0x38] sm:$0xff] %v751
      %760 = vst [vmem:[#allocation2 + $0x40] sm:$0xff] %v752
      %761 = vst [vmem:[#allocation3 + $0x9] sm:$0xff] %v745
      %762 = vst [vmem:[#allocation3 + $0x11] sm:$0xff] %v746
      %763 = vst [vmem:[#allocation3 + $0x19] sm:$0xff] %v747
      %764 = vst [vmem:[#allocation3 + $0x21] sm:$0xff] %v748
      %765 = vst [vmem:[#allocation3 + $0x29] sm:$0xff] %v749
      %766 = vst [vmem:[#allocation3 + $0x31] sm:$0xff] %v750
      %767 = vst [vmem:[#allocation3 + $0x39] sm:$0xff] %v751
      %768 = vst [vmem:[#allocation3 + $0x41] sm:$0xff] %v752
      %769 = vst [vmem:[#allocation4 + $0x7] sm:$0xff] %v745
      %770 = vst [vmem:[#allocation4 + $0xf] sm:$0xff] %v746
      %771 = vst [vmem:[#allocation4 + $0x17] sm:$0xff] %v747
      %772 = vst [vmem:[#allocation4 + $0x1f] sm:$0xff] %v748
      %773 = vst [vmem:[#allocation4 + $0x27] sm:$0xff] %v749
      %774 = vst [vmem:[#allocation4 + $0x2f] sm:$0xff] %v750
      %775 = vst [vmem:[#allocation4 + $0x37] sm:$0xff] %v751
      %776 = vst [vmem:[#allocation4 + $0x3f] sm:$0xff] %v752
      %v777 = vld [vmem:[%s5] sm:$0xff]
      %v778 = vld [vmem:[%s5 + $0x8] sm:$0x1]
      %v779 = vld [vmem:[%s6] sm:$0x1]
      %v780 = vld [vmem:[#allocation3] sm:$0xff]
      %v781 = vld [vmem:[#allocation3 + $0x8] sm:$0xff]
      %v782 = vld [vmem:[#allocation3 + $0x10] sm:$0xff]
      %v783 = vld [vmem:[#allocation3 + $0x18] sm:$0xff]
      %v784 = vld [vmem:[#allocation3 + $0x20] sm:$0xff]
      %v785 = vld [vmem:[#allocation3 + $0x28] sm:$0xff]
      %v786 = vld [vmem:[#allocation3 + $0x30] sm:$0xff]
      %v787 = vld [vmem:[#allocation3 + $0x38] sm:$0xff]
      %v788 = vlaneseq
      %v789 = vshrl.u32 %v788, 7
      %v790 = vsub.s32 0, %v789
      %v791 = vrot.slane %v777, %v790
      %v792 = vmul.f32 %v780, %v791
      %v793 = vmul.f32 %v781, %v791
      %v794 = vmul.f32 %v782, %v791
      %v795 = vmul.f32 %v783, %v791
      %v796 = vmul.f32 %v784, %v791
      %v797 = vmul.f32 %v785, %v791
      %v798 = vmul.f32 %v786, %v791
      %v799 = vmul.f32 %v787, %v791
      %v800 = vld [vmem:[#allocation2] sm:$0xff]
      %v801 = vld [vmem:[#allocation2 + $0x8] sm:$0xff]
      %v802 = vld [vmem:[#allocation2 + $0x10] sm:$0xff]
      %v803 = vld [vmem:[#allocation2 + $0x18] sm:$0xff]
      %v804 = vld [vmem:[#allocation2 + $0x20] sm:$0xff]
      %v805 = vld [vmem:[#allocation2 + $0x28] sm:$0xff]
      %v806 = vld [vmem:[#allocation2 + $0x30] sm:$0xff]
      %v807 = vld [vmem:[#allocation2 + $0x38] sm:$0xff]
      %v808 = vlaneseq
      %v809 = vshrl.u32 %v808, 7
      %v810 = vsub.s32 1, %v809
      %v811 = vrot.slane %v777, %v810
      %v812 = vmul.f32 %v800, %v811
      %v813 = vmul.f32 %v801, %v811
      %v814 = vmul.f32 %v802, %v811
      %v815 = vmul.f32 %v803, %v811
      %v816 = vmul.f32 %v804, %v811
      %v817 = vmul.f32 %v805, %v811
      %v818 = vmul.f32 %v806, %v811
      %v819 = vmul.f32 %v807, %v811
      %v820 = vld [vmem:[#allocation4] sm:$0xff]
      %v821 = vld [vmem:[#allocation4 + $0x8] sm:$0xff]
      %v822 = vld [vmem:[#allocation4 + $0x10] sm:$0xff]
      %v823 = vld [vmem:[#allocation4 + $0x18] sm:$0xff]
      %v824 = vld [vmem:[#allocation4 + $0x20] sm:$0xff]
      %v825 = vld [vmem:[#allocation4 + $0x28] sm:$0xff]
      %v826 = vld [vmem:[#allocation4 + $0x30] sm:$0xff]
      %v827 = vld [vmem:[#allocation4 + $0x38] sm:$0xff]
      %v828 = vlaneseq
      %v829 = vshrl.u32 %v828, 7
      %v830 = vsub.s32 2, %v829
      %v831 = vrot.slane %v777, %v830
      %v832 = vmul.f32 %v820, %v831
      %v833 = vmul.f32 %v821, %v831
      %v834 = vmul.f32 %v822, %v831
      %v835 = vmul.f32 %v823, %v831
      %v836 = vmul.f32 %v824, %v831
      %v837 = vmul.f32 %v825, %v831
      %v838 = vmul.f32 %v826, %v831
      %v839 = vmul.f32 %v827, %v831
      %v840 = vld [vmem:[#allocation3 + $0x40] sm:$0xff]
      %v841 = vlaneseq
      %v842 = vshrl.u32 %v841, 7
      %v843 = vsub.s32 3, %v842
      %v844 = vrot.slane %v777, %v843
      %v845 = vmul.f32 %v781, %v844
      %v846 = vmul.f32 %v782, %v844
      %v847 = vmul.f32 %v783, %v844
      %v848 = vmul.f32 %v784, %v844
      %v849 = vmul.f32 %v785, %v844
      %v850 = vmul.f32 %v786, %v844
      %v851 = vmul.f32 %v787, %v844
      %v852 = vmul.f32 %v840, %v844
      %v853 = vld [vmem:[#allocation2 + $0x40] sm:$0xff]
      %v854 = vlaneseq
      %v855 = vshrl.u32 %v854, 7
      %v856 = vsub.s32 4, %v855
      %v857 = vrot.slane %v777, %v856
      %v858 = vmul.f32 %v801, %v857
      %v859 = vmul.f32 %v802, %v857
      %v860 = vmul.f32 %v803, %v857
      %v861 = vmul.f32 %v804, %v857
      %v862 = vmul.f32 %v805, %v857
      %v863 = vmul.f32 %v806, %v857
      %v864 = vmul.f32 %v807, %v857
      %v865 = vmul.f32 %v853, %v857
      %v866 = vld [vmem:[#allocation4 + $0x40] sm:$0xff]
      %v867 = vlaneseq
      %v868 = vshrl.u32 %v867, 7
      %v869 = vsub.s32 5, %v868
      %v870 = vrot.slane %v777, %v869
      %v871 = vmul.f32 %v821, %v870
      %v872 = vmul.f32 %v822, %v870
      %v873 = vmul.f32 %v823, %v870
      %v874 = vmul.f32 %v824, %v870
      %v875 = vmul.f32 %v825, %v870
      %v876 = vmul.f32 %v826, %v870
      %v877 = vmul.f32 %v827, %v870
      %v878 = vmul.f32 %v866, %v870
      %v879 = vadd.f32 %v792, %v845
      %v880 = vadd.f32 %v793, %v846
      %v881 = vadd.f32 %v794, %v847
      %v882 = vadd.f32 %v795, %v848
      %v883 = vadd.f32 %v796, %v849
      %v884 = vadd.f32 %v797, %v850
      %v885 = vadd.f32 %v798, %v851
      %v886 = vadd.f32 %v799, %v852
      %v887 = vadd.f32 %v812, %v858
      %v888 = vadd.f32 %v813, %v859
      %v889 = vadd.f32 %v814, %v860
      %v890 = vadd.f32 %v815, %v861
      %v891 = vadd.f32 %v816, %v862
      %v892 = vadd.f32 %v817, %v863
      %v893 = vadd.f32 %v818, %v864
      %v894 = vadd.f32 %v819, %v865
      %v895 = vadd.f32 %v832, %v871
      %v896 = vadd.f32 %v833, %v872
      %v897 = vadd.f32 %v834, %v873
      %v898 = vadd.f32 %v835, %v874
      %v899 = vadd.f32 %v836, %v875
      %v900 = vadd.f32 %v837, %v876
      %v901 = vadd.f32 %v838, %v877
      %v902 = vadd.f32 %v839, %v878
      %v903 = vld [vmem:[#allocation3 + $0x10] sm:$0xff]
      %v904 = vld [vmem:[#allocation3 + $0x18] sm:$0xff]
      %v905 = vld [vmem:[#allocation3 + $0x20] sm:$0xff]
      %v906 = vld [vmem:[#allocation3 + $0x28] sm:$0xff]
      %v907 = vld [vmem:[#allocation3 + $0x30] sm:$0xff]
      %v908 = vld [vmem:[#allocation3 + $0x38] sm:$0xff]
      %v909 = vld [vmem:[#allocation3 + $0x40] sm:$0xff]
      %v910 = vld [vmem:[#allocation3 + $0x48] sm:$0xff]
      %v911 = vlaneseq
      %v912 = vshrl.u32 %v911, 7
      %v913 = vsub.s32 6, %v912
      %v914 = vrot.slane %v777, %v913
      %v915 = vmul.f32 %v903, %v914
      %v916 = vmul.f32 %v904, %v914
      %v917 = vmul.f32 %v905, %v914
      %v918 = vmul.f32 %v906, %v914
      %v919 = vmul.f32 %v907, %v914
      %v920 = vmul.f32 %v908, %v914
      %v921 = vmul.f32 %v909, %v914
      %v922 = vmul.f32 %v910, %v914
      %v923 = vld [vmem:[#allocation2 + $0x10] sm:$0xff]
      %v924 = vld [vmem:[#allocation2 + $0x18] sm:$0xff]
      %v925 = vld [vmem:[#allocation2 + $0x20] sm:$0xff]
      %v926 = vld [vmem:[#allocation2 + $0x28] sm:$0xff]
      %v927 = vld [vmem:[#allocation2 + $0x30] sm:$0xff]
      %v928 = vld [vmem:[#allocation2 + $0x38] sm:$0xff]
      %v929 = vld [vmem:[#allocation2 + $0x40] sm:$0xff]
      %v930 = vld [vmem:[#allocation2 + $0x48] sm:$0xff]
      %v931 = vlaneseq
      %v932 = vshrl.u32 %v931, 7
      %v933 = vsub.s32 7, %v932
      %v934 = vrot.slane %v777, %v933
      %v935 = vmul.f32 %v923, %v934
      %v936 = vmul.f32 %v924, %v934
      %v937 = vmul.f32 %v925, %v934
      %v938 = vmul.f32 %v926, %v934
      %v939 = vmul.f32 %v927, %v934
      %v940 = vmul.f32 %v928, %v934
      %v941 = vmul.f32 %v929, %v934
      %v942 = vmul.f32 %v930, %v934
      %v943 = vld [vmem:[#allocation4 + $0x10] sm:$0xff]
      %v944 = vld [vmem:[#allocation4 + $0x18] sm:$0xff]
      %v945 = vld [vmem:[#allocation4 + $0x20] sm:$0xff]
      %v946 = vld [vmem:[#allocation4 + $0x28] sm:$0xff]
      %v947 = vld [vmem:[#allocation4 + $0x30] sm:$0xff]
      %v948 = vld [vmem:[#allocation4 + $0x38] sm:$0xff]
      %v949 = vld [vmem:[#allocation4 + $0x40] sm:$0xff]
      %v950 = vld [vmem:[#allocation4 + $0x48] sm:$0xff]
      %v951 = vlaneseq
      %v952 = vshrl.u32 %v951, 7
      %v953 = vsub.s32 0, %v952
      %v954 = vrot.slane %v778, %v953
      %v955 = vmul.f32 %v943, %v954
      %v956 = vmul.f32 %v944, %v954
      %v957 = vmul.f32 %v945, %v954
      %v958 = vmul.f32 %v946, %v954
      %v959 = vmul.f32 %v947, %v954
      %v960 = vmul.f32 %v948, %v954
      %v961 = vmul.f32 %v949, %v954
      %v962 = vmul.f32 %v950, %v954
      %v963 = vadd.f32 %v879, %v915
      %v964 = vadd.f32 %v880, %v916
      %v965 = vadd.f32 %v881, %v917
      %v966 = vadd.f32 %v882, %v918
      %v967 = vadd.f32 %v883, %v919
      %v968 = vadd.f32 %v884, %v920
      %v969 = vadd.f32 %v885, %v921
      %v970 = vadd.f32 %v886, %v922
      %v971 = vadd.f32 %v887, %v935
      %v972 = vadd.f32 %v888, %v936
      %v973 = vadd.f32 %v889, %v937
      %v974 = vadd.f32 %v890, %v938
      %v975 = vadd.f32 %v891, %v939
      %v976 = vadd.f32 %v892, %v940
      %v977 = vadd.f32 %v893, %v941
      %v978 = vadd.f32 %v894, %v942
      %v979 = vadd.f32 %v895, %v955
      %v980 = vadd.f32 %v896, %v956
      %v981 = vadd.f32 %v897, %v957
      %v982 = vadd.f32 %v898, %v958
      %v983 = vadd.f32 %v899, %v959
      %v984 = vadd.f32 %v900, %v960
      %v985 = vadd.f32 %v901, %v961
      %v986 = vadd.f32 %v902, %v962
      %988 = vset.pattern.permute.xlu0 0
      %989 = vperm.xlu0 %988, %v721
      %v990 = vpop.permute.xlu0 %989
      %993 = vset.pattern.permute.xlu0 0
      %994 = vperm.xlu0 %993, %v722
      %v995 = vpop.permute.xlu0 %994
      %998 = vset.pattern.permute.xlu0 0
      %999 = vperm.xlu0 %998, %v723
      %v1000 = vpop.permute.xlu0 %999
      %1003 = vset.pattern.permute.xlu0 0
      %1004 = vperm.xlu0 %1003, %v724
      %v1005 = vpop.permute.xlu0 %1004
      %1008 = vset.pattern.permute.xlu0 0
      %1009 = vperm.xlu0 %1008, %v725
      %v1010 = vpop.permute.xlu0 %1009
      %1013 = vset.pattern.permute.xlu0 0
      %1014 = vperm.xlu0 %1013, %v726
      %v1015 = vpop.permute.xlu0 %1014
      %1018 = vset.pattern.permute.xlu0 0
      %1019 = vperm.xlu0 %1018, %v727
      %v1020 = vpop.permute.xlu0 %1019
      %1023 = vset.pattern.permute.xlu0 0
      %1024 = vperm.xlu0 %1023, %v728
      %v1025 = vpop.permute.xlu0 %1024
      %v1027 = vmul.f32 %v963, %v990
      %v1028 = vmul.f32 %v964, %v995
      %v1029 = vmul.f32 %v965, %v1000
      %v1030 = vmul.f32 %v966, %v1005
      %v1031 = vmul.f32 %v967, %v1010
      %v1032 = vmul.f32 %v968, %v1015
      %v1033 = vmul.f32 %v969, %v1020
      %v1034 = vmul.f32 %v970, %v1025
      %v1035 = vadd.f32 %v1027, %v971
      %v1036 = vadd.f32 %v1028, %v972
      %v1037 = vadd.f32 %v1029, %v973
      %v1038 = vadd.f32 %v1030, %v974
      %v1039 = vadd.f32 %v1031, %v975
      %v1040 = vadd.f32 %v1032, %v976
      %v1041 = vadd.f32 %v1033, %v977
      %v1042 = vadd.f32 %v1034, %v978
      %1044 = vset.pattern.permute.xlu0 0
      %1045 = vperm.xlu0 %1044, %v729
      %v1046 = vpop.permute.xlu0 %1045
      %1049 = vset.pattern.permute.xlu0 0
      %1050 = vperm.xlu0 %1049, %v730
      %v1051 = vpop.permute.xlu0 %1050
      %1054 = vset.pattern.permute.xlu0 0
      %1055 = vperm.xlu0 %1054, %v731
      %v1056 = vpop.permute.xlu0 %1055
      %1059 = vset.pattern.permute.xlu0 0
      %1060 = vperm.xlu0 %1059, %v732
      %v1061 = vpop.permute.xlu0 %1060
      %1064 = vset.pattern.permute.xlu0 0
      %1065 = vperm.xlu0 %1064, %v733
      %v1066 = vpop.permute.xlu0 %1065
      %1069 = vset.pattern.permute.xlu0 0
      %1070 = vperm.xlu0 %1069, %v734
      %v1071 = vpop.permute.xlu0 %1070
      %1074 = vset.pattern.permute.xlu0 0
      %1075 = vperm.xlu0 %1074, %v735
      %v1076 = vpop.permute.xlu0 %1075
      %1079 = vset.pattern.permute.xlu0 0
      %1080 = vperm.xlu0 %1079, %v736
      %v1081 = vpop.permute.xlu0 %1080
      %v1083 = vmul.f32 %v979, %v1046
      %v1084 = vmul.f32 %v980, %v1051
      %v1085 = vmul.f32 %v981, %v1056
      %v1086 = vmul.f32 %v982, %v1061
      %v1087 = vmul.f32 %v983, %v1066
      %v1088 = vmul.f32 %v984, %v1071
      %v1089 = vmul.f32 %v985, %v1076
      %v1090 = vmul.f32 %v986, %v1081
      %v1091 = vadd.f32 %v1035, %v1083
      %v1092 = vadd.f32 %v1036, %v1084
      %v1093 = vadd.f32 %v1037, %v1085
      %v1094 = vadd.f32 %v1038, %v1086
      %v1095 = vadd.f32 %v1039, %v1087
      %v1096 = vadd.f32 %v1040, %v1088
      %v1097 = vadd.f32 %v1041, %v1089
      %v1098 = vadd.f32 %v1042, %v1090
      %v1100 = vlaneseq
      %v1101 = vshrl.u32 %v1100, 7
      %v1102 = vsub.s32 0, %v1101
      %v1103 = vrot.slane %v779, %v1102
      %v1105 = vadd.f32 %v1091, %v1103
      %v1106 = vadd.f32 %v1092, %v1103
      %v1107 = vadd.f32 %v1093, %v1103
      %v1108 = vadd.f32 %v1094, %v1103
      %v1109 = vadd.f32 %v1095, %v1103
      %v1110 = vadd.f32 %v1096, %v1103
      %v1111 = vadd.f32 %v1097, %v1103
      %v1112 = vadd.f32 %v1098, %v1103
      %v1113 = vand.u32 2147483647, %v1105
      %v1114 = vand.u32 2147483647, %v1106
      %v1115 = vand.u32 2147483647, %v1107
      %v1116 = vand.u32 2147483647, %v1108
      %v1117 = vand.u32 2147483647, %v1109
      %v1118 = vand.u32 2147483647, %v1110
      %v1119 = vand.u32 2147483647, %v1111
      %v1120 = vand.u32 2147483647, %v1112
      %v1121 = vsub.f32 0.0, %v1113
      %v1122 = vsub.f32 0.0, %v1114
      %v1123 = vsub.f32 0.0, %v1115
      %v1124 = vsub.f32 0.0, %v1116
      %v1125 = vsub.f32 0.0, %v1117
      %v1126 = vsub.f32 0.0, %v1118
      %v1127 = vsub.f32 0.0, %v1119
      %v1128 = vsub.f32 0.0, %v1120
      %v1129 = vmul.f32 %v1121, 1.442695
      %v1130 = vpow.pop %v1129
      %v1131 = vmul.f32 %v1122, 1.442695
      %v1132 = vpow.pop %v1131
      %v1133 = vmul.f32 %v1123, 1.442695
      %v1134 = vpow.pop %v1133
      %v1135 = vmul.f32 %v1124, 1.442695
      %v1136 = vpow.pop %v1135
      %v1137 = vmul.f32 %v1125, 1.442695
      %v1138 = vpow.pop %v1137
      %v1139 = vmul.f32 %v1126, 1.442695
      %v1140 = vpow.pop %v1139
      %v1141 = vmul.f32 %v1127, 1.442695
      %v1142 = vpow.pop %v1141
      %v1143 = vmul.f32 %v1128, 1.442695
      %v1144 = vpow.pop %v1143
      %vm1145 = vcmp.ge.f32.partialorder %v1105, 0.0
      %vm1146 = vcmp.ge.f32.partialorder %v1106, 0.0
      %vm1147 = vcmp.ge.f32.partialorder %v1107, 0.0
      %vm1148 = vcmp.ge.f32.partialorder %v1108, 0.0
      %vm1149 = vcmp.ge.f32.partialorder %v1109, 0.0
      %vm1150 = vcmp.ge.f32.partialorder %v1110, 0.0
      %vm1151 = vcmp.ge.f32.partialorder %v1111, 0.0
      %vm1152 = vcmp.ge.f32.partialorder %v1112, 0.0
      %v1153 = vadd.f32 %v1130, 1.0
      %v1154 = vadd.f32 %v1132, 1.0
      %v1155 = vadd.f32 %v1134, 1.0
      %v1156 = vadd.f32 %v1136, 1.0
      %v1157 = vadd.f32 %v1138, 1.0
      %v1158 = vadd.f32 %v1140, 1.0
      %v1159 = vadd.f32 %v1142, 1.0
      %v1160 = vadd.f32 %v1144, 1.0
      %v1161 = vrcp.pop %v1153
      %v1162 = vmul.f32 1.0, %v1161
      %v1163 = vrcp.pop %v1154
      %v1164 = vmul.f32 1.0, %v1163
      %v1165 = vrcp.pop %v1155
      %v1166 = vmul.f32 1.0, %v1165
      %v1167 = vrcp.pop %v1156
      %v1168 = vmul.f32 1.0, %v1167
      %v1169 = vrcp.pop %v1157
      %v1170 = vmul.f32 1.0, %v1169
      %v1171 = vrcp.pop %v1158
      %v1172 = vmul.f32 1.0, %v1171
      %v1173 = vrcp.pop %v1159
      %v1174 = vmul.f32 1.0, %v1173
      %v1175 = vrcp.pop %v1160
      %v1176 = vmul.f32 1.0, %v1175
      %v1177 = vmul.f32 %v1130, %v1161
      %v1178 = vmul.f32 %v1132, %v1163
      %v1179 = vmul.f32 %v1134, %v1165
      %v1180 = vmul.f32 %v1136, %v1167
      %v1181 = vmul.f32 %v1138, %v1169
      %v1182 = vmul.f32 %v1140, %v1171
      %v1183 = vmul.f32 %v1142, %v1173
      %v1184 = vmul.f32 %v1144, %v1175
      %v1185 = vsel %vm1145, %v1162, %v1177
      %v1186 = vsel %vm1146, %v1164, %v1178
      %v1187 = vsel %vm1147, %v1166, %v1179
      %v1188 = vsel %vm1148, %v1168, %v1180
      %v1189 = vsel %vm1149, %v1170, %v1181
      %v1190 = vsel %vm1150, %v1172, %v1182
      %v1191 = vsel %vm1151, %v1174, %v1183
      %v1192 = vsel %vm1152, %v1176, %v1184
      %v1193 = vmul.f32 %v1105, %v1185
      %v1194 = vmul.f32 %v1106, %v1186
      %v1195 = vmul.f32 %v1107, %v1187
      %v1196 = vmul.f32 %v1108, %v1188
      %v1197 = vmul.f32 %v1109, %v1189
      %v1198 = vmul.f32 %v1110, %v1190
      %v1199 = vmul.f32 %v1111, %v1191
      %v1200 = vmul.f32 %v1112, %v1192
      %1201 = vst [vmem:[#allocation2 + $0x8] sm:$0xff] %v1193
      %1202 = vst [vmem:[#allocation2 + $0x10] sm:$0xff] %v1194
      %1203 = vst [vmem:[#allocation2 + $0x18] sm:$0xff] %v1195
      %1204 = vst [vmem:[#allocation2 + $0x20] sm:$0xff] %v1196
      %1205 = vst [vmem:[#allocation2 + $0x28] sm:$0xff] %v1197
      %1206 = vst [vmem:[#allocation2 + $0x30] sm:$0xff] %v1198
      %1207 = vst [vmem:[#allocation2 + $0x38] sm:$0xff] %v1199
      %1208 = vst [vmem:[#allocation2 + $0x40] sm:$0xff] %v1200
      %1209 = vst [vmem:[#allocation3 + $0x9] sm:$0xff] %v1193
      %1210 = vst [vmem:[#allocation3 + $0x11] sm:$0xff] %v1194
      %1211 = vst [vmem:[#allocation3 + $0x19] sm:$0xff] %v1195
      %1212 = vst [vmem:[#allocation3 + $0x21] sm:$0xff] %v1196
      %1213 = vst [vmem:[#allocation3 + $0x29] sm:$0xff] %v1197
      %1214 = vst [vmem:[#allocation3 + $0x31] sm:$0xff] %v1198
      %1215 = vst [vmem:[#allocation3 + $0x39] sm:$0xff] %v1199
      %1216 = vst [vmem:[#allocation3 + $0x41] sm:$0xff] %v1200
      %1217 = vst [vmem:[#allocation4 + $0x7] sm:$0xff] %v1193
      %1218 = vst [vmem:[#allocation4 + $0xf] sm:$0xff] %v1194
      %1219 = vst [vmem:[#allocation4 + $0x17] sm:$0xff] %v1195
      %1220 = vst [vmem:[#allocation4 + $0x1f] sm:$0xff] %v1196
      %1221 = vst [vmem:[#allocation4 + $0x27] sm:$0xff] %v1197
      %1222 = vst [vmem:[#allocation4 + $0x2f] sm:$0xff] %v1198
      %1223 = vst [vmem:[#allocation4 + $0x37] sm:$0xff] %v1199
      %1224 = vst [vmem:[#allocation4 + $0x3f] sm:$0xff] %v1200
      %v1225 = vld [vmem:[%s7] sm:$0xff]
      %v1226 = vld [vmem:[%s7 + $0x8] sm:$0x1]
      %v1227 = vld [vmem:[%s8] sm:$0x1]
      %v1228 = vld [vmem:[#allocation3] sm:$0xff]
      %v1229 = vld [vmem:[#allocation3 + $0x8] sm:$0xff]
      %v1230 = vld [vmem:[#allocation3 + $0x10] sm:$0xff]
      %v1231 = vld [vmem:[#allocation3 + $0x18] sm:$0xff]
      %v1232 = vld [vmem:[#allocation3 + $0x20] sm:$0xff]
      %v1233 = vld [vmem:[#allocation3 + $0x28] sm:$0xff]
      %v1234 = vld [vmem:[#allocation3 + $0x30] sm:$0xff]
      %v1235 = vld [vmem:[#allocation3 + $0x38] sm:$0xff]
      %v1236 = vlaneseq
      %v1237 = vshrl.u32 %v1236, 7
      %v1238 = vsub.s32 0, %v1237
      %v1239 = vrot.slane %v1225, %v1238
      %v1240 = vmul.f32 %v1228, %v1239
      %v1241 = vmul.f32 %v1229, %v1239
      %v1242 = vmul.f32 %v1230, %v1239
      %v1243 = vmul.f32 %v1231, %v1239
      %v1244 = vmul.f32 %v1232, %v1239
      %v1245 = vmul.f32 %v1233, %v1239
      %v1246 = vmul.f32 %v1234, %v1239
      %v1247 = vmul.f32 %v1235, %v1239
      %v1248 = vld [vmem:[#allocation2] sm:$0xff]
      %v1249 = vld [vmem:[#allocation2 + $0x8] sm:$0xff]
      %v1250 = vld [vmem:[#allocation2 + $0x10] sm:$0xff]
      %v1251 = vld [vmem:[#allocation2 + $0x18] sm:$0xff]
      %v1252 = vld [vmem:[#allocation2 + $0x20] sm:$0xff]
      %v1253 = vld [vmem:[#allocation2 + $0x28] sm:$0xff]
      %v1254 = vld [vmem:[#allocation2 + $0x30] sm:$0xff]
      %v1255 = vld [vmem:[#allocation2 + $0x38] sm:$0xff]
      %v1256 = vlaneseq
      %v1257 = vshrl.u32 %v1256, 7
      %v1258 = vsub.s32 1, %v1257
      %v1259 = vrot.slane %v1225, %v1258
      %v1260 = vmul.f32 %v1248, %v1259
      %v1261 = vmul.f32 %v1249, %v1259
      %v1262 = vmul.f32 %v1250, %v1259
      %v1263 = vmul.f32 %v1251, %v1259
      %v1264 = vmul.f32 %v1252, %v1259
      %v1265 = vmul.f32 %v1253, %v1259
      %v1266 = vmul.f32 %v1254, %v1259
      %v1267 = vmul.f32 %v1255, %v1259
      %v1268 = vld [vmem:[#allocation4] sm:$0xff]
      %v1269 = vld [vmem:[#allocation4 + $0x8] sm:$0xff]
      %v1270 = vld [vmem:[#allocation4 + $0x10] sm:$0xff]
      %v1271 = vld [vmem:[#allocation4 + $0x18] sm:$0xff]
      %v1272 = vld [vmem:[#allocation4 + $0x20] sm:$0xff]
      %v1273 = vld [vmem:[#allocation4 + $0x28] sm:$0xff]
      %v1274 = vld [vmem:[#allocation4 + $0x30] sm:$0xff]
      %v1275 = vld [vmem:[#allocation4 + $0x38] sm:$0xff]
      %v1276 = vlaneseq
      %v1277 = vshrl.u32 %v1276, 7
      %v1278 = vsub.s32 2, %v1277
      %v1279 = vrot.slane %v1225, %v1278
      %v1280 = vmul.f32 %v1268, %v1279
      %v1281 = vmul.f32 %v1269, %v1279
      %v1282 = vmul.f32 %v1270, %v1279
      %v1283 = vmul.f32 %v1271, %v1279
      %v1284 = vmul.f32 %v1272, %v1279
      %v1285 = vmul.f32 %v1273, %v1279
      %v1286 = vmul.f32 %v1274, %v1279
      %v1287 = vmul.f32 %v1275, %v1279
      %v1288 = vld [vmem:[#allocation3 + $0x40] sm:$0xff]
      %v1289 = vlaneseq
      %v1290 = vshrl.u32 %v1289, 7
      %v1291 = vsub.s32 3, %v1290
      %v1292 = vrot.slane %v1225, %v1291
      %v1293 = vmul.f32 %v1229, %v1292
      %v1294 = vmul.f32 %v1230, %v1292
      %v1295 = vmul.f32 %v1231, %v1292
      %v1296 = vmul.f32 %v1232, %v1292
      %v1297 = vmul.f32 %v1233, %v1292
      %v1298 = vmul.f32 %v1234, %v1292
      %v1299 = vmul.f32 %v1235, %v1292
      %v1300 = vmul.f32 %v1288, %v1292
      %v1301 = vld [vmem:[#allocation2 + $0x40] sm:$0xff]
      %v1302 = vlaneseq
      %v1303 = vshrl.u32 %v1302, 7
      %v1304 = vsub.s32 4, %v1303
      %v1305 = vrot.slane %v1225, %v1304
      %v1306 = vmul.f32 %v1249, %v1305
      %v1307 = vmul.f32 %v1250, %v1305
      %v1308 = vmul.f32 %v1251, %v1305
      %v1309 = vmul.f32 %v1252, %v1305
      %v1310 = vmul.f32 %v1253, %v1305
      %v1311 = vmul.f32 %v1254, %v1305
      %v1312 = vmul.f32 %v1255, %v1305
      %v1313 = vmul.f32 %v1301, %v1305
      %v1314 = vld [vmem:[#allocation4 + $0x40] sm:$0xff]
      %v1315 = vlaneseq
      %v1316 = vshrl.u32 %v1315, 7
      %v1317 = vsub.s32 5, %v1316
      %v1318 = vrot.slane %v1225, %v1317
      %v1319 = vmul.f32 %v1269, %v1318
      %v1320 = vmul.f32 %v1270, %v1318
      %v1321 = vmul.f32 %v1271, %v1318
      %v1322 = vmul.f32 %v1272, %v1318
      %v1323 = vmul.f32 %v1273, %v1318
      %v1324 = vmul.f32 %v1274, %v1318
      %v1325 = vmul.f32 %v1275, %v1318
      %v1326 = vmul.f32 %v1314, %v1318
      %v1327 = vadd.f32 %v1240, %v1293
      %v1328 = vadd.f32 %v1241, %v1294
      %v1329 = vadd.f32 %v1242, %v1295
      %v1330 = vadd.f32 %v1243, %v1296
      %v1331 = vadd.f32 %v1244, %v1297
      %v1332 = vadd.f32 %v1245, %v1298
      %v1333 = vadd.f32 %v1246, %v1299
      %v1334 = vadd.f32 %v1247, %v1300
      %v1335 = vadd.f32 %v1260, %v1306
      %v1336 = vadd.f32 %v1261, %v1307
      %v1337 = vadd.f32 %v1262, %v1308
      %v1338 = vadd.f32 %v1263, %v1309
      %v1339 = vadd.f32 %v1264, %v1310
      %v1340 = vadd.f32 %v1265, %v1311
      %v1341 = vadd.f32 %v1266, %v1312
      %v1342 = vadd.f32 %v1267, %v1313
      %v1343 = vadd.f32 %v1280, %v1319
      %v1344 = vadd.f32 %v1281, %v1320
      %v1345 = vadd.f32 %v1282, %v1321
      %v1346 = vadd.f32 %v1283, %v1322
      %v1347 = vadd.f32 %v1284, %v1323
      %v1348 = vadd.f32 %v1285, %v1324
      %v1349 = vadd.f32 %v1286, %v1325
      %v1350 = vadd.f32 %v1287, %v1326
      %v1351 = vld [vmem:[#allocation3 + $0x10] sm:$0xff]
      %v1352 = vld [vmem:[#allocation3 + $0x18] sm:$0xff]
      %v1353 = vld [vmem:[#allocation3 + $0x20] sm:$0xff]
      %v1354 = vld [vmem:[#allocation3 + $0x28] sm:$0xff]
      %v1355 = vld [vmem:[#allocation3 + $0x30] sm:$0xff]
      %v1356 = vld [vmem:[#allocation3 + $0x38] sm:$0xff]
      %v1357 = vld [vmem:[#allocation3 + $0x40] sm:$0xff]
      %v1358 = vld [vmem:[#allocation3 + $0x48] sm:$0xff]
      %v1359 = vlaneseq
      %v1360 = vshrl.u32 %v1359, 7
      %v1361 = vsub.s32 6, %v1360
      %v1362 = vrot.slane %v1225, %v1361
      %v1363 = vmul.f32 %v1351, %v1362
      %v1364 = vmul.f32 %v1352, %v1362
      %v1365 = vmul.f32 %v1353, %v1362
      %v1366 = vmul.f32 %v1354, %v1362
      %v1367 = vmul.f32 %v1355, %v1362
      %v1368 = vmul.f32 %v1356, %v1362
      %v1369 = vmul.f32 %v1357, %v1362
      %v1370 = vmul.f32 %v1358, %v1362
      %v1371 = vld [vmem:[#allocation2 + $0x10] sm:$0xff]
      %v1372 = vld [vmem:[#allocation2 + $0x18] sm:$0xff]
      %v1373 = vld [vmem:[#allocation2 + $0x20] sm:$0xff]
      %v1374 = vld [vmem:[#allocation2 + $0x28] sm:$0xff]
      %v1375 = vld [vmem:[#allocation2 + $0x30] sm:$0xff]
      %v1376 = vld [vmem:[#allocation2 + $0x38] sm:$0xff]
      %v1377 = vld [vmem:[#allocation2 + $0x40] sm:$0xff]
      %v1378 = vld [vmem:[#allocation2 + $0x48] sm:$0xff]
      %v1379 = vlaneseq
      %v1380 = vshrl.u32 %v1379, 7
      %v1381 = vsub.s32 7, %v1380
      %v1382 = vrot.slane %v1225, %v1381
      %v1383 = vmul.f32 %v1371, %v1382
      %v1384 = vmul.f32 %v1372, %v1382
      %v1385 = vmul.f32 %v1373, %v1382
      %v1386 = vmul.f32 %v1374, %v1382
      %v1387 = vmul.f32 %v1375, %v1382
      %v1388 = vmul.f32 %v1376, %v1382
      %v1389 = vmul.f32 %v1377, %v1382
      %v1390 = vmul.f32 %v1378, %v1382
      %v1391 = vld [vmem:[#allocation4 + $0x10] sm:$0xff]
      %v1392 = vld [vmem:[#allocation4 + $0x18] sm:$0xff]
      %v1393 = vld [vmem:[#allocation4 + $0x20] sm:$0xff]
      %v1394 = vld [vmem:[#allocation4 + $0x28] sm:$0xff]
      %v1395 = vld [vmem:[#allocation4 + $0x30] sm:$0xff]
      %v1396 = vld [vmem:[#allocation4 + $0x38] sm:$0xff]
      %v1397 = vld [vmem:[#allocation4 + $0x40] sm:$0xff]
      %v1398 = vld [vmem:[#allocation4 + $0x48] sm:$0xff]
      %v1399 = vlaneseq
      %v1400 = vshrl.u32 %v1399, 7
      %v1401 = vsub.s32 0, %v1400
      %v1402 = vrot.slane %v1226, %v1401
      %v1403 = vmul.f32 %v1391, %v1402
      %v1404 = vmul.f32 %v1392, %v1402
      %v1405 = vmul.f32 %v1393, %v1402
      %v1406 = vmul.f32 %v1394, %v1402
      %v1407 = vmul.f32 %v1395, %v1402
      %v1408 = vmul.f32 %v1396, %v1402
      %v1409 = vmul.f32 %v1397, %v1402
      %v1410 = vmul.f32 %v1398, %v1402
      %v1411 = vadd.f32 %v1327, %v1363
      %v1412 = vadd.f32 %v1328, %v1364
      %v1413 = vadd.f32 %v1329, %v1365
      %v1414 = vadd.f32 %v1330, %v1366
      %v1415 = vadd.f32 %v1331, %v1367
      %v1416 = vadd.f32 %v1332, %v1368
      %v1417 = vadd.f32 %v1333, %v1369
      %v1418 = vadd.f32 %v1334, %v1370
      %v1419 = vadd.f32 %v1335, %v1383
      %v1420 = vadd.f32 %v1336, %v1384
      %v1421 = vadd.f32 %v1337, %v1385
      %v1422 = vadd.f32 %v1338, %v1386
      %v1423 = vadd.f32 %v1339, %v1387
      %v1424 = vadd.f32 %v1340, %v1388
      %v1425 = vadd.f32 %v1341, %v1389
      %v1426 = vadd.f32 %v1342, %v1390
      %v1427 = vadd.f32 %v1343, %v1403
      %v1428 = vadd.f32 %v1344, %v1404
      %v1429 = vadd.f32 %v1345, %v1405
      %v1430 = vadd.f32 %v1346, %v1406
      %v1431 = vadd.f32 %v1347, %v1407
      %v1432 = vadd.f32 %v1348, %v1408
      %v1433 = vadd.f32 %v1349, %v1409
      %v1434 = vadd.f32 %v1350, %v1410
      %v1435 = vmul.f32 %v1411, %v990
      %v1436 = vmul.f32 %v1412, %v995
      %v1437 = vmul.f32 %v1413, %v1000
      %v1438 = vmul.f32 %v1414, %v1005
      %v1439 = vmul.f32 %v1415, %v1010
      %v1440 = vmul.f32 %v1416, %v1015
      %v1441 = vmul.f32 %v1417, %v1020
      %v1442 = vmul.f32 %v1418, %v1025
      %v1443 = vadd.f32 %v1435, %v1419
      %v1444 = vadd.f32 %v1436, %v1420
      %v1445 = vadd.f32 %v1437, %v1421
      %v1446 = vadd.f32 %v1438, %v1422
      %v1447 = vadd.f32 %v1439, %v1423
      %v1448 = vadd.f32 %v1440, %v1424
      %v1449 = vadd.f32 %v1441, %v1425
      %v1450 = vadd.f32 %v1442, %v1426
      %v1451 = vmul.f32 %v1427, %v1046
      %v1452 = vmul.f32 %v1428, %v1051
      %v1453 = vmul.f32 %v1429, %v1056
      %v1454 = vmul.f32 %v1430, %v1061
      %v1455 = vmul.f32 %v1431, %v1066
      %v1456 = vmul.f32 %v1432, %v1071
      %v1457 = vmul.f32 %v1433, %v1076
      %v1458 = vmul.f32 %v1434, %v1081
      %v1459 = vadd.f32 %v1443, %v1451
      %v1460 = vadd.f32 %v1444, %v1452
      %v1461 = vadd.f32 %v1445, %v1453
      %v1462 = vadd.f32 %v1446, %v1454
      %v1463 = vadd.f32 %v1447, %v1455
      %v1464 = vadd.f32 %v1448, %v1456
      %v1465 = vadd.f32 %v1449, %v1457
      %v1466 = vadd.f32 %v1450, %v1458
      %v1468 = vlaneseq
      %v1469 = vshrl.u32 %v1468, 7
      %v1470 = vsub.s32 0, %v1469
      %v1471 = vrot.slane %v1227, %v1470
      %v1473 = vadd.f32 %v1459, %v1471
      %v1474 = vadd.f32 %v1460, %v1471
      %v1475 = vadd.f32 %v1461, %v1471
      %v1476 = vadd.f32 %v1462, %v1471
      %v1477 = vadd.f32 %v1463, %v1471
      %v1478 = vadd.f32 %v1464, %v1471
      %v1479 = vadd.f32 %v1465, %v1471
      %v1480 = vadd.f32 %v1466, %v1471
      %v1481 = vpack.c.bf16 %v1194, %v1193
      %v1482 = vpack.c.bf16 %v1196, %v1195
      %v1483 = vpack.c.bf16 %v1198, %v1197
      %v1484 = vpack.c.bf16 %v1200, %v1199
      %v1485 = vld [vmem:[%s9] sm:$0xf]
      %v1486 = vld [vmem:[%s9 + $0x4] sm:$0xf]
      %v1487 = vld [vmem:[%s9 + $0x8] sm:$0xf]
      %v1488 = vld [vmem:[%s9 + $0xc] sm:$0xf]
      %v1489 = vld [vmem:[%s9 + $0x10] sm:$0xf]
      %v1490 = vld [vmem:[%s9 + $0x14] sm:$0xf]
      %v1491 = vld [vmem:[%s9 + $0x18] sm:$0xf]
      %v1492 = vld [vmem:[%s9 + $0x1c] sm:$0xf]
      %v1493 = vld [vmem:[%s9 + $0x20] sm:$0xf]
      %v1494 = vld [vmem:[%s9 + $0x24] sm:$0xf]
      %v1495 = vld [vmem:[%s9 + $0x28] sm:$0xf]
      %v1496 = vld [vmem:[%s9 + $0x2c] sm:$0xf]
      %v1497 = vld [vmem:[%s9 + $0x30] sm:$0xf]
      %v1498 = vld [vmem:[%s9 + $0x34] sm:$0xf]
      %v1499 = vld [vmem:[%s9 + $0x38] sm:$0xf]
      %v1500 = vld [vmem:[%s9 + $0x3c] sm:$0xf]
      %v1501 = vld [vmem:[%s10] sm:$0x1]
      %v1503 = vlaneseq
      %v1504 = vshrl.u32 %v1503, 7
      %v1505 = vsub.s32 0, %v1504
      %v1506 = vrot.slane %v1501, %v1505
      %v1524 = vunpack.c.l.b16 %v1485
      %v1525 = vunpack.c.l.b16 %v1486
      %v1526 = vunpack.c.l.b16 %v1487
      %v1527 = vunpack.c.l.b16 %v1488
      %v1528 = vunpack.c.l.b16 %v1489
      %v1529 = vunpack.c.l.b16 %v1490
      %v1530 = vunpack.c.l.b16 %v1491
      %v1531 = vunpack.c.l.b16 %v1492
      %v1532 = vunpack.c.l.b16 %v1493
      %v1533 = vunpack.c.l.b16 %v1494
      %v1534 = vunpack.c.l.b16 %v1495
      %v1535 = vunpack.c.l.b16 %v1496
      %v1536 = vunpack.c.l.b16 %v1497
      %v1537 = vunpack.c.l.b16 %v1498
      %v1538 = vunpack.c.l.b16 %v1499
      %v1539 = vunpack.c.l.b16 %v1500
      %v1540 = vpack.c.b16 %v1525, %v1524
      %v1541 = vpack.c.b16 %v1527, %v1526
      %v1542 = vpack.c.b16 %v1529, %v1528
      %v1543 = vpack.c.b16 %v1531, %v1530
      %v1544 = vpack.c.b16 %v1533, %v1532
      %v1545 = vpack.c.b16 %v1535, %v1534
      %v1546 = vpack.c.b16 %v1537, %v1536
      %v1547 = vpack.c.b16 %v1539, %v1538
      %1556 = vmatprep.subr.bf16.mxu0 0
      %1557 = vmatpush1.bf16.msra.mxu0 %v1547
      %1558 = vmatprep.subr.bf16.mxu0 0
      %1559 = vmatpush1.bf16.msra.mxu0 %v1546
      %1560 = vmatprep.subr.bf16.mxu0 0
      %1561 = vmatpush1.bf16.msra.mxu0 %v1545
      %1562 = vmatprep.subr.bf16.mxu0 0
      %1563 = vmatpush1.bf16.msra.mxu0 %v1544
      %1564 = vmatprep.subr.bf16.mxu0 0
      %1565 = vmatpush1.bf16.msra.mxu0 %v1543
      %1566 = vmatprep.subr.bf16.mxu0 0
      %1567 = vmatpush1.bf16.msra.mxu0 %v1542
      %1568 = vmatprep.subr.bf16.mxu0 0
      %1569 = vmatpush1.bf16.msra.mxu0 %v1541
      %1570 = vmatprep.subr.bf16.mxu0 0
      %1571 = vmatpush1.bf16.msra.mxu0 %v1540
      %1572 = vmatprep.subr.bf16.mxu0 0
      %1573 = vmatpush2.bf16.msra.mxu0 0
      %1574 = vmatprep.subr.bf16.mxu0 0
      %1575 = vmatpush2.bf16.msra.mxu0 0
      %1576 = vmatprep.subr.bf16.mxu0 0
      %1577 = vmatpush2.bf16.msra.mxu0 0
      %1578 = vmatprep.subr.bf16.mxu0 0
      %1579 = vmatpush2.bf16.msra.mxu0 0
      %1580 = vmatprep.subr.bf16.mxu0 0
      %1581 = vmatpush2.bf16.msra.mxu0 0
      %1582 = vmatprep.subr.bf16.mxu0 0
      %1583 = vmatpush2.bf16.msra.mxu0 0
      %1584 = vmatprep.subr.bf16.mxu0 0
      %1585 = vmatpush2.bf16.msra.mxu0 0
      %1586 = vmatprep.subr.bf16.mxu0 0
      %1587 = vmatpush2.bf16.msra.mxu0 0
      %1588 = vmatprep.mubr.bf16.mxu0 0
      %1589 = vmatmul.mubr.bf16.gmra.mxu0 %v1481
      %v1590 = vpop.f32.mrf.mxu0
      %v1591 = vadd.f32 %v1506, %v1590
      %v1592 = vpop.f32.mrf.mxu0
      %v1593 = vpop.f32.mrf.mxu0
      %v1594 = vadd.f32 %v1506, %v1593
      %v1595 = vpop.f32.mrf.mxu0
      %1596 = vmatprep.mubr.bf16.mxu0 0
      %1597 = vmatmul.mubr.bf16.gmra.mxu0 %v1482
      %v1598 = vpop.f32.mrf.mxu0
      %v1599 = vadd.f32 %v1506, %v1598
      %v1600 = vpop.f32.mrf.mxu0
      %v1601 = vpop.f32.mrf.mxu0
      %v1602 = vadd.f32 %v1506, %v1601
      %v1603 = vpop.f32.mrf.mxu0
      %1604 = vmatprep.mubr.bf16.mxu0 0
      %1605 = vmatmul.mubr.bf16.gmra.mxu0 %v1483
      %v1606 = vpop.f32.mrf.mxu0
      %v1607 = vadd.f32 %v1506, %v1606
      %v1608 = vpop.f32.mrf.mxu0
      %v1609 = vpop.f32.mrf.mxu0
      %v1610 = vadd.f32 %v1506, %v1609
      %v1611 = vpop.f32.mrf.mxu0
      %1612 = vmatprep.mubr.bf16.mxu0 0
      %1613 = vmatmul.mubr.bf16.gmra.mxu0 %v1484
      %v1614 = vpop.f32.mrf.mxu0
      %v1615 = vadd.f32 %v1506, %v1614
      %v1616 = vpop.f32.mrf.mxu0
      %v1617 = vpop.f32.mrf.mxu0
      %v1618 = vadd.f32 %v1506, %v1617
      %v1619 = vpop.f32.mrf.mxu0
      %1620 = vdwg.mxu0
      %vm1621 = vcmp.gt.f32.partialorder %v1591, 0.0
      %vm1622 = vcmp.gt.f32.partialorder %v1594, 0.0
      %vm1623 = vcmp.gt.f32.partialorder %v1599, 0.0
      %vm1624 = vcmp.gt.f32.partialorder %v1602, 0.0
      %vm1625 = vcmp.gt.f32.partialorder %v1607, 0.0
      %vm1626 = vcmp.gt.f32.partialorder %v1610, 0.0
      %vm1627 = vcmp.gt.f32.partialorder %v1615, 0.0
      %vm1628 = vcmp.gt.f32.partialorder %v1618, 0.0
      %v1629 = vadd.f32 %v1591, 1.0
      %v1630 = vadd.f32 %v1594, 1.0
      %v1631 = vadd.f32 %v1599, 1.0
      %v1632 = vadd.f32 %v1602, 1.0
      %v1633 = vadd.f32 %v1607, 1.0
      %v1634 = vadd.f32 %v1610, 1.0
      %v1635 = vadd.f32 %v1615, 1.0
      %v1636 = vadd.f32 %v1618, 1.0
      %v1637 = vmin.f32 %v1591, 0.0
      %v1638 = vmin.f32 %v1594, 0.0
      %v1639 = vmin.f32 %v1599, 0.0
      %v1640 = vmin.f32 %v1602, 0.0
      %v1641 = vmin.f32 %v1607, 0.0
      %v1642 = vmin.f32 %v1610, 0.0
      %v1643 = vmin.f32 %v1615, 0.0
      %v1644 = vmin.f32 %v1618, 0.0
      %v1645 = vmul.f32 %v1637, 1.442695
      %v1646 = vpow.pop %v1645
      %v1647 = vmul.f32 %v1638, 1.442695
      %v1648 = vpow.pop %v1647
      %v1649 = vmul.f32 %v1639, 1.442695
      %v1650 = vpow.pop %v1649
      %v1651 = vmul.f32 %v1640, 1.442695
      %v1652 = vpow.pop %v1651
      %v1653 = vmul.f32 %v1641, 1.442695
      %v1654 = vpow.pop %v1653
      %v1655 = vmul.f32 %v1642, 1.442695
      %v1656 = vpow.pop %v1655
      %v1657 = vmul.f32 %v1643, 1.442695
      %v1658 = vpow.pop %v1657
      %v1659 = vmul.f32 %v1644, 1.442695
      %v1660 = vpow.pop %v1659
      %v1661 = vsel %vm1621, %v1629, %v1646
      %v1662 = vsel %vm1622, %v1630, %v1648
      %v1663 = vsel %vm1623, %v1631, %v1650
      %v1664 = vsel %vm1624, %v1632, %v1652
      %v1665 = vsel %vm1625, %v1633, %v1654
      %v1666 = vsel %vm1626, %v1634, %v1656
      %v1667 = vsel %vm1627, %v1635, %v1658
      %v1668 = vsel %vm1628, %v1636, %v1660
      %v1669 = vld [vmem:[%s11] sm:$0xf]
      %v1670 = vld [vmem:[%s11 + $0x4] sm:$0xf]
      %v1671 = vld [vmem:[%s11 + $0x8] sm:$0xf]
      %v1672 = vld [vmem:[%s11 + $0xc] sm:$0xf]
      %v1673 = vld [vmem:[%s11 + $0x10] sm:$0xf]
      %v1674 = vld [vmem:[%s11 + $0x14] sm:$0xf]
      %v1675 = vld [vmem:[%s11 + $0x18] sm:$0xf]
      %v1676 = vld [vmem:[%s11 + $0x1c] sm:$0xf]
      %v1677 = vld [vmem:[%s11 + $0x20] sm:$0xf]
      %v1678 = vld [vmem:[%s11 + $0x24] sm:$0xf]
      %v1679 = vld [vmem:[%s11 + $0x28] sm:$0xf]
      %v1680 = vld [vmem:[%s11 + $0x2c] sm:$0xf]
      %v1681 = vld [vmem:[%s11 + $0x30] sm:$0xf]
      %v1682 = vld [vmem:[%s11 + $0x34] sm:$0xf]
      %v1683 = vld [vmem:[%s11 + $0x38] sm:$0xf]
      %v1684 = vld [vmem:[%s11 + $0x3c] sm:$0xf]
      %v1685 = vld [vmem:[%s12] sm:$0x1]
      %v1687 = vlaneseq
      %v1688 = vshrl.u32 %v1687, 7
      %v1689 = vsub.s32 0, %v1688
      %v1690 = vrot.slane %v1685, %v1689
      %v1708 = vunpack.c.l.b16 %v1669
      %v1709 = vunpack.c.l.b16 %v1670
      %v1710 = vunpack.c.l.b16 %v1671
      %v1711 = vunpack.c.l.b16 %v1672
      %v1712 = vunpack.c.l.b16 %v1673
      %v1713 = vunpack.c.l.b16 %v1674
      %v1714 = vunpack.c.l.b16 %v1675
      %v1715 = vunpack.c.l.b16 %v1676
      %v1716 = vunpack.c.l.b16 %v1677
      %v1717 = vunpack.c.l.b16 %v1678
      %v1718 = vunpack.c.l.b16 %v1679
      %v1719 = vunpack.c.l.b16 %v1680
      %v1720 = vunpack.c.l.b16 %v1681
      %v1721 = vunpack.c.l.b16 %v1682
      %v1722 = vunpack.c.l.b16 %v1683
      %v1723 = vunpack.c.l.b16 %v1684
      %v1724 = vpack.c.b16 %v1709, %v1708
      %v1725 = vpack.c.b16 %v1711, %v1710
      %v1726 = vpack.c.b16 %v1713, %v1712
      %v1727 = vpack.c.b16 %v1715, %v1714
      %v1728 = vpack.c.b16 %v1717, %v1716
      %v1729 = vpack.c.b16 %v1719, %v1718
      %v1730 = vpack.c.b16 %v1721, %v1720
      %v1731 = vpack.c.b16 %v1723, %v1722
      %1740 = vmatprep.subr.bf16.mxu0 0
      %1741 = vmatpush1.bf16.msra.mxu0 %v1731
      %1742 = vmatprep.subr.bf16.mxu0 0
      %1743 = vmatpush1.bf16.msra.mxu0 %v1730
      %1744 = vmatprep.subr.bf16.mxu0 0
      %1745 = vmatpush1.bf16.msra.mxu0 %v1729
      %1746 = vmatprep.subr.bf16.mxu0 0
      %1747 = vmatpush1.bf16.msra.mxu0 %v1728
      %1748 = vmatprep.subr.bf16.mxu0 0
      %1749 = vmatpush1.bf16.msra.mxu0 %v1727
      %1750 = vmatprep.subr.bf16.mxu0 0
      %1751 = vmatpush1.bf16.msra.mxu0 %v1726
      %1752 = vmatprep.subr.bf16.mxu0 0
      %1753 = vmatpush1.bf16.msra.mxu0 %v1725
      %1754 = vmatprep.subr.bf16.mxu0 0
      %1755 = vmatpush1.bf16.msra.mxu0 %v1724
      %1756 = vmatprep.subr.bf16.mxu0 0
      %1757 = vmatpush2.bf16.msra.mxu0 0
      %1758 = vmatprep.subr.bf16.mxu0 0
      %1759 = vmatpush2.bf16.msra.mxu0 0
      %1760 = vmatprep.subr.bf16.mxu0 0
      %1761 = vmatpush2.bf16.msra.mxu0 0
      %1762 = vmatprep.subr.bf16.mxu0 0
      %1763 = vmatpush2.bf16.msra.mxu0 0
      %1764 = vmatprep.subr.bf16.mxu0 0
      %1765 = vmatpush2.bf16.msra.mxu0 0
      %1766 = vmatprep.subr.bf16.mxu0 0
      %1767 = vmatpush2.bf16.msra.mxu0 0
      %1768 = vmatprep.subr.bf16.mxu0 0
      %1769 = vmatpush2.bf16.msra.mxu0 0
      %1770 = vmatprep.subr.bf16.mxu0 0
      %1771 = vmatpush2.bf16.msra.mxu0 0
      %1772 = vmatprep.mubr.bf16.mxu0 0
      %1773 = vmatmul.mubr.bf16.gmra.mxu0 %v1481
      %v1774 = vpop.f32.mrf.mxu0
      %v1775 = vadd.f32 %v1690, %v1774
      %v1776 = vpop.f32.mrf.mxu0
      %v1777 = vpop.f32.mrf.mxu0
      %v1778 = vadd.f32 %v1690, %v1777
      %v1779 = vpop.f32.mrf.mxu0
      %1780 = vmatprep.mubr.bf16.mxu0 0
      %1781 = vmatmul.mubr.bf16.gmra.mxu0 %v1482
      %v1782 = vpop.f32.mrf.mxu0
      %v1783 = vadd.f32 %v1690, %v1782
      %v1784 = vpop.f32.mrf.mxu0
      %v1785 = vpop.f32.mrf.mxu0
      %v1786 = vadd.f32 %v1690, %v1785
      %v1787 = vpop.f32.mrf.mxu0
      %1788 = vmatprep.mubr.bf16.mxu0 0
      %1789 = vmatmul.mubr.bf16.gmra.mxu0 %v1483
      %v1790 = vpop.f32.mrf.mxu0
      %v1791 = vadd.f32 %v1690, %v1790
      %v1792 = vpop.f32.mrf.mxu0
      %v1793 = vpop.f32.mrf.mxu0
      %v1794 = vadd.f32 %v1690, %v1793
      %v1795 = vpop.f32.mrf.mxu0
      %1796 = vmatprep.mubr.bf16.mxu0 0
      %1797 = vmatmul.mubr.bf16.gmra.mxu0 %v1484
      %v1798 = vpop.f32.mrf.mxu0
      %v1799 = vadd.f32 %v1690, %v1798
      %v1800 = vpop.f32.mrf.mxu0
      %v1801 = vpop.f32.mrf.mxu0
      %v1802 = vadd.f32 %v1690, %v1801
      %v1803 = vpop.f32.mrf.mxu0
      %1804 = vdwg.mxu0
      %vm1805 = vcmp.gt.f32.partialorder %v1775, 0.0
      %vm1806 = vcmp.gt.f32.partialorder %v1778, 0.0
      %vm1807 = vcmp.gt.f32.partialorder %v1783, 0.0
      %vm1808 = vcmp.gt.f32.partialorder %v1786, 0.0
      %vm1809 = vcmp.gt.f32.partialorder %v1791, 0.0
      %vm1810 = vcmp.gt.f32.partialorder %v1794, 0.0
      %vm1811 = vcmp.gt.f32.partialorder %v1799, 0.0
      %vm1812 = vcmp.gt.f32.partialorder %v1802, 0.0
      %v1813 = vadd.f32 %v1775, 1.0
      %v1814 = vadd.f32 %v1778, 1.0
      %v1815 = vadd.f32 %v1783, 1.0
      %v1816 = vadd.f32 %v1786, 1.0
      %v1817 = vadd.f32 %v1791, 1.0
      %v1818 = vadd.f32 %v1794, 1.0
      %v1819 = vadd.f32 %v1799, 1.0
      %v1820 = vadd.f32 %v1802, 1.0
      %v1821 = vmin.f32 %v1775, 0.0
      %v1822 = vmin.f32 %v1778, 0.0
      %v1823 = vmin.f32 %v1783, 0.0
      %v1824 = vmin.f32 %v1786, 0.0
      %v1825 = vmin.f32 %v1791, 0.0
      %v1826 = vmin.f32 %v1794, 0.0
      %v1827 = vmin.f32 %v1799, 0.0
      %v1828 = vmin.f32 %v1802, 0.0
      %v1829 = vmul.f32 %v1821, 1.442695
      %v1830 = vpow.pop %v1829
      %v1831 = vmul.f32 %v1822, 1.442695
      %v1832 = vpow.pop %v1831
      %v1833 = vmul.f32 %v1823, 1.442695
      %v1834 = vpow.pop %v1833
      %v1835 = vmul.f32 %v1824, 1.442695
      %v1836 = vpow.pop %v1835
      %v1837 = vmul.f32 %v1825, 1.442695
      %v1838 = vpow.pop %v1837
      %v1839 = vmul.f32 %v1826, 1.442695
      %v1840 = vpow.pop %v1839
      %v1841 = vmul.f32 %v1827, 1.442695
      %v1842 = vpow.pop %v1841
      %v1843 = vmul.f32 %v1828, 1.442695
      %v1844 = vpow.pop %v1843
      %v1845 = vsel %vm1805, %v1813, %v1830
      %v1846 = vsel %vm1806, %v1814, %v1832
      %v1847 = vsel %vm1807, %v1815, %v1834
      %v1848 = vsel %vm1808, %v1816, %v1836
      %v1849 = vsel %vm1809, %v1817, %v1838
      %v1850 = vsel %vm1810, %v1818, %v1840
      %v1851 = vsel %vm1811, %v1819, %v1842
      %v1852 = vsel %vm1812, %v1820, %v1844
      %v1853 = vld [vmem:[%s13] sm:$0xff]
      %v1854 = vld [vmem:[%s13 + $0x8] sm:$0xff]
      %v1855 = vld [vmem:[%s13 + $0x10] sm:$0xff]
      %v1856 = vld [vmem:[%s13 + $0x18] sm:$0xff]
      %v1857 = vld [vmem:[%s13 + $0x20] sm:$0xff]
      %v1858 = vld [vmem:[%s13 + $0x28] sm:$0xff]
      %v1859 = vld [vmem:[%s13 + $0x30] sm:$0xff]
      %v1860 = vld [vmem:[%s13 + $0x38] sm:$0xff]
      %v1861 = vld [vmem:[%s14] sm:$0xff]
      %v1862 = vld [vmem:[%s14 + $0x8] sm:$0xff]
      %v1863 = vld [vmem:[%s14 + $0x10] sm:$0xff]
      %v1864 = vld [vmem:[%s14 + $0x18] sm:$0xff]
      %v1865 = vld [vmem:[%s14 + $0x20] sm:$0xff]
      %v1866 = vld [vmem:[%s14 + $0x28] sm:$0xff]
      %v1867 = vld [vmem:[%s14 + $0x30] sm:$0xff]
      %v1868 = vld [vmem:[%s14 + $0x38] sm:$0xff]
      %v1869 = vlaneseq
      %v1870 = vand.u32 %v1869, 127
      %vm1871 = vcmp.lt.s32.totalorder %v1870, 0
      %v1872 = vsub.s32 0, %v1870
      %v1873 = vsel %vm1871, %v1872, %v1870
      %v1874 = vshrl.u32 %v1873, 1
      %v1875 = vand.u32 %v1873, 1
      %v1876 = vsub.s32 0, %v1875
      %v1877 = vsel %vm1871, %v1876, %v1875
      %vm1878 = vcmp.ne.s32.totalorder %v1877, 0
      %vm1879 = vcmp.lt.s32.totalorder %v1877, 0
      %vm1880 = vmand %vm1879, %vm1878
      %v1881 = vadd.s32 %v1877, 2
      %v1882 = vsel %vm1880, %v1881, %v1877
      %vm1883 = vcmp.eq.s32.totalorder %v1882, 0
      %1884 = vrot.lane.b32.xlu0 %v1661, 127
      %v1885 = vpop.permute.xlu0 %1884
      %1886 = vrot.lane.b32.xlu0 %v1662, 127
      %v1887 = vpop.permute.xlu0 %1886
      %1888 = vrot.lane.b32.xlu0 %v1663, 127
      %v1889 = vpop.permute.xlu0 %1888
      %1890 = vrot.lane.b32.xlu0 %v1664, 127
      %v1891 = vpop.permute.xlu0 %1890
      %1892 = vrot.lane.b32.xlu0 %v1665, 127
      %v1893 = vpop.permute.xlu0 %1892
      %1894 = vrot.lane.b32.xlu0 %v1666, 127
      %v1895 = vpop.permute.xlu0 %1894
      %1896 = vrot.lane.b32.xlu0 %v1667, 127
      %v1897 = vpop.permute.xlu0 %1896
      %1898 = vrot.lane.b32.xlu0 %v1668, 127
      %v1899 = vpop.permute.xlu0 %1898
      %1900 = vrot.lane.b32.xlu0 %v1661, 1
      %v1901 = vpop.permute.xlu0 %1900
      %1902 = vrot.lane.b32.xlu0 %v1662, 1
      %v1903 = vpop.permute.xlu0 %1902
      %1904 = vrot.lane.b32.xlu0 %v1663, 1
      %v1905 = vpop.permute.xlu0 %1904
      %1906 = vrot.lane.b32.xlu0 %v1664, 1
      %v1907 = vpop.permute.xlu0 %1906
      %1908 = vrot.lane.b32.xlu0 %v1665, 1
      %v1909 = vpop.permute.xlu0 %1908
      %1910 = vrot.lane.b32.xlu0 %v1666, 1
      %v1911 = vpop.permute.xlu0 %1910
      %1912 = vrot.lane.b32.xlu0 %v1667, 1
      %v1913 = vpop.permute.xlu0 %1912
      %1914 = vrot.lane.b32.xlu0 %v1668, 1
      %v1915 = vpop.permute.xlu0 %1914
      %v1916 = vmul.f32 %v1661, %v1853
      %v1917 = vmul.f32 %v1662, %v1854
      %v1918 = vmul.f32 %v1663, %v1855
      %v1919 = vmul.f32 %v1664, %v1856
      %v1920 = vmul.f32 %v1665, %v1857
      %v1921 = vmul.f32 %v1666, %v1858
      %v1922 = vmul.f32 %v1667, %v1859
      %v1923 = vmul.f32 %v1668, %v1860
      %v1924 = vsel %vm1883, %v1885, %v1901
      %v1925 = vsel %vm1883, %v1887, %v1903
      %v1926 = vsel %vm1883, %v1889, %v1905
      %v1927 = vsel %vm1883, %v1891, %v1907
      %v1928 = vsel %vm1883, %v1893, %v1909
      %v1929 = vsel %vm1883, %v1895, %v1911
      %v1930 = vsel %vm1883, %v1897, %v1913
      %v1931 = vsel %vm1883, %v1899, %v1915
      %v1932 = vmul.f32 %v1924, %v1861
      %v1933 = vmul.f32 %v1925, %v1862
      %v1934 = vmul.f32 %v1926, %v1863
      %v1935 = vmul.f32 %v1927, %v1864
      %v1936 = vmul.f32 %v1928, %v1865
      %v1937 = vmul.f32 %v1929, %v1866
      %v1938 = vmul.f32 %v1930, %v1867
      %v1939 = vmul.f32 %v1931, %v1868
      %v1940 = vadd.f32 %v1916, %v1932
      %v1941 = vadd.f32 %v1917, %v1933
      %v1942 = vadd.f32 %v1918, %v1934
      %v1943 = vadd.f32 %v1919, %v1935
      %v1944 = vadd.f32 %v1920, %v1936
      %v1945 = vadd.f32 %v1921, %v1937
      %v1946 = vadd.f32 %v1922, %v1938
      %v1947 = vadd.f32 %v1923, %v1939
      %1948 = vrot.lane.b32.xlu0 %v1845, 127
      %v1949 = vpop.permute.xlu0 %1948
      %1950 = vrot.lane.b32.xlu0 %v1846, 127
      %v1951 = vpop.permute.xlu0 %1950
      %1952 = vrot.lane.b32.xlu0 %v1847, 127
      %v1953 = vpop.permute.xlu0 %1952
      %1954 = vrot.lane.b32.xlu0 %v1848, 127
      %v1955 = vpop.permute.xlu0 %1954
      %1956 = vrot.lane.b32.xlu0 %v1849, 127
      %v1957 = vpop.permute.xlu0 %1956
      %1958 = vrot.lane.b32.xlu0 %v1850, 127
      %v1959 = vpop.permute.xlu0 %1958
      %1960 = vrot.lane.b32.xlu0 %v1851, 127
      %v1961 = vpop.permute.xlu0 %1960
      %1962 = vrot.lane.b32.xlu0 %v1852, 127
      %v1963 = vpop.permute.xlu0 %1962
      %1964 = vrot.lane.b32.xlu0 %v1845, 1
      %v1965 = vpop.permute.xlu0 %1964
      %1966 = vrot.lane.b32.xlu0 %v1846, 1
      %v1967 = vpop.permute.xlu0 %1966
      %1968 = vrot.lane.b32.xlu0 %v1847, 1
      %v1969 = vpop.permute.xlu0 %1968
      %1970 = vrot.lane.b32.xlu0 %v1848, 1
      %v1971 = vpop.permute.xlu0 %1970
      %1972 = vrot.lane.b32.xlu0 %v1849, 1
      %v1973 = vpop.permute.xlu0 %1972
      %1974 = vrot.lane.b32.xlu0 %v1850, 1
      %v1975 = vpop.permute.xlu0 %1974
      %1976 = vrot.lane.b32.xlu0 %v1851, 1
      %v1977 = vpop.permute.xlu0 %1976
      %1978 = vrot.lane.b32.xlu0 %v1852, 1
      %v1979 = vpop.permute.xlu0 %1978
      %v1980 = vmul.f32 %v1845, %v1853
      %v1981 = vmul.f32 %v1846, %v1854
      %v1982 = vmul.f32 %v1847, %v1855
      %v1983 = vmul.f32 %v1848, %v1856
      %v1984 = vmul.f32 %v1849, %v1857
      %v1985 = vmul.f32 %v1850, %v1858
      %v1986 = vmul.f32 %v1851, %v1859
      %v1987 = vmul.f32 %v1852, %v1860
      %v1988 = vsel %vm1883, %v1949, %v1965
      %v1989 = vsel %vm1883, %v1951, %v1967
      %v1990 = vsel %vm1883, %v1953, %v1969
      %v1991 = vsel %vm1883, %v1955, %v1971
      %v1992 = vsel %vm1883, %v1957, %v1973
      %v1993 = vsel %vm1883, %v1959, %v1975
      %v1994 = vsel %vm1883, %v1961, %v1977
      %v1995 = vsel %vm1883, %v1963, %v1979
      %v1996 = vmul.f32 %v1988, %v1861
      %v1997 = vmul.f32 %v1989, %v1862
      %v1998 = vmul.f32 %v1990, %v1863
      %v1999 = vmul.f32 %v1991, %v1864
      %v2000 = vmul.f32 %v1992, %v1865
      %v2001 = vmul.f32 %v1993, %v1866
      %v2002 = vmul.f32 %v1994, %v1867
      %v2003 = vmul.f32 %v1995, %v1868
      %v2004 = vadd.f32 %v1980, %v1996
      %v2005 = vadd.f32 %v1981, %v1997
      %v2006 = vadd.f32 %v1982, %v1998
      %v2007 = vadd.f32 %v1983, %v1999
      %v2008 = vadd.f32 %v1984, %v2000
      %v2009 = vadd.f32 %v1985, %v2001
      %v2010 = vadd.f32 %v1986, %v2002
      %v2011 = vadd.f32 %v1987, %v2003
      %v2012 = vadd.f32 %v1845, %v1846
      %v2013 = vadd.f32 %v2012, %v1847
      %v2014 = vadd.f32 %v2013, %v1848
      %v2015 = vadd.f32 %v2014, %v1849
      %v2016 = vadd.f32 %v2015, %v1850
      %v2017 = vadd.f32 %v2016, %v1851
      %v2018 = vadd.f32 %v2017, %v1852
      %v2019 = vrot.slane %v2018, 4
      %v2020 = vadd.f32 %v2018, %v2019
      %v2021 = vrot.slane %v2020, 2
      %v2022 = vadd.f32 %v2020, %v2021
      %v2023 = vrot.slane %v2022, 1
      %v2024 = vadd.f32 %v2022, %v2023
      %v2025 = vrcp.pop 64.0
      %v2026 = vmul.f32 %v2024, %v2025
      %v2027 = vmul.f32 %v1661, %v2026
      %v2028 = vmul.f32 %v1662, %v2026
      %v2029 = vmul.f32 %v1663, %v2026
      %v2030 = vmul.f32 %v1664, %v2026
      %v2031 = vmul.f32 %v1665, %v2026
      %v2032 = vmul.f32 %v1666, %v2026
      %v2033 = vmul.f32 %v1667, %v2026
      %v2034 = vmul.f32 %v1668, %v2026
      %v2035 = vld [vmem:[%s15] sm:$0xff]
      %v2036 = vld [vmem:[%s15 + $0x8] sm:$0xff]
      %v2037 = vld [vmem:[%s15 + $0x10] sm:$0xff]
      %v2038 = vld [vmem:[%s15 + $0x18] sm:$0xff]
      %v2039 = vld [vmem:[%s15 + $0x20] sm:$0xff]
      %v2040 = vld [vmem:[%s15 + $0x28] sm:$0xff]
      %v2041 = vld [vmem:[%s15 + $0x30] sm:$0xff]
      %v2042 = vld [vmem:[%s15 + $0x38] sm:$0xff]
      %v2043 = vld [vmem:[%s15 + $0x40] sm:$0xff]
      %v2044 = vld [vmem:[%s15 + $0x48] sm:$0xff]
      %v2045 = vld [vmem:[%s15 + $0x50] sm:$0xff]
      %v2046 = vld [vmem:[%s15 + $0x58] sm:$0xff]
      %v2047 = vld [vmem:[%s15 + $0x60] sm:$0xff]
      %v2048 = vld [vmem:[%s15 + $0x68] sm:$0xff]
      %v2049 = vld [vmem:[%s15 + $0x70] sm:$0xff]
      %v2050 = vld [vmem:[%s15 + $0x78] sm:$0xff]
      %2051 = vmatprep.subr.mxu0 0.0
      %2052 = vmatpush1.msra.mxu0 %v2050
      %2053 = vmatprep.subr.mxu0 0.0
      %2054 = vmatpush1.msra.mxu0 %v2049
      %2055 = vmatprep.subr.mxu0 0.0
      %2056 = vmatpush1.msra.mxu0 %v2048
      %2057 = vmatprep.subr.mxu0 0.0
      %2058 = vmatpush1.msra.mxu0 %v2047
      %2059 = vmatprep.subr.mxu0 0.0
      %2060 = vmatpush1.msra.mxu0 %v2046
      %2061 = vmatprep.subr.mxu0 0.0
      %2062 = vmatpush1.msra.mxu0 %v2045
      %2063 = vmatprep.subr.mxu0 0.0
      %2064 = vmatpush1.msra.mxu0 %v2044
      %2065 = vmatprep.subr.mxu0 0.0
      %2066 = vmatpush1.msra.mxu0 %v2043
      %2067 = vmatprep.subr.mxu0 0.0
      %2068 = vmatpush1.msra.mxu0 %v2042
      %2069 = vmatprep.subr.mxu0 0.0
      %2070 = vmatpush1.msra.mxu0 %v2041
      %2071 = vmatprep.subr.mxu0 0.0
      %2072 = vmatpush1.msra.mxu0 %v2040
      %2073 = vmatprep.subr.mxu0 0.0
      %2074 = vmatpush1.msra.mxu0 %v2039
      %2075 = vmatprep.subr.mxu0 0.0
      %2076 = vmatpush1.msra.mxu0 %v2038
      %2077 = vmatprep.subr.mxu0 0.0
      %2078 = vmatpush1.msra.mxu0 %v2037
      %2079 = vmatprep.subr.mxu0 0.0
      %2080 = vmatpush1.msra.mxu0 %v2036
      %2081 = vmatprep.subr.mxu0 0.0
      %2082 = vmatpush1.msra.mxu0 %v2035
      %2083 = vmatprep.subr.mxu0 0.0
      %2084 = vmatpush2.msra.mxu0 0.0
      %2085 = vmatprep.subr.mxu0 0.0
      %2086 = vmatpush2.msra.mxu0 0.0
      %2087 = vmatprep.subr.mxu0 0.0
      %2088 = vmatpush2.msra.mxu0 0.0
      %2089 = vmatprep.subr.mxu0 0.0
      %2090 = vmatpush2.msra.mxu0 0.0
      %2091 = vmatprep.subr.mxu0 0.0
      %2092 = vmatpush2.msra.mxu0 0.0
      %2093 = vmatprep.subr.mxu0 0.0
      %2094 = vmatpush2.msra.mxu0 0.0
      %2095 = vmatprep.subr.mxu0 0.0
      %2096 = vmatpush2.msra.mxu0 0.0
      %2097 = vmatprep.subr.mxu0 0.0
      %2098 = vmatpush2.msra.mxu0 0.0
      %2099 = vmatprep.subr.mxu0 0.0
      %2100 = vmatpush2.msra.mxu0 0.0
      %2101 = vmatprep.subr.mxu0 0.0
      %2102 = vmatpush2.msra.mxu0 0.0
      %2103 = vmatprep.subr.mxu0 0.0
      %2104 = vmatpush2.msra.mxu0 0.0
      %2105 = vmatprep.subr.mxu0 0.0
      %2106 = vmatpush2.msra.mxu0 0.0
      %2107 = vmatprep.subr.mxu0 0.0
      %2108 = vmatpush2.msra.mxu0 0.0
      %2109 = vmatprep.subr.mxu0 0.0
      %2110 = vmatpush2.msra.mxu0 0.0
      %2111 = vmatprep.subr.mxu0 0.0
      %2112 = vmatpush2.msra.mxu0 0.0
      %2113 = vmatprep.subr.mxu0 0.0
      %2114 = vmatpush2.msra.mxu0 0.0
      %2115 = vmatprep.mubr.f32.mxu0 0.0
      %2116 = vmatmul.mubr.f32.gmra.mxu0 %v2027
      %v2117 = vpop.f32.mrf.mxu0
      %v2118 = vadd.f32 1e-06, %v2117
      %v2119 = vpop.f32.mrf.mxu0
      %2120 = vmatprep.mubr.f32.mxu0 0.0
      %2121 = vmatmul.mubr.f32.gmra.mxu0 %v2028
      %v2122 = vpop.f32.mrf.mxu0
      %v2123 = vadd.f32 1e-06, %v2122
      %v2124 = vpop.f32.mrf.mxu0
      %2125 = vmatprep.mubr.f32.mxu0 0.0
      %2126 = vmatmul.mubr.f32.gmra.mxu0 %v2029
      %v2127 = vpop.f32.mrf.mxu0
      %v2128 = vadd.f32 1e-06, %v2127
      %v2129 = vpop.f32.mrf.mxu0
      %2130 = vmatprep.mubr.f32.mxu0 0.0
      %2131 = vmatmul.mubr.f32.gmra.mxu0 %v2030
      %v2132 = vpop.f32.mrf.mxu0
      %v2133 = vadd.f32 1e-06, %v2132
      %v2134 = vpop.f32.mrf.mxu0
      %2135 = vmatprep.mubr.f32.mxu0 0.0
      %2136 = vmatmul.mubr.f32.gmra.mxu0 %v2031
      %v2137 = vpop.f32.mrf.mxu0
      %v2138 = vadd.f32 1e-06, %v2137
      %v2139 = vpop.f32.mrf.mxu0
      %2140 = vmatprep.mubr.f32.mxu0 0.0
      %2141 = vmatmul.mubr.f32.gmra.mxu0 %v2032
      %v2142 = vpop.f32.mrf.mxu0
      %v2143 = vadd.f32 1e-06, %v2142
      %v2144 = vpop.f32.mrf.mxu0
      %2145 = vmatprep.mubr.f32.mxu0 0.0
      %2146 = vmatmul.mubr.f32.gmra.mxu0 %v2033
      %v2147 = vpop.f32.mrf.mxu0
      %v2148 = vadd.f32 1e-06, %v2147
      %v2149 = vpop.f32.mrf.mxu0
      %2150 = vmatprep.mubr.f32.mxu0 0.0
      %2151 = vmatmul.mubr.f32.gmra.mxu0 %v2034
      %v2152 = vpop.f32.mrf.mxu0
      %v2153 = vadd.f32 1e-06, %v2152
      %v2154 = vpop.f32.mrf.mxu0
      %2155 = vdwg.mxu0
      %v2156 = vrcp.pop %v2118
      %v2157 = vrcp.pop %v2123
      %v2158 = vrcp.pop %v2128
      %v2159 = vrcp.pop %v2133
      %v2160 = vrcp.pop %v2138
      %v2161 = vrcp.pop %v2143
      %v2162 = vrcp.pop %v2148
      %v2163 = vrcp.pop %v2153
      %v2164 = vpack.c.bf16 %v2005, %v2004
      %v2165 = vpack.c.bf16 %v2007, %v2006
      %v2166 = vpack.c.bf16 %v2009, %v2008
      %v2167 = vpack.c.bf16 %v2011, %v2010
      %2168 = vxpose.xlu0.c.b16.start [1/8] %v2164, 128
      %2169 = vxpose.xlu0.c.b16.cont [2/8] %v2165, 128
      %2170 = vxpose.xlu0.c.b16.cont [3/8] %v2166, 128
      %2171 = vxpose.xlu0.c.b16.cont [4/8] %v2167, 128
      %2172 = vxpose.xlu0.c.b16.cont [5/8] 0, 128
      %2173 = vxpose.xlu0.c.b16.cont [6/8] 0, 128
      %2174 = vxpose.xlu0.c.b16.cont [7/8] 0, 128
      %2175 = vxpose.xlu0.c.b16.end [8/8] 0, 128
      %v2176 = vpop.trf.xlu0
      %v2177 = vpop.trf.xlu0
      %v2178 = vpop.trf.xlu0
      %v2179 = vpop.trf.xlu0
      %v2180 = vpop.trf.xlu0
      %v2181 = vpop.trf.xlu0
      %v2182 = vpop.trf.xlu0
      %v2183 = vpop.trf.xlu0
      %vm2184 = vcmask 523264
      %v2186 = vsel %vm2184, %v2176, 0
      %v2189 = vsel %vm2184, %v2177, 0
      %2191 = vmatprep.subr.bf16.mxu0 0
      %2192 = vmatpush1.bf16.msra.mxu0 0
      %2193 = vmatprep.subr.bf16.mxu0 0
      %2194 = vmatpush1.bf16.msra.mxu0 0
      %2195 = vmatprep.subr.bf16.mxu0 0
      %2196 = vmatpush1.bf16.msra.mxu0 0
      %2197 = vmatprep.subr.bf16.mxu0 0
      %2198 = vmatpush1.bf16.msra.mxu0 0
      %2199 = vmatprep.subr.bf16.mxu0 0
      %2200 = vmatpush1.bf16.msra.mxu0 %v1484
      %2201 = vmatprep.subr.bf16.mxu0 0
      %2202 = vmatpush1.bf16.msra.mxu0 %v1483
      %2203 = vmatprep.subr.bf16.mxu0 0
      %2204 = vmatpush1.bf16.msra.mxu0 %v1482
      %2205 = vmatprep.subr.bf16.mxu0 0
      %2206 = vmatpush1.bf16.msra.mxu0 %v1481
      %2207 = vmatprep.subr.bf16.mxu0 0
      %2208 = vmatpush2.bf16.msra.mxu0 0
      %2209 = vmatprep.subr.bf16.mxu0 0
      %2210 = vmatpush2.bf16.msra.mxu0 0
      %2211 = vmatprep.subr.bf16.mxu0 0
      %2212 = vmatpush2.bf16.msra.mxu0 0
      %2213 = vmatprep.subr.bf16.mxu0 0
      %2214 = vmatpush2.bf16.msra.mxu0 0
      %2215 = vmatprep.subr.bf16.mxu0 0
      %2216 = vmatpush2.bf16.msra.mxu0 0
      %2217 = vmatprep.subr.bf16.mxu0 0
      %2218 = vmatpush2.bf16.msra.mxu0 0
      %2219 = vmatprep.subr.bf16.mxu0 0
      %2220 = vmatpush2.bf16.msra.mxu0 0
      %2221 = vmatprep.subr.bf16.mxu0 0
      %2222 = vmatpush2.bf16.msra.mxu0 0
      %2223 = vmatprep.mubr.bf16.mxu0 0
      %2224 = vmatmul.mubr.bf16.gmra.mxu0 %v2186
      %v2225 = vpop.f32.mrf.mxu0
      %v2226 = vadd.f32 0.0, %v2225
      %v2227 = vpop.f32.mrf.mxu0
      %v2228 = vpop.f32.mrf.mxu0
      %v2229 = vadd.f32 0.0, %v2228
      %v2230 = vpop.f32.mrf.mxu0
      %2231 = vmatprep.mubr.bf16.mxu0 0
      %2232 = vmatmul.mubr.bf16.gmra.mxu0 %v2189
      %v2233 = vpop.f32.mrf.mxu0
      %v2234 = vadd.f32 0.0, %v2233
      %v2235 = vpop.f32.mrf.mxu0
      %v2236 = vpop.f32.mrf.mxu0
      %v2237 = vadd.f32 0.0, %v2236
      %v2238 = vpop.f32.mrf.mxu0
      %2239 = vdwg.mxu0
      %v2240 = vmul.f32 %v2226, 0.015625
      %v2241 = vmul.f32 %v2229, 0.015625
      %v2242 = vmul.f32 %v2234, 0.015625
      %v2243 = vmul.f32 %v2237, 0.015625
      %vm2244 = vcmask 261120
      %2245 = vst.msk [vmem:[#allocation5] sm:$0xff] %vm2244, %v2240
      %2246 = vst.msk [vmem:[#allocation5 + $0x8] sm:$0xff] %vm2244, %v2241
      %2247 = vst.msk [vmem:[#allocation5 + $0x10] sm:$0xff] %vm2244, %v2242
      %2248 = vst.msk [vmem:[#allocation5 + $0x18] sm:$0xff] %vm2244, %v2243
      %2253 = vrot.lane.b32.xlu0 %v2164, 96
      %v2254 = vpop.permute.xlu0 %2253
      %2255 = vrot.lane.b32.xlu0 %v2165, 96
      %v2256 = vpop.permute.xlu0 %2255
      %2257 = vrot.lane.b32.xlu0 %v2166, 96
      %v2258 = vpop.permute.xlu0 %2257
      %2259 = vrot.lane.b32.xlu0 %v2167, 96
      %v2260 = vpop.permute.xlu0 %2259
      %2265 = vxpose.xlu0.c.b16.start [1/8] %v2254, 128
      %2266 = vxpose.xlu0.c.b16.cont [2/8] %v2256, 128
      %2267 = vxpose.xlu0.c.b16.cont [3/8] %v2258, 128
      %2268 = vxpose.xlu0.c.b16.cont [4/8] %v2260, 128
      %2269 = vxpose.xlu0.c.b16.cont [5/8] 0, 128
      %2270 = vxpose.xlu0.c.b16.cont [6/8] 0, 128
      %2271 = vxpose.xlu0.c.b16.cont [7/8] 0, 128
      %2272 = vxpose.xlu0.c.b16.end [8/8] 0, 128
      %v2273 = vpop.trf.xlu0
      %v2274 = vpop.trf.xlu0
      %v2275 = vpop.trf.xlu0
      %v2276 = vpop.trf.xlu0
      %v2277 = vpop.trf.xlu0
      %v2278 = vpop.trf.xlu0
      %v2279 = vpop.trf.xlu0
      %v2280 = vpop.trf.xlu0
      %2285 = vrot.lane.b32.xlu0 %v1481, 96
      %v2286 = vpop.permute.xlu0 %2285
      %2287 = vrot.lane.b32.xlu0 %v1482, 96
      %v2288 = vpop.permute.xlu0 %2287
      %2289 = vrot.lane.b32.xlu0 %v1483, 96
      %v2290 = vpop.permute.xlu0 %2289
      %2291 = vrot.lane.b32.xlu0 %v1484, 96
      %v2292 = vpop.permute.xlu0 %2291
      %v2298 = vsel %vm2184, %v2273, 0
      %v2301 = vsel %vm2184, %v2274, 0
      %2303 = vmatprep.subr.bf16.mxu0 0
      %2304 = vmatpush1.bf16.msra.mxu0 0
      %2305 = vmatprep.subr.bf16.mxu0 0
      %2306 = vmatpush1.bf16.msra.mxu0 0
      %2307 = vmatprep.subr.bf16.mxu0 0
      %2308 = vmatpush1.bf16.msra.mxu0 0
      %2309 = vmatprep.subr.bf16.mxu0 0
      %2310 = vmatpush1.bf16.msra.mxu0 0
      %2311 = vmatprep.subr.bf16.mxu0 0
      %2312 = vmatpush1.bf16.msra.mxu0 %v2292
      %2313 = vmatprep.subr.bf16.mxu0 0
      %2314 = vmatpush1.bf16.msra.mxu0 %v2290
      %2315 = vmatprep.subr.bf16.mxu0 0
      %2316 = vmatpush1.bf16.msra.mxu0 %v2288
      %2317 = vmatprep.subr.bf16.mxu0 0
      %2318 = vmatpush1.bf16.msra.mxu0 %v2286
      %2319 = vmatprep.subr.bf16.mxu0 0
      %2320 = vmatpush2.bf16.msra.mxu0 0
      %2321 = vmatprep.subr.bf16.mxu0 0
      %2322 = vmatpush2.bf16.msra.mxu0 0
      %2323 = vmatprep.subr.bf16.mxu0 0
      %2324 = vmatpush2.bf16.msra.mxu0 0
      %2325 = vmatprep.subr.bf16.mxu0 0
      %2326 = vmatpush2.bf16.msra.mxu0 0
      %2327 = vmatprep.subr.bf16.mxu0 0
      %2328 = vmatpush2.bf16.msra.mxu0 0
      %2329 = vmatprep.subr.bf16.mxu0 0
      %2330 = vmatpush2.bf16.msra.mxu0 0
      %2331 = vmatprep.subr.bf16.mxu0 0
      %2332 = vmatpush2.bf16.msra.mxu0 0
      %2333 = vmatprep.subr.bf16.mxu0 0
      %2334 = vmatpush2.bf16.msra.mxu0 0
      %2335 = vmatprep.mubr.bf16.mxu0 0
      %2336 = vmatmul.mubr.bf16.gmra.mxu0 %v2298
      %v2337 = vpop.f32.mrf.mxu0
      %v2338 = vadd.f32 0.0, %v2337
      %v2339 = vpop.f32.mrf.mxu0
      %v2340 = vpop.f32.mrf.mxu0
      %v2341 = vadd.f32 0.0, %v2340
      %v2342 = vpop.f32.mrf.mxu0
      %2343 = vmatprep.mubr.bf16.mxu0 0
      %2344 = vmatmul.mubr.bf16.gmra.mxu0 %v2301
      %v2345 = vpop.f32.mrf.mxu0
      %v2346 = vadd.f32 0.0, %v2345
      %v2347 = vpop.f32.mrf.mxu0
      %v2348 = vpop.f32.mrf.mxu0
      %v2349 = vadd.f32 0.0, %v2348
      %v2350 = vpop.f32.mrf.mxu0
      %2351 = vdwg.mxu0
      %v2352 = vmul.f32 %v2338, 0.015625
      %v2353 = vmul.f32 %v2341, 0.015625
      %v2354 = vmul.f32 %v2346, 0.015625
      %v2355 = vmul.f32 %v2349, 0.015625
      %2360 = vrot.lane.b32.xlu0 %v2352, 32
      %v2361 = vpop.permute.xlu0 %2360
      %2362 = vrot.lane.b32.xlu0 %v2353, 32
      %v2363 = vpop.permute.xlu0 %2362
      %2364 = vrot.lane.b32.xlu0 %v2354, 32
      %v2365 = vpop.permute.xlu0 %2364
      %2366 = vrot.lane.b32.xlu0 %v2355, 32
      %v2367 = vpop.permute.xlu0 %2366
      %vm2372 = vcmask 523520
      %2373 = vst.msk [vmem:[#allocation5 + $0x20] sm:$0xff] %vm2372, %v2361
      %2374 = vst.msk [vmem:[#allocation5 + $0x28] sm:$0xff] %vm2372, %v2363
      %2375 = vst.msk [vmem:[#allocation5 + $0x30] sm:$0xff] %vm2372, %v2365
      %2376 = vst.msk [vmem:[#allocation5 + $0x38] sm:$0xff] %vm2372, %v2367
      %2377 = vrot.lane.b32.xlu0 %v2164, 64
      %v2378 = vpop.permute.xlu0 %2377
      %2379 = vrot.lane.b32.xlu0 %v2165, 64
      %v2380 = vpop.permute.xlu0 %2379
      %2381 = vrot.lane.b32.xlu0 %v2166, 64
      %v2382 = vpop.permute.xlu0 %2381
      %2383 = vrot.lane.b32.xlu0 %v2167, 64
      %v2384 = vpop.permute.xlu0 %2383
      %2389 = vxpose.xlu0.c.b16.start [1/8] %v2378, 128
      %2390 = vxpose.xlu0.c.b16.cont [2/8] %v2380, 128
      %2391 = vxpose.xlu0.c.b16.cont [3/8] %v2382, 128
      %2392 = vxpose.xlu0.c.b16.cont [4/8] %v2384, 128
      %2393 = vxpose.xlu0.c.b16.cont [5/8] 0, 128
      %2394 = vxpose.xlu0.c.b16.cont [6/8] 0, 128
      %2395 = vxpose.xlu0.c.b16.cont [7/8] 0, 128
      %2396 = vxpose.xlu0.c.b16.end [8/8] 0, 128
      %v2397 = vpop.trf.xlu0
      %v2398 = vpop.trf.xlu0
      %v2399 = vpop.trf.xlu0
      %v2400 = vpop.trf.xlu0
      %v2401 = vpop.trf.xlu0
      %v2402 = vpop.trf.xlu0
      %v2403 = vpop.trf.xlu0
      %v2404 = vpop.trf.xlu0
      %2405 = vrot.lane.b32.xlu0 %v1481, 64
      %v2406 = vpop.permute.xlu0 %2405
      %2407 = vrot.lane.b32.xlu0 %v1482, 64
      %v2408 = vpop.permute.xlu0 %2407
      %2409 = vrot.lane.b32.xlu0 %v1483, 64
      %v2410 = vpop.permute.xlu0 %2409
      %2411 = vrot.lane.b32.xlu0 %v1484, 64
      %v2412 = vpop.permute.xlu0 %2411
      %v2418 = vsel %vm2184, %v2397, 0
      %v2421 = vsel %vm2184, %v2398, 0
      %2423 = vmatprep.subr.bf16.mxu0 0
      %2424 = vmatpush1.bf16.msra.mxu0 0
      %2425 = vmatprep.subr.bf16.mxu0 0
      %2426 = vmatpush1.bf16.msra.mxu0 0
      %2427 = vmatprep.subr.bf16.mxu0 0
      %2428 = vmatpush1.bf16.msra.mxu0 0
      %2429 = vmatprep.subr.bf16.mxu0 0
      %2430 = vmatpush1.bf16.msra.mxu0 0
      %2431 = vmatprep.subr.bf16.mxu0 0
      %2432 = vmatpush1.bf16.msra.mxu0 %v2412
      %2433 = vmatprep.subr.bf16.mxu0 0
      %2434 = vmatpush1.bf16.msra.mxu0 %v2410
      %2435 = vmatprep.subr.bf16.mxu0 0
      %2436 = vmatpush1.bf16.msra.mxu0 %v2408
      %2437 = vmatprep.subr.bf16.mxu0 0
      %2438 = vmatpush1.bf16.msra.mxu0 %v2406
      %2439 = vmatprep.subr.bf16.mxu0 0
      %2440 = vmatpush2.bf16.msra.mxu0 0
      %2441 = vmatprep.subr.bf16.mxu0 0
      %2442 = vmatpush2.bf16.msra.mxu0 0
      %2443 = vmatprep.subr.bf16.mxu0 0
      %2444 = vmatpush2.bf16.msra.mxu0 0
      %2445 = vmatprep.subr.bf16.mxu0 0
      %2446 = vmatpush2.bf16.msra.mxu0 0
      %2447 = vmatprep.subr.bf16.mxu0 0
      %2448 = vmatpush2.bf16.msra.mxu0 0
      %2449 = vmatprep.subr.bf16.mxu0 0
      %2450 = vmatpush2.bf16.msra.mxu0 0
      %2451 = vmatprep.subr.bf16.mxu0 0
      %2452 = vmatpush2.bf16.msra.mxu0 0
      %2453 = vmatprep.subr.bf16.mxu0 0
      %2454 = vmatpush2.bf16.msra.mxu0 0
      %2455 = vmatprep.mubr.bf16.mxu0 0
      %2456 = vmatmul.mubr.bf16.gmra.mxu0 %v2418
      %v2457 = vpop.f32.mrf.mxu0
      %v2458 = vadd.f32 0.0, %v2457
      %v2459 = vpop.f32.mrf.mxu0
      %v2460 = vpop.f32.mrf.mxu0
      %v2461 = vadd.f32 0.0, %v2460
      %v2462 = vpop.f32.mrf.mxu0
      %2463 = vmatprep.mubr.bf16.mxu0 0
      %2464 = vmatmul.mubr.bf16.gmra.mxu0 %v2421
      %v2465 = vpop.f32.mrf.mxu0
      %v2466 = vadd.f32 0.0, %v2465
      %v2467 = vpop.f32.mrf.mxu0
      %v2468 = vpop.f32.mrf.mxu0
      %v2469 = vadd.f32 0.0, %v2468
      %v2470 = vpop.f32.mrf.mxu0
      %2471 = vdwg.mxu0
      %v2472 = vmul.f32 %v2458, 0.015625
      %v2473 = vmul.f32 %v2461, 0.015625
      %v2474 = vmul.f32 %v2466, 0.015625
      %v2475 = vmul.f32 %v2469, 0.015625
      %2480 = vrot.lane.b32.xlu0 %v2472, 64
      %v2481 = vpop.permute.xlu0 %2480
      %2482 = vrot.lane.b32.xlu0 %v2473, 64
      %v2483 = vpop.permute.xlu0 %2482
      %2484 = vrot.lane.b32.xlu0 %v2474, 64
      %v2485 = vpop.permute.xlu0 %2484
      %2486 = vrot.lane.b32.xlu0 %v2475, 64
      %v2487 = vpop.permute.xlu0 %2486
      %vm2492 = vcmask 785920
      %2493 = vst.msk [vmem:[#allocation5 + $0x40] sm:$0xff] %vm2492, %v2481
      %2494 = vst.msk [vmem:[#allocation5 + $0x48] sm:$0xff] %vm2492, %v2483
      %2495 = vst.msk [vmem:[#allocation5 + $0x50] sm:$0xff] %vm2492, %v2485
      %2496 = vst.msk [vmem:[#allocation5 + $0x58] sm:$0xff] %vm2492, %v2487
      %2497 = vrot.lane.b32.xlu0 %v2164, 32
      %v2498 = vpop.permute.xlu0 %2497
      %2499 = vrot.lane.b32.xlu0 %v2165, 32
      %v2500 = vpop.permute.xlu0 %2499
      %2501 = vrot.lane.b32.xlu0 %v2166, 32
      %v2502 = vpop.permute.xlu0 %2501
      %2503 = vrot.lane.b32.xlu0 %v2167, 32
      %v2504 = vpop.permute.xlu0 %2503
      %2509 = vxpose.xlu0.c.b16.start [1/8] %v2498, 128
      %2510 = vxpose.xlu0.c.b16.cont [2/8] %v2500, 128
      %2511 = vxpose.xlu0.c.b16.cont [3/8] %v2502, 128
      %2512 = vxpose.xlu0.c.b16.cont [4/8] %v2504, 128
      %2513 = vxpose.xlu0.c.b16.cont [5/8] 0, 128
      %2514 = vxpose.xlu0.c.b16.cont [6/8] 0, 128
      %2515 = vxpose.xlu0.c.b16.cont [7/8] 0, 128
      %2516 = vxpose.xlu0.c.b16.end [8/8] 0, 128
      %v2517 = vpop.trf.xlu0
      %v2518 = vpop.trf.xlu0
      %v2519 = vpop.trf.xlu0
      %v2520 = vpop.trf.xlu0
      %v2521 = vpop.trf.xlu0
      %v2522 = vpop.trf.xlu0
      %v2523 = vpop.trf.xlu0
      %v2524 = vpop.trf.xlu0
      %2525 = vrot.lane.b32.xlu0 %v1481, 32
      %v2526 = vpop.permute.xlu0 %2525
      %2527 = vrot.lane.b32.xlu0 %v1482, 32
      %v2528 = vpop.permute.xlu0 %2527
      %2529 = vrot.lane.b32.xlu0 %v1483, 32
      %v2530 = vpop.permute.xlu0 %2529
      %2531 = vrot.lane.b32.xlu0 %v1484, 32
      %v2532 = vpop.permute.xlu0 %2531
      %v2538 = vsel %vm2184, %v2517, 0
      %v2541 = vsel %vm2184, %v2518, 0
      %2543 = vmatprep.subr.bf16.mxu0 0
      %2544 = vmatpush1.bf16.msra.mxu0 0
      %2545 = vmatprep.subr.bf16.mxu0 0
      %2546 = vmatpush1.bf16.msra.mxu0 0
      %2547 = vmatprep.subr.bf16.mxu0 0
      %2548 = vmatpush1.bf16.msra.mxu0 0
      %2549 = vmatprep.subr.bf16.mxu0 0
      %2550 = vmatpush1.bf16.msra.mxu0 0
      %2551 = vmatprep.subr.bf16.mxu0 0
      %2552 = vmatpush1.bf16.msra.mxu0 %v2532
      %2553 = vmatprep.subr.bf16.mxu0 0
      %2554 = vmatpush1.bf16.msra.mxu0 %v2530
      %2555 = vmatprep.subr.bf16.mxu0 0
      %2556 = vmatpush1.bf16.msra.mxu0 %v2528
      %2557 = vmatprep.subr.bf16.mxu0 0
      %2558 = vmatpush1.bf16.msra.mxu0 %v2526
      %2559 = vmatprep.subr.bf16.mxu0 0
      %2560 = vmatpush2.bf16.msra.mxu0 0
      %2561 = vmatprep.subr.bf16.mxu0 0
      %2562 = vmatpush2.bf16.msra.mxu0 0
      %2563 = vmatprep.subr.bf16.mxu0 0
      %2564 = vmatpush2.bf16.msra.mxu0 0
      %2565 = vmatprep.subr.bf16.mxu0 0
      %2566 = vmatpush2.bf16.msra.mxu0 0
      %2567 = vmatprep.subr.bf16.mxu0 0
      %2568 = vmatpush2.bf16.msra.mxu0 0
      %2569 = vmatprep.subr.bf16.mxu0 0
      %2570 = vmatpush2.bf16.msra.mxu0 0
      %2571 = vmatprep.subr.bf16.mxu0 0
      %2572 = vmatpush2.bf16.msra.mxu0 0
      %2573 = vmatprep.subr.bf16.mxu0 0
      %2574 = vmatpush2.bf16.msra.mxu0 0
      %2575 = vmatprep.mubr.bf16.mxu0 0
      %2576 = vmatmul.mubr.bf16.gmra.mxu0 %v2538
      %v2577 = vpop.f32.mrf.mxu0
      %v2578 = vadd.f32 0.0, %v2577
      %v2579 = vpop.f32.mrf.mxu0
      %v2580 = vpop.f32.mrf.mxu0
      %v2581 = vadd.f32 0.0, %v2580
      %v2582 = vpop.f32.mrf.mxu0
      %2583 = vmatprep.mubr.bf16.mxu0 0
      %2584 = vmatmul.mubr.bf16.gmra.mxu0 %v2541
      %v2585 = vpop.f32.mrf.mxu0
      %v2586 = vadd.f32 0.0, %v2585
      %v2587 = vpop.f32.mrf.mxu0
      %v2588 = vpop.f32.mrf.mxu0
      %v2589 = vadd.f32 0.0, %v2588
      %v2590 = vpop.f32.mrf.mxu0
      %2591 = vdwg.mxu0
      %v2592 = vmul.f32 %v2578, 0.015625
      %v2593 = vmul.f32 %v2581, 0.015625
      %v2594 = vmul.f32 %v2586, 0.015625
      %v2595 = vmul.f32 %v2589, 0.015625
      %2600 = vrot.lane.b32.xlu0 %v2592, 96
      %v2601 = vpop.permute.xlu0 %2600
      %2602 = vrot.lane.b32.xlu0 %v2593, 96
      %v2603 = vpop.permute.xlu0 %2602
      %2604 = vrot.lane.b32.xlu0 %v2594, 96
      %v2605 = vpop.permute.xlu0 %2604
      %2606 = vrot.lane.b32.xlu0 %v2595, 96
      %v2607 = vpop.permute.xlu0 %2606
      %vm2612 = vcmask 1048320
      %2613 = vst.msk [vmem:[#allocation5 + $0x60] sm:$0xff] %vm2612, %v2601
      %2614 = vst.msk [vmem:[#allocation5 + $0x68] sm:$0xff] %vm2612, %v2603
      %2615 = vst.msk [vmem:[#allocation5 + $0x70] sm:$0xff] %vm2612, %v2605
      %2616 = vst.msk [vmem:[#allocation5 + $0x78] sm:$0xff] %vm2612, %v2607
      %v2617 = vpack.c.bf16 %v1941, %v1940
      %v2618 = vpack.c.bf16 %v1943, %v1942
      %v2619 = vpack.c.bf16 %v1945, %v1944
      %v2620 = vpack.c.bf16 %v1947, %v1946
      %v2621 = vld [vmem:[#allocation5] sm:$0xff]
      %v2622 = vld [vmem:[#allocation5 + $0x8] sm:$0xff]
      %v2623 = vld [vmem:[#allocation5 + $0x10] sm:$0xff]
      %v2624 = vld [vmem:[#allocation5 + $0x18] sm:$0xff]
      %v2625 = vld [vmem:[#allocation5 + $0x20] sm:$0xff]
      %v2626 = vld [vmem:[#allocation5 + $0x28] sm:$0xff]
      %v2627 = vld [vmem:[#allocation5 + $0x30] sm:$0xff]
      %v2628 = vld [vmem:[#allocation5 + $0x38] sm:$0xff]
      %v2629 = vld [vmem:[#allocation5 + $0x40] sm:$0xff]
      %v2630 = vld [vmem:[#allocation5 + $0x48] sm:$0xff]
      %v2631 = vld [vmem:[#allocation5 + $0x50] sm:$0xff]
      %v2632 = vld [vmem:[#allocation5 + $0x58] sm:$0xff]
      %v2633 = vld [vmem:[#allocation5 + $0x60] sm:$0xff]
      %v2634 = vld [vmem:[#allocation5 + $0x68] sm:$0xff]
      %v2635 = vld [vmem:[#allocation5 + $0x70] sm:$0xff]
      %v2636 = vld [vmem:[#allocation5 + $0x78] sm:$0xff]
      %v2637 = vpack.c.bf16 %v2622, %v2621
      %v2638 = vpack.c.bf16 %v2624, %v2623
      %v2639 = vpack.c.bf16 %v2626, %v2625
      %v2640 = vpack.c.bf16 %v2628, %v2627
      %v2641 = vpack.c.bf16 %v2630, %v2629
      %v2642 = vpack.c.bf16 %v2632, %v2631
      %v2643 = vpack.c.bf16 %v2634, %v2633
      %v2644 = vpack.c.bf16 %v2636, %v2635
      %2645 = vmatprep.subr.bf16.mxu0 0
      %2646 = vmatpush1.bf16.msra.mxu0 %v2644
      %2647 = vmatprep.subr.bf16.mxu0 0
      %2648 = vmatpush1.bf16.msra.mxu0 %v2643
      %2649 = vmatprep.subr.bf16.mxu0 0
      %2650 = vmatpush1.bf16.msra.mxu0 %v2642
      %2651 = vmatprep.subr.bf16.mxu0 0
      %2652 = vmatpush1.bf16.msra.mxu0 %v2641
      %2653 = vmatprep.subr.bf16.mxu0 0
      %2654 = vmatpush1.bf16.msra.mxu0 %v2640
      %2655 = vmatprep.subr.bf16.mxu0 0
      %2656 = vmatpush1.bf16.msra.mxu0 %v2639
      %2657 = vmatprep.subr.bf16.mxu0 0
      %2658 = vmatpush1.bf16.msra.mxu0 %v2638
      %2659 = vmatprep.subr.bf16.mxu0 0
      %2660 = vmatpush1.bf16.msra.mxu0 %v2637
      %2661 = vmatprep.subr.bf16.mxu0 0
      %2662 = vmatpush2.bf16.msra.mxu0 0
      %2663 = vmatprep.subr.bf16.mxu0 0
      %2664 = vmatpush2.bf16.msra.mxu0 0
      %2665 = vmatprep.subr.bf16.mxu0 0
      %2666 = vmatpush2.bf16.msra.mxu0 0
      %2667 = vmatprep.subr.bf16.mxu0 0
      %2668 = vmatpush2.bf16.msra.mxu0 0
      %2669 = vmatprep.subr.bf16.mxu0 0
      %2670 = vmatpush2.bf16.msra.mxu0 0
      %2671 = vmatprep.subr.bf16.mxu0 0
      %2672 = vmatpush2.bf16.msra.mxu0 0
      %2673 = vmatprep.subr.bf16.mxu0 0
      %2674 = vmatpush2.bf16.msra.mxu0 0
      %2675 = vmatprep.subr.bf16.mxu0 0
      %2676 = vmatpush2.bf16.msra.mxu0 0
      %2677 = vmatprep.mubr.bf16.mxu0 0
      %2678 = vmatmul.mubr.bf16.gmra.mxu0 %v2617
      %v2679 = vpop.f32.mrf.mxu0
      %v2680 = vadd.f32 0.0, %v2679
      %v2681 = vpop.f32.mrf.mxu0
      %v2682 = vpop.f32.mrf.mxu0
      %v2683 = vadd.f32 0.0, %v2682
      %v2684 = vpop.f32.mrf.mxu0
      %2685 = vmatprep.mubr.bf16.mxu0 0
      %2686 = vmatmul.mubr.bf16.gmra.mxu0 %v2618
      %v2687 = vpop.f32.mrf.mxu0
      %v2688 = vadd.f32 0.0, %v2687
      %v2689 = vpop.f32.mrf.mxu0
      %v2690 = vpop.f32.mrf.mxu0
      %v2691 = vadd.f32 0.0, %v2690
      %v2692 = vpop.f32.mrf.mxu0
      %2693 = vmatprep.mubr.bf16.mxu0 0
      %2694 = vmatmul.mubr.bf16.gmra.mxu0 %v2619
      %v2695 = vpop.f32.mrf.mxu0
      %v2696 = vadd.f32 0.0, %v2695
      %v2697 = vpop.f32.mrf.mxu0
      %v2698 = vpop.f32.mrf.mxu0
      %v2699 = vadd.f32 0.0, %v2698
      %v2700 = vpop.f32.mrf.mxu0
      %2701 = vmatprep.mubr.bf16.mxu0 0
      %2702 = vmatmul.mubr.bf16.gmra.mxu0 %v2620
      %v2703 = vpop.f32.mrf.mxu0
      %v2704 = vadd.f32 0.0, %v2703
      %v2705 = vpop.f32.mrf.mxu0
      %v2706 = vpop.f32.mrf.mxu0
      %v2707 = vadd.f32 0.0, %v2706
      %v2708 = vpop.f32.mrf.mxu0
      %2709 = vdwg.mxu0
      %v2710 = vmul.f32 %v2680, %v2156
      %v2711 = vmul.f32 %v2683, %v2157
      %v2712 = vmul.f32 %v2688, %v2158
      %v2713 = vmul.f32 %v2691, %v2159
      %v2714 = vmul.f32 %v2696, %v2160
      %v2715 = vmul.f32 %v2699, %v2161
      %v2716 = vmul.f32 %v2704, %v2162
      %v2717 = vmul.f32 %v2707, %v2163
      %v2718 = vadd.f32 %v2710, %v1473
      %v2719 = vadd.f32 %v2711, %v1474
      %v2720 = vadd.f32 %v2712, %v1475
      %v2721 = vadd.f32 %v2713, %v1476
      %v2722 = vadd.f32 %v2714, %v1477
      %v2723 = vadd.f32 %v2715, %v1478
      %v2724 = vadd.f32 %v2716, %v1479
      %v2725 = vadd.f32 %v2717, %v1480
      %v2726 = vld [vmem:[%s659] sm:$0xf]
      %v2727 = vld [vmem:[%s659 + $0x4] sm:$0xf]
      %v2728 = vld [vmem:[%s659 + $0x8] sm:$0xf]
      %v2729 = vld [vmem:[%s659 + $0xc] sm:$0xf]
      %v2730 = vld [vmem:[%s659 + $0x10] sm:$0xf]
      %v2731 = vld [vmem:[%s659 + $0x14] sm:$0xf]
      %v2732 = vld [vmem:[%s659 + $0x18] sm:$0xf]
      %v2733 = vld [vmem:[%s659 + $0x1c] sm:$0xf]
      %v2734 = vunpack.c.l.bf16 %v2726
      %v2735 = vunpack.c.l.bf16 %v2727
      %v2736 = vunpack.c.l.bf16 %v2728
      %v2737 = vunpack.c.l.bf16 %v2729
      %v2738 = vunpack.c.l.bf16 %v2730
      %v2739 = vunpack.c.l.bf16 %v2731
      %v2740 = vunpack.c.l.bf16 %v2732
      %v2741 = vunpack.c.l.bf16 %v2733
      %v2742 = vmul.f32 %v2718, %v2734
      %v2743 = vmul.f32 %v2719, %v2735
      %v2744 = vmul.f32 %v2720, %v2736
      %v2745 = vmul.f32 %v2721, %v2737
      %v2746 = vmul.f32 %v2722, %v2738
      %v2747 = vmul.f32 %v2723, %v2739
      %v2748 = vmul.f32 %v2724, %v2740
      %v2749 = vmul.f32 %v2725, %v2741
      %v2750 = vpack.c.bf16 %v2743, %v2742
      %v2751 = vpack.c.bf16 %v2745, %v2744
      %v2752 = vpack.c.bf16 %v2747, %v2746
      %v2753 = vpack.c.bf16 %v2749, %v2748
      %v2754 = vld [vmem:[%s664] sm:$0xf]
      %v2755 = vld [vmem:[%s664 + $0x4] sm:$0xf]
      %v2756 = vld [vmem:[%s664 + $0x8] sm:$0xf]
      %v2757 = vld [vmem:[%s664 + $0xc] sm:$0xf]
      %v2758 = vld [vmem:[%s664 + $0x10] sm:$0xf]
      %v2759 = vld [vmem:[%s664 + $0x14] sm:$0xf]
      %v2760 = vld [vmem:[%s664 + $0x18] sm:$0xf]
      %v2761 = vld [vmem:[%s664 + $0x1c] sm:$0xf]
      %v2762 = vunpack.c.l.bf16 %v2754
      %v2763 = vunpack.c.l.bf16 %v2755
      %v2764 = vunpack.c.l.bf16 %v2756
      %v2765 = vunpack.c.l.bf16 %v2757
      %v2766 = vunpack.c.l.bf16 %v2758
      %v2767 = vunpack.c.l.bf16 %v2759
      %v2768 = vunpack.c.l.bf16 %v2760
      %v2769 = vunpack.c.l.bf16 %v2761
      %v2770 = vld [vmem:[%s16] sm:$0xf]
      %v2771 = vld [vmem:[%s16 + $0x4] sm:$0xf]
      %v2772 = vld [vmem:[%s16 + $0x8] sm:$0xf]
      %v2773 = vld [vmem:[%s16 + $0xc] sm:$0xf]
      %v2774 = vld [vmem:[%s16 + $0x10] sm:$0xf]
      %v2775 = vld [vmem:[%s16 + $0x14] sm:$0xf]
      %v2776 = vld [vmem:[%s16 + $0x18] sm:$0xf]
      %v2777 = vld [vmem:[%s16 + $0x1c] sm:$0xf]
      %v2778 = vld [vmem:[%s16 + $0x20] sm:$0xf]
      %v2779 = vld [vmem:[%s16 + $0x24] sm:$0xf]
      %v2780 = vld [vmem:[%s16 + $0x28] sm:$0xf]
      %v2781 = vld [vmem:[%s16 + $0x2c] sm:$0xf]
      %v2782 = vld [vmem:[%s16 + $0x30] sm:$0xf]
      %v2783 = vld [vmem:[%s16 + $0x34] sm:$0xf]
      %v2784 = vld [vmem:[%s16 + $0x38] sm:$0xf]
      %v2785 = vld [vmem:[%s16 + $0x3c] sm:$0xf]
      %v2786 = vld [vmem:[%s17] sm:$0x1]
      %v2788 = vlaneseq
      %v2789 = vshrl.u32 %v2788, 7
      %v2790 = vsub.s32 0, %v2789
      %v2791 = vrot.slane %v2786, %v2790
      %v2809 = vunpack.c.l.b16 %v2770
      %v2810 = vunpack.c.l.b16 %v2771
      %v2811 = vunpack.c.l.b16 %v2772
      %v2812 = vunpack.c.l.b16 %v2773
      %v2813 = vunpack.c.l.b16 %v2774
      %v2814 = vunpack.c.l.b16 %v2775
      %v2815 = vunpack.c.l.b16 %v2776
      %v2816 = vunpack.c.l.b16 %v2777
      %v2817 = vunpack.c.l.b16 %v2778
      %v2818 = vunpack.c.l.b16 %v2779
      %v2819 = vunpack.c.l.b16 %v2780
      %v2820 = vunpack.c.l.b16 %v2781
      %v2821 = vunpack.c.l.b16 %v2782
      %v2822 = vunpack.c.l.b16 %v2783
      %v2823 = vunpack.c.l.b16 %v2784
      %v2824 = vunpack.c.l.b16 %v2785
      %v2825 = vpack.c.b16 %v2810, %v2809
      %v2826 = vpack.c.b16 %v2812, %v2811
      %v2827 = vpack.c.b16 %v2814, %v2813
      %v2828 = vpack.c.b16 %v2816, %v2815
      %v2829 = vpack.c.b16 %v2818, %v2817
      %v2830 = vpack.c.b16 %v2820, %v2819
      %v2831 = vpack.c.b16 %v2822, %v2821
      %v2832 = vpack.c.b16 %v2824, %v2823
      %2841 = vmatprep.subr.bf16.mxu0 0
      %2842 = vmatpush1.bf16.msra.mxu0 %v2832
      %2843 = vmatprep.subr.bf16.mxu0 0
      %2844 = vmatpush1.bf16.msra.mxu0 %v2831
      %2845 = vmatprep.subr.bf16.mxu0 0
      %2846 = vmatpush1.bf16.msra.mxu0 %v2830
      %2847 = vmatprep.subr.bf16.mxu0 0
      %2848 = vmatpush1.bf16.msra.mxu0 %v2829
      %2849 = vmatprep.subr.bf16.mxu0 0
      %2850 = vmatpush1.bf16.msra.mxu0 %v2828
      %2851 = vmatprep.subr.bf16.mxu0 0
      %2852 = vmatpush1.bf16.msra.mxu0 %v2827
      %2853 = vmatprep.subr.bf16.mxu0 0
      %2854 = vmatpush1.bf16.msra.mxu0 %v2826
      %2855 = vmatprep.subr.bf16.mxu0 0
      %2856 = vmatpush1.bf16.msra.mxu0 %v2825
      %2857 = vmatprep.subr.bf16.mxu0 0
      %2858 = vmatpush2.bf16.msra.mxu0 0
      %2859 = vmatprep.subr.bf16.mxu0 0
      %2860 = vmatpush2.bf16.msra.mxu0 0
      %2861 = vmatprep.subr.bf16.mxu0 0
      %2862 = vmatpush2.bf16.msra.mxu0 0
      %2863 = vmatprep.subr.bf16.mxu0 0
      %2864 = vmatpush2.bf16.msra.mxu0 0
      %2865 = vmatprep.subr.bf16.mxu0 0
      %2866 = vmatpush2.bf16.msra.mxu0 0
      %2867 = vmatprep.subr.bf16.mxu0 0
      %2868 = vmatpush2.bf16.msra.mxu0 0
      %2869 = vmatprep.subr.bf16.mxu0 0
      %2870 = vmatpush2.bf16.msra.mxu0 0
      %2871 = vmatprep.subr.bf16.mxu0 0
      %2872 = vmatpush2.bf16.msra.mxu0 0
      %2873 = vmatprep.mubr.bf16.mxu0 0
      %2874 = vmatmul.mubr.bf16.gmra.mxu0 %v2750
      %v2875 = vpop.f32.mrf.mxu0
      %v2876 = vadd.f32 %v2791, %v2875
      %v2877 = vpop.f32.mrf.mxu0
      %v2878 = vpop.f32.mrf.mxu0
      %v2879 = vadd.f32 %v2791, %v2878
      %v2880 = vpop.f32.mrf.mxu0
      %2881 = vmatprep.mubr.bf16.mxu0 0
      %2882 = vmatmul.mubr.bf16.gmra.mxu0 %v2751
      %v2883 = vpop.f32.mrf.mxu0
      %v2884 = vadd.f32 %v2791, %v2883
      %v2885 = vpop.f32.mrf.mxu0
      %v2886 = vpop.f32.mrf.mxu0
      %v2887 = vadd.f32 %v2791, %v2886
      %v2888 = vpop.f32.mrf.mxu0
      %2889 = vmatprep.mubr.bf16.mxu0 0
      %2890 = vmatmul.mubr.bf16.gmra.mxu0 %v2752
      %v2891 = vpop.f32.mrf.mxu0
      %v2892 = vadd.f32 %v2791, %v2891
      %v2893 = vpop.f32.mrf.mxu0
      %v2894 = vpop.f32.mrf.mxu0
      %v2895 = vadd.f32 %v2791, %v2894
      %v2896 = vpop.f32.mrf.mxu0
      %2897 = vmatprep.mubr.bf16.mxu0 0
      %2898 = vmatmul.mubr.bf16.gmra.mxu0 %v2753
      %v2899 = vpop.f32.mrf.mxu0
      %v2900 = vadd.f32 %v2791, %v2899
      %v2901 = vpop.f32.mrf.mxu0
      %v2902 = vpop.f32.mrf.mxu0
      %v2903 = vadd.f32 %v2791, %v2902
      %v2904 = vpop.f32.mrf.mxu0
      %2905 = vdwg.mxu0
      %v2906 = vadd.f32 %v2762, %v2876
      %v2907 = vadd.f32 %v2763, %v2879
      %v2908 = vadd.f32 %v2764, %v2884
      %v2909 = vadd.f32 %v2765, %v2887
      %v2910 = vadd.f32 %v2766, %v2892
      %v2911 = vadd.f32 %v2767, %v2895
      %v2912 = vadd.f32 %v2768, %v2900
      %v2913 = vadd.f32 %v2769, %v2903
      %2914 = vst [vmem:[#allocation2 + $0x8] sm:$0xff] %v2906
      %2915 = vst [vmem:[#allocation2 + $0x10] sm:$0xff] %v2907
      %2916 = vst [vmem:[#allocation2 + $0x18] sm:$0xff] %v2908
      %2917 = vst [vmem:[#allocation2 + $0x20] sm:$0xff] %v2909
      %2918 = vst [vmem:[#allocation2 + $0x28] sm:$0xff] %v2910
      %2919 = vst [vmem:[#allocation2 + $0x30] sm:$0xff] %v2911
      %2920 = vst [vmem:[#allocation2 + $0x38] sm:$0xff] %v2912
      %2921 = vst [vmem:[#allocation2 + $0x40] sm:$0xff] %v2913
      %2922 = vst [vmem:[#allocation3 + $0x9] sm:$0xff] %v2906
      %2923 = vst [vmem:[#allocation3 + $0x11] sm:$0xff] %v2907
      %2924 = vst [vmem:[#allocation3 + $0x19] sm:$0xff] %v2908
      %2925 = vst [vmem:[#allocation3 + $0x21] sm:$0xff] %v2909
      %2926 = vst [vmem:[#allocation3 + $0x29] sm:$0xff] %v2910
      %2927 = vst [vmem:[#allocation3 + $0x31] sm:$0xff] %v2911
      %2928 = vst [vmem:[#allocation3 + $0x39] sm:$0xff] %v2912
      %2929 = vst [vmem:[#allocation3 + $0x41] sm:$0xff] %v2913
      %2930 = vst [vmem:[#allocation4 + $0x7] sm:$0xff] %v2906
      %2931 = vst [vmem:[#allocation4 + $0xf] sm:$0xff] %v2907
      %2932 = vst [vmem:[#allocation4 + $0x17] sm:$0xff] %v2908
      %2933 = vst [vmem:[#allocation4 + $0x1f] sm:$0xff] %v2909
      %2934 = vst [vmem:[#allocation4 + $0x27] sm:$0xff] %v2910
      %2935 = vst [vmem:[#allocation4 + $0x2f] sm:$0xff] %v2911
      %2936 = vst [vmem:[#allocation4 + $0x37] sm:$0xff] %v2912
      %2937 = vst [vmem:[#allocation4 + $0x3f] sm:$0xff] %v2913
      %v2938 = vld [vmem:[%s18] sm:$0xff]
      %v2939 = vld [vmem:[%s18 + $0x8] sm:$0x1]
      %v2940 = vld [vmem:[%s19] sm:$0x1]
      %v2941 = vld [vmem:[#allocation3] sm:$0xff]
      %v2942 = vld [vmem:[#allocation3 + $0x8] sm:$0xff]
      %v2943 = vld [vmem:[#allocation3 + $0x10] sm:$0xff]
      %v2944 = vld [vmem:[#allocation3 + $0x18] sm:$0xff]
      %v2945 = vld [vmem:[#allocation3 + $0x20] sm:$0xff]
      %v2946 = vld [vmem:[#allocation3 + $0x28] sm:$0xff]
      %v2947 = vld [vmem:[#allocation3 + $0x30] sm:$0xff]
      %v2948 = vld [vmem:[#allocation3 + $0x38] sm:$0xff]
      %v2949 = vlaneseq
      %v2950 = vshrl.u32 %v2949, 7
      %v2951 = vsub.s32 0, %v2950
      %v2952 = vrot.slane %v2938, %v2951
      %v2953 = vmul.f32 %v2941, %v2952
      %v2954 = vmul.f32 %v2942, %v2952
      %v2955 = vmul.f32 %v2943, %v2952
      %v2956 = vmul.f32 %v2944, %v2952
      %v2957 = vmul.f32 %v2945, %v2952
      %v2958 = vmul.f32 %v2946, %v2952
      %v2959 = vmul.f32 %v2947, %v2952
      %v2960 = vmul.f32 %v2948, %v2952
      %v2961 = vld [vmem:[#allocation2] sm:$0xff]
      %v2962 = vld [vmem:[#allocation2 + $0x8] sm:$0xff]
      %v2963 = vld [vmem:[#allocation2 + $0x10] sm:$0xff]
      %v2964 = vld [vmem:[#allocation2 + $0x18] sm:$0xff]
      %v2965 = vld [vmem:[#allocation2 + $0x20] sm:$0xff]
      %v2966 = vld [vmem:[#allocation2 + $0x28] sm:$0xff]
      %v2967 = vld [vmem:[#allocation2 + $0x30] sm:$0xff]
      %v2968 = vld [vmem:[#allocation2 + $0x38] sm:$0xff]
      %v2969 = vlaneseq
      %v2970 = vshrl.u32 %v2969, 7
      %v2971 = vsub.s32 1, %v2970
      %v2972 = vrot.slane %v2938, %v2971
      %v2973 = vmul.f32 %v2961, %v2972
      %v2974 = vmul.f32 %v2962, %v2972
      %v2975 = vmul.f32 %v2963, %v2972
      %v2976 = vmul.f32 %v2964, %v2972
      %v2977 = vmul.f32 %v2965, %v2972
      %v2978 = vmul.f32 %v2966, %v2972
      %v2979 = vmul.f32 %v2967, %v2972
      %v2980 = vmul.f32 %v2968, %v2972
      %v2981 = vld [vmem:[#allocation4] sm:$0xff]
      %v2982 = vld [vmem:[#allocation4 + $0x8] sm:$0xff]
      %v2983 = vld [vmem:[#allocation4 + $0x10] sm:$0xff]
      %v2984 = vld [vmem:[#allocation4 + $0x18] sm:$0xff]
      %v2985 = vld [vmem:[#allocation4 + $0x20] sm:$0xff]
      %v2986 = vld [vmem:[#allocation4 + $0x28] sm:$0xff]
      %v2987 = vld [vmem:[#allocation4 + $0x30] sm:$0xff]
      %v2988 = vld [vmem:[#allocation4 + $0x38] sm:$0xff]
      %v2989 = vlaneseq
      %v2990 = vshrl.u32 %v2989, 7
      %v2991 = vsub.s32 2, %v2990
      %v2992 = vrot.slane %v2938, %v2991
      %v2993 = vmul.f32 %v2981, %v2992
      %v2994 = vmul.f32 %v2982, %v2992
      %v2995 = vmul.f32 %v2983, %v2992
      %v2996 = vmul.f32 %v2984, %v2992
      %v2997 = vmul.f32 %v2985, %v2992
      %v2998 = vmul.f32 %v2986, %v2992
      %v2999 = vmul.f32 %v2987, %v2992
      %v3000 = vmul.f32 %v2988, %v2992
      %v3001 = vld [vmem:[#allocation3 + $0x40] sm:$0xff]
      %v3002 = vlaneseq
      %v3003 = vshrl.u32 %v3002, 7
      %v3004 = vsub.s32 3, %v3003
      %v3005 = vrot.slane %v2938, %v3004
      %v3006 = vmul.f32 %v2942, %v3005
      %v3007 = vmul.f32 %v2943, %v3005
      %v3008 = vmul.f32 %v2944, %v3005
      %v3009 = vmul.f32 %v2945, %v3005
      %v3010 = vmul.f32 %v2946, %v3005
      %v3011 = vmul.f32 %v2947, %v3005
      %v3012 = vmul.f32 %v2948, %v3005
      %v3013 = vmul.f32 %v3001, %v3005
      %v3014 = vld [vmem:[#allocation2 + $0x40] sm:$0xff]
      %v3015 = vlaneseq
      %v3016 = vshrl.u32 %v3015, 7
      %v3017 = vsub.s32 4, %v3016
      %v3018 = vrot.slane %v2938, %v3017
      %v3019 = vmul.f32 %v2962, %v3018
      %v3020 = vmul.f32 %v2963, %v3018
      %v3021 = vmul.f32 %v2964, %v3018
      %v3022 = vmul.f32 %v2965, %v3018
      %v3023 = vmul.f32 %v2966, %v3018
      %v3024 = vmul.f32 %v2967, %v3018
      %v3025 = vmul.f32 %v2968, %v3018
      %v3026 = vmul.f32 %v3014, %v3018
      %v3027 = vld [vmem:[#allocation4 + $0x40] sm:$0xff]
      %v3028 = vlaneseq
      %v3029 = vshrl.u32 %v3028, 7
      %v3030 = vsub.s32 5, %v3029
      %v3031 = vrot.slane %v2938, %v3030
      %v3032 = vmul.f32 %v2982, %v3031
      %v3033 = vmul.f32 %v2983, %v3031
      %v3034 = vmul.f32 %v2984, %v3031
      %v3035 = vmul.f32 %v2985, %v3031
      %v3036 = vmul.f32 %v2986, %v3031
      %v3037 = vmul.f32 %v2987, %v3031
      %v3038 = vmul.f32 %v2988, %v3031
      %v3039 = vmul.f32 %v3027, %v3031
      %v3040 = vadd.f32 %v2953, %v3006
      %v3041 = vadd.f32 %v2954, %v3007
      %v3042 = vadd.f32 %v2955, %v3008
      %v3043 = vadd.f32 %v2956, %v3009
      %v3044 = vadd.f32 %v2957, %v3010
      %v3045 = vadd.f32 %v2958, %v3011
      %v3046 = vadd.f32 %v2959, %v3012
      %v3047 = vadd.f32 %v2960, %v3013
      %v3048 = vadd.f32 %v2973, %v3019
      %v3049 = vadd.f32 %v2974, %v3020
      %v3050 = vadd.f32 %v2975, %v3021
      %v3051 = vadd.f32 %v2976, %v3022
      %v3052 = vadd.f32 %v2977, %v3023
      %v3053 = vadd.f32 %v2978, %v3024
      %v3054 = vadd.f32 %v2979, %v3025
      %v3055 = vadd.f32 %v2980, %v3026
      %v3056 = vadd.f32 %v2993, %v3032
      %v3057 = vadd.f32 %v2994, %v3033
      %v3058 = vadd.f32 %v2995, %v3034
      %v3059 = vadd.f32 %v2996, %v3035
      %v3060 = vadd.f32 %v2997, %v3036
      %v3061 = vadd.f32 %v2998, %v3037
      %v3062 = vadd.f32 %v2999, %v3038
      %v3063 = vadd.f32 %v3000, %v3039
      %v3064 = vld [vmem:[#allocation3 + $0x10] sm:$0xff]
      %v3065 = vld [vmem:[#allocation3 + $0x18] sm:$0xff]
      %v3066 = vld [vmem:[#allocation3 + $0x20] sm:$0xff]
      %v3067 = vld [vmem:[#allocation3 + $0x28] sm:$0xff]
      %v3068 = vld [vmem:[#allocation3 + $0x30] sm:$0xff]
      %v3069 = vld [vmem:[#allocation3 + $0x38] sm:$0xff]
      %v3070 = vld [vmem:[#allocation3 + $0x40] sm:$0xff]
      %v3071 = vld [vmem:[#allocation3 + $0x48] sm:$0xff]
      %v3072 = vlaneseq
      %v3073 = vshrl.u32 %v3072, 7
      %v3074 = vsub.s32 6, %v3073
      %v3075 = vrot.slane %v2938, %v3074
      %v3076 = vmul.f32 %v3064, %v3075
      %v3077 = vmul.f32 %v3065, %v3075
      %v3078 = vmul.f32 %v3066, %v3075
      %v3079 = vmul.f32 %v3067, %v3075
      %v3080 = vmul.f32 %v3068, %v3075
      %v3081 = vmul.f32 %v3069, %v3075
      %v3082 = vmul.f32 %v3070, %v3075
      %v3083 = vmul.f32 %v3071, %v3075
      %v3084 = vld [vmem:[#allocation2 + $0x10] sm:$0xff]
      %v3085 = vld [vmem:[#allocation2 + $0x18] sm:$0xff]
      %v3086 = vld [vmem:[#allocation2 + $0x20] sm:$0xff]
      %v3087 = vld [vmem:[#allocation2 + $0x28] sm:$0xff]
      %v3088 = vld [vmem:[#allocation2 + $0x30] sm:$0xff]
      %v3089 = vld [vmem:[#allocation2 + $0x38] sm:$0xff]
      %v3090 = vld [vmem:[#allocation2 + $0x40] sm:$0xff]
      %v3091 = vld [vmem:[#allocation2 + $0x48] sm:$0xff]
      %v3092 = vlaneseq
      %v3093 = vshrl.u32 %v3092, 7
      %v3094 = vsub.s32 7, %v3093
      %v3095 = vrot.slane %v2938, %v3094
      %v3096 = vmul.f32 %v3084, %v3095
      %v3097 = vmul.f32 %v3085, %v3095
      %v3098 = vmul.f32 %v3086, %v3095
      %v3099 = vmul.f32 %v3087, %v3095
      %v3100 = vmul.f32 %v3088, %v3095
      %v3101 = vmul.f32 %v3089, %v3095
      %v3102 = vmul.f32 %v3090, %v3095
      %v3103 = vmul.f32 %v3091, %v3095
      %v3104 = vld [vmem:[#allocation4 + $0x10] sm:$0xff]
      %v3105 = vld [vmem:[#allocation4 + $0x18] sm:$0xff]
      %v3106 = vld [vmem:[#allocation4 + $0x20] sm:$0xff]
      %v3107 = vld [vmem:[#allocation4 + $0x28] sm:$0xff]
      %v3108 = vld [vmem:[#allocation4 + $0x30] sm:$0xff]
      %v3109 = vld [vmem:[#allocation4 + $0x38] sm:$0xff]
      %v3110 = vld [vmem:[#allocation4 + $0x40] sm:$0xff]
      %v3111 = vld [vmem:[#allocation4 + $0x48] sm:$0xff]
      %v3112 = vlaneseq
      %v3113 = vshrl.u32 %v3112, 7
      %v3114 = vsub.s32 0, %v3113
      %v3115 = vrot.slane %v2939, %v3114
      %v3116 = vmul.f32 %v3104, %v3115
      %v3117 = vmul.f32 %v3105, %v3115
      %v3118 = vmul.f32 %v3106, %v3115
      %v3119 = vmul.f32 %v3107, %v3115
      %v3120 = vmul.f32 %v3108, %v3115
      %v3121 = vmul.f32 %v3109, %v3115
      %v3122 = vmul.f32 %v3110, %v3115
      %v3123 = vmul.f32 %v3111, %v3115
      %v3124 = vadd.f32 %v3040, %v3076
      %v3125 = vadd.f32 %v3041, %v3077
      %v3126 = vadd.f32 %v3042, %v3078
      %v3127 = vadd.f32 %v3043, %v3079
      %v3128 = vadd.f32 %v3044, %v3080
      %v3129 = vadd.f32 %v3045, %v3081
      %v3130 = vadd.f32 %v3046, %v3082
      %v3131 = vadd.f32 %v3047, %v3083
      %v3132 = vadd.f32 %v3048, %v3096
      %v3133 = vadd.f32 %v3049, %v3097
      %v3134 = vadd.f32 %v3050, %v3098
      %v3135 = vadd.f32 %v3051, %v3099
      %v3136 = vadd.f32 %v3052, %v3100
      %v3137 = vadd.f32 %v3053, %v3101
      %v3138 = vadd.f32 %v3054, %v3102
      %v3139 = vadd.f32 %v3055, %v3103
      %v3140 = vadd.f32 %v3056, %v3116
      %v3141 = vadd.f32 %v3057, %v3117
      %v3142 = vadd.f32 %v3058, %v3118
      %v3143 = vadd.f32 %v3059, %v3119
      %v3144 = vadd.f32 %v3060, %v3120
      %v3145 = vadd.f32 %v3061, %v3121
      %v3146 = vadd.f32 %v3062, %v3122
      %v3147 = vadd.f32 %v3063, %v3123
      %v3148 = vmul.f32 %v3124, %v990
      %v3149 = vmul.f32 %v3125, %v995
      %v3150 = vmul.f32 %v3126, %v1000
      %v3151 = vmul.f32 %v3127, %v1005
      %v3152 = vmul.f32 %v3128, %v1010
      %v3153 = vmul.f32 %v3129, %v1015
      %v3154 = vmul.f32 %v3130, %v1020
      %v3155 = vmul.f32 %v3131, %v1025
      %v3156 = vadd.f32 %v3148, %v3132
      %v3157 = vadd.f32 %v3149, %v3133
      %v3158 = vadd.f32 %v3150, %v3134
      %v3159 = vadd.f32 %v3151, %v3135
      %v3160 = vadd.f32 %v3152, %v3136
      %v3161 = vadd.f32 %v3153, %v3137
      %v3162 = vadd.f32 %v3154, %v3138
      %v3163 = vadd.f32 %v3155, %v3139
      %v3164 = vmul.f32 %v3140, %v1046
      %v3165 = vmul.f32 %v3141, %v1051
      %v3166 = vmul.f32 %v3142, %v1056
      %v3167 = vmul.f32 %v3143, %v1061
      %v3168 = vmul.f32 %v3144, %v1066
      %v3169 = vmul.f32 %v3145, %v1071
      %v3170 = vmul.f32 %v3146, %v1076
      %v3171 = vmul.f32 %v3147, %v1081
      %v3172 = vadd.f32 %v3156, %v3164
      %v3173 = vadd.f32 %v3157, %v3165
      %v3174 = vadd.f32 %v3158, %v3166
      %v3175 = vadd.f32 %v3159, %v3167
      %v3176 = vadd.f32 %v3160, %v3168
      %v3177 = vadd.f32 %v3161, %v3169
      %v3178 = vadd.f32 %v3162, %v3170
      %v3179 = vadd.f32 %v3163, %v3171
      %v3181 = vlaneseq
      %v3182 = vshrl.u32 %v3181, 7
      %v3183 = vsub.s32 0, %v3182
      %v3184 = vrot.slane %v2940, %v3183
      %v3186 = vadd.f32 %v3172, %v3184
      %v3187 = vadd.f32 %v3173, %v3184
      %v3188 = vadd.f32 %v3174, %v3184
      %v3189 = vadd.f32 %v3175, %v3184
      %v3190 = vadd.f32 %v3176, %v3184
      %v3191 = vadd.f32 %v3177, %v3184
      %v3192 = vadd.f32 %v3178, %v3184
      %v3193 = vadd.f32 %v3179, %v3184
      %v3194 = vadd.f32 %v2906, %v3186
      %v3195 = vadd.f32 %v2907, %v3187
      %v3196 = vadd.f32 %v2908, %v3188
      %v3197 = vadd.f32 %v2909, %v3189
      %v3198 = vadd.f32 %v2910, %v3190
      %v3199 = vadd.f32 %v2911, %v3191
      %v3200 = vadd.f32 %v2912, %v3192
      %v3201 = vadd.f32 %v2913, %v3193
      %v3202 = vpack.c.bf16 %v3195, %v3194
      %v3203 = vpack.c.bf16 %v3197, %v3196
      %v3204 = vpack.c.bf16 %v3199, %v3198
      %v3205 = vpack.c.bf16 %v3201, %v3200
      %v3210 = vunpack.c.l.b16 %v3202
      %v3211 = vunpack.c.h.b16 %v3202
      %v3212 = vunpack.c.l.b16 %v3203
      %v3213 = vunpack.c.h.b16 %v3203
      %v3214 = vunpack.c.l.b16 %v3204
      %v3215 = vunpack.c.h.b16 %v3204
      %v3216 = vunpack.c.l.b16 %v3205
      %v3217 = vunpack.c.h.b16 %v3205
      %v3218 = vpack.c.b16 %v3210, %v3210
      %v3219 = vpack.c.b16 %v3211, %v3211
      %v3220 = vpack.c.b16 %v3212, %v3212
      %v3221 = vpack.c.b16 %v3213, %v3213
      %v3222 = vpack.c.b16 %v3214, %v3214
      %v3223 = vpack.c.b16 %v3215, %v3215
      %v3224 = vpack.c.b16 %v3216, %v3216
      %v3225 = vpack.c.b16 %v3217, %v3217
      %3234 = vst [vmem:[%s669] sm:$0xf] %v3218
      %3235 = vst [vmem:[%s669 + $0x4] sm:$0xf] %v3219
      %3236 = vst [vmem:[%s669 + $0x8] sm:$0xf] %v3220
      %3237 = vst [vmem:[%s669 + $0xc] sm:$0xf] %v3221
      %3238 = vst [vmem:[%s669 + $0x10] sm:$0xf] %v3222
      %3239 = vst [vmem:[%s669 + $0x14] sm:$0xf] %v3223
      %3240 = vst [vmem:[%s669 + $0x18] sm:$0xf] %v3224
      %3241 = vst [vmem:[%s669 + $0x1c] sm:$0xf] %v3225
      %p3242 = scmp.lt.s32.totalorder %s31, 1
      %s3243 = scalar_select %p3242, %s31, 1
      %s3244 = smul.addr %s3243, 8
      %s3245 = smul.addr %s3244, 4
      %s3246 = scalar_lea.vmem %s20, %s3245
      // Predicated region
      $region105: #{mlla_block_forward.6} parent=99 // pred_check
        %p3247 = pneg %p484
      $region106: #{mlla_block_forward.6} parent=99 // pred_check_branch
        %3249 = sbr.rel (%p3247) target = $region108
      $region107: #{mlla_block_forward.6} parent=99 // pred_region
        _
      $region108: #{mlla_block_forward.6} parent=99 // pred_fallthru
        _
    $region100: #{mlla_block_forward.6} parent=5 // pred_fallthru
      _
    %p3250 = scmp.le.s32.totalorder 2, %s26
    // Predicated region
    $region109: #{mlla_block_forward.6} parent=5 // pred_check
      %p3251 = pneg %p3250
    $region110: #{mlla_block_forward.6} parent=5 // pred_check_branch
      %3253 = sbr.rel (%p3251) target = $region112
    $region111: #{mlla_block_forward.6} parent=5 // pred_region
      %s3254 = ssub.s32 %s26, 2
      // Predicated region
      $region113: #{mlla_block_forward.6} parent=111 // pred_check
        %p3255 = pneg %p490
      $region114: #{mlla_block_forward.6} parent=111 // pred_check_branch
        %3257 = sbr.rel (%p3255) target = $region116
      $region115: #{mlla_block_forward.6} parent=111 // pred_region
        %p3258 = scmp.lt.s32.totalorder %s32, 1
        %s3259 = scalar_select %p3258, %s32, 1
        %s3260 = smul.addr %s3259, 8
        %s3261 = smul.addr %s3260, 4
        %s3262 = scalar_lea.vmem %s20, %s3261
      $region116: #{mlla_block_forward.6} parent=111 // pred_fallthru
        _
    $region112: #{mlla_block_forward.6} parent=5 // pred_fallthru
      _
  $region6: #{mlla_block_forward.6} parent=0 // loop_footer
    %s30 = sadd.s32 1, %s26
  $region7: #{mlla_block_forward.6} parent=0 // loop_footer_branch
    %25 = sbr.rel target = $region3
  $region8: #{mlla_block_forward.6} parent=0 // loop_exit
    _

</llo_original>
